<compile_context>
chip_gen: v5e
topology: v5e:2x2
jax: 0.10.0
libtpu: 0.0.40
codegen_flags: <defaults>
</compile_context>

<pallas_src>
import jax
import jax.numpy as jnp
from jax.experimental import pallas as pl
from jax.experimental.pallas import tpu as pltpu

NEG_SLOPE = 0.01            # nn.LeakyReLU default
EPS = 1e-5                  # nn.InstanceNorm3d default


def _vmem_limit_bytes():
    # Review guidance: ~96-110 MiB on v5e/v6e (128 MiB physical), <= ~48 MiB on v7x (64 MiB).
    try:
        cap = pltpu.get_tpu_info().vmem_capacity_bytes
        return int(min(cap * 3 // 4, 110 * 1024 * 1024))
    except Exception:
        return 64 * 1024 * 1024


VMEM_LIMIT = _vmem_limit_bytes()


# ---------------------------------------------------------------------------
# Kernel 1: ConvTranspose3d(k=2, s=2) has no output overlap, so over the whole batch it is a
# single lane-dense matmul:  (8*Cout, Cin) x (Cin, N*D1*H1*W1) + bias,  output in bf16.
# ---------------------------------------------------------------------------
def _up_matmul_kernel(x_ref, w_ref, b_ref, o_ref):
    # x_ref: (Cin, N*M1) bf16   w_ref: (8*Cout, Cin) bf16   b_ref: (8*Cout, 1) f32
    y = jnp.dot(w_ref[...], x_ref[...], preferred_element_type=jnp.float32)
    o_ref[...] = (y + b_ref[...]).astype(o_ref.dtype)


def conv_transpose_matmul(x2d, w2d, b_col):
    R, _ = w2d.shape
    L = x2d.shape[1]
    return pl.pallas_call(
        _up_matmul_kernel,
        out_shape=jax.ShapeDtypeStruct((R, L), jnp.bfloat16),
        compiler_params=pltpu.CompilerParams(vmem_limit_bytes=VMEM_LIMIT),
    )(x2d, w2d, b_col)


# ---------------------------------------------------------------------------
# Kernel 2: fully fused DoubleConv.
#   input  : (N, Cin1, Mp)  flattened zero-padded concat slab, Mp = (D+2)(H+2)(W+2), bf16
#   output : (N, Cout, Mc)  "corner" layout (valid columns extracted by the wrapper), f32
# Per sample:
#   conv1: acc = sum_t W1[t] @ x[:, off_t : off_t+Mc]      (27 lane-shifted MXU matmuls)
#   masked one-pass InstanceNorm + affine + LeakyReLU
#   the masked activation is stored (bf16) into a VMEM scratch at a lane-aligned offset so the
#   scratch IS conv2's zero-padded input; conv2 repeats the same 27-tap accumulation + norm.
# ---------------------------------------------------------------------------
def fused_double_conv(xf, mask, w1, g1, b1, w2, g2, b2, spatial):
    N, Cin1, Mp = xf.shape
    Cout = w1.shape[1]
    D, H, W = spatial
    Hp, Wp = H + 2, W + 2
    assert Mp == (D + 2) * Hp * Wp

    maxoff = 2 * Hp * Wp + 2 * Wp + 2
    Mc = Mp - maxoff                                   # computed (corner-layout) columns
    shift = Hp * Wp + Wp + 1                           # corner -> centered re-pad offset
    offs1 = tuple(kd * Hp * Wp + kh * Wp + kw
                  for kd in range(3) for kh in range(3) for kw in range(3))
    # place conv1 output at a lane-aligned scratch offset (unmasked leading stores)
    p2_off = ((shift + 127) // 128) * 128
    delta = p2_off - shift
    offs2 = tuple(o + delta for o in offs1)
    p2_len = ((max(p2_off, max(offs2)) + Mc + 127) // 128) * 128
    inv_cnt = 1.0 / float(D * H * W)

    def kernel(x_ref, m_ref, w1_ref, g1_ref, b1_ref, w2_ref, g2_ref, b2_ref,
               o_ref, p2_ref):
        x = x_ref[0]                                   # (Cin1, Mp) bf16
        msk = m_ref[...]                               # (1, Mc) f32 (1 = valid output column)

        def conv_in_lrelu(src, w_ref, g_ref, be_ref, offs):
            # 27-tap accumulation: each tap is a static lane-offset slice + MXU matmul.
            acc = jnp.dot(w_ref[0], src[:, offs[0]:offs[0] + Mc],
                          preferred_element_type=jnp.float32)
            for t in range(1, 27):
                o = offs[t]
                acc = acc + jnp.dot(w_ref[t], src[:, o:o + Mc],
                                    preferred_element_type=jnp.float32)
            # one-pass masked InstanceNorm stats (sum & sum-of-squares over valid columns)
            accm = acc * msk
            mean = jnp.sum(accm, axis=1, keepdims=True) * inv_cnt
            ex2 = jnp.sum(accm * acc, axis=1, keepdims=True) * inv_cnt
            var = jnp.maximum(ex2 - mean * mean, 0.0)
            y = (acc - mean) * jax.lax.rsqrt(var + EPS)
            y = y * g_ref[...] + be_ref[...]
            return jnp.where(y >= 0, y, NEG_SLOPE * y)                 # LeakyReLU

        # conv1 + InstanceNorm + LeakyReLU; zero the invalid columns so the scratch is a
        # correctly zero-padded input for conv2.
        y1 = conv_in_lrelu(x, w1_ref, g1_ref, b1_ref, offs1) * msk     # (Cout, Mc) f32
        p2_ref[...] = jnp.zeros((Cout, p2_len), jnp.bfloat16)
        p2_ref[:, p2_off:p2_off + Mc] = y1.astype(jnp.bfloat16)

        # conv2 + InstanceNorm + LeakyReLU, reading the VMEM-resident activation.
        y2 = conv_in_lrelu(p2_ref[...], w2_ref, g2_ref, b2_ref, offs2)
        o_ref[...] = y2[None].astype(o_ref.dtype)

    # TODO(synk): for production UNet volumes add spatial (M) tiling + two-pass stats so the
    # per-step block fits v7x's 64 MiB VMEM; whole-sample blocks are fine at these sizes.
    return pl.pallas_call(
        kernel,
        out_shape=jax.ShapeDtypeStruct((N, Cout, Mc), jnp.float32),
        grid=(N,),
        in_specs=[
            pl.BlockSpec((1, Cin1, Mp), lambda n: (n, 0, 0)),
            pl.BlockSpec((1, Mc), lambda n: (0, 0)),
            pl.BlockSpec((27, Cout, Cin1), lambda n: (0, 0, 0)),
            pl.BlockSpec((Cout, 1), lambda n: (0, 0)),
            pl.BlockSpec((Cout, 1), lambda n: (0, 0)),
            pl.BlockSpec((27, Cout, Cout), lambda n: (0, 0, 0)),
            pl.BlockSpec((Cout, 1), lambda n: (0, 0)),
            pl.BlockSpec((Cout, 1), lambda n: (0, 0)),
        ],
        out_specs=pl.BlockSpec((1, Cout, Mc), lambda n: (n, 0, 0)),
        scratch_shapes=[pltpu.VMEM((Cout, p2_len), jnp.bfloat16)],
        compiler_params=pltpu.CompilerParams(
            dimension_semantics=("parallel",),
            vmem_limit_bytes=VMEM_LIMIT),
    )(xf, mask, w1, g1, b1, w2, g2, b2)


# ---------------------------------------------------------------------------
# Wrapper-side helpers (cheap XLA glue).
# ---------------------------------------------------------------------------
def _pad_for_concat_and_conv(x, tgt_spatial):
    # torch F.pad(..., diff//2, diff-diff//2, ...) to match x3 (negative diffs crop), FUSED with
    # the +1 zero padding of the following Conv3d(padding=1)  ->  one lax.pad per tensor.
    cfg = [(0, 0, 0), (0, 0, 0)]
    for ax in range(3):
        diff = tgt_spatial[ax] - x.shape[2 + ax]
        cfg.append((diff // 2 + 1, diff - diff // 2 + 1, 0))
    return jax.lax.pad(x, jnp.array(0, x.dtype), cfg)


# ---------------------------------------------------------------------------
# Parameters (deterministic synthetic init, kernel-friendly layouts) + forward.
# ---------------------------------------------------------------------------
def init_params(key, in_channels, out_channels):
    ks = jax.random.split(key, 6)
    co = out_channels
    return {
        # ConvTranspose3d(in, out, k=2, s=2): tap-major (2,2,2,Cout,Cin).
        # NOTE: PyTorch stores (Cin, Cout, 2,2,2); real checkpoints need a permute first.
        "up_w": 0.1 * jax.random.normal(ks[0], (2, 2, 2, co, in_channels), jnp.float32),
        "up_b": 0.1 * jax.random.normal(ks[1], (co,), jnp.float32),
        # Conv3d(3*out, out, 3, pad=1): tap-major (27, Cout, Cin); tap = kd*9 + kh*3 + kw.
        # (PyTorch (Cout,Cin,3,3,3) -> transpose(2,3,4,0,1).reshape(27,Cout,Cin) when porting.)
        "c1_w": 0.1 * jax.random.normal(ks[2], (27, co, 3 * co), jnp.float32),
        "c1_b": 0.1 * jax.random.normal(ks[3], (co,), jnp.float32),   # cancelled by InstanceNorm
        "in1_g": jnp.ones((co,), jnp.float32),
        "in1_b": jnp.zeros((co,), jnp.float32),
        # Conv3d(out, out, 3, pad=1)
        "c2_w": 0.1 * jax.random.normal(ks[4], (27, co, co), jnp.float32),
        "c2_b": 0.1 * jax.random.normal(ks[5], (co,), jnp.float32),   # cancelled by InstanceNorm
        "in2_g": jnp.ones((co,), jnp.float32),
        "in2_b": jnp.zeros((co,), jnp.float32),
    }


def upp_forward(params, x1, x2, x3):
    # Everything stays channel-major NCDHW — matching the kernels' channels-on-sublanes /
    # flattened-spatial-on-lanes layout, so no NDHWC boundary transposes.
    N, Cin, D1, H1, W1 = x1.shape
    Cout = params["up_w"].shape[3]
    M1 = D1 * H1 * W1

    # --- ConvTranspose3d(k=2, s=2): ONE lane-dense matmul over the whole batch (bf16 out) ---
    x1_2d = jnp.transpose(x1.reshape(N, Cin, M1), (1, 0, 2)).reshape(Cin, N * M1)
    x1_2d = x1_2d.astype(jnp.bfloat16)
    w_up = params["up_w"].reshape(8 * Cout, Cin).astype(jnp.bfloat16)
    b_up = jnp.tile(params["up_b"], 8).reshape(8 * Cout, 1)
    y = conv_transpose_matmul(x1_2d, w_up, b_up)             # (8*Cout, N*M1) bf16
    # 2x2x2 tap interleave back to spatial (bf16 halves its bytes).
    # TODO(synk): fold these tap offsets into the fused kernel's indexing instead.
    y = y.reshape(2, 2, 2, Cout, N, D1, H1, W1)
    y = jnp.transpose(y, (4, 3, 5, 0, 6, 1, 7, 2))           # (N, C, D1,2, H1,2, W1,2)
    x1u = y.reshape(N, Cout, 2 * D1, 2 * H1, 2 * W1)

    # --- F.pad-to-x3 + conv zero-pad (fused), channel concat, flatten padded spatial ---
    D, H, W = x3.shape[2:]
    x3p = _pad_for_concat_and_conv(x3.astype(jnp.bfloat16), (D, H, W))
    x2p = _pad_for_concat_and_conv(x2.astype(jnp.bfloat16), (D, H, W))
    x1p = _pad_for_concat_and_conv(x1u, (D, H, W))
    x = jnp.concatenate([x3p, x2p, x1p], axis=1)             # (N, 3*Cout, D+2, H+2, W+2) bf16
    Dp, Hp, Wp = D + 2, H + 2, W + 2
    Mp = Dp * Hp * Wp
    xf = x.reshape(N, 3 * Cout, Mp)

    # validity mask for the fused kernel's "corner" output layout (guards InstanceNorm stats)
    Mc = Mp - (2 * Hp * Wp + 2 * Wp + 2)
    idx = jnp.arange(Mc, dtype=jnp.int32)
    a = idx // (Hp * Wp)
    r = idx % (Hp * Wp)
    mask = ((a < D) & ((r // Wp) < H) & ((r % Wp) < W)).astype(jnp.float32)[None, :]

    # --- fused DoubleConv (conv+IN+LReLU x2) — single kernel, no im2col, no HBM intermediates ---
    out_slab = fused_double_conv(
        xf, mask,
        params["c1_w"].astype(jnp.bfloat16),
        params["in1_g"].reshape(Cout, 1), params["in1_b"].reshape(Cout, 1),
        params["c2_w"].astype(jnp.bfloat16),
        params["in2_g"].reshape(Cout, 1), params["in2_b"].reshape(Cout, 1),
        (D, H, W))                                            # (N, Cout, Mc) f32

    # --- extract the valid columns of the corner layout back to dense (N, Cout, D, H, W) ---
    out_full = jnp.pad(out_slab, ((0, 0), (0, 0), (0, D * Hp * Wp - Mc)))
    out = out_full.reshape(N, Cout, D, Hp, Wp)[:, :, :, :H, :W]
    return out                                                # NCDHW, f32


if __name__ == "__main__":
    key = jax.random.PRNGKey(0)
    k1, k2, k3, kp = jax.random.split(key, 4)

    in_ch, out_ch, N = 8, 4, 2
    # x1 is the coarse feature map (in_ch channels), x2/x3 are skip connections (out_ch channels).
    x1 = jax.random.normal(k1, (N, in_ch, 4, 4, 4), jnp.float32)   # upsampled to (8,8,8)
    x2 = jax.random.normal(k2, (N, out_ch, 6, 6, 6), jnp.float32)  # padded to (8,8,8)
    x3 = jax.random.normal(k3, (N, out_ch, 8, 8, 8), jnp.float32)

    params = init_params(kp, in_ch, out_ch)

    out = jax.jit(upp_forward)(params, x1, x2, x3)
    out = jax.block_until_ready(out)

    assert out.shape == (N, out_ch, 8, 8, 8), out.shape
    assert bool(jnp.all(jnp.isfinite(out)))
    print("KERNEL_OK")
</pallas_src>

<mosaic_0001>
module attributes {stable_mosaic.version = 11 : i64} {
  func.func @_up_matmul_kernel(%arg0: memref<8x128xbf16, #tpu.memory_space<vmem>>, %arg1: memref<32x8xbf16, #tpu.memory_space<vmem>>, %arg2: memref<32x1xf32, #tpu.memory_space<vmem>>, %arg3: memref<32x128xbf16, #tpu.memory_space<vmem>>) attributes {dimension_semantics = [], scalar_prefetch = 0 : i64, scratch_operands = 0 : i64, tpu.core_type = #tpu.core_type<tc>} {
    %c0 = arith.constant 0 : index
    %c0_0 = arith.constant 0 : index
    %0 = vector.load %arg1[%c0, %c0_0] : memref<32x8xbf16, #tpu.memory_space<vmem>>, vector<32x8xbf16>
    %c0_1 = arith.constant 0 : index
    %c0_2 = arith.constant 0 : index
    %1 = vector.load %arg0[%c0_1, %c0_2] : memref<8x128xbf16, #tpu.memory_space<vmem>>, vector<8x128xbf16>
    %cst = arith.constant dense<0.000000e+00> : vector<32x128xf32>
    %2 = tpu.matmul %0, %1, %cst {dimension_numbers = #tpu.dot_dimension_numbers<[1], [0], [0], [1], [0, 0, 1, 1], [], []>} : vector<32x8xbf16>, vector<8x128xbf16>, vector<32x128xf32> -> vector<32x128xf32>
    %c0_3 = arith.constant 0 : index
    %c0_4 = arith.constant 0 : index
    %3 = vector.load %arg2[%c0_3, %c0_4] : memref<32x1xf32, #tpu.memory_space<vmem>>, vector<32x1xf32>
    %4 = vector.broadcast %3 : vector<32x1xf32> to vector<32x128xf32>
    %5 = arith.addf %2, %4 : vector<32x128xf32>
    %6 = arith.truncf %5 : vector<32x128xf32> to vector<32x128xbf16>
    %c0_5 = arith.constant 0 : index
    %c0_6 = arith.constant 0 : index
    %7 = vector.load %arg3[%c0_5, %c0_6] : memref<32x128xbf16, #tpu.memory_space<vmem>>, vector<32x128xbf16>
    tpu.vector_store %arg3[%c0_5, %c0_6], %6 {strides = array<i32>} : memref<32x128xbf16, #tpu.memory_space<vmem>>, vector<32x128xbf16>,
    return
  }
}

module attributes {stable_mosaic.version = 11 : i64} {
  func.func @kernel(%arg0: i32, %arg1: memref<1x12x1000xbf16, #tpu.memory_space<vmem>>, %arg2: memref<1x778xf32, #tpu.memory_space<vmem>>, %arg3: memref<27x4x12xbf16, #tpu.memory_space<vmem>>, %arg4: memref<4x1xf32, #tpu.memory_space<vmem>>, %arg5: memref<4x1xf32, #tpu.memory_space<vmem>>, %arg6: memref<27x4x4xbf16, #tpu.memory_space<vmem>>, %arg7: memref<4x1xf32, #tpu.memory_space<vmem>>, %arg8: memref<4x1xf32, #tpu.memory_space<vmem>>, %arg9: memref<1x4x778xf32, #tpu.memory_space<vmem>>, %arg10: memref<4x1024xbf16, #tpu.memory_space<vmem>>) attributes {dimension_semantics = [#tpu.dimension_semantics<parallel>], iteration_bounds = array<i64: 2>, scalar_prefetch = 0 : i64, scratch_operands = 1 : i64, tpu.core_type = #tpu.core_type<tc>, window_params = [{transform_indices = @transform_0, window_bounds = array<i64: 1, 12, 1000>}, {pipeline_mode = #tpu.pipeline_mode<synchronous>, transform_indices = @transform_1, window_bounds = array<i64: 1, 778>}, {pipeline_mode = #tpu.pipeline_mode<synchronous>, transform_indices = @transform_2, window_bounds = array<i64: 27, 4, 12>}, {pipeline_mode = #tpu.pipeline_mode<synchronous>, transform_indices = @transform_3, window_bounds = array<i64: 4, 1>}, {pipeline_mode = #tpu.pipeline_mode<synchronous>, transform_indices = @transform_4, window_bounds = array<i64: 4, 1>}, {pipeline_mode = #tpu.pipeline_mode<synchronous>, transform_indices = @transform_5, window_bounds = array<i64: 27, 4, 4>}, {pipeline_mode = #tpu.pipeline_mode<synchronous>, transform_indices = @transform_6, window_bounds = array<i64: 4, 1>}, {pipeline_mode = #tpu.pipeline_mode<synchronous>, transform_indices = @transform_7, window_bounds = array<i64: 4, 1>}, {transform_indices = @transform_8, window_bounds = array<i64: 1, 4, 778>}]} {
    %c0 = arith.constant 0 : index
    %c0_0 = arith.constant 0 : index
    %c0_1 = arith.constant 0 : index
    %0 = vector.load %arg1[%c0, %c0_0, %c0_1] : memref<1x12x1000xbf16, #tpu.memory_space<vmem>>, vector<1x12x1000xbf16>
    %1 = vector.shape_cast %0 : vector<1x12x1000xbf16> to vector<12x1000xbf16>
    %c0_2 = arith.constant 0 : index
    %c0_3 = arith.constant 0 : index
    %2 = vector.load %arg2[%c0_2, %c0_3] : memref<1x778xf32, #tpu.memory_space<vmem>>, vector<1x778xf32>
    %c0_4 = arith.constant 0 : index
    %c0_5 = arith.constant 0 : index
    %c0_6 = arith.constant 0 : index
    %3 = vector.load %arg3[%c0_4, %c0_5, %c0_6] : memref<27x4x12xbf16, #tpu.memory_space<vmem>>, vector<1x4x12xbf16>
    %4 = vector.shape_cast %3 : vector<1x4x12xbf16> to vector<4x12xbf16>
    %5 = vector.extract_strided_slice %1 {offsets = [0, 0], sizes = [12, 778], strides = [1, 1]} : vector<12x1000xbf16> to vector<12x778xbf16>
    %cst = arith.constant dense<0.000000e+00> : vector<4x778xf32>
    %6 = tpu.matmul %4, %5, %cst {dimension_numbers = #tpu.dot_dimension_numbers<[1], [0], [0], [1], [0, 0, 1, 1], [], []>} : vector<4x12xbf16>, vector<12x778xbf16>, vector<4x778xf32> -> vector<4x778xf32>
    %c1 = arith.constant 1 : index
    %c0_7 = arith.constant 0 : index
    %c0_8 = arith.constant 0 : index
    %7 = vector.load %arg3[%c1, %c0_7, %c0_8] : memref<27x4x12xbf16, #tpu.memory_space<vmem>>, vector<1x4x12xbf16>
    %8 = vector.shape_cast %7 : vector<1x4x12xbf16> to vector<4x12xbf16>
    %9 = vector.extract_strided_slice %1 {offsets = [0, 1], sizes = [12, 778], strides = [1, 1]} : vector<12x1000xbf16> to vector<12x778xbf16>
    %cst_9 = arith.constant dense<0.000000e+00> : vector<4x778xf32>
    %10 = tpu.matmul %8, %9, %cst_9 {dimension_numbers = #tpu.dot_dimension_numbers<[1], [0], [0], [1], [0, 0, 1, 1], [], []>} : vector<4x12xbf16>, vector<12x778xbf16>, vector<4x778xf32> -> vector<4x778xf32>
    %11 = arith.addf %6, %10 : vector<4x778xf32>
    %c2 = arith.constant 2 : index
    %c0_10 = arith.constant 0 : index
    %c0_11 = arith.constant 0 : index
    %12 = vector.load %arg3[%c2, %c0_10, %c0_11] : memref<27x4x12xbf16, #tpu.memory_space<vmem>>, vector<1x4x12xbf16>
    %13 = vector.shape_cast %12 : vector<1x4x12xbf16> to vector<4x12xbf16>
    %14 = vector.extract_strided_slice %1 {offsets = [0, 2], sizes = [12, 778], strides = [1, 1]} : vector<12x1000xbf16> to vector<12x778xbf16>
    %cst_12 = arith.constant dense<0.000000e+00> : vector<4x778xf32>
    %15 = tpu.matmul %13, %14, %cst_12 {dimension_numbers = #tpu.dot_dimension_numbers<[1], [0], [0], [1], [0, 0, 1, 1], [], []>} : vector<4x12xbf16>, vector<12x778xbf16>, vector<4x778xf32> -> vector<4x778xf32>
    %16 = arith.addf %11, %15 : vector<4x778xf32>
    %c3 = arith.constant 3 : index
    %c0_13 = arith.constant 0 : index
    %c0_14 = arith.constant 0 : index
    %17 = vector.load %arg3[%c3, %c0_13, %c0_14] : memref<27x4x12xbf16, #tpu.memory_space<vmem>>, vector<1x4x12xbf16>
    %18 = vector.shape_cast %17 : vector<1x4x12xbf16> to vector<4x12xbf16>
    %19 = vector.extract_strided_slice %1 {offsets = [0, 10], sizes = [12, 778], strides = [1, 1]} : vector<12x1000xbf16> to vector<12x778xbf16>
    %cst_15 = arith.constant dense<0.000000e+00> : vector<4x778xf32>
    %20 = tpu.matmul %18, %19, %cst_15 {dimension_numbers = #tpu.dot_dimension_numbers<[1], [0], [0], [1], [0, 0, 1, 1], [], []>} : vector<4x12xbf16>, vector<12x778xbf16>, vector<4x778xf32> -> vector<4x778xf32>
    %21 = arith.addf %16, %20 : vector<4x778xf32>
    %c4 = arith.constant 4 : index
    %c0_16 = arith.constant 0 : index
    %c0_17 = arith.constant 0 : index
    %22 = vector.load %arg3[%c4, %c0_16, %c0_17] : memref<27x4x12xbf16, #tpu.memory_space<vmem>>, vector<1x4x12xbf16>
    %23 = vector.shape_cast %22 : vector<1x4x12xbf16> to vector<4x12xbf16>
    %24 = vector.extract_strided_slice %1 {offsets = [0, 11], sizes = [12, 778], strides = [1, 1]} : vector<12x1000xbf16> to vector<12x778xbf16>
    %cst_18 = arith.constant dense<0.000000e+00> : vector<4x778xf32>
    %25 = tpu.matmul %23, %24, %cst_18 {dimension_numbers = #tpu.dot_dimension_numbers<[1], [0], [0], [1], [0, 0, 1, 1], [], []>} : vector<4x12xbf16>, vector<12x778xbf16>, vector<4x778xf32> -> vector<4x778xf32>
    %26 = arith.addf %21, %25 : vector<4x778xf32>
    %c5 = arith.constant 5 : index
    %c0_19 = arith.constant 0 : index
    %c0_20 = arith.constant 0 : index
    %27 = vector.load %arg3[%c5, %c0_19, %c0_20] : memref<27x4x12xbf16, #tpu.memory_space<vmem>>, vector<1x4x12xbf16>
    %28 = vector.shape_cast %27 : vector<1x4x12xbf16> to vector<4x12xbf16>
    %29 = vector.extract_strided_slice %1 {offsets = [0, 12], sizes = [12, 778], strides = [1, 1]} : vector<12x1000xbf16> to vector<12x778xbf16>
    %cst_21 = arith.constant dense<0.000000e+00> : vector<4x778xf32>
    %30 = tpu.matmul %28, %29, %cst_21 {dimension_numbers = #tpu.dot_dimension_numbers<[1], [0], [0], [1], [0, 0, 1, 1], [], []>} : vector<4x12xbf16>, vector<12x778xbf16>, vector<4x778xf32> -> vector<4x778xf32>
    %31 = arith.addf %26, %30 : vector<4x778xf32>
    %c6 = arith.constant 6 : index
    %c0_22 = arith.constant 0 : index
    %c0_23 = arith.constant 0 : index
    %32 = vector.load %arg3[%c6, %c0_22, %c0_23] : memref<27x4x12xbf16, #tpu.memory_space<vmem>>, vector<1x4x12xbf16>
    %33 = vector.shape_cast %32 : vector<1x4x12xbf16> to vector<4x12xbf16>
    %34 = vector.extract_strided_slice %1 {offsets = [0, 20], sizes = [12, 778], strides = [1, 1]} : vector<12x1000xbf16> to vector<12x778xbf16>
    %cst_24 = arith.constant dense<0.000000e+00> : vector<4x778xf32>
    %35 = tpu.matmul %33, %34, %cst_24 {dimension_numbers = #tpu.dot_dimension_numbers<[1], [0], [0], [1], [0, 0, 1, 1], [], []>} : vector<4x12xbf16>, vector<12x778xbf16>, vector<4x778xf32> -> vector<4x778xf32>
    %36 = arith.addf %31, %35 : vector<4x778xf32>
    %c7 = arith.constant 7 : index
    %c0_25 = arith.constant 0 : index
    %c0_26 = arith.constant 0 : index
    %37 = vector.load %arg3[%c7, %c0_25, %c0_26] : memref<27x4x12xbf16, #tpu.memory_space<vmem>>, vector<1x4x12xbf16>
    %38 = vector.shape_cast %37 : vector<1x4x12xbf16> to vector<4x12xbf16>
    %39 = vector.extract_strided_slice %1 {offsets = [0, 21], sizes = [12, 778], strides = [1, 1]} : vector<12x1000xbf16> to vector<12x778xbf16>
    %cst_27 = arith.constant dense<0.000000e+00> : vector<4x778xf32>
    %40 = tpu.matmul %38, %39, %cst_27 {dimension_numbers = #tpu.dot_dimension_numbers<[1], [0], [0], [1], [0, 0, 1, 1], [], []>} : vector<4x12xbf16>, vector<12x778xbf16>, vector<4x778xf32> -> vector<4x778xf32>
    %41 = arith.addf %36, %40 : vector<4x778xf32>
    %c8 = arith.constant 8 : index
    %c0_28 = arith.constant 0 : index
    %c0_29 = arith.constant 0 : index
    %42 = vector.load %arg3[%c8, %c0_28, %c0_29] : memref<27x4x12xbf16, #tpu.memory_space<vmem>>, vector<1x4x12xbf16>
    %43 = vector.shape_cast %42 : vector<1x4x12xbf16> to vector<4x12xbf16>
    %44 = vector.extract_strided_slice %1 {offsets = [0, 22], sizes = [12, 778], strides = [1, 1]} : vector<12x1000xbf16> to vector<12x778xbf16>
    %cst_30 = arith.constant dense<0.000000e+00> : vector<4x778xf32>
    %45 = tpu.matmul %43, %44, %cst_30 {dimension_numbers = #tpu.dot_dimension_numbers<[1], [0], [0], [1], [0, 0, 1, 1], [], []>} : vector<4x12xbf16>, vector<12x778xbf16>, vector<4x778xf32> -> vector<4x778xf32>
    %46 = arith.addf %41, %45 : vector<4x778xf32>
    %c9 = arith.constant 9 : index
    %c0_31 = arith.constant 0 : index
    %c0_32 = arith.constant 0 : index
    %47 = vector.load %arg3[%c9, %c0_31, %c0_32] : memref<27x4x12xbf16, #tpu.memory_space<vmem>>, vector<1x4x12xbf16>
    %48 = vector.shape_cast %47 : vector<1x4x12xbf16> to vector<4x12xbf16>
    %49 = vector.extract_strided_slice %1 {offsets = [0, 100], sizes = [12, 778], strides = [1, 1]} : vector<12x1000xbf16> to vector<12x778xbf16>
    %cst_33 = arith.constant dense<0.000000e+00> : vector<4x778xf32>
    %50 = tpu.matmul %48, %49, %cst_33 {dimension_numbers = #tpu.dot_dimension_numbers<[1], [0], [0], [1], [0, 0, 1, 1], [], []>} : vector<4x12xbf16>, vector<12x778xbf16>, vector<4x778xf32> -> vector<4x778xf32>
    %51 = arith.addf %46, %50 : vector<4x778xf32>
    %c10 = arith.constant 10 : index
    %c0_34 = arith.constant 0 : index
    %c0_35 = arith.constant 0 : index
    %52 = vector.load %arg3[%c10, %c0_34, %c0_35] : memref<27x4x12xbf16, #tpu.memory_space<vmem>>, vector<1x4x12xbf16>
    %53 = vector.shape_cast %52 : vector<1x4x12xbf16> to vector<4x12xbf16>
    %54 = vector.extract_strided_slice %1 {offsets = [0, 101], sizes = [12, 778], strides = [1, 1]} : vector<12x1000xbf16> to vector<12x778xbf16>
    %cst_36 = arith.constant dense<0.000000e+00> : vector<4x778xf32>
    %55 = tpu.matmul %53, %54, %cst_36 {dimension_numbers = #tpu.dot_dimension_numbers<[1], [0], [0], [1], [0, 0, 1, 1], [], []>} : vector<4x12xbf16>, vector<12x778xbf16>, vector<4x778xf32> -> vector<4x778xf32>
    %56 = arith.addf %51, %55 : vector<4x778xf32>
    %c11 = arith.constant 11 : index
    %c0_37 = arith.constant 0 : index
    %c0_38 = arith.constant 0 : index
    %57 = vector.load %arg3[%c11, %c0_37, %c0_38] : memref<27x4x12xbf16, #tpu.memory_space<vmem>>, vector<1x4x12xbf16>
    %58 = vector.shape_cast %57 : vector<1x4x12xbf16> to vector<4x12xbf16>
    %59 = vector.extract_strided_slice %1 {offsets = [0, 102], sizes = [12, 778], strides = [1, 1]} : vector<12x1000xbf16> to vector<12x778xbf16>
    %cst_39 = arith.constant dense<0.000000e+00> : vector<4x778xf32>
    %60 = tpu.matmul %58, %59, %cst_39 {dimension_numbers = #tpu.dot_dimension_numbers<[1], [0], [0], [1], [0, 0, 1, 1], [], []>} : vector<4x12xbf16>, vector<12x778xbf16>, vector<4x778xf32> -> vector<4x778xf32>
    %61 = arith.addf %56, %60 : vector<4x778xf32>
    %c12 = arith.constant 12 : index
    %c0_40 = arith.constant 0 : index
    %c0_41 = arith.constant 0 : index
    %62 = vector.load %arg3[%c12, %c0_40, %c0_41] : memref<27x4x12xbf16, #tpu.memory_space<vmem>>, vector<1x4x12xbf16>
    %63 = vector.shape_cast %62 : vector<1x4x12xbf16> to vector<4x12xbf16>
    %64 = vector.extract_strided_slice %1 {offsets = [0, 110], sizes = [12, 778], strides = [1, 1]} : vector<12x1000xbf16> to vector<12x778xbf16>
    %cst_42 = arith.constant dense<0.000000e+00> : vector<4x778xf32>
    %65 = tpu.matmul %63, %64, %cst_42 {dimension_numbers = #tpu.dot_dimension_numbers<[1], [0], [0], [1], [0, 0, 1, 1], [], []>} : vector<4x12xbf16>, vector<12x778xbf16>, vector<4x778xf32> -> vector<4x778xf32>
    %66 = arith.addf %61, %65 : vector<4x778xf32>
    %c13 = arith.constant 13 : index
    %c0_43 = arith.constant 0 : index
    %c0_44 = arith.constant 0 : index
    %67 = vector.load %arg3[%c13, %c0_43, %c0_44] : memref<27x4x12xbf16, #tpu.memory_space<vmem>>, vector<1x4x12xbf16>
    %68 = vector.shape_cast %67 : vector<1x4x12xbf16> to vector<4x12xbf16>
    %69 = vector.extract_strided_slice %1 {offsets = [0, 111], sizes = [12, 778], strides = [1, 1]} : vector<12x1000xbf16> to vector<12x778xbf16>
    %cst_45 = arith.constant dense<0.000000e+00> : vector<4x778xf32>
    %70 = tpu.matmul %68, %69, %cst_45 {dimension_numbers = #tpu.dot_dimension_numbers<[1], [0], [0], [1], [0, 0, 1, 1], [], []>} : vector<4x12xbf16>, vector<12x778xbf16>, vector<4x778xf32> -> vector<4x778xf32>
    %71 = arith.addf %66, %70 : vector<4x778xf32>
    %c14 = arith.constant 14 : index
    %c0_46 = arith.constant 0 : index
    %c0_47 = arith.constant 0 : index
    %72 = vector.load %arg3[%c14, %c0_46, %c0_47] : memref<27x4x12xbf16, #tpu.memory_space<vmem>>, vector<1x4x12xbf16>
    %73 = vector.shape_cast %72 : vector<1x4x12xbf16> to vector<4x12xbf16>
    %74 = vector.extract_strided_slice %1 {offsets = [0, 112], sizes = [12, 778], strides = [1, 1]} : vector<12x1000xbf16> to vector<12x778xbf16>
    %cst_48 = arith.constant dense<0.000000e+00> : vector<4x778xf32>
    %75 = tpu.matmul %73, %74, %cst_48 {dimension_numbers = #tpu.dot_dimension_numbers<[1], [0], [0], [1], [0, 0, 1, 1], [], []>} : vector<4x12xbf16>, vector<12x778xbf16>, vector<4x778xf32> -> vector<4x778xf32>
    %76 = arith.addf %71, %75 : vector<4x778xf32>
    %c15 = arith.constant 15 : index
    %c0_49 = arith.constant 0 : index
    %c0_50 = arith.constant 0 : index
    %77 = vector.load %arg3[%c15, %c0_49, %c0_50] : memref<27x4x12xbf16, #tpu.memory_space<vmem>>, vector<1x4x12xbf16>
    %78 = vector.shape_cast %77 : vector<1x4x12xbf16> to vector<4x12xbf16>
    %79 = vector.extract_strided_slice %1 {offsets = [0, 120], sizes = [12, 778], strides = [1, 1]} : vector<12x1000xbf16> to vector<12x778xbf16>
    %cst_51 = arith.constant dense<0.000000e+00> : vector<4x778xf32>
    %80 = tpu.matmul %78, %79, %cst_51 {dimension_numbers = #tpu.dot_dimension_numbers<[1], [0], [0], [1], [0, 0, 1, 1], [], []>} : vector<4x12xbf16>, vector<12x778xbf16>, vector<4x778xf32> -> vector<4x778xf32>
    %81 = arith.addf %76, %80 : vector<4x778xf32>
    %c16 = arith.constant 16 : index
    %c0_52 = arith.constant 0 : index
    %c0_53 = arith.constant 0 : index
    %82 = vector.load %arg3[%c16, %c0_52, %c0_53] : memref<27x4x12xbf16, #tpu.memory_space<vmem>>, vector<1x4x12xbf16>
    %83 = vector.shape_cast %82 : vector<1x4x12xbf16> to vector<4x12xbf16>
    %84 = vector.extract_strided_slice %1 {offsets = [0, 121], sizes = [12, 778], strides = [1, 1]} : vector<12x1000xbf16> to vector<12x778xbf16>
    %cst_54 = arith.constant dense<0.000000e+00> : vector<4x778xf32>
    %85 = tpu.matmul %83, %84, %cst_54 {dimension_numbers = #tpu.dot_dimension_numbers<[1], [0], [0], [1], [0, 0, 1, 1], [], []>} : vector<4x12xbf16>, vector<12x778xbf16>, vector<4x778xf32> -> vector<4x778xf32>
    %86 = arith.addf %81, %85 : vector<4x778xf32>
    %c17 = arith.constant 17 : index
    %c0_55 = arith.constant 0 : index
    %c0_56 = arith.constant 0 : index
    %87 = vector.load %arg3[%c17, %c0_55, %c0_56] : memref<27x4x12xbf16, #tpu.memory_space<vmem>>, vector<1x4x12xbf16>
    %88 = vector.shape_cast %87 : vector<1x4x12xbf16> to vector<4x12xbf16>
    %89 = vector.extract_strided_slice %1 {offsets = [0, 122], sizes = [12, 778], strides = [1, 1]} : vector<12x1000xbf16> to vector<12x778xbf16>
    %cst_57 = arith.constant dense<0.000000e+00> : vector<4x778xf32>
    %90 = tpu.matmul %88, %89, %cst_57 {dimension_numbers = #tpu.dot_dimension_numbers<[1], [0], [0], [1], [0, 0, 1, 1], [], []>} : vector<4x12xbf16>, vector<12x778xbf16>, vector<4x778xf32> -> vector<4x778xf32>
    %91 = arith.addf %86, %90 : vector<4x778xf32>
    %c18 = arith.constant 18 : index
    %c0_58 = arith.constant 0 : index
    %c0_59 = arith.constant 0 : index
    %92 = vector.load %arg3[%c18, %c0_58, %c0_59] : memref<27x4x12xbf16, #tpu.memory_space<vmem>>, vector<1x4x12xbf16>
    %93 = vector.shape_cast %92 : vector<1x4x12xbf16> to vector<4x12xbf16>
    %94 = vector.extract_strided_slice %1 {offsets = [0, 200], sizes = [12, 778], strides = [1, 1]} : vector<12x1000xbf16> to vector<12x778xbf16>
    %cst_60 = arith.constant dense<0.000000e+00> : vector<4x778xf32>
    %95 = tpu.matmul %93, %94, %cst_60 {dimension_numbers = #tpu.dot_dimension_numbers<[1], [0], [0], [1], [0, 0, 1, 1], [], []>} : vector<4x12xbf16>, vector<12x778xbf16>, vector<4x778xf32> -> vector<4x778xf32>
    %96 = arith.addf %91, %95 : vector<4x778xf32>
    %c19 = arith.constant 19 : index
    %c0_61 = arith.constant 0 : index
    %c0_62 = arith.constant 0 : index
    %97 = vector.load %arg3[%c19, %c0_61, %c0_62] : memref<27x4x12xbf16, #tpu.memory_space<vmem>>, vector<1x4x12xbf16>
    %98 = vector.shape_cast %97 : vector<1x4x12xbf16> to vector<4x12xbf16>
    %99 = vector.extract_strided_slice %1 {offsets = [0, 201], sizes = [12, 778], strides = [1, 1]} : vector<12x1000xbf16> to vector<12x778xbf16>
    %cst_63 = arith.constant dense<0.000000e+00> : vector<4x778xf32>
    %100 = tpu.matmul %98, %99, %cst_63 {dimension_numbers = #tpu.dot_dimension_numbers<[1], [0], [0], [1], [0, 0, 1, 1], [], []>} : vector<4x12xbf16>, vector<12x778xbf16>, vector<4x778xf32> -> vector<4x778xf32>
    %101 = arith.addf %96, %100 : vector<4x778xf32>
    %c20 = arith.constant 20 : index
    %c0_64 = arith.constant 0 : index
    %c0_65 = arith.constant 0 : index
    %102 = vector.load %arg3[%c20, %c0_64, %c0_65] : memref<27x4x12xbf16, #tpu.memory_space<vmem>>, vector<1x4x12xbf16>
    %103 = vector.shape_cast %102 : vector<1x4x12xbf16> to vector<4x12xbf16>
    %104 = vector.extract_strided_slice %1 {offsets = [0, 202], sizes = [12, 778], strides = [1, 1]} : vector<12x1000xbf16> to vector<12x778xbf16>
    %cst_66 = arith.constant dense<0.000000e+00> : vector<4x778xf32>
    %105 = tpu.matmul %103, %104, %cst_66 {dimension_numbers = #tpu.dot_dimension_numbers<[1], [0], [0], [1], [0, 0, 1, 1], [], []>} : vector<4x12xbf16>, vector<12x778xbf16>, vector<4x778xf32> -> vector<4x778xf32>
    %106 = arith.addf %101, %105 : vector<4x778xf32>
    %c21 = arith.constant 21 : index
    %c0_67 = arith.constant 0 : index
    %c0_68 = arith.constant 0 : index
    %107 = vector.load %arg3[%c21, %c0_67, %c0_68] : memref<27x4x12xbf16, #tpu.memory_space<vmem>>, vector<1x4x12xbf16>
    %108 = vector.shape_cast %107 : vector<1x4x12xbf16> to vector<4x12xbf16>
    %109 = vector.extract_strided_slice %1 {offsets = [0, 210], sizes = [12, 778], strides = [1, 1]} : vector<12x1000xbf16> to vector<12x778xbf16>
    %cst_69 = arith.constant dense<0.000000e+00> : vector<4x778xf32>
    %110 = tpu.matmul %108, %109, %cst_69 {dimension_numbers = #tpu.dot_dimension_numbers<[1], [0], [0], [1], [0, 0, 1, 1], [], []>} : vector<4x12xbf16>, vector<12x778xbf16>, vector<4x778xf32> -> vector<4x778xf32>
    %111 = arith.addf %106, %110 : vector<4x778xf32>
    %c22 = arith.constant 22 : index
    %c0_70 = arith.constant 0 : index
    %c0_71 = arith.constant 0 : index
    %112 = vector.load %arg3[%c22, %c0_70, %c0_71] : memref<27x4x12xbf16, #tpu.memory_space<vmem>>, vector<1x4x12xbf16>
    %113 = vector.shape_cast %112 : vector<1x4x12xbf16> to vector<4x12xbf16>
    %114 = vector.extract_strided_slice %1 {offsets = [0, 211], sizes = [12, 778], strides = [1, 1]} : vector<12x1000xbf16> to vector<12x778xbf16>
    %cst_72 = arith.constant dense<0.000000e+00> : vector<4x778xf32>
    %115 = tpu.matmul %113, %114, %cst_72 {dimension_numbers = #tpu.dot_dimension_numbers<[1], [0], [0], [1], [0, 0, 1, 1], [], []>} : vector<4x12xbf16>, vector<12x778xbf16>, vector<4x778xf32> -> vector<4x778xf32>
    %116 = arith.addf %111, %115 : vector<4x778xf32>
    %c23 = arith.constant 23 : index
    %c0_73 = arith.constant 0 : index
    %c0_74 = arith.constant 0 : index
    %117 = vector.load %arg3[%c23, %c0_73, %c0_74] : memref<27x4x12xbf16, #tpu.memory_space<vmem>>, vector<1x4x12xbf16>
    %118 = vector.shape_cast %117 : vector<1x4x12xbf16> to vector<4x12xbf16>
    %119 = vector.extract_strided_slice %1 {offsets = [0, 212], sizes = [12, 778], strides = [1, 1]} : vector<12x1000xbf16> to vector<12x778xbf16>
    %cst_75 = arith.constant dense<0.000000e+00> : vector<4x778xf32>
    %120 = tpu.matmul %118, %119, %cst_75 {dimension_numbers = #tpu.dot_dimension_numbers<[1], [0], [0], [1], [0, 0, 1, 1], [], []>} : vector<4x12xbf16>, vector<12x778xbf16>, vector<4x778xf32> -> vector<4x778xf32>
    %121 = arith.addf %116, %120 : vector<4x778xf32>
    %c24 = arith.constant 24 : index
    %c0_76 = arith.constant 0 : index
    %c0_77 = arith.constant 0 : index
    %122 = vector.load %arg3[%c24, %c0_76, %c0_77] : memref<27x4x12xbf16, #tpu.memory_space<vmem>>, vector<1x4x12xbf16>
    %123 = vector.shape_cast %122 : vector<1x4x12xbf16> to vector<4x12xbf16>
    %124 = vector.extract_strided_slice %1 {offsets = [0, 220], sizes = [12, 778], strides = [1, 1]} : vector<12x1000xbf16> to vector<12x778xbf16>
    %cst_78 = arith.constant dense<0.000000e+00> : vector<4x778xf32>
    %125 = tpu.matmul %123, %124, %cst_78 {dimension_numbers = #tpu.dot_dimension_numbers<[1], [0], [0], [1], [0, 0, 1, 1], [], []>} : vector<4x12xbf16>, vector<12x778xbf16>, vector<4x778xf32> -> vector<4x778xf32>
    %126 = arith.addf %121, %125 : vector<4x778xf32>
    %c25 = arith.constant 25 : index
    %c0_79 = arith.constant 0 : index
    %c0_80 = arith.constant 0 : index
    %127 = vector.load %arg3[%c25, %c0_79, %c0_80] : memref<27x4x12xbf16, #tpu.memory_space<vmem>>, vector<1x4x12xbf16>
    %128 = vector.shape_cast %127 : vector<1x4x12xbf16> to vector<4x12xbf16>
    %129 = vector.extract_strided_slice %1 {offsets = [0, 221], sizes = [12, 778], strides = [1, 1]} : vector<12x1000xbf16> to vector<12x778xbf16>
    %cst_81 = arith.constant dense<0.000000e+00> : vector<4x778xf32>
    %130 = tpu.matmul %128, %129, %cst_81 {dimension_numbers = #tpu.dot_dimension_numbers<[1], [0], [0], [1], [0, 0, 1, 1], [], []>} : vector<4x12xbf16>, vector<12x778xbf16>, vector<4x778xf32> -> vector<4x778xf32>
    %131 = arith.addf %126, %130 : vector<4x778xf32>
    %c26 = arith.constant 26 : index
    %c0_82 = arith.constant 0 : index
    %c0_83 = arith.constant 0 : index
    %132 = vector.load %arg3[%c26, %c0_82, %c0_83] : memref<27x4x12xbf16, #tpu.memory_space<vmem>>, vector<1x4x12xbf16>
    %133 = vector.shape_cast %132 : vector<1x4x12xbf16> to vector<4x12xbf16>
    %134 = vector.extract_strided_slice %1 {offsets = [0, 222], sizes = [12, 778], strides = [1, 1]} : vector<12x1000xbf16> to vector<12x778xbf16>
    %cst_84 = arith.constant dense<0.000000e+00> : vector<4x778xf32>
    %135 = tpu.matmul %133, %134, %cst_84 {dimension_numbers = #tpu.dot_dimension_numbers<[1], [0], [0], [1], [0, 0, 1, 1], [], []>} : vector<4x12xbf16>, vector<12x778xbf16>, vector<4x778xf32> -> vector<4x778xf32>
    %136 = arith.addf %131, %135 : vector<4x778xf32>
    %137 = vector.broadcast %2 : vector<1x778xf32> to vector<4x778xf32>
    %138 = arith.mulf %136, %137 : vector<4x778xf32>
    %cst_85 = arith.constant dense<0.000000e+00> : vector<4xf32>
    %139 = vector.multi_reduction <add>, %138, %cst_85 [1] : vector<4x778xf32> to vector<4xf32>
    %140 = vector.shape_cast %139 : vector<4xf32> to vector<4x1xf32>
    %cst_86 = arith.constant 0.001953125 : f32
    %141 = vector.broadcast %cst_86 : f32 to vector<4x1xf32>
    %142 = arith.mulf %140, %141 : vector<4x1xf32>
    %143 = arith.mulf %138, %136 : vector<4x778xf32>
    %cst_87 = arith.constant dense<0.000000e+00> : vector<4xf32>
    %144 = vector.multi_reduction <add>, %143, %cst_87 [1] : vector<4x778xf32> to vector<4xf32>
    %145 = vector.shape_cast %144 : vector<4xf32> to vector<4x1xf32>
    %cst_88 = arith.constant 0.001953125 : f32
    %146 = vector.broadcast %cst_88 : f32 to vector<4x1xf32>
    %147 = arith.mulf %145, %146 : vector<4x1xf32>
    %148 = arith.mulf %142, %142 : vector<4x1xf32>
    %149 = arith.subf %147, %148 : vector<4x1xf32>
    %cst_89 = arith.constant 0.000000e+00 : f32
    %150 = vector.broadcast %cst_89 : f32 to vector<4x1xf32>
    %151 = arith.maximumf %149, %150 : vector<4x1xf32>
    %152 = vector.broadcast %142 : vector<4x1xf32> to vector<4x778xf32>
    %153 = arith.subf %136, %152 : vector<4x778xf32>
    %cst_90 = arith.constant 9.99999974E-6 : f32
    %154 = vector.broadcast %cst_90 : f32 to vector<4x1xf32>
    %155 = arith.addf %151, %154 : vector<4x1xf32>
    %156 = math.rsqrt %155 : vector<4x1xf32>
    %157 = vector.broadcast %156 : vector<4x1xf32> to vector<4x778xf32>
    %158 = arith.mulf %153, %157 : vector<4x778xf32>
    %c0_91 = arith.constant 0 : index
    %c0_92 = arith.constant 0 : index
    %159 = vector.load %arg4[%c0_91, %c0_92] : memref<4x1xf32, #tpu.memory_space<vmem>>, vector<4x1xf32>
    %160 = vector.broadcast %159 : vector<4x1xf32> to vector<4x778xf32>
    %161 = arith.mulf %158, %160 : vector<4x778xf32>
    %c0_93 = arith.constant 0 : index
    %c0_94 = arith.constant 0 : index
    %162 = vector.load %arg5[%c0_93, %c0_94] : memref<4x1xf32, #tpu.memory_space<vmem>>, vector<4x1xf32>
    %163 = vector.broadcast %162 : vector<4x1xf32> to vector<4x778xf32>
    %164 = arith.addf %161, %163 : vector<4x778xf32>
    %cst_95 = arith.constant 0.000000e+00 : f32
    %165 = vector.broadcast %cst_95 : f32 to vector<4x778xf32>
    %166 = arith.cmpf oge, %164, %165 : vector<4x778xf32>
    %cst_96 = arith.constant 0.00999999977 : f32
    %167 = vector.broadcast %cst_96 : f32 to vector<4x778xf32>
    %168 = arith.mulf %167, %164 : vector<4x778xf32>
    %169 = arith.select %166, %164, %168 : vector<4x778xi1>, vector<4x778xf32>
    %170 = vector.broadcast %2 : vector<1x778xf32> to vector<4x778xf32>
    %171 = arith.mulf %169, %170 : vector<4x778xf32>
    %cst_97 = arith.constant 0.000000e+00 : bf16
    %172 = vector.broadcast %cst_97 : bf16 to vector<4x1024xbf16>
    %c0_98 = arith.constant 0 : index
    %c0_99 = arith.constant 0 : index
    %173 = vector.load %arg10[%c0_98, %c0_99] : memref<4x1024xbf16, #tpu.memory_space<vmem>>, vector<4x1024xbf16>
    tpu.vector_store %arg10[%c0_98, %c0_99], %172 {strides = array<i32>} : memref<4x1024xbf16, #tpu.memory_space<vmem>>, vector<4x1024xbf16>,
    %174 = arith.truncf %171 : vector<4x778xf32> to vector<4x778xbf16>
    %c0_100 = arith.constant 0 : index
    %c128 = arith.constant 128 : index
    %175 = vector.load %arg10[%c0_100, %c128] : memref<4x1024xbf16, #tpu.memory_space<vmem>>, vector<4x778xbf16>
    tpu.vector_store %arg10[%c0_100, %c128], %174 {strides = array<i32>} : memref<4x1024xbf16, #tpu.memory_space<vmem>>, vector<4x778xbf16>,
    %c0_101 = arith.constant 0 : index
    %c0_102 = arith.constant 0 : index
    %176 = vector.load %arg10[%c0_101, %c0_102] : memref<4x1024xbf16, #tpu.memory_space<vmem>>, vector<4x1024xbf16>
    %c0_103 = arith.constant 0 : index
    %c0_104 = arith.constant 0 : index
    %c0_105 = arith.constant 0 : index
    %177 = vector.load %arg6[%c0_103, %c0_104, %c0_105] : memref<27x4x4xbf16, #tpu.memory_space<vmem>>, vector<1x4x4xbf16>
    %178 = vector.shape_cast %177 : vector<1x4x4xbf16> to vector<4x4xbf16>
    %179 = vector.extract_strided_slice %176 {offsets = [0, 17], sizes = [4, 778], strides = [1, 1]} : vector<4x1024xbf16> to vector<4x778xbf16>
    %cst_106 = arith.constant dense<0.000000e+00> : vector<4x778xf32>
    %180 = tpu.matmul %178, %179, %cst_106 {dimension_numbers = #tpu.dot_dimension_numbers<[1], [0], [0], [1], [0, 0, 1, 1], [], []>} : vector<4x4xbf16>, vector<4x778xbf16>, vector<4x778xf32> -> vector<4x778xf32>
    %c1_107 = arith.constant 1 : index
    %c0_108 = arith.constant 0 : index
    %c0_109 = arith.constant 0 : index
    %181 = vector.load %arg6[%c1_107, %c0_108, %c0_109] : memref<27x4x4xbf16, #tpu.memory_space<vmem>>, vector<1x4x4xbf16>
    %182 = vector.shape_cast %181 : vector<1x4x4xbf16> to vector<4x4xbf16>
    %183 = vector.extract_strided_slice %176 {offsets = [0, 18], sizes = [4, 778], strides = [1, 1]} : vector<4x1024xbf16> to vector<4x778xbf16>
    %cst_110 = arith.constant dense<0.000000e+00> : vector<4x778xf32>
    %184 = tpu.matmul %182, %183, %cst_110 {dimension_numbers = #tpu.dot_dimension_numbers<[1], [0], [0], [1], [0, 0, 1, 1], [], []>} : vector<4x4xbf16>, vector<4x778xbf16>, vector<4x778xf32> -> vector<4x778xf32>
    %185 = arith.addf %180, %184 : vector<4x778xf32>
    %c2_111 = arith.constant 2 : index
    %c0_112 = arith.constant 0 : index
    %c0_113 = arith.constant 0 : index
    %186 = vector.load %arg6[%c2_111, %c0_112, %c0_113] : memref<27x4x4xbf16, #tpu.memory_space<vmem>>, vector<1x4x4xbf16>
    %187 = vector.shape_cast %186 : vector<1x4x4xbf16> to vector<4x4xbf16>
    %188 = vector.extract_strided_slice %176 {offsets = [0, 19], sizes = [4, 778], strides = [1, 1]} : vector<4x1024xbf16> to vector<4x778xbf16>
    %cst_114 = arith.constant dense<0.000000e+00> : vector<4x778xf32>
    %189 = tpu.matmul %187, %188, %cst_114 {dimension_numbers = #tpu.dot_dimension_numbers<[1], [0], [0], [1], [0, 0, 1, 1], [], []>} : vector<4x4xbf16>, vector<4x778xbf16>, vector<4x778xf32> -> vector<4x778xf32>
    %190 = arith.addf %185, %189 : vector<4x778xf32>
    %c3_115 = arith.constant 3 : index
    %c0_116 = arith.constant 0 : index
    %c0_117 = arith.constant 0 : index
    %191 = vector.load %arg6[%c3_115, %c0_116, %c0_117] : memref<27x4x4xbf16, #tpu.memory_space<vmem>>, vector<1x4x4xbf16>
    %192 = vector.shape_cast %191 : vector<1x4x4xbf16> to vector<4x4xbf16>
    %193 = vector.extract_strided_slice %176 {offsets = [0, 27], sizes = [4, 778], strides = [1, 1]} : vector<4x1024xbf16> to vector<4x778xbf16>
    %cst_118 = arith.constant dense<0.000000e+00> : vector<4x778xf32>
    %194 = tpu.matmul %192, %193, %cst_118 {dimension_numbers = #tpu.dot_dimension_numbers<[1], [0], [0], [1], [0, 0, 1, 1], [], []>} : vector<4x4xbf16>, vector<4x778xbf16>, vector<4x778xf32> -> vector<4x778xf32>
    %195 = arith.addf %190, %194 : vector<4x778xf32>
    %c4_119 = arith.constant 4 : index
    %c0_120 = arith.constant 0 : index
    %c0_121 = arith.constant 0 : index
    %196 = vector.load %arg6[%c4_119, %c0_120, %c0_121] : memref<27x4x4xbf16, #tpu.memory_space<vmem>>, vector<1x4x4xbf16>
    %197 = vector.shape_cast %196 : vector<1x4x4xbf16> to vector<4x4xbf16>
    %198 = vector.extract_strided_slice %176 {offsets = [0, 28], sizes = [4, 778], strides = [1, 1]} : vector<4x1024xbf16> to vector<4x778xbf16>
    %cst_122 = arith.constant dense<0.000000e+00> : vector<4x778xf32>
    %199 = tpu.matmul %197, %198, %cst_122 {dimension_numbers = #tpu.dot_dimension_numbers<[1], [0], [0], [1], [0, 0, 1, 1], [], []>} : vector<4x4xbf16>, vector<4x778xbf16>, vector<4x778xf32> -> vector<4x778xf32>
    %200 = arith.addf %195, %199 : vector<4x778xf32>
    %c5_123 = arith.constant 5 : index
    %c0_124 = arith.constant 0 : index
    %c0_125 = arith.constant 0 : index
    %201 = vector.load %arg6[%c5_123, %c0_124, %c0_125] : memref<27x4x4xbf16, #tpu.memory_space<vmem>>, vector<1x4x4xbf16>
    %202 = vector.shape_cast %201 : vector<1x4x4xbf16> to vector<4x4xbf16>
    %203 = vector.extract_strided_slice %176 {offsets = [0, 29], sizes = [4, 778], strides = [1, 1]} : vector<4x1024xbf16> to vector<4x778xbf16>
    %cst_126 = arith.constant dense<0.000000e+00> : vector<4x778xf32>
    %204 = tpu.matmul %202, %203, %cst_126 {dimension_numbers = #tpu.dot_dimension_numbers<[1], [0], [0], [1], [0, 0, 1, 1], [], []>} : vector<4x4xbf16>, vector<4x778xbf16>, vector<4x778xf32> -> vector<4x778xf32>
    %205 = arith.addf %200, %204 : vector<4x778xf32>
    %c6_127 = arith.constant 6 : index
    %c0_128 = arith.constant 0 : index
    %c0_129 = arith.constant 0 : index
    %206 = vector.load %arg6[%c6_127, %c0_128, %c0_129] : memref<27x4x4xbf16, #tpu.memory_space<vmem>>, vector<1x4x4xbf16>
    %207 = vector.shape_cast %206 : vector<1x4x4xbf16> to vector<4x4xbf16>
    %208 = vector.extract_strided_slice %176 {offsets = [0, 37], sizes = [4, 778], strides = [1, 1]} : vector<4x1024xbf16> to vector<4x778xbf16>
    %cst_130 = arith.constant dense<0.000000e+00> : vector<4x778xf32>
    %209 = tpu.matmul %207, %208, %cst_130 {dimension_numbers = #tpu.dot_dimension_numbers<[1], [0], [0], [1], [0, 0, 1, 1], [], []>} : vector<4x4xbf16>, vector<4x778xbf16>, vector<4x778xf32> -> vector<4x778xf32>
    %210 = arith.addf %205, %209 : vector<4x778xf32>
    %c7_131 = arith.constant 7 : index
    %c0_132 = arith.constant 0 : index
    %c0_133 = arith.constant 0 : index
    %211 = vector.load %arg6[%c7_131, %c0_132, %c0_133] : memref<27x4x4xbf16, #tpu.memory_space<vmem>>, vector<1x4x4xbf16>
    %212 = vector.shape_cast %211 : vector<1x4x4xbf16> to vector<4x4xbf16>
    %213 = vector.extract_strided_slice %176 {offsets = [0, 38], sizes = [4, 778], strides = [1, 1]} : vector<4x1024xbf16> to vector<4x778xbf16>
    %cst_134 = arith.constant dense<0.000000e+00> : vector<4x778xf32>
    %214 = tpu.matmul %212, %213, %cst_134 {dimension_numbers = #tpu.dot_dimension_numbers<[1], [0], [0], [1], [0, 0, 1, 1], [], []>} : vector<4x4xbf16>, vector<4x778xbf16>, vector<4x778xf32> -> vector<4x778xf32>
    %215 = arith.addf %210, %214 : vector<4x778xf32>
    %c8_135 = arith.constant 8 : index
    %c0_136 = arith.constant 0 : index
    %c0_137 = arith.constant 0 : index
    %216 = vector.load %arg6[%c8_135, %c0_136, %c0_137] : memref<27x4x4xbf16, #tpu.memory_space<vmem>>, vector<1x4x4xbf16>
    %217 = vector.shape_cast %216 : vector<1x4x4xbf16> to vector<4x4xbf16>
    %218 = vector.extract_strided_slice %176 {offsets = [0, 39], sizes = [4, 778], strides = [1, 1]} : vector<4x1024xbf16> to vector<4x778xbf16>
    %cst_138 = arith.constant dense<0.000000e+00> : vector<4x778xf32>
    %219 = tpu.matmul %217, %218, %cst_138 {dimension_numbers = #tpu.dot_dimension_numbers<[1], [0], [0], [1], [0, 0, 1, 1], [], []>} : vector<4x4xbf16>, vector<4x778xbf16>, vector<4x778xf32> -> vector<4x778xf32>
    %220 = arith.addf %215, %219 : vector<4x778xf32>
    %c9_139 = arith.constant 9 : index
    %c0_140 = arith.constant 0 : index
    %c0_141 = arith.constant 0 : index
    %221 = vector.load %arg6[%c9_139, %c0_140, %c0_141] : memref<27x4x4xbf16, #tpu.memory_space<vmem>>, vector<1x4x4xbf16>
    %222 = vector.shape_cast %221 : vector<1x4x4xbf16> to vector<4x4xbf16>
    %223 = vector.extract_strided_slice %176 {offsets = [0, 117], sizes = [4, 778], strides = [1, 1]} : vector<4x1024xbf16> to vector<4x778xbf16>
    %cst_142 = arith.constant dense<0.000000e+00> : vector<4x778xf32>
    %224 = tpu.matmul %222, %223, %cst_142 {dimension_numbers = #tpu.dot_dimension_numbers<[1], [0], [0], [1], [0, 0, 1, 1], [], []>} : vector<4x4xbf16>, vector<4x778xbf16>, vector<4x778xf32> -> vector<4x778xf32>
    %225 = arith.addf %220, %224 : vector<4x778xf32>
    %c10_143 = arith.constant 10 : index
    %c0_144 = arith.constant 0 : index
    %c0_145 = arith.constant 0 : index
    %226 = vector.load %arg6[%c10_143, %c0_144, %c0_145] : memref<27x4x4xbf16, #tpu.memory_space<vmem>>, vector<1x4x4xbf16>
    %227 = vector.shape_cast %226 : vector<1x4x4xbf16> to vector<4x4xbf16>
    %228 = vector.extract_strided_slice %176 {offsets = [0, 118], sizes = [4, 778], strides = [1, 1]} : vector<4x1024xbf16> to vector<4x778xbf16>
    %cst_146 = arith.constant dense<0.000000e+00> : vector<4x778xf32>
    %229 = tpu.matmul %227, %228, %cst_146 {dimension_numbers = #tpu.dot_dimension_numbers<[1], [0], [0], [1], [0, 0, 1, 1], [], []>} : vector<4x4xbf16>, vector<4x778xbf16>, vector<4x778xf32> -> vector<4x778xf32>
    %230 = arith.addf %225, %229 : vector<4x778xf32>
    %c11_147 = arith.constant 11 : index
    %c0_148 = arith.constant 0 : index
    %c0_149 = arith.constant 0 : index
    %231 = vector.load %arg6[%c11_147, %c0_148, %c0_149] : memref<27x4x4xbf16, #tpu.memory_space<vmem>>, vector<1x4x4xbf16>
    %232 = vector.shape_cast %231 : vector<1x4x4xbf16> to vector<4x4xbf16>
    %233 = vector.extract_strided_slice %176 {offsets = [0, 119], sizes = [4, 778], strides = [1, 1]} : vector<4x1024xbf16> to vector<4x778xbf16>
    %cst_150 = arith.constant dense<0.000000e+00> : vector<4x778xf32>
    %234 = tpu.matmul %232, %233, %cst_150 {dimension_numbers = #tpu.dot_dimension_numbers<[1], [0], [0], [1], [0, 0, 1, 1], [], []>} : vector<4x4xbf16>, vector<4x778xbf16>, vector<4x778xf32> -> vector<4x778xf32>
    %235 = arith.addf %230, %234 : vector<4x778xf32>
    %c12_151 = arith.constant 12 : index
    %c0_152 = arith.constant 0 : index
    %c0_153 = arith.constant 0 : index
    %236 = vector.load %arg6[%c12_151, %c0_152, %c0_153] : memref<27x4x4xbf16, #tpu.memory_space<vmem>>, vector<1x4x4xbf16>
    %237 = vector.shape_cast %236 : vector<1x4x4xbf16> to vector<4x4xbf16>
    %238 = vector.extract_strided_slice %176 {offsets = [0, 127], sizes = [4, 778], strides = [1, 1]} : vector<4x1024xbf16> to vector<4x778xbf16>
    %cst_154 = arith.constant dense<0.000000e+00> : vector<4x778xf32>
    %239 = tpu.matmul %237, %238, %cst_154 {dimension_numbers = #tpu.dot_dimension_numbers<[1], [0], [0], [1], [0, 0, 1, 1], [], []>} : vector<4x4xbf16>, vector<4x778xbf16>, vector<4x778xf32> -> vector<4x778xf32>
    %240 = arith.addf %235, %239 : vector<4x778xf32>
    %c13_155 = arith.constant 13 : index
    %c0_156 = arith.constant 0 : index
    %c0_157 = arith.constant 0 : index
    %241 = vector.load %arg6[%c13_155, %c0_156, %c0_157] : memref<27x4x4xbf16, #tpu.memory_space<vmem>>, vector<1x4x4xbf16>
    %242 = vector.shape_cast %241 : vector<1x4x4xbf16> to vector<4x4xbf16>
    %243 = vector.extract_strided_slice %176 {offsets = [0, 128], sizes = [4, 778], strides = [1, 1]} : vector<4x1024xbf16> to vector<4x778xbf16>
    %cst_158 = arith.constant dense<0.000000e+00> : vector<4x778xf32>
    %244 = tpu.matmul %242, %243, %cst_158 {dimension_numbers = #tpu.dot_dimension_numbers<[1], [0], [0], [1], [0, 0, 1, 1], [], []>} : vector<4x4xbf16>, vector<4x778xbf16>, vector<4x778xf32> -> vector<4x778xf32>
    %245 = arith.addf %240, %244 : vector<4x778xf32>
    %c14_159 = arith.constant 14 : index
    %c0_160 = arith.constant 0 : index
    %c0_161 = arith.constant 0 : index
    %246 = vector.load %arg6[%c14_159, %c0_160, %c0_161] : memref<27x4x4xbf16, #tpu.memory_space<vmem>>, vector<1x4x4xbf16>
    %247 = vector.shape_cast %246 : vector<1x4x4xbf16> to vector<4x4xbf16>
    %248 = vector.extract_strided_slice %176 {offsets = [0, 129], sizes = [4, 778], strides = [1, 1]} : vector<4x1024xbf16> to vector<4x778xbf16>
    %cst_162 = arith.constant dense<0.000000e+00> : vector<4x778xf32>
    %249 = tpu.matmul %247, %248, %cst_162 {dimension_numbers = #tpu.dot_dimension_numbers<[1], [0], [0], [1], [0, 0, 1, 1], [], []>} : vector<4x4xbf16>, vector<4x778xbf16>, vector<4x778xf32> -> vector<4x778xf32>
    %250 = arith.addf %245, %249 : vector<4x778xf32>
    %c15_163 = arith.constant 15 : index
    %c0_164 = arith.constant 0 : index
    %c0_165 = arith.constant 0 : index
    %251 = vector.load %arg6[%c15_163, %c0_164, %c0_165] : memref<27x4x4xbf16, #tpu.memory_space<vmem>>, vector<1x4x4xbf16>
    %252 = vector.shape_cast %251 : vector<1x4x4xbf16> to vector<4x4xbf16>
    %253 = vector.extract_strided_slice %176 {offsets = [0, 137], sizes = [4, 778], strides = [1, 1]} : vector<4x1024xbf16> to vector<4x778xbf16>
    %cst_166 = arith.constant dense<0.000000e+00> : vector<4x778xf32>
    %254 = tpu.matmul %252, %253, %cst_166 {dimension_numbers = #tpu.dot_dimension_numbers<[1], [0], [0], [1], [0, 0, 1, 1], [], []>} : vector<4x4xbf16>, vector<4x778xbf16>, vector<4x778xf32> -> vector<4x778xf32>
    %255 = arith.addf %250, %254 : vector<4x778xf32>
    %c16_167 = arith.constant 16 : index
    %c0_168 = arith.constant 0 : index
    %c0_169 = arith.constant 0 : index
    %256 = vector.load %arg6[%c16_167, %c0_168, %c0_169] : memref<27x4x4xbf16, #tpu.memory_space<vmem>>, vector<1x4x4xbf16>
    %257 = vector.shape_cast %256 : vector<1x4x4xbf16> to vector<4x4xbf16>
    %258 = vector.extract_strided_slice %176 {offsets = [0, 138], sizes = [4, 778], strides = [1, 1]} : vector<4x1024xbf16> to vector<4x778xbf16>
    %cst_170 = arith.constant dense<0.000000e+00> : vector<4x778xf32>
    %259 = tpu.matmul %257, %258, %cst_170 {dimension_numbers = #tpu.dot_dimension_numbers<[1], [0], [0], [1], [0, 0, 1, 1], [], []>} : vector<4x4xbf16>, vector<4x778xbf16>, vector<4x778xf32> -> vector<4x778xf32>
    %260 = arith.addf %255, %259 : vector<4x778xf32>
    %c17_171 = arith.constant 17 : index
    %c0_172 = arith.constant 0 : index
    %c0_173 = arith.constant 0 : index
    %261 = vector.load %arg6[%c17_171, %c0_172, %c0_173] : memref<27x4x4xbf16, #tpu.memory_space<vmem>>, vector<1x4x4xbf16>
    %262 = vector.shape_cast %261 : vector<1x4x4xbf16> to vector<4x4xbf16>
    %263 = vector.extract_strided_slice %176 {offsets = [0, 139], sizes = [4, 778], strides = [1, 1]} : vector<4x1024xbf16> to vector<4x778xbf16>
    %cst_174 = arith.constant dense<0.000000e+00> : vector<4x778xf32>
    %264 = tpu.matmul %262, %263, %cst_174 {dimension_numbers = #tpu.dot_dimension_numbers<[1], [0], [0], [1], [0, 0, 1, 1], [], []>} : vector<4x4xbf16>, vector<4x778xbf16>, vector<4x778xf32> -> vector<4x778xf32>
    %265 = arith.addf %260, %264 : vector<4x778xf32>
    %c18_175 = arith.constant 18 : index
    %c0_176 = arith.constant 0 : index
    %c0_177 = arith.constant 0 : index
    %266 = vector.load %arg6[%c18_175, %c0_176, %c0_177] : memref<27x4x4xbf16, #tpu.memory_space<vmem>>, vector<1x4x4xbf16>
    %267 = vector.shape_cast %266 : vector<1x4x4xbf16> to vector<4x4xbf16>
    %268 = vector.extract_strided_slice %176 {offsets = [0, 217], sizes = [4, 778], strides = [1, 1]} : vector<4x1024xbf16> to vector<4x778xbf16>
    %cst_178 = arith.constant dense<0.000000e+00> : vector<4x778xf32>
    %269 = tpu.matmul %267, %268, %cst_178 {dimension_numbers = #tpu.dot_dimension_numbers<[1], [0], [0], [1], [0, 0, 1, 1], [], []>} : vector<4x4xbf16>, vector<4x778xbf16>, vector<4x778xf32> -> vector<4x778xf32>
    %270 = arith.addf %265, %269 : vector<4x778xf32>
    %c19_179 = arith.constant 19 : index
    %c0_180 = arith.constant 0 : index
    %c0_181 = arith.constant 0 : index
    %271 = vector.load %arg6[%c19_179, %c0_180, %c0_181] : memref<27x4x4xbf16, #tpu.memory_space<vmem>>, vector<1x4x4xbf16>
    %272 = vector.shape_cast %271 : vector<1x4x4xbf16> to vector<4x4xbf16>
    %273 = vector.extract_strided_slice %176 {offsets = [0, 218], sizes = [4, 778], strides = [1, 1]} : vector<4x1024xbf16> to vector<4x778xbf16>
    %cst_182 = arith.constant dense<0.000000e+00> : vector<4x778xf32>
    %274 = tpu.matmul %272, %273, %cst_182 {dimension_numbers = #tpu.dot_dimension_numbers<[1], [0], [0], [1], [0, 0, 1, 1], [], []>} : vector<4x4xbf16>, vector<4x778xbf16>, vector<4x778xf32> -> vector<4x778xf32>
    %275 = arith.addf %270, %274 : vector<4x778xf32>
    %c20_183 = arith.constant 20 : index
    %c0_184 = arith.constant 0 : index
    %c0_185 = arith.constant 0 : index
    %276 = vector.load %arg6[%c20_183, %c0_184, %c0_185] : memref<27x4x4xbf16, #tpu.memory_space<vmem>>, vector<1x4x4xbf16>
    %277 = vector.shape_cast %276 : vector<1x4x4xbf16> to vector<4x4xbf16>
    %278 = vector.extract_strided_slice %176 {offsets = [0, 219], sizes = [4, 778], strides = [1, 1]} : vector<4x1024xbf16> to vector<4x778xbf16>
    %cst_186 = arith.constant dense<0.000000e+00> : vector<4x778xf32>
    %279 = tpu.matmul %277, %278, %cst_186 {dimension_numbers = #tpu.dot_dimension_numbers<[1], [0], [0], [1], [0, 0, 1, 1], [], []>} : vector<4x4xbf16>, vector<4x778xbf16>, vector<4x778xf32> -> vector<4x778xf32>
    %280 = arith.addf %275, %279 : vector<4x778xf32>
    %c21_187 = arith.constant 21 : index
    %c0_188 = arith.constant 0 : index
    %c0_189 = arith.constant 0 : index
    %281 = vector.load %arg6[%c21_187, %c0_188, %c0_189] : memref<27x4x4xbf16, #tpu.memory_space<vmem>>, vector<1x4x4xbf16>
    %282 = vector.shape_cast %281 : vector<1x4x4xbf16> to vector<4x4xbf16>
    %283 = vector.extract_strided_slice %176 {offsets = [0, 227], sizes = [4, 778], strides = [1, 1]} : vector<4x1024xbf16> to vector<4x778xbf16>
    %cst_190 = arith.constant dense<0.000000e+00> : vector<4x778xf32>
    %284 = tpu.matmul %282, %283, %cst_190 {dimension_numbers = #tpu.dot_dimension_numbers<[1], [0], [0], [1], [0, 0, 1, 1], [], []>} : vector<4x4xbf16>, vector<4x778xbf16>, vector<4x778xf32> -> vector<4x778xf32>
    %285 = arith.addf %280, %284 : vector<4x778xf32>
    %c22_191 = arith.constant 22 : index
    %c0_192 = arith.constant 0 : index
    %c0_193 = arith.constant 0 : index
    %286 = vector.load %arg6[%c22_191, %c0_192, %c0_193] : memref<27x4x4xbf16, #tpu.memory_space<vmem>>, vector<1x4x4xbf16>
    %287 = vector.shape_cast %286 : vector<1x4x4xbf16> to vector<4x4xbf16>
    %288 = vector.extract_strided_slice %176 {offsets = [0, 228], sizes = [4, 778], strides = [1, 1]} : vector<4x1024xbf16> to vector<4x778xbf16>
    %cst_194 = arith.constant dense<0.000000e+00> : vector<4x778xf32>
    %289 = tpu.matmul %287, %288, %cst_194 {dimension_numbers = #tpu.dot_dimension_numbers<[1], [0], [0], [1], [0, 0, 1, 1], [], []>} : vector<4x4xbf16>, vector<4x778xbf16>, vector<4x778xf32> -> vector<4x778xf32>
    %290 = arith.addf %285, %289 : vector<4x778xf32>
    %c23_195 = arith.constant 23 : index
    %c0_196 = arith.constant 0 : index
    %c0_197 = arith.constant 0 : index
    %291 = vector.load %arg6[%c23_195, %c0_196, %c0_197] : memref<27x4x4xbf16, #tpu.memory_space<vmem>>, vector<1x4x4xbf16>
    %292 = vector.shape_cast %291 : vector<1x4x4xbf16> to vector<4x4xbf16>
    %293 = vector.extract_strided_slice %176 {offsets = [0, 229], sizes = [4, 778], strides = [1, 1]} : vector<4x1024xbf16> to vector<4x778xbf16>
    %cst_198 = arith.constant dense<0.000000e+00> : vector<4x778xf32>
    %294 = tpu.matmul %292, %293, %cst_198 {dimension_numbers = #tpu.dot_dimension_numbers<[1], [0], [0], [1], [0, 0, 1, 1], [], []>} : vector<4x4xbf16>, vector<4x778xbf16>, vector<4x778xf32> -> vector<4x778xf32>
    %295 = arith.addf %290, %294 : vector<4x778xf32>
    %c24_199 = arith.constant 24 : index
    %c0_200 = arith.constant 0 : index
    %c0_201 = arith.constant 0 : index
    %296 = vector.load %arg6[%c24_199, %c0_200, %c0_201] : memref<27x4x4xbf16, #tpu.memory_space<vmem>>, vector<1x4x4xbf16>
    %297 = vector.shape_cast %296 : vector<1x4x4xbf16> to vector<4x4xbf16>
    %298 = vector.extract_strided_slice %176 {offsets = [0, 237], sizes = [4, 778], strides = [1, 1]} : vector<4x1024xbf16> to vector<4x778xbf16>
    %cst_202 = arith.constant dense<0.000000e+00> : vector<4x778xf32>
    %299 = tpu.matmul %297, %298, %cst_202 {dimension_numbers = #tpu.dot_dimension_numbers<[1], [0], [0], [1], [0, 0, 1, 1], [], []>} : vector<4x4xbf16>, vector<4x778xbf16>, vector<4x778xf32> -> vector<4x778xf32>
    %300 = arith.addf %295, %299 : vector<4x778xf32>
    %c25_203 = arith.constant 25 : index
    %c0_204 = arith.constant 0 : index
    %c0_205 = arith.constant 0 : index
    %301 = vector.load %arg6[%c25_203, %c0_204, %c0_205] : memref<27x4x4xbf16, #tpu.memory_space<vmem>>, vector<1x4x4xbf16>
    %302 = vector.shape_cast %301 : vector<1x4x4xbf16> to vector<4x4xbf16>
    %303 = vector.extract_strided_slice %176 {offsets = [0, 238], sizes = [4, 778], strides = [1, 1]} : vector<4x1024xbf16> to vector<4x778xbf16>
    %cst_206 = arith.constant dense<0.000000e+00> : vector<4x778xf32>
    %304 = tpu.matmul %302, %303, %cst_206 {dimension_numbers = #tpu.dot_dimension_numbers<[1], [0], [0], [1], [0, 0, 1, 1], [], []>} : vector<4x4xbf16>, vector<4x778xbf16>, vector<4x778xf32> -> vector<4x778xf32>
    %305 = arith.addf %300, %304 : vector<4x778xf32>
    %c26_207 = arith.constant 26 : index
    %c0_208 = arith.constant 0 : index
    %c0_209 = arith.constant 0 : index
    %306 = vector.load %arg6[%c26_207, %c0_208, %c0_209] : memref<27x4x4xbf16, #tpu.memory_space<vmem>>, vector<1x4x4xbf16>
    %307 = vector.shape_cast %306 : vector<1x4x4xbf16> to vector<4x4xbf16>
    %308 = vector.extract_strided_slice %176 {offsets = [0, 239], sizes = [4, 778], strides = [1, 1]} : vector<4x1024xbf16> to vector<4x778xbf16>
    %cst_210 = arith.constant dense<0.000000e+00> : vector<4x778xf32>
    %309 = tpu.matmul %307, %308, %cst_210 {dimension_numbers = #tpu.dot_dimension_numbers<[1], [0], [0], [1], [0, 0, 1, 1], [], []>} : vector<4x4xbf16>, vector<4x778xbf16>, vector<4x778xf32> -> vector<4x778xf32>
    %310 = arith.addf %305, %309 : vector<4x778xf32>
    %311 = vector.broadcast %2 : vector<1x778xf32> to vector<4x778xf32>
    %312 = arith.mulf %310, %311 : vector<4x778xf32>
    %cst_211 = arith.constant dense<0.000000e+00> : vector<4xf32>
    %313 = vector.multi_reduction <add>, %312, %cst_211 [1] : vector<4x778xf32> to vector<4xf32>
    %314 = vector.shape_cast %313 : vector<4xf32> to vector<4x1xf32>
    %cst_212 = arith.constant 0.001953125 : f32
    %315 = vector.broadcast %cst_212 : f32 to vector<4x1xf32>
    %316 = arith.mulf %314, %315 : vector<4x1xf32>
    %317 = arith.mulf %312, %310 : vector<4x778xf32>
    %cst_213 = arith.constant dense<0.000000e+00> : vector<4xf32>
    %318 = vector.multi_reduction <add>, %317, %cst_213 [1] : vector<4x778xf32> to vector<4xf32>
    %319 = vector.shape_cast %318 : vector<4xf32> to vector<4x1xf32>
    %cst_214 = arith.constant 0.001953125 : f32
    %320 = vector.broadcast %cst_214 : f32 to vector<4x1xf32>
    %321 = arith.mulf %319, %320 : vector<4x1xf32>
    %322 = arith.mulf %316, %316 : vector<4x1xf32>
    %323 = arith.subf %321, %322 : vector<4x1xf32>
    %cst_215 = arith.constant 0.000000e+00 : f32
    %324 = vector.broadcast %cst_215 : f32 to vector<4x1xf32>
    %325 = arith.maximumf %323, %324 : vector<4x1xf32>
    %326 = vector.broadcast %316 : vector<4x1xf32> to vector<4x778xf32>
    %327 = arith.subf %310, %326 : vector<4x778xf32>
    %cst_216 = arith.constant 9.99999974E-6 : f32
    %328 = vector.broadcast %cst_216 : f32 to vector<4x1xf32>
    %329 = arith.addf %325, %328 : vector<4x1xf32>
    %330 = math.rsqrt %329 : vector<4x1xf32>
    %331 = vector.broadcast %330 : vector<4x1xf32> to vector<4x778xf32>
    %332 = arith.mulf %327, %331 : vector<4x778xf32>
    %c0_217 = arith.constant 0 : index
    %c0_218 = arith.constant 0 : index
    %333 = vector.load %arg7[%c0_217, %c0_218] : memref<4x1xf32, #tpu.memory_space<vmem>>, vector<4x1xf32>
    %334 = vector.broadcast %333 : vector<4x1xf32> to vector<4x778xf32>
    %335 = arith.mulf %332, %334 : vector<4x778xf32>
    %c0_219 = arith.constant 0 : index
    %c0_220 = arith.constant 0 : index
    %336 = vector.load %arg8[%c0_219, %c0_220] : memref<4x1xf32, #tpu.memory_space<vmem>>, vector<4x1xf32>
    %337 = vector.broadcast %336 : vector<4x1xf32> to vector<4x778xf32>
    %338 = arith.addf %335, %337 : vector<4x778xf32>
    %cst_221 = arith.constant 0.000000e+00 : f32
    %339 = vector.broadcast %cst_221 : f32 to vector<4x778xf32>
    %340 = arith.cmpf oge, %338, %339 : vector<4x778xf32>
    %cst_222 = arith.constant 0.00999999977 : f32
    %341 = vector.broadcast %cst_222 : f32 to vector<4x778xf32>
    %342 = arith.mulf %341, %338 : vector<4x778xf32>
    %343 = arith.select %340, %338, %342 : vector<4x778xi1>, vector<4x778xf32>
    %344 = vector.shape_cast %343 : vector<4x778xf32> to vector<1x4x778xf32>
    %c0_223 = arith.constant 0 : index
    %c0_224 = arith.constant 0 : index
    %c0_225 = arith.constant 0 : index
    %345 = vector.load %arg9[%c0_223, %c0_224, %c0_225] : memref<1x4x778xf32, #tpu.memory_space<vmem>>, vector<1x4x778xf32>
    tpu.vector_store %arg9[%c0_223, %c0_224, %c0_225], %344 {strides = array<i32>} : memref<1x4x778xf32, #tpu.memory_space<vmem>>, vector<1x4x778xf32>,
    return
  }
  func.func @transform_0(%arg0: i32) -> (i32, i32, i32) {
    %c0_i32 = arith.constant 0 : i32
    %c0_i32_0 = arith.constant 0 : i32
    %c0_i32_1 = arith.constant 0 : i32
    return %arg0, %c0_i32, %c0_i32_0 : i32, i32, i32
  }
  func.func @transform_1(%arg0: i32) -> (i32, i32) {
    %c0_i32 = arith.constant 0 : i32
    %c0_i32_0 = arith.constant 0 : i32
    %c0_i32_1 = arith.constant 0 : i32
    return %c0_i32, %c0_i32_0 : i32, i32
  }
  func.func @transform_2(%arg0: i32) -> (i32, i32, i32) {
    %c0_i32 = arith.constant 0 : i32
    %c0_i32_0 = arith.constant 0 : i32
    %c0_i32_1 = arith.constant 0 : i32
    %c0_i32_2 = arith.constant 0 : i32
    return %c0_i32, %c0_i32_0, %c0_i32_1 : i32, i32, i32
  }
  func.func @transform_3(%arg0: i32) -> (i32, i32) {
    %c0_i32 = arith.constant 0 : i32
    %c0_i32_0 = arith.constant 0 : i32
    %c0_i32_1 = arith.constant 0 : i32
    return %c0_i32, %c0_i32_0 : i32, i32
  }
  func.func @transform_4(%arg0: i32) -> (i32, i32) {
    %c0_i32 = arith.constant 0 : i32
    %c0_i32_0 = arith.constant 0 : i32
    %c0_i32_1 = arith.constant 0 : i32
    return %c0_i32, %c0_i32_0 : i32, i32
  }
  func.func @transform_5(%arg0: i32) -> (i32, i32, i32) {
    %c0_i32 = arith.constant 0 : i32
    %c0_i32_0 = arith.constant 0 : i32
    %c0_i32_1 = arith.constant 0 : i32
    %c0_i32_2 = arith.constant 0 : i32
    return %c0_i32, %c0_i32_0, %c0_i32_1 : i32, i32, i32
  }
  func.func @transform_6(%arg0: i32) -> (i32, i32) {
    %c0_i32 = arith.constant 0 : i32
    %c0_i32_0 = arith.constant 0 : i32
    %c0_i32_1 = arith.constant 0 : i32
    return %c0_i32, %c0_i32_0 : i32, i32
  }
  func.func @transform_7(%arg0: i32) -> (i32, i32) {
    %c0_i32 = arith.constant 0 : i32
    %c0_i32_0 = arith.constant 0 : i32
    %c0_i32_1 = arith.constant 0 : i32
    return %c0_i32, %c0_i32_0 : i32, i32
  }
  func.func @transform_8(%arg0: i32) -> (i32, i32, i32) {
    %c0_i32 = arith.constant 0 : i32
    %c0_i32_0 = arith.constant 0 : i32
    %c0_i32_1 = arith.constant 0 : i32
    return %arg0, %c0_i32, %c0_i32_0 : i32, i32, i32
  }
}

</mosaic_0001>

<llo_original>
// kernel: tile.8
$region0: #{tile.8}
  #allocation2 [shape = 's32[1]{0}', space=sflag, size = 0x4, scoped, tag = 'scoped memory for tile.8']
  %s0 = inlined_call_operand.hbm [shape: f32[4], index: 0, kind: input, shape index: {}]
  %s1 = inlined_call_operand.vmem [shape: f32[8,4], index: 1, kind: output, shape index: {}]
  $region1: #{tile.8} parent=0
    #allocation0 [shape = 'u8[512]{0}', space=vmem, size = 0x400, scoped, tag = 'operand span for operand 0']
    #allocation1 [shape = 's32[1]{0}', space=sflag, size = 0x4, scoped, tag = 'scoped memory for tile.8']
    %2 = vsyncpa [#allocation1], 0
    // Predicated region
    $region2: #{tile.8} parent=1 // pred_check
      _
    $region3: #{tile.8} parent=1 // pred_check_branch
      %4 = sbr.rel (0) target = $region5
    $region4: #{tile.8} parent=1 // pred_region
      %6 = vsyncadd [#allocation1], 0
      %s8 = sshll.u32 %s0, 4
      %s9 = int_to_ptr.hbm [resolvable:$true] %s8
      %s10 = sshll.u32 [#allocation0], 4
      %s11 = int_to_ptr.vmem [resolvable:$true] %s10
      %13 = dma.hbm_to_vmem [thread:$0]  %s9, 16, %s11, [#allocation1]
    $region5: #{tile.8} parent=1 // pred_fallthru
      _
    // Predicated region
    $region6: #{tile.8} parent=1 // pred_check
      _
    $region7: #{tile.8} parent=1 // pred_check_branch
      %15 = sbr.rel (0) target = $region9
    $region8: #{tile.8} parent=1 // pred_region
      %17 = dma.done [#allocation1], 16
    $region9: #{tile.8} parent=1 // pred_fallthru
      _
    %v18 = vld [vmem:[#allocation0] ss:$0 sm:$0xff]
    %19 = vst [vmem:[%s1] sm:$0xff] %v18
    %20 = vsyncpa [#allocation1], 1

// kernel: tile.0
$region0: #{tile.0}
  %s0 = inlined_call_operand.vmem [shape: f32[8,4], index: 0, kind: input, shape index: {}]
  %s1 = inlined_call_operand.vmem [shape: f32[32,1], index: 1, kind: output, shape index: {}]
  %v2 = vld [vmem:[%s0] sm:$0xff]
  %vm3 = vcmask 7168
  %4 = vst.msk [vmem:[%s1] ss:$4 sm:$0xff] %vm3, %v2
  %v5 = vld [vmem:[%s0] sm:$0xff]
  %6 = vrot.lane.b32.xlu0 %v5, 127
  %v7 = vpop.permute.xlu0 %6
  %vm8 = vcmask 7168
  %s9 = scalar_lea.vmem %s1, 1
  %10 = vst.msk [vmem:[%s9] ss:$4 sm:$0xff] %vm8, %v7
  %v11 = vld [vmem:[%s0] sm:$0xff]
  %12 = vrot.lane.b32.xlu0 %v11, 126
  %v13 = vpop.permute.xlu0 %12
  %vm14 = vcmask 7168
  %s15 = scalar_lea.vmem %s1, 2
  %16 = vst.msk [vmem:[%s15] ss:$4 sm:$0xff] %vm14, %v13
  %v17 = vld [vmem:[%s0] sm:$0xff]
  %18 = vrot.lane.b32.xlu0 %v17, 125
  %v19 = vpop.permute.xlu0 %18
  %vm20 = vcmask 7168
  %s21 = scalar_lea.vmem %s1, 3
  %22 = vst.msk [vmem:[%s21] ss:$4 sm:$0xff] %vm20, %v19

// kernel: upp_forward.2
$region0: #{upp_forward.2}
  #allocation0 [shape = 'u32[]', space=smem, size = 0x4, offset = 0x4, fixed_abs, tag = 'smem constant byte address 0x4 - core index']
  #allocation1 [shape = 'u32[72,128]{1,0:T(1,128)}', space=vmem, size = 0x9000, scoped, tag = 'internal scratch']
  %s0 = inlined_call_operand.vmem [shape: bf16[8,128], index: 0, kind: input, shape index: {}]
  %s1 = inlined_call_operand.vmem [shape: bf16[32,8], index: 1, kind: input, shape index: {}]
  %s2 = inlined_call_operand.vmem [shape: f32[32,1], index: 2, kind: input, shape index: {}]
  %s3 = inlined_call_operand.vmem [shape: bf16[32,128], index: 3, kind: output, shape index: {}]
  %s4 = sld [smem:[#allocation0]]
  $region22: #{upp_forward.2} parent=0
    _
  %s6 = ssub.s32 1, %s4
  %s7 = scalar_select 0, %s6, %s4
  // Predicated region
  $region2: #{upp_forward.2} parent=0 // pred_check
    _
  $region3: #{upp_forward.2} parent=0 // pred_check_branch
    %9 = sbr.rel (0) target = $region5
  $region4: #{upp_forward.2} parent=0 // pred_region
    _
  $region5: #{upp_forward.2} parent=0 // pred_fallthru
    _
  // Predicated region
  $region6: #{upp_forward.2} parent=0 // pred_check
    _
  $region7: #{upp_forward.2} parent=0 // pred_check_branch
    %11 = sbr.rel (0) target = $region9
  $region8: #{upp_forward.2} parent=0 // pred_region
    _
  $region9: #{upp_forward.2} parent=0 // pred_fallthru
    _
  // Predicated region
  $region10: #{upp_forward.2} parent=0 // pred_check
    _
  $region11: #{upp_forward.2} parent=0 // pred_check_branch
    %13 = sbr.rel (0) target = $region13
  $region12: #{upp_forward.2} parent=0 // pred_region
    _
  $region13: #{upp_forward.2} parent=0 // pred_fallthru
    _
  %v15 = vld [vmem:[%s1] sm:$0xf]
  %v16 = vld [vmem:[%s1 + $0x4] sm:$0xf]
  %v17 = vld [vmem:[%s1 + $0x8] sm:$0xf]
  %v18 = vld [vmem:[%s1 + $0xc] sm:$0xf]
  %v19 = vld [vmem:[%s0] sm:$0xf]
  %v20 = vld [vmem:[%s2] sm:$0xff]
  %v21 = vld [vmem:[%s2 + $0x8] sm:$0xff]
  %v22 = vld [vmem:[%s2 + $0x10] sm:$0xff]
  %v23 = vld [vmem:[%s2 + $0x18] sm:$0xff]
  %25 = vset.pattern.permute.xlu0 0
  %26 = vperm.xlu0 %25, %v20
  %v27 = vpop.permute.xlu0 %26
  %30 = vset.pattern.permute.xlu0 0
  %31 = vperm.xlu0 %30, %v21
  %v32 = vpop.permute.xlu0 %31
  %35 = vset.pattern.permute.xlu0 0
  %36 = vperm.xlu0 %35, %v22
  %v37 = vpop.permute.xlu0 %36
  %40 = vset.pattern.permute.xlu0 0
  %41 = vperm.xlu0 %40, %v23
  %v42 = vpop.permute.xlu0 %41
  %v48 = vunpack.c.l.b16 %v15
  %v49 = vunpack.c.l.b16 %v16
  %v50 = vunpack.c.l.b16 %v17
  %v51 = vunpack.c.l.b16 %v18
  %v52 = vpack.c.b16 %v49, %v48
  %v53 = vpack.c.b16 %v51, %v50
  %vm54 = vcmask 64512
  %v56 = vsel %vm54, %v52, 0
  %v59 = vsel %vm54, %v53, 0
  %vm61 = vcmask 1043456
  %v63 = vsel %vm61, %v19, 0
  %65 = vmatpush.bf16.msra.mxu0 0
  %66 = vmatpush.bf16.msra.mxu0 0
  %67 = vmatpush.bf16.msra.mxu0 0
  %68 = vmatpush.bf16.msra.mxu0 0
  %69 = vmatpush.bf16.msra.mxu0 0
  %70 = vmatpush.bf16.msra.mxu0 0
  %71 = vmatpush.bf16.msra.mxu0 0
  %72 = vmatpush.bf16.msra.mxu0 %v63
  %73 = vmatmul.bf16.gmra.mxu0 %v56
  %v74 = vpop.f32.mrf.mxu0
  %v75 = vadd.f32 %v27, %v74
  %v76 = vpop.f32.mrf.mxu0
  %v77 = vadd.f32 %v32, %v76
  %78 = vmatmul.bf16.gmra.mxu0 %v59
  %v79 = vpop.f32.mrf.mxu0
  %v80 = vadd.f32 %v37, %v79
  %v81 = vpop.f32.mrf.mxu0
  %v82 = vadd.f32 %v42, %v81
  %83 = vdwg.mxu0
  %v84 = vpack.c.bf16 %v75, %v75
  %v85 = vpack.c.bf16 %v77, %v77
  %v86 = vpack.c.bf16 %v80, %v80
  %v87 = vpack.c.bf16 %v82, %v82
  %88 = vst [vmem:[%s3] sm:$0xf] %v84
  %89 = vst [vmem:[%s3 + $0x4] sm:$0xf] %v85
  %90 = vst [vmem:[%s3 + $0x8] sm:$0xf] %v86
  %91 = vst [vmem:[%s3 + $0xc] sm:$0xf] %v87
  // Predicated region
  $region14: #{upp_forward.2} parent=0 // pred_check
    _
  $region15: #{upp_forward.2} parent=0 // pred_check_branch
    %93 = sbr.rel (0) target = $region17
  $region16: #{upp_forward.2} parent=0 // pred_region
    _
  $region17: #{upp_forward.2} parent=0 // pred_fallthru
    _
  // Predicated region
  $region18: #{upp_forward.2} parent=0 // pred_check
    _
  $region19: #{upp_forward.2} parent=0 // pred_check_branch
    %95 = sbr.rel (0) target = $region21
  $region20: #{upp_forward.2} parent=0 // pred_region
    _
  $region21: #{upp_forward.2} parent=0 // pred_fallthru
    _

// kernel: upp_forward.3
$region0: #{upp_forward.3}
  #allocation0 [shape = 'u32[]', space=smem, size = 0x4, offset = 0x4, fixed_abs, tag = 'smem constant byte address 0x4 - core index']
  #allocation1 [shape = 'u32[72,128]{1,0:T(1,128)}', space=vmem, size = 0x9000, scoped, tag = 'internal scratch']
  #allocation2 [shape = 'bf16[4,1024]{1,0:T(4,128)(2,1)}', space=vmem, size = 0x2000, scoped, tag = 'scratch operand']
  %s0 = inlined_call_operand.vmem [shape: bf16[2,12,1000], index: 0, kind: input, shape index: {}]
  %s1 = inlined_call_operand.vmem [shape: f32[1,778], index: 1, kind: input, shape index: {}]
  %s2 = inlined_call_operand.vmem [shape: bf16[27,4,12], index: 2, kind: input, shape index: {}]
  %s3 = inlined_call_operand.vmem [shape: f32[4,1], index: 3, kind: input, shape index: {}]
  %s4 = inlined_call_operand.vmem [shape: f32[4,1], index: 4, kind: input, shape index: {}]
  %s5 = inlined_call_operand.vmem [shape: bf16[27,4,4], index: 5, kind: input, shape index: {}]
  %s6 = inlined_call_operand.vmem [shape: f32[4,1], index: 6, kind: input, shape index: {}]
  %s7 = inlined_call_operand.vmem [shape: f32[4,1], index: 7, kind: input, shape index: {}]
  %s8 = inlined_call_operand.vmem [shape: f32[2,4,778], index: 8, kind: output, shape index: {}]
  %s9 = sld [smem:[#allocation0]]
  $region65: #{upp_forward.3} parent=0
    _
  %s11 = ssub.s32 1, %s9
  %s12 = scalar_select 0, %s11, %s9
  loop: start=0, step=1, limit=4
  $region2: #{upp_forward.3} parent=0 // loop_pre_header
    _
  $region3: #{upp_forward.3} parent=0 // loop_header
    %s14 = sphi 0, %s18
    %p15 = scmp.ge.s32.totalorder %s14, 4
    %s24 = sphi 0, %s26
    %s27 = sphi 0, %s24
    %s28 = sphi 0, %s27
    %s44 = sphi 0, %s28
    %s48 = sphi 0, %s48
    %s50 = sphi 0, %s48
    %s51 = sphi 0, %s50
    %s65 = sphi 0, %s51
    %s69 = sphi 0, %s69
    %s71 = sphi 0, %s69
    %s72 = sphi 0, %s71
    %s86 = sphi 0, %s72
    %s90 = sphi 0, %s90
    %s92 = sphi 0, %s90
    %s93 = sphi 0, %s92
    %s107 = sphi 0, %s93
    %s111 = sphi 0, %s111
    %s113 = sphi 0, %s111
    %s114 = sphi 0, %s113
    %s128 = sphi 0, %s114
    %s132 = sphi 0, %s132
    %s134 = sphi 0, %s132
    %s135 = sphi 0, %s134
    %s149 = sphi 0, %s135
    %s153 = sphi 0, %s153
    %s155 = sphi 0, %s153
    %s156 = sphi 0, %s155
    %s170 = sphi 0, %s156
    %s174 = sphi 0, %s174
    %s176 = sphi 0, %s174
    %s177 = sphi 0, %s176
    %s191 = sphi 0, %s177
    %s197 = sphi 0, %s199
    %s200 = sphi 0, %s197
    %s201 = sphi 0, %s200
    %s217 = sphi 0, %s201
  $region4: #{upp_forward.3} parent=0 // loop_header_branch
    %17 = sbr.rel (%p15) target = $region8
  $region5: #{upp_forward.3} parent=0 // loop_body
    %s19 = ssub.s32 %s14, 1
    %s20 = ssub.s32 %s14, 2
    %s21 = sadd.s32 %s14, 1
    %s22 = ssub.s32 %s14, %s21
    %p23 = scmp.eq.s32.totalorder %s22, 0
    %s25 = sadd.s32 %s24, 1
    %s26 = scalar_select %p23, %s24, %s25
    %p29 = pneg %p23
    %p30 = scmp.eq.s32.totalorder %s14, 1
    %p31 = por %p29, %p30
    %p32 = scmp.ne.s32.totalorder %s24, %s27
    %p33 = scmp.eq.s32.totalorder %s14, 0
    %p34 = por %p32, %p33
    %p35 = scmp.ne.s32.totalorder %s24, %s27
    %p36 = scmp.eq.s32.totalorder %s19, 1
    %p37 = por %p35, %p36
    %p38 = scmp.ne.s32.totalorder %s27, %s28
    %p39 = scmp.eq.s32.totalorder %s19, 0
    %p40 = por %p38, %p39
    %p41 = scmp.ne.s32.totalorder %s27, %s28
    %p42 = scmp.eq.s32.totalorder %s20, 1
    %p43 = por %p41, %p42
    %p45 = scmp.ne.s32.totalorder %s28, %s44
    %p46 = scmp.eq.s32.totalorder %s20, 0
    %p47 = por %p45, %p46
    %s49 = sadd.s32 %s48, 1
    %p52 = scmp.eq.s32.totalorder %s14, 1
    %p53 = scmp.ne.s32.totalorder %s48, %s50
    %p54 = scmp.eq.s32.totalorder %s14, 0
    %p55 = por %p53, %p54
    %p56 = scmp.ne.s32.totalorder %s48, %s50
    %p57 = scmp.eq.s32.totalorder %s19, 1
    %p58 = por %p56, %p57
    %p59 = scmp.ne.s32.totalorder %s50, %s51
    %p60 = scmp.eq.s32.totalorder %s19, 0
    %p61 = por %p59, %p60
    %p62 = scmp.ne.s32.totalorder %s50, %s51
    %p63 = scmp.eq.s32.totalorder %s20, 1
    %p64 = por %p62, %p63
    %p66 = scmp.ne.s32.totalorder %s51, %s65
    %p67 = scmp.eq.s32.totalorder %s20, 0
    %p68 = por %p66, %p67
    %s70 = sadd.s32 %s69, 1
    %p73 = scmp.eq.s32.totalorder %s14, 1
    %p74 = scmp.ne.s32.totalorder %s69, %s71
    %p75 = scmp.eq.s32.totalorder %s14, 0
    %p76 = por %p74, %p75
    %p77 = scmp.ne.s32.totalorder %s69, %s71
    %p78 = scmp.eq.s32.totalorder %s19, 1
    %p79 = por %p77, %p78
    %p80 = scmp.ne.s32.totalorder %s71, %s72
    %p81 = scmp.eq.s32.totalorder %s19, 0
    %p82 = por %p80, %p81
    %p83 = scmp.ne.s32.totalorder %s71, %s72
    %p84 = scmp.eq.s32.totalorder %s20, 1
    %p85 = por %p83, %p84
    %p87 = scmp.ne.s32.totalorder %s72, %s86
    %p88 = scmp.eq.s32.totalorder %s20, 0
    %p89 = por %p87, %p88
    %s91 = sadd.s32 %s90, 1
    %p94 = scmp.eq.s32.totalorder %s14, 1
    %p95 = scmp.ne.s32.totalorder %s90, %s92
    %p96 = scmp.eq.s32.totalorder %s14, 0
    %p97 = por %p95, %p96
    %p98 = scmp.ne.s32.totalorder %s90, %s92
    %p99 = scmp.eq.s32.totalorder %s19, 1
    %p100 = por %p98, %p99
    %p101 = scmp.ne.s32.totalorder %s92, %s93
    %p102 = scmp.eq.s32.totalorder %s19, 0
    %p103 = por %p101, %p102
    %p104 = scmp.ne.s32.totalorder %s92, %s93
    %p105 = scmp.eq.s32.totalorder %s20, 1
    %p106 = por %p104, %p105
    %p108 = scmp.ne.s32.totalorder %s93, %s107
    %p109 = scmp.eq.s32.totalorder %s20, 0
    %p110 = por %p108, %p109
    %s112 = sadd.s32 %s111, 1
    %p115 = scmp.eq.s32.totalorder %s14, 1
    %p116 = scmp.ne.s32.totalorder %s111, %s113
    %p117 = scmp.eq.s32.totalorder %s14, 0
    %p118 = por %p116, %p117
    %p119 = scmp.ne.s32.totalorder %s111, %s113
    %p120 = scmp.eq.s32.totalorder %s19, 1
    %p121 = por %p119, %p120
    %p122 = scmp.ne.s32.totalorder %s113, %s114
    %p123 = scmp.eq.s32.totalorder %s19, 0
    %p124 = por %p122, %p123
    %p125 = scmp.ne.s32.totalorder %s113, %s114
    %p126 = scmp.eq.s32.totalorder %s20, 1
    %p127 = por %p125, %p126
    %p129 = scmp.ne.s32.totalorder %s114, %s128
    %p130 = scmp.eq.s32.totalorder %s20, 0
    %p131 = por %p129, %p130
    %s133 = sadd.s32 %s132, 1
    %p136 = scmp.eq.s32.totalorder %s14, 1
    %p137 = scmp.ne.s32.totalorder %s132, %s134
    %p138 = scmp.eq.s32.totalorder %s14, 0
    %p139 = por %p137, %p138
    %p140 = scmp.ne.s32.totalorder %s132, %s134
    %p141 = scmp.eq.s32.totalorder %s19, 1
    %p142 = por %p140, %p141
    %p143 = scmp.ne.s32.totalorder %s134, %s135
    %p144 = scmp.eq.s32.totalorder %s19, 0
    %p145 = por %p143, %p144
    %p146 = scmp.ne.s32.totalorder %s134, %s135
    %p147 = scmp.eq.s32.totalorder %s20, 1
    %p148 = por %p146, %p147
    %p150 = scmp.ne.s32.totalorder %s135, %s149
    %p151 = scmp.eq.s32.totalorder %s20, 0
    %p152 = por %p150, %p151
    %s154 = sadd.s32 %s153, 1
    %p157 = scmp.eq.s32.totalorder %s14, 1
    %p158 = scmp.ne.s32.totalorder %s153, %s155
    %p159 = scmp.eq.s32.totalorder %s14, 0
    %p160 = por %p158, %p159
    %p161 = scmp.ne.s32.totalorder %s153, %s155
    %p162 = scmp.eq.s32.totalorder %s19, 1
    %p163 = por %p161, %p162
    %p164 = scmp.ne.s32.totalorder %s155, %s156
    %p165 = scmp.eq.s32.totalorder %s19, 0
    %p166 = por %p164, %p165
    %p167 = scmp.ne.s32.totalorder %s155, %s156
    %p168 = scmp.eq.s32.totalorder %s20, 1
    %p169 = por %p167, %p168
    %p171 = scmp.ne.s32.totalorder %s156, %s170
    %p172 = scmp.eq.s32.totalorder %s20, 0
    %p173 = por %p171, %p172
    %s175 = sadd.s32 %s174, 1
    %p178 = scmp.eq.s32.totalorder %s14, 1
    %p179 = scmp.ne.s32.totalorder %s174, %s176
    %p180 = scmp.eq.s32.totalorder %s14, 0
    %p181 = por %p179, %p180
    %p182 = scmp.ne.s32.totalorder %s174, %s176
    %p183 = scmp.eq.s32.totalorder %s19, 1
    %p184 = por %p182, %p183
    %p185 = scmp.ne.s32.totalorder %s176, %s177
    %p186 = scmp.eq.s32.totalorder %s19, 0
    %p187 = por %p185, %p186
    %p188 = scmp.ne.s32.totalorder %s176, %s177
    %p189 = scmp.eq.s32.totalorder %s20, 1
    %p190 = por %p188, %p189
    %p192 = scmp.ne.s32.totalorder %s177, %s191
    %p193 = scmp.eq.s32.totalorder %s20, 0
    %p194 = por %p192, %p193
    %s195 = ssub.s32 %s14, %s21
    %p196 = scmp.eq.s32.totalorder %s195, 0
    %s198 = sadd.s32 %s197, 1
    %s199 = scalar_select %p196, %s197, %s198
    %p202 = pneg %p196
    %p203 = scmp.eq.s32.totalorder %s14, 1
    %p204 = por %p202, %p203
    %p205 = scmp.ne.s32.totalorder %s197, %s200
    %p206 = scmp.eq.s32.totalorder %s14, 0
    %p207 = por %p205, %p206
    %p208 = scmp.ne.s32.totalorder %s197, %s200
    %p209 = scmp.eq.s32.totalorder %s19, 1
    %p210 = por %p208, %p209
    %p211 = scmp.ne.s32.totalorder %s200, %s201
    %p212 = scmp.eq.s32.totalorder %s19, 0
    %p213 = por %p211, %p212
    %p214 = scmp.ne.s32.totalorder %s200, %s201
    %p215 = scmp.eq.s32.totalorder %s20, 1
    %p216 = por %p214, %p215
    %p218 = scmp.ne.s32.totalorder %s201, %s217
    %p219 = scmp.eq.s32.totalorder %s20, 0
    %p220 = por %p218, %p219
    %p221 = scmp.le.s32.totalorder 1, %s14
    %p222 = scmp.lt.s32.totalorder %s14, 3
    %p223 = pnand %p221, %p222
    %p224 = pneg %p223
    // Predicated region
    $region9: #{upp_forward.3} parent=5 // pred_check
      _
    $region10: #{upp_forward.3} parent=5 // pred_check_branch
      %226 = sbr.rel (%p223) target = $region12
    $region11: #{upp_forward.3} parent=5 // pred_region
      %s227 = ssub.s32 %s14, 1
      // Predicated region
      $region13: #{upp_forward.3} parent=11 // pred_check
        %p228 = pneg %p61
      $region14: #{upp_forward.3} parent=11 // pred_check_branch
        %230 = sbr.rel (%p228) target = $region16
      $region15: #{upp_forward.3} parent=11 // pred_region
        _
      $region16: #{upp_forward.3} parent=11 // pred_fallthru
        _
      // Predicated region
      $region17: #{upp_forward.3} parent=11 // pred_check
        %p231 = pneg %p82
      $region18: #{upp_forward.3} parent=11 // pred_check_branch
        %233 = sbr.rel (%p231) target = $region20
      $region19: #{upp_forward.3} parent=11 // pred_region
        _
      $region20: #{upp_forward.3} parent=11 // pred_fallthru
        _
      // Predicated region
      $region21: #{upp_forward.3} parent=11 // pred_check
        %p234 = pneg %p103
      $region22: #{upp_forward.3} parent=11 // pred_check_branch
        %236 = sbr.rel (%p234) target = $region24
      $region23: #{upp_forward.3} parent=11 // pred_region
        _
      $region24: #{upp_forward.3} parent=11 // pred_fallthru
        _
      // Predicated region
      $region25: #{upp_forward.3} parent=11 // pred_check
        %p237 = pneg %p124
      $region26: #{upp_forward.3} parent=11 // pred_check_branch
        %239 = sbr.rel (%p237) target = $region28
      $region27: #{upp_forward.3} parent=11 // pred_region
        _
      $region28: #{upp_forward.3} parent=11 // pred_fallthru
        _
      // Predicated region
      $region29: #{upp_forward.3} parent=11 // pred_check
        %p240 = pneg %p145
      $region30: #{upp_forward.3} parent=11 // pred_check_branch
        %242 = sbr.rel (%p240) target = $region32
      $region31: #{upp_forward.3} parent=11 // pred_region
        _
      $region32: #{upp_forward.3} parent=11 // pred_fallthru
        _
      // Predicated region
      $region33: #{upp_forward.3} parent=11 // pred_check
        %p243 = pneg %p166
      $region34: #{upp_forward.3} parent=11 // pred_check_branch
        %245 = sbr.rel (%p243) target = $region36
      $region35: #{upp_forward.3} parent=11 // pred_region
        _
      $region36: #{upp_forward.3} parent=11 // pred_fallthru
        _
      // Predicated region
      $region37: #{upp_forward.3} parent=11 // pred_check
        %p246 = pneg %p187
      $region38: #{upp_forward.3} parent=11 // pred_check_branch
        %248 = sbr.rel (%p246) target = $region40
      $region39: #{upp_forward.3} parent=11 // pred_region
        _
      $region40: #{upp_forward.3} parent=11 // pred_fallthru
        _
    $region12: #{upp_forward.3} parent=5 // pred_fallthru
      _
    %p249 = scmp.lt.s32.totalorder %s14, 2
    // Predicated region
    $region41: #{upp_forward.3} parent=5 // pred_check
      %p250 = pneg %p249
    $region42: #{upp_forward.3} parent=5 // pred_check_branch
      %252 = sbr.rel (%p250) target = $region44
    $region43: #{upp_forward.3} parent=5 // pred_region
      // Predicated region
      $region45: #{upp_forward.3} parent=43 // pred_check
        %p253 = pneg %p34
      $region46: #{upp_forward.3} parent=43 // pred_check_branch
        %255 = sbr.rel (%p253) target = $region48
      $region47: #{upp_forward.3} parent=43 // pred_region
        %p256 = scmp.lt.s32.totalorder %s14, 1
        %s257 = scalar_select %p256, %s14, 1
        %s258 = smul.addr %s257, 16
        %s259 = smul.addr %s258, 4
        %s260 = scalar_lea.vmem %s0, %s259
      $region48: #{upp_forward.3} parent=43 // pred_fallthru
        _
    $region44: #{upp_forward.3} parent=5 // pred_fallthru
      _
    %p261 = scmp.le.s32.totalorder 1, %s14
    %p262 = scmp.lt.s32.totalorder %s14, 3
    %p263 = pnand %p261, %p262
    %p264 = pneg %p263
    // Predicated region
    $region49: #{upp_forward.3} parent=5 // pred_check
      _
    $region50: #{upp_forward.3} parent=5 // pred_check_branch
      %266 = sbr.rel (%p263) target = $region52
    $region51: #{upp_forward.3} parent=5 // pred_region
      %s267 = ssub.s32 %s14, 1
      %p268 = scmp.lt.s32.totalorder %s19, 1
      %s269 = scalar_select %p268, %s19, 1
      %s270 = smul.addr %s269, 16
      %s271 = smul.addr %s270, 4
      %s272 = scalar_lea.vmem %s0, %s271
      %p273 = pneg %p40
      %p274 = pneg %p37
      %p275 = pneg %p61
      %p276 = pneg %p58
      %p277 = pneg %p82
      %p278 = pneg %p79
      %p279 = pneg %p103
      %p280 = pneg %p100
      %p281 = pneg %p124
      %p282 = pneg %p121
      %p283 = pneg %p145
      %p284 = pneg %p142
      %p285 = pneg %p166
      %p286 = pneg %p163
      %p287 = pneg %p187
      %p288 = pneg %p184
      %p289 = pneg %p213
      %p290 = pneg %p210
      %p291 = scmp.lt.s32.totalorder %s19, 1
      %s292 = scalar_select %p291, %s19, 1
      %s293 = smul.addr %s292, 7
      %s294 = smul.addr %s293, 4
      %s295 = scalar_lea.vmem %s8, %s294
      %p296 = scmp.lt.s32.totalorder %s19, 1
      %s297 = scalar_select %p296, %s19, 1
      %s298 = smul.addr %s297, 16
      %s299 = smul.addr %s298, 4
      %s300 = scalar_lea.vmem %s0, %s299
      %p301 = scmp.lt.s32.totalorder %s19, 1
      %s302 = scalar_select %p301, %s19, 1
      %s303 = smul.addr %s302, 7
      %s304 = smul.addr %s303, 4
      %s305 = scalar_lea.vmem %s8, %s304
      %v307 = vld [vmem:[%s300] sm:$0xff]
      %v308 = vld [vmem:[%s300 + $0x8] sm:$0xff]
      %v309 = vld [vmem:[%s300 + $0x10] sm:$0xff]
      %v310 = vld [vmem:[%s300 + $0x18] sm:$0xff]
      %v311 = vld [vmem:[%s300 + $0x20] sm:$0x33]
      %v312 = vld [vmem:[%s300 + $0x28] sm:$0x33]
      %v313 = vld [vmem:[%s300 + $0x30] sm:$0x33]
      %v314 = vld [vmem:[%s300 + $0x38] sm:$0x33]
      %v315 = vld [vmem:[%s1] sm:$0x7f]
      %v316 = vld [vmem:[%s2] sm:$0x3]
      %s317 = scalar_lea.vmem %s2, 2
      %v318 = vld [vmem:[%s317] sm:$0x3]
      %v327 = vunpack.c.l.b16 %v307
      %v328 = vunpack.c.h.b16 %v307
      %v329 = vunpack.c.l.b16 %v308
      %v330 = vunpack.c.h.b16 %v308
      %v331 = vunpack.c.l.b16 %v309
      %v332 = vunpack.c.h.b16 %v309
      %v333 = vunpack.c.l.b16 %v310
      %v334 = vunpack.c.l.b16 %v311
      %v335 = vunpack.c.h.b16 %v311
      %v336 = vunpack.c.l.b16 %v312
      %v337 = vunpack.c.h.b16 %v312
      %v338 = vunpack.c.l.b16 %v313
      %v339 = vunpack.c.h.b16 %v313
      %v340 = vunpack.c.l.b16 %v314
      %v341 = vpack.c.b16 %v334, %v327
      %v342 = vpack.c.b16 %v335, %v328
      %v343 = vpack.c.b16 %v336, %v329
      %v344 = vpack.c.b16 %v337, %v330
      %v345 = vpack.c.b16 %v338, %v331
      %v346 = vpack.c.b16 %v339, %v332
      %v347 = vpack.c.b16 %v340, %v333
      %348 = vrot.lane.b32.xlu0 %v341, 127
      %v349 = vpop.permute.xlu0 %348
      %350 = vrot.lane.b32.xlu0 %v342, 127
      %v351 = vpop.permute.xlu0 %350
      %352 = vrot.lane.b32.xlu0 %v343, 127
      %v353 = vpop.permute.xlu0 %352
      %354 = vrot.lane.b32.xlu0 %v344, 127
      %v355 = vpop.permute.xlu0 %354
      %356 = vrot.lane.b32.xlu0 %v345, 127
      %v357 = vpop.permute.xlu0 %356
      %358 = vrot.lane.b32.xlu0 %v346, 127
      %v359 = vpop.permute.xlu0 %358
      %360 = vrot.lane.b32.xlu0 %v347, 127
      %v361 = vpop.permute.xlu0 %360
      %vm362 = vcmask 1039360
      %v363 = vsel %vm362, %v349, %v351
      %v364 = vsel %vm362, %v351, %v353
      %v365 = vsel %vm362, %v353, %v355
      %v366 = vsel %vm362, %v355, %v357
      %v367 = vsel %vm362, %v357, %v359
      %v368 = vsel %vm362, %v359, %v361
      %vm369 = vcmask 97280
      %v371 = vsel %vm369, %v318, 0
      %vm373 = vcmask 1045504
      %v375 = vsel %vm373, %v363, 0
      %v378 = vsel %vm373, %v364, 0
      %v381 = vsel %vm373, %v365, 0
      %v384 = vsel %vm373, %v366, 0
      %v387 = vsel %vm373, %v367, 0
      %v390 = vsel %vm373, %v368, 0
      %v393 = vsel %vm373, %v361, 0
      %395 = vmatpush.bf16.msra.mxu0 0
      %396 = vmatpush.bf16.msra.mxu0 0
      %397 = vmatpush.bf16.msra.mxu0 0
      %398 = vmatpush.bf16.msra.mxu0 0
      %399 = vmatpush.bf16.msra.mxu0 0
      %400 = vmatpush.bf16.msra.mxu0 0
      %401 = vmatpush.bf16.msra.mxu0 0
      %402 = vmatpush.bf16.msra.mxu0 %v375
      %403 = vmatmul.bf16.gmra.mxu0 %v371
      %v404 = vpop.f32.mrf.mxu0
      %v405 = vadd.f32 0.0, %v404
      %v406 = vpop.f32.mrf.mxu0
      %407 = vdwg.mxu0
      %408 = vmatpush.bf16.msra.mxu0 0
      %409 = vmatpush.bf16.msra.mxu0 0
      %410 = vmatpush.bf16.msra.mxu0 0
      %411 = vmatpush.bf16.msra.mxu0 0
      %412 = vmatpush.bf16.msra.mxu0 0
      %413 = vmatpush.bf16.msra.mxu0 0
      %414 = vmatpush.bf16.msra.mxu0 0
      %415 = vmatpush.bf16.msra.mxu0 %v378
      %416 = vmatmul.bf16.gmra.mxu0 %v371
      %v417 = vpop.f32.mrf.mxu0
      %v418 = vadd.f32 0.0, %v417
      %v419 = vpop.f32.mrf.mxu0
      %420 = vdwg.mxu0
      %421 = vmatpush.bf16.msra.mxu0 0
      %422 = vmatpush.bf16.msra.mxu0 0
      %423 = vmatpush.bf16.msra.mxu0 0
      %424 = vmatpush.bf16.msra.mxu0 0
      %425 = vmatpush.bf16.msra.mxu0 0
      %426 = vmatpush.bf16.msra.mxu0 0
      %427 = vmatpush.bf16.msra.mxu0 0
      %428 = vmatpush.bf16.msra.mxu0 %v381
      %429 = vmatmul.bf16.gmra.mxu0 %v371
      %v430 = vpop.f32.mrf.mxu0
      %v431 = vadd.f32 0.0, %v430
      %v432 = vpop.f32.mrf.mxu0
      %433 = vdwg.mxu0
      %434 = vmatpush.bf16.msra.mxu0 0
      %435 = vmatpush.bf16.msra.mxu0 0
      %436 = vmatpush.bf16.msra.mxu0 0
      %437 = vmatpush.bf16.msra.mxu0 0
      %438 = vmatpush.bf16.msra.mxu0 0
      %439 = vmatpush.bf16.msra.mxu0 0
      %440 = vmatpush.bf16.msra.mxu0 0
      %441 = vmatpush.bf16.msra.mxu0 %v384
      %442 = vmatmul.bf16.gmra.mxu0 %v371
      %v443 = vpop.f32.mrf.mxu0
      %v444 = vadd.f32 0.0, %v443
      %v445 = vpop.f32.mrf.mxu0
      %446 = vdwg.mxu0
      %447 = vmatpush.bf16.msra.mxu0 0
      %448 = vmatpush.bf16.msra.mxu0 0
      %449 = vmatpush.bf16.msra.mxu0 0
      %450 = vmatpush.bf16.msra.mxu0 0
      %451 = vmatpush.bf16.msra.mxu0 0
      %452 = vmatpush.bf16.msra.mxu0 0
      %453 = vmatpush.bf16.msra.mxu0 0
      %454 = vmatpush.bf16.msra.mxu0 %v387
      %455 = vmatmul.bf16.gmra.mxu0 %v371
      %v456 = vpop.f32.mrf.mxu0
      %v457 = vadd.f32 0.0, %v456
      %v458 = vpop.f32.mrf.mxu0
      %459 = vdwg.mxu0
      %460 = vmatpush.bf16.msra.mxu0 0
      %461 = vmatpush.bf16.msra.mxu0 0
      %462 = vmatpush.bf16.msra.mxu0 0
      %463 = vmatpush.bf16.msra.mxu0 0
      %464 = vmatpush.bf16.msra.mxu0 0
      %465 = vmatpush.bf16.msra.mxu0 0
      %466 = vmatpush.bf16.msra.mxu0 0
      %467 = vmatpush.bf16.msra.mxu0 %v390
      %468 = vmatmul.bf16.gmra.mxu0 %v371
      %v469 = vpop.f32.mrf.mxu0
      %v470 = vadd.f32 0.0, %v469
      %v471 = vpop.f32.mrf.mxu0
      %472 = vdwg.mxu0
      %473 = vmatpush.bf16.msra.mxu0 0
      %474 = vmatpush.bf16.msra.mxu0 0
      %475 = vmatpush.bf16.msra.mxu0 0
      %476 = vmatpush.bf16.msra.mxu0 0
      %477 = vmatpush.bf16.msra.mxu0 0
      %478 = vmatpush.bf16.msra.mxu0 0
      %479 = vmatpush.bf16.msra.mxu0 0
      %480 = vmatpush.bf16.msra.mxu0 %v393
      %481 = vmatmul.bf16.gmra.mxu0 %v371
      %v482 = vpop.f32.mrf.mxu0
      %v483 = vadd.f32 0.0, %v482
      %v484 = vpop.f32.mrf.mxu0
      %485 = vdwg.mxu0
      %v487 = vsel %vm369, %v316, 0
      %v490 = vsel %vm373, %v341, 0
      %v493 = vsel %vm373, %v342, 0
      %v496 = vsel %vm373, %v343, 0
      %v499 = vsel %vm373, %v344, 0
      %v502 = vsel %vm373, %v345, 0
      %v505 = vsel %vm373, %v346, 0
      %v508 = vsel %vm373, %v347, 0
      %510 = vmatpush.bf16.msra.mxu0 0
      %511 = vmatpush.bf16.msra.mxu0 0
      %512 = vmatpush.bf16.msra.mxu0 0
      %513 = vmatpush.bf16.msra.mxu0 0
      %514 = vmatpush.bf16.msra.mxu0 0
      %515 = vmatpush.bf16.msra.mxu0 0
      %516 = vmatpush.bf16.msra.mxu0 0
      %517 = vmatpush.bf16.msra.mxu0 %v490
      %518 = vmatmul.bf16.gmra.mxu0 %v487
      %v519 = vpop.f32.mrf.mxu0
      %v520 = vadd.f32 %v405, %v519
      %v521 = vpop.f32.mrf.mxu0
      %522 = vdwg.mxu0
      %523 = vmatpush.bf16.msra.mxu0 0
      %524 = vmatpush.bf16.msra.mxu0 0
      %525 = vmatpush.bf16.msra.mxu0 0
      %526 = vmatpush.bf16.msra.mxu0 0
      %527 = vmatpush.bf16.msra.mxu0 0
      %528 = vmatpush.bf16.msra.mxu0 0
      %529 = vmatpush.bf16.msra.mxu0 0
      %530 = vmatpush.bf16.msra.mxu0 %v493
      %531 = vmatmul.bf16.gmra.mxu0 %v487
      %v532 = vpop.f32.mrf.mxu0
      %v533 = vadd.f32 %v418, %v532
      %v534 = vpop.f32.mrf.mxu0
      %535 = vdwg.mxu0
      %536 = vmatpush.bf16.msra.mxu0 0
      %537 = vmatpush.bf16.msra.mxu0 0
      %538 = vmatpush.bf16.msra.mxu0 0
      %539 = vmatpush.bf16.msra.mxu0 0
      %540 = vmatpush.bf16.msra.mxu0 0
      %541 = vmatpush.bf16.msra.mxu0 0
      %542 = vmatpush.bf16.msra.mxu0 0
      %543 = vmatpush.bf16.msra.mxu0 %v496
      %544 = vmatmul.bf16.gmra.mxu0 %v487
      %v545 = vpop.f32.mrf.mxu0
      %v546 = vadd.f32 %v431, %v545
      %v547 = vpop.f32.mrf.mxu0
      %548 = vdwg.mxu0
      %549 = vmatpush.bf16.msra.mxu0 0
      %550 = vmatpush.bf16.msra.mxu0 0
      %551 = vmatpush.bf16.msra.mxu0 0
      %552 = vmatpush.bf16.msra.mxu0 0
      %553 = vmatpush.bf16.msra.mxu0 0
      %554 = vmatpush.bf16.msra.mxu0 0
      %555 = vmatpush.bf16.msra.mxu0 0
      %556 = vmatpush.bf16.msra.mxu0 %v499
      %557 = vmatmul.bf16.gmra.mxu0 %v487
      %v558 = vpop.f32.mrf.mxu0
      %v559 = vadd.f32 %v444, %v558
      %v560 = vpop.f32.mrf.mxu0
      %561 = vdwg.mxu0
      %562 = vmatpush.bf16.msra.mxu0 0
      %563 = vmatpush.bf16.msra.mxu0 0
      %564 = vmatpush.bf16.msra.mxu0 0
      %565 = vmatpush.bf16.msra.mxu0 0
      %566 = vmatpush.bf16.msra.mxu0 0
      %567 = vmatpush.bf16.msra.mxu0 0
      %568 = vmatpush.bf16.msra.mxu0 0
      %569 = vmatpush.bf16.msra.mxu0 %v502
      %570 = vmatmul.bf16.gmra.mxu0 %v487
      %v571 = vpop.f32.mrf.mxu0
      %v572 = vadd.f32 %v457, %v571
      %v573 = vpop.f32.mrf.mxu0
      %574 = vdwg.mxu0
      %575 = vmatpush.bf16.msra.mxu0 0
      %576 = vmatpush.bf16.msra.mxu0 0
      %577 = vmatpush.bf16.msra.mxu0 0
      %578 = vmatpush.bf16.msra.mxu0 0
      %579 = vmatpush.bf16.msra.mxu0 0
      %580 = vmatpush.bf16.msra.mxu0 0
      %581 = vmatpush.bf16.msra.mxu0 0
      %582 = vmatpush.bf16.msra.mxu0 %v505
      %583 = vmatmul.bf16.gmra.mxu0 %v487
      %v584 = vpop.f32.mrf.mxu0
      %v585 = vadd.f32 %v470, %v584
      %v586 = vpop.f32.mrf.mxu0
      %587 = vdwg.mxu0
      %588 = vmatpush.bf16.msra.mxu0 0
      %589 = vmatpush.bf16.msra.mxu0 0
      %590 = vmatpush.bf16.msra.mxu0 0
      %591 = vmatpush.bf16.msra.mxu0 0
      %592 = vmatpush.bf16.msra.mxu0 0
      %593 = vmatpush.bf16.msra.mxu0 0
      %594 = vmatpush.bf16.msra.mxu0 0
      %595 = vmatpush.bf16.msra.mxu0 %v508
      %596 = vmatmul.bf16.gmra.mxu0 %v487
      %v597 = vpop.f32.mrf.mxu0
      %v598 = vadd.f32 %v483, %v597
      %v599 = vpop.f32.mrf.mxu0
      %600 = vdwg.mxu0
      %s601 = scalar_lea.vmem %s2, 4
      %v602 = vld [vmem:[%s601] sm:$0x3]
      %603 = vrot.lane.b32.xlu0 %v341, 126
      %v604 = vpop.permute.xlu0 %603
      %605 = vrot.lane.b32.xlu0 %v342, 126
      %v606 = vpop.permute.xlu0 %605
      %607 = vrot.lane.b32.xlu0 %v343, 126
      %v608 = vpop.permute.xlu0 %607
      %609 = vrot.lane.b32.xlu0 %v344, 126
      %v610 = vpop.permute.xlu0 %609
      %611 = vrot.lane.b32.xlu0 %v345, 126
      %v612 = vpop.permute.xlu0 %611
      %613 = vrot.lane.b32.xlu0 %v346, 126
      %v614 = vpop.permute.xlu0 %613
      %615 = vrot.lane.b32.xlu0 %v347, 126
      %v616 = vpop.permute.xlu0 %615
      %vm617 = vcmask 1031168
      %v618 = vsel %vm617, %v604, %v606
      %v619 = vsel %vm617, %v606, %v608
      %v620 = vsel %vm617, %v608, %v610
      %v621 = vsel %vm617, %v610, %v612
      %v622 = vsel %vm617, %v612, %v614
      %v623 = vsel %vm617, %v614, %v616
      %v625 = vsel %vm369, %v602, 0
      %v628 = vsel %vm373, %v618, 0
      %v631 = vsel %vm373, %v619, 0
      %v634 = vsel %vm373, %v620, 0
      %v637 = vsel %vm373, %v621, 0
      %v640 = vsel %vm373, %v622, 0
      %v643 = vsel %vm373, %v623, 0
      %v646 = vsel %vm373, %v616, 0
      %648 = vmatpush.bf16.msra.mxu0 0
      %649 = vmatpush.bf16.msra.mxu0 0
      %650 = vmatpush.bf16.msra.mxu0 0
      %651 = vmatpush.bf16.msra.mxu0 0
      %652 = vmatpush.bf16.msra.mxu0 0
      %653 = vmatpush.bf16.msra.mxu0 0
      %654 = vmatpush.bf16.msra.mxu0 0
      %655 = vmatpush.bf16.msra.mxu0 %v628
      %656 = vmatmul.bf16.gmra.mxu0 %v625
      %v657 = vpop.f32.mrf.mxu0
      %v658 = vadd.f32 0.0, %v657
      %v659 = vpop.f32.mrf.mxu0
      %660 = vdwg.mxu0
      %661 = vmatpush.bf16.msra.mxu0 0
      %662 = vmatpush.bf16.msra.mxu0 0
      %663 = vmatpush.bf16.msra.mxu0 0
      %664 = vmatpush.bf16.msra.mxu0 0
      %665 = vmatpush.bf16.msra.mxu0 0
      %666 = vmatpush.bf16.msra.mxu0 0
      %667 = vmatpush.bf16.msra.mxu0 0
      %668 = vmatpush.bf16.msra.mxu0 %v631
      %669 = vmatmul.bf16.gmra.mxu0 %v625
      %v670 = vpop.f32.mrf.mxu0
      %v671 = vadd.f32 0.0, %v670
      %v672 = vpop.f32.mrf.mxu0
      %673 = vdwg.mxu0
      %674 = vmatpush.bf16.msra.mxu0 0
      %675 = vmatpush.bf16.msra.mxu0 0
      %676 = vmatpush.bf16.msra.mxu0 0
      %677 = vmatpush.bf16.msra.mxu0 0
      %678 = vmatpush.bf16.msra.mxu0 0
      %679 = vmatpush.bf16.msra.mxu0 0
      %680 = vmatpush.bf16.msra.mxu0 0
      %681 = vmatpush.bf16.msra.mxu0 %v634
      %682 = vmatmul.bf16.gmra.mxu0 %v625
      %v683 = vpop.f32.mrf.mxu0
      %v684 = vadd.f32 0.0, %v683
      %v685 = vpop.f32.mrf.mxu0
      %686 = vdwg.mxu0
      %687 = vmatpush.bf16.msra.mxu0 0
      %688 = vmatpush.bf16.msra.mxu0 0
      %689 = vmatpush.bf16.msra.mxu0 0
      %690 = vmatpush.bf16.msra.mxu0 0
      %691 = vmatpush.bf16.msra.mxu0 0
      %692 = vmatpush.bf16.msra.mxu0 0
      %693 = vmatpush.bf16.msra.mxu0 0
      %694 = vmatpush.bf16.msra.mxu0 %v637
      %695 = vmatmul.bf16.gmra.mxu0 %v625
      %v696 = vpop.f32.mrf.mxu0
      %v697 = vadd.f32 0.0, %v696
      %v698 = vpop.f32.mrf.mxu0
      %699 = vdwg.mxu0
      %700 = vmatpush.bf16.msra.mxu0 0
      %701 = vmatpush.bf16.msra.mxu0 0
      %702 = vmatpush.bf16.msra.mxu0 0
      %703 = vmatpush.bf16.msra.mxu0 0
      %704 = vmatpush.bf16.msra.mxu0 0
      %705 = vmatpush.bf16.msra.mxu0 0
      %706 = vmatpush.bf16.msra.mxu0 0
      %707 = vmatpush.bf16.msra.mxu0 %v640
      %708 = vmatmul.bf16.gmra.mxu0 %v625
      %v709 = vpop.f32.mrf.mxu0
      %v710 = vadd.f32 0.0, %v709
      %v711 = vpop.f32.mrf.mxu0
      %712 = vdwg.mxu0
      %713 = vmatpush.bf16.msra.mxu0 0
      %714 = vmatpush.bf16.msra.mxu0 0
      %715 = vmatpush.bf16.msra.mxu0 0
      %716 = vmatpush.bf16.msra.mxu0 0
      %717 = vmatpush.bf16.msra.mxu0 0
      %718 = vmatpush.bf16.msra.mxu0 0
      %719 = vmatpush.bf16.msra.mxu0 0
      %720 = vmatpush.bf16.msra.mxu0 %v643
      %721 = vmatmul.bf16.gmra.mxu0 %v625
      %v722 = vpop.f32.mrf.mxu0
      %v723 = vadd.f32 0.0, %v722
      %v724 = vpop.f32.mrf.mxu0
      %725 = vdwg.mxu0
      %726 = vmatpush.bf16.msra.mxu0 0
      %727 = vmatpush.bf16.msra.mxu0 0
      %728 = vmatpush.bf16.msra.mxu0 0
      %729 = vmatpush.bf16.msra.mxu0 0
      %730 = vmatpush.bf16.msra.mxu0 0
      %731 = vmatpush.bf16.msra.mxu0 0
      %732 = vmatpush.bf16.msra.mxu0 0
      %733 = vmatpush.bf16.msra.mxu0 %v646
      %734 = vmatmul.bf16.gmra.mxu0 %v625
      %v735 = vpop.f32.mrf.mxu0
      %v736 = vadd.f32 0.0, %v735
      %v737 = vpop.f32.mrf.mxu0
      %738 = vdwg.mxu0
      %v739 = vadd.f32 %v520, %v658
      %v740 = vadd.f32 %v533, %v671
      %v741 = vadd.f32 %v546, %v684
      %v742 = vadd.f32 %v559, %v697
      %v743 = vadd.f32 %v572, %v710
      %v744 = vadd.f32 %v585, %v723
      %v745 = vadd.f32 %v598, %v736
      %s746 = scalar_lea.vmem %s2, 6
      %v747 = vld [vmem:[%s746] sm:$0x3]
      %748 = vrot.lane.b32.xlu0 %v341, 118
      %v749 = vpop.permute.xlu0 %748
      %750 = vrot.lane.b32.xlu0 %v342, 118
      %v751 = vpop.permute.xlu0 %750
      %752 = vrot.lane.b32.xlu0 %v343, 118
      %v753 = vpop.permute.xlu0 %752
      %754 = vrot.lane.b32.xlu0 %v344, 118
      %v755 = vpop.permute.xlu0 %754
      %756 = vrot.lane.b32.xlu0 %v345, 118
      %v757 = vpop.permute.xlu0 %756
      %758 = vrot.lane.b32.xlu0 %v346, 118
      %v759 = vpop.permute.xlu0 %758
      %760 = vrot.lane.b32.xlu0 %v347, 118
      %v761 = vpop.permute.xlu0 %760
      %vm762 = vcmask 965632
      %v763 = vsel %vm762, %v749, %v751
      %v764 = vsel %vm762, %v751, %v753
      %v765 = vsel %vm762, %v753, %v755
      %v766 = vsel %vm762, %v755, %v757
      %v767 = vsel %vm762, %v757, %v759
      %v768 = vsel %vm762, %v759, %v761
      %v770 = vsel %vm369, %v747, 0
      %v773 = vsel %vm373, %v763, 0
      %v776 = vsel %vm373, %v764, 0
      %v779 = vsel %vm373, %v765, 0
      %v782 = vsel %vm373, %v766, 0
      %v785 = vsel %vm373, %v767, 0
      %v788 = vsel %vm373, %v768, 0
      %v791 = vsel %vm373, %v761, 0
      %793 = vmatpush.bf16.msra.mxu0 0
      %794 = vmatpush.bf16.msra.mxu0 0
      %795 = vmatpush.bf16.msra.mxu0 0
      %796 = vmatpush.bf16.msra.mxu0 0
      %797 = vmatpush.bf16.msra.mxu0 0
      %798 = vmatpush.bf16.msra.mxu0 0
      %799 = vmatpush.bf16.msra.mxu0 0
      %800 = vmatpush.bf16.msra.mxu0 %v773
      %801 = vmatmul.bf16.gmra.mxu0 %v770
      %v802 = vpop.f32.mrf.mxu0
      %v803 = vadd.f32 0.0, %v802
      %v804 = vpop.f32.mrf.mxu0
      %805 = vdwg.mxu0
      %806 = vmatpush.bf16.msra.mxu0 0
      %807 = vmatpush.bf16.msra.mxu0 0
      %808 = vmatpush.bf16.msra.mxu0 0
      %809 = vmatpush.bf16.msra.mxu0 0
      %810 = vmatpush.bf16.msra.mxu0 0
      %811 = vmatpush.bf16.msra.mxu0 0
      %812 = vmatpush.bf16.msra.mxu0 0
      %813 = vmatpush.bf16.msra.mxu0 %v776
      %814 = vmatmul.bf16.gmra.mxu0 %v770
      %v815 = vpop.f32.mrf.mxu0
      %v816 = vadd.f32 0.0, %v815
      %v817 = vpop.f32.mrf.mxu0
      %818 = vdwg.mxu0
      %819 = vmatpush.bf16.msra.mxu0 0
      %820 = vmatpush.bf16.msra.mxu0 0
      %821 = vmatpush.bf16.msra.mxu0 0
      %822 = vmatpush.bf16.msra.mxu0 0
      %823 = vmatpush.bf16.msra.mxu0 0
      %824 = vmatpush.bf16.msra.mxu0 0
      %825 = vmatpush.bf16.msra.mxu0 0
      %826 = vmatpush.bf16.msra.mxu0 %v779
      %827 = vmatmul.bf16.gmra.mxu0 %v770
      %v828 = vpop.f32.mrf.mxu0
      %v829 = vadd.f32 0.0, %v828
      %v830 = vpop.f32.mrf.mxu0
      %831 = vdwg.mxu0
      %832 = vmatpush.bf16.msra.mxu0 0
      %833 = vmatpush.bf16.msra.mxu0 0
      %834 = vmatpush.bf16.msra.mxu0 0
      %835 = vmatpush.bf16.msra.mxu0 0
      %836 = vmatpush.bf16.msra.mxu0 0
      %837 = vmatpush.bf16.msra.mxu0 0
      %838 = vmatpush.bf16.msra.mxu0 0
      %839 = vmatpush.bf16.msra.mxu0 %v782
      %840 = vmatmul.bf16.gmra.mxu0 %v770
      %v841 = vpop.f32.mrf.mxu0
      %v842 = vadd.f32 0.0, %v841
      %v843 = vpop.f32.mrf.mxu0
      %844 = vdwg.mxu0
      %845 = vmatpush.bf16.msra.mxu0 0
      %846 = vmatpush.bf16.msra.mxu0 0
      %847 = vmatpush.bf16.msra.mxu0 0
      %848 = vmatpush.bf16.msra.mxu0 0
      %849 = vmatpush.bf16.msra.mxu0 0
      %850 = vmatpush.bf16.msra.mxu0 0
      %851 = vmatpush.bf16.msra.mxu0 0
      %852 = vmatpush.bf16.msra.mxu0 %v785
      %853 = vmatmul.bf16.gmra.mxu0 %v770
      %v854 = vpop.f32.mrf.mxu0
      %v855 = vadd.f32 0.0, %v854
      %v856 = vpop.f32.mrf.mxu0
      %857 = vdwg.mxu0
      %858 = vmatpush.bf16.msra.mxu0 0
      %859 = vmatpush.bf16.msra.mxu0 0
      %860 = vmatpush.bf16.msra.mxu0 0
      %861 = vmatpush.bf16.msra.mxu0 0
      %862 = vmatpush.bf16.msra.mxu0 0
      %863 = vmatpush.bf16.msra.mxu0 0
      %864 = vmatpush.bf16.msra.mxu0 0
      %865 = vmatpush.bf16.msra.mxu0 %v788
      %866 = vmatmul.bf16.gmra.mxu0 %v770
      %v867 = vpop.f32.mrf.mxu0
      %v868 = vadd.f32 0.0, %v867
      %v869 = vpop.f32.mrf.mxu0
      %870 = vdwg.mxu0
      %871 = vmatpush.bf16.msra.mxu0 0
      %872 = vmatpush.bf16.msra.mxu0 0
      %873 = vmatpush.bf16.msra.mxu0 0
      %874 = vmatpush.bf16.msra.mxu0 0
      %875 = vmatpush.bf16.msra.mxu0 0
      %876 = vmatpush.bf16.msra.mxu0 0
      %877 = vmatpush.bf16.msra.mxu0 0
      %878 = vmatpush.bf16.msra.mxu0 %v791
      %879 = vmatmul.bf16.gmra.mxu0 %v770
      %v880 = vpop.f32.mrf.mxu0
      %v881 = vadd.f32 0.0, %v880
      %v882 = vpop.f32.mrf.mxu0
      %883 = vdwg.mxu0
      %v884 = vadd.f32 %v739, %v803
      %v885 = vadd.f32 %v740, %v816
      %v886 = vadd.f32 %v741, %v829
      %v887 = vadd.f32 %v742, %v842
      %v888 = vadd.f32 %v743, %v855
      %v889 = vadd.f32 %v744, %v868
      %v890 = vadd.f32 %v745, %v881
      %s891 = scalar_lea.vmem %s2, 8
      %v892 = vld [vmem:[%s891] sm:$0x3]
      %893 = vrot.lane.b32.xlu0 %v341, 117
      %v894 = vpop.permute.xlu0 %893
      %895 = vrot.lane.b32.xlu0 %v342, 117
      %v896 = vpop.permute.xlu0 %895
      %897 = vrot.lane.b32.xlu0 %v343, 117
      %v898 = vpop.permute.xlu0 %897
      %899 = vrot.lane.b32.xlu0 %v344, 117
      %v900 = vpop.permute.xlu0 %899
      %901 = vrot.lane.b32.xlu0 %v345, 117
      %v902 = vpop.permute.xlu0 %901
      %903 = vrot.lane.b32.xlu0 %v346, 117
      %v904 = vpop.permute.xlu0 %903
      %905 = vrot.lane.b32.xlu0 %v347, 117
      %v906 = vpop.permute.xlu0 %905
      %vm907 = vcmask 957440
      %v908 = vsel %vm907, %v894, %v896
      %v909 = vsel %vm907, %v896, %v898
      %v910 = vsel %vm907, %v898, %v900
      %v911 = vsel %vm907, %v900, %v902
      %v912 = vsel %vm907, %v902, %v904
      %v913 = vsel %vm907, %v904, %v906
      %v915 = vsel %vm369, %v892, 0
      %v918 = vsel %vm373, %v908, 0
      %v921 = vsel %vm373, %v909, 0
      %v924 = vsel %vm373, %v910, 0
      %v927 = vsel %vm373, %v911, 0
      %v930 = vsel %vm373, %v912, 0
      %v933 = vsel %vm373, %v913, 0
      %v936 = vsel %vm373, %v906, 0
      %938 = vmatpush.bf16.msra.mxu0 0
      %939 = vmatpush.bf16.msra.mxu0 0
      %940 = vmatpush.bf16.msra.mxu0 0
      %941 = vmatpush.bf16.msra.mxu0 0
      %942 = vmatpush.bf16.msra.mxu0 0
      %943 = vmatpush.bf16.msra.mxu0 0
      %944 = vmatpush.bf16.msra.mxu0 0
      %945 = vmatpush.bf16.msra.mxu0 %v918
      %946 = vmatmul.bf16.gmra.mxu0 %v915
      %v947 = vpop.f32.mrf.mxu0
      %v948 = vadd.f32 0.0, %v947
      %v949 = vpop.f32.mrf.mxu0
      %950 = vdwg.mxu0
      %951 = vmatpush.bf16.msra.mxu0 0
      %952 = vmatpush.bf16.msra.mxu0 0
      %953 = vmatpush.bf16.msra.mxu0 0
      %954 = vmatpush.bf16.msra.mxu0 0
      %955 = vmatpush.bf16.msra.mxu0 0
      %956 = vmatpush.bf16.msra.mxu0 0
      %957 = vmatpush.bf16.msra.mxu0 0
      %958 = vmatpush.bf16.msra.mxu0 %v921
      %959 = vmatmul.bf16.gmra.mxu0 %v915
      %v960 = vpop.f32.mrf.mxu0
      %v961 = vadd.f32 0.0, %v960
      %v962 = vpop.f32.mrf.mxu0
      %963 = vdwg.mxu0
      %964 = vmatpush.bf16.msra.mxu0 0
      %965 = vmatpush.bf16.msra.mxu0 0
      %966 = vmatpush.bf16.msra.mxu0 0
      %967 = vmatpush.bf16.msra.mxu0 0
      %968 = vmatpush.bf16.msra.mxu0 0
      %969 = vmatpush.bf16.msra.mxu0 0
      %970 = vmatpush.bf16.msra.mxu0 0
      %971 = vmatpush.bf16.msra.mxu0 %v924
      %972 = vmatmul.bf16.gmra.mxu0 %v915
      %v973 = vpop.f32.mrf.mxu0
      %v974 = vadd.f32 0.0, %v973
      %v975 = vpop.f32.mrf.mxu0
      %976 = vdwg.mxu0
      %977 = vmatpush.bf16.msra.mxu0 0
      %978 = vmatpush.bf16.msra.mxu0 0
      %979 = vmatpush.bf16.msra.mxu0 0
      %980 = vmatpush.bf16.msra.mxu0 0
      %981 = vmatpush.bf16.msra.mxu0 0
      %982 = vmatpush.bf16.msra.mxu0 0
      %983 = vmatpush.bf16.msra.mxu0 0
      %984 = vmatpush.bf16.msra.mxu0 %v927
      %985 = vmatmul.bf16.gmra.mxu0 %v915
      %v986 = vpop.f32.mrf.mxu0
      %v987 = vadd.f32 0.0, %v986
      %v988 = vpop.f32.mrf.mxu0
      %989 = vdwg.mxu0
      %990 = vmatpush.bf16.msra.mxu0 0
      %991 = vmatpush.bf16.msra.mxu0 0
      %992 = vmatpush.bf16.msra.mxu0 0
      %993 = vmatpush.bf16.msra.mxu0 0
      %994 = vmatpush.bf16.msra.mxu0 0
      %995 = vmatpush.bf16.msra.mxu0 0
      %996 = vmatpush.bf16.msra.mxu0 0
      %997 = vmatpush.bf16.msra.mxu0 %v930
      %998 = vmatmul.bf16.gmra.mxu0 %v915
      %v999 = vpop.f32.mrf.mxu0
      %v1000 = vadd.f32 0.0, %v999
      %v1001 = vpop.f32.mrf.mxu0
      %1002 = vdwg.mxu0
      %1003 = vmatpush.bf16.msra.mxu0 0
      %1004 = vmatpush.bf16.msra.mxu0 0
      %1005 = vmatpush.bf16.msra.mxu0 0
      %1006 = vmatpush.bf16.msra.mxu0 0
      %1007 = vmatpush.bf16.msra.mxu0 0
      %1008 = vmatpush.bf16.msra.mxu0 0
      %1009 = vmatpush.bf16.msra.mxu0 0
      %1010 = vmatpush.bf16.msra.mxu0 %v933
      %1011 = vmatmul.bf16.gmra.mxu0 %v915
      %v1012 = vpop.f32.mrf.mxu0
      %v1013 = vadd.f32 0.0, %v1012
      %v1014 = vpop.f32.mrf.mxu0
      %1015 = vdwg.mxu0
      %1016 = vmatpush.bf16.msra.mxu0 0
      %1017 = vmatpush.bf16.msra.mxu0 0
      %1018 = vmatpush.bf16.msra.mxu0 0
      %1019 = vmatpush.bf16.msra.mxu0 0
      %1020 = vmatpush.bf16.msra.mxu0 0
      %1021 = vmatpush.bf16.msra.mxu0 0
      %1022 = vmatpush.bf16.msra.mxu0 0
      %1023 = vmatpush.bf16.msra.mxu0 %v936
      %1024 = vmatmul.bf16.gmra.mxu0 %v915
      %v1025 = vpop.f32.mrf.mxu0
      %v1026 = vadd.f32 0.0, %v1025
      %v1027 = vpop.f32.mrf.mxu0
      %1028 = vdwg.mxu0
      %v1029 = vadd.f32 %v884, %v948
      %v1030 = vadd.f32 %v885, %v961
      %v1031 = vadd.f32 %v886, %v974
      %v1032 = vadd.f32 %v887, %v987
      %v1033 = vadd.f32 %v888, %v1000
      %v1034 = vadd.f32 %v889, %v1013
      %v1035 = vadd.f32 %v890, %v1026
      %s1036 = scalar_lea.vmem %s2, 10
      %v1037 = vld [vmem:[%s1036] sm:$0x3]
      %1038 = vrot.lane.b32.xlu0 %v341, 116
      %v1039 = vpop.permute.xlu0 %1038
      %1040 = vrot.lane.b32.xlu0 %v342, 116
      %v1041 = vpop.permute.xlu0 %1040
      %1042 = vrot.lane.b32.xlu0 %v343, 116
      %v1043 = vpop.permute.xlu0 %1042
      %1044 = vrot.lane.b32.xlu0 %v344, 116
      %v1045 = vpop.permute.xlu0 %1044
      %1046 = vrot.lane.b32.xlu0 %v345, 116
      %v1047 = vpop.permute.xlu0 %1046
      %1048 = vrot.lane.b32.xlu0 %v346, 116
      %v1049 = vpop.permute.xlu0 %1048
      %1050 = vrot.lane.b32.xlu0 %v347, 116
      %v1051 = vpop.permute.xlu0 %1050
      %vm1052 = vcmask 949248
      %v1053 = vsel %vm1052, %v1039, %v1041
      %v1054 = vsel %vm1052, %v1041, %v1043
      %v1055 = vsel %vm1052, %v1043, %v1045
      %v1056 = vsel %vm1052, %v1045, %v1047
      %v1057 = vsel %vm1052, %v1047, %v1049
      %v1058 = vsel %vm1052, %v1049, %v1051
      %v1060 = vsel %vm369, %v1037, 0
      %v1063 = vsel %vm373, %v1053, 0
      %v1066 = vsel %vm373, %v1054, 0
      %v1069 = vsel %vm373, %v1055, 0
      %v1072 = vsel %vm373, %v1056, 0
      %v1075 = vsel %vm373, %v1057, 0
      %v1078 = vsel %vm373, %v1058, 0
      %v1081 = vsel %vm373, %v1051, 0
      %1083 = vmatpush.bf16.msra.mxu0 0
      %1084 = vmatpush.bf16.msra.mxu0 0
      %1085 = vmatpush.bf16.msra.mxu0 0
      %1086 = vmatpush.bf16.msra.mxu0 0
      %1087 = vmatpush.bf16.msra.mxu0 0
      %1088 = vmatpush.bf16.msra.mxu0 0
      %1089 = vmatpush.bf16.msra.mxu0 0
      %1090 = vmatpush.bf16.msra.mxu0 %v1063
      %1091 = vmatmul.bf16.gmra.mxu0 %v1060
      %v1092 = vpop.f32.mrf.mxu0
      %v1093 = vadd.f32 0.0, %v1092
      %v1094 = vpop.f32.mrf.mxu0
      %1095 = vdwg.mxu0
      %1096 = vmatpush.bf16.msra.mxu0 0
      %1097 = vmatpush.bf16.msra.mxu0 0
      %1098 = vmatpush.bf16.msra.mxu0 0
      %1099 = vmatpush.bf16.msra.mxu0 0
      %1100 = vmatpush.bf16.msra.mxu0 0
      %1101 = vmatpush.bf16.msra.mxu0 0
      %1102 = vmatpush.bf16.msra.mxu0 0
      %1103 = vmatpush.bf16.msra.mxu0 %v1066
      %1104 = vmatmul.bf16.gmra.mxu0 %v1060
      %v1105 = vpop.f32.mrf.mxu0
      %v1106 = vadd.f32 0.0, %v1105
      %v1107 = vpop.f32.mrf.mxu0
      %1108 = vdwg.mxu0
      %1109 = vmatpush.bf16.msra.mxu0 0
      %1110 = vmatpush.bf16.msra.mxu0 0
      %1111 = vmatpush.bf16.msra.mxu0 0
      %1112 = vmatpush.bf16.msra.mxu0 0
      %1113 = vmatpush.bf16.msra.mxu0 0
      %1114 = vmatpush.bf16.msra.mxu0 0
      %1115 = vmatpush.bf16.msra.mxu0 0
      %1116 = vmatpush.bf16.msra.mxu0 %v1069
      %1117 = vmatmul.bf16.gmra.mxu0 %v1060
      %v1118 = vpop.f32.mrf.mxu0
      %v1119 = vadd.f32 0.0, %v1118
      %v1120 = vpop.f32.mrf.mxu0
      %1121 = vdwg.mxu0
      %1122 = vmatpush.bf16.msra.mxu0 0
      %1123 = vmatpush.bf16.msra.mxu0 0
      %1124 = vmatpush.bf16.msra.mxu0 0
      %1125 = vmatpush.bf16.msra.mxu0 0
      %1126 = vmatpush.bf16.msra.mxu0 0
      %1127 = vmatpush.bf16.msra.mxu0 0
      %1128 = vmatpush.bf16.msra.mxu0 0
      %1129 = vmatpush.bf16.msra.mxu0 %v1072
      %1130 = vmatmul.bf16.gmra.mxu0 %v1060
      %v1131 = vpop.f32.mrf.mxu0
      %v1132 = vadd.f32 0.0, %v1131
      %v1133 = vpop.f32.mrf.mxu0
      %1134 = vdwg.mxu0
      %1135 = vmatpush.bf16.msra.mxu0 0
      %1136 = vmatpush.bf16.msra.mxu0 0
      %1137 = vmatpush.bf16.msra.mxu0 0
      %1138 = vmatpush.bf16.msra.mxu0 0
      %1139 = vmatpush.bf16.msra.mxu0 0
      %1140 = vmatpush.bf16.msra.mxu0 0
      %1141 = vmatpush.bf16.msra.mxu0 0
      %1142 = vmatpush.bf16.msra.mxu0 %v1075
      %1143 = vmatmul.bf16.gmra.mxu0 %v1060
      %v1144 = vpop.f32.mrf.mxu0
      %v1145 = vadd.f32 0.0, %v1144
      %v1146 = vpop.f32.mrf.mxu0
      %1147 = vdwg.mxu0
      %1148 = vmatpush.bf16.msra.mxu0 0
      %1149 = vmatpush.bf16.msra.mxu0 0
      %1150 = vmatpush.bf16.msra.mxu0 0
      %1151 = vmatpush.bf16.msra.mxu0 0
      %1152 = vmatpush.bf16.msra.mxu0 0
      %1153 = vmatpush.bf16.msra.mxu0 0
      %1154 = vmatpush.bf16.msra.mxu0 0
      %1155 = vmatpush.bf16.msra.mxu0 %v1078
      %1156 = vmatmul.bf16.gmra.mxu0 %v1060
      %v1157 = vpop.f32.mrf.mxu0
      %v1158 = vadd.f32 0.0, %v1157
      %v1159 = vpop.f32.mrf.mxu0
      %1160 = vdwg.mxu0
      %1161 = vmatpush.bf16.msra.mxu0 0
      %1162 = vmatpush.bf16.msra.mxu0 0
      %1163 = vmatpush.bf16.msra.mxu0 0
      %1164 = vmatpush.bf16.msra.mxu0 0
      %1165 = vmatpush.bf16.msra.mxu0 0
      %1166 = vmatpush.bf16.msra.mxu0 0
      %1167 = vmatpush.bf16.msra.mxu0 0
      %1168 = vmatpush.bf16.msra.mxu0 %v1081
      %1169 = vmatmul.bf16.gmra.mxu0 %v1060
      %v1170 = vpop.f32.mrf.mxu0
      %v1171 = vadd.f32 0.0, %v1170
      %v1172 = vpop.f32.mrf.mxu0
      %1173 = vdwg.mxu0
      %v1174 = vadd.f32 %v1029, %v1093
      %v1175 = vadd.f32 %v1030, %v1106
      %v1176 = vadd.f32 %v1031, %v1119
      %v1177 = vadd.f32 %v1032, %v1132
      %v1178 = vadd.f32 %v1033, %v1145
      %v1179 = vadd.f32 %v1034, %v1158
      %v1180 = vadd.f32 %v1035, %v1171
      %s1181 = scalar_lea.vmem %s2, 12
      %v1182 = vld [vmem:[%s1181] sm:$0x3]
      %1183 = vrot.lane.b32.xlu0 %v341, 108
      %v1184 = vpop.permute.xlu0 %1183
      %1185 = vrot.lane.b32.xlu0 %v342, 108
      %v1186 = vpop.permute.xlu0 %1185
      %1187 = vrot.lane.b32.xlu0 %v343, 108
      %v1188 = vpop.permute.xlu0 %1187
      %1189 = vrot.lane.b32.xlu0 %v344, 108
      %v1190 = vpop.permute.xlu0 %1189
      %1191 = vrot.lane.b32.xlu0 %v345, 108
      %v1192 = vpop.permute.xlu0 %1191
      %1193 = vrot.lane.b32.xlu0 %v346, 108
      %v1194 = vpop.permute.xlu0 %1193
      %1195 = vrot.lane.b32.xlu0 %v347, 108
      %v1196 = vpop.permute.xlu0 %1195
      %vm1197 = vcmask 883712
      %v1198 = vsel %vm1197, %v1184, %v1186
      %v1199 = vsel %vm1197, %v1186, %v1188
      %v1200 = vsel %vm1197, %v1188, %v1190
      %v1201 = vsel %vm1197, %v1190, %v1192
      %v1202 = vsel %vm1197, %v1192, %v1194
      %v1203 = vsel %vm1197, %v1194, %v1196
      %v1205 = vsel %vm369, %v1182, 0
      %v1208 = vsel %vm373, %v1198, 0
      %v1211 = vsel %vm373, %v1199, 0
      %v1214 = vsel %vm373, %v1200, 0
      %v1217 = vsel %vm373, %v1201, 0
      %v1220 = vsel %vm373, %v1202, 0
      %v1223 = vsel %vm373, %v1203, 0
      %v1226 = vsel %vm373, %v1196, 0
      %1228 = vmatpush.bf16.msra.mxu0 0
      %1229 = vmatpush.bf16.msra.mxu0 0
      %1230 = vmatpush.bf16.msra.mxu0 0
      %1231 = vmatpush.bf16.msra.mxu0 0
      %1232 = vmatpush.bf16.msra.mxu0 0
      %1233 = vmatpush.bf16.msra.mxu0 0
      %1234 = vmatpush.bf16.msra.mxu0 0
      %1235 = vmatpush.bf16.msra.mxu0 %v1208
      %1236 = vmatmul.bf16.gmra.mxu0 %v1205
      %v1237 = vpop.f32.mrf.mxu0
      %v1238 = vadd.f32 0.0, %v1237
      %v1239 = vpop.f32.mrf.mxu0
      %1240 = vdwg.mxu0
      %1241 = vmatpush.bf16.msra.mxu0 0
      %1242 = vmatpush.bf16.msra.mxu0 0
      %1243 = vmatpush.bf16.msra.mxu0 0
      %1244 = vmatpush.bf16.msra.mxu0 0
      %1245 = vmatpush.bf16.msra.mxu0 0
      %1246 = vmatpush.bf16.msra.mxu0 0
      %1247 = vmatpush.bf16.msra.mxu0 0
      %1248 = vmatpush.bf16.msra.mxu0 %v1211
      %1249 = vmatmul.bf16.gmra.mxu0 %v1205
      %v1250 = vpop.f32.mrf.mxu0
      %v1251 = vadd.f32 0.0, %v1250
      %v1252 = vpop.f32.mrf.mxu0
      %1253 = vdwg.mxu0
      %1254 = vmatpush.bf16.msra.mxu0 0
      %1255 = vmatpush.bf16.msra.mxu0 0
      %1256 = vmatpush.bf16.msra.mxu0 0
      %1257 = vmatpush.bf16.msra.mxu0 0
      %1258 = vmatpush.bf16.msra.mxu0 0
      %1259 = vmatpush.bf16.msra.mxu0 0
      %1260 = vmatpush.bf16.msra.mxu0 0
      %1261 = vmatpush.bf16.msra.mxu0 %v1214
      %1262 = vmatmul.bf16.gmra.mxu0 %v1205
      %v1263 = vpop.f32.mrf.mxu0
      %v1264 = vadd.f32 0.0, %v1263
      %v1265 = vpop.f32.mrf.mxu0
      %1266 = vdwg.mxu0
      %1267 = vmatpush.bf16.msra.mxu0 0
      %1268 = vmatpush.bf16.msra.mxu0 0
      %1269 = vmatpush.bf16.msra.mxu0 0
      %1270 = vmatpush.bf16.msra.mxu0 0
      %1271 = vmatpush.bf16.msra.mxu0 0
      %1272 = vmatpush.bf16.msra.mxu0 0
      %1273 = vmatpush.bf16.msra.mxu0 0
      %1274 = vmatpush.bf16.msra.mxu0 %v1217
      %1275 = vmatmul.bf16.gmra.mxu0 %v1205
      %v1276 = vpop.f32.mrf.mxu0
      %v1277 = vadd.f32 0.0, %v1276
      %v1278 = vpop.f32.mrf.mxu0
      %1279 = vdwg.mxu0
      %1280 = vmatpush.bf16.msra.mxu0 0
      %1281 = vmatpush.bf16.msra.mxu0 0
      %1282 = vmatpush.bf16.msra.mxu0 0
      %1283 = vmatpush.bf16.msra.mxu0 0
      %1284 = vmatpush.bf16.msra.mxu0 0
      %1285 = vmatpush.bf16.msra.mxu0 0
      %1286 = vmatpush.bf16.msra.mxu0 0
      %1287 = vmatpush.bf16.msra.mxu0 %v1220
      %1288 = vmatmul.bf16.gmra.mxu0 %v1205
      %v1289 = vpop.f32.mrf.mxu0
      %v1290 = vadd.f32 0.0, %v1289
      %v1291 = vpop.f32.mrf.mxu0
      %1292 = vdwg.mxu0
      %1293 = vmatpush.bf16.msra.mxu0 0
      %1294 = vmatpush.bf16.msra.mxu0 0
      %1295 = vmatpush.bf16.msra.mxu0 0
      %1296 = vmatpush.bf16.msra.mxu0 0
      %1297 = vmatpush.bf16.msra.mxu0 0
      %1298 = vmatpush.bf16.msra.mxu0 0
      %1299 = vmatpush.bf16.msra.mxu0 0
      %1300 = vmatpush.bf16.msra.mxu0 %v1223
      %1301 = vmatmul.bf16.gmra.mxu0 %v1205
      %v1302 = vpop.f32.mrf.mxu0
      %v1303 = vadd.f32 0.0, %v1302
      %v1304 = vpop.f32.mrf.mxu0
      %1305 = vdwg.mxu0
      %1306 = vmatpush.bf16.msra.mxu0 0
      %1307 = vmatpush.bf16.msra.mxu0 0
      %1308 = vmatpush.bf16.msra.mxu0 0
      %1309 = vmatpush.bf16.msra.mxu0 0
      %1310 = vmatpush.bf16.msra.mxu0 0
      %1311 = vmatpush.bf16.msra.mxu0 0
      %1312 = vmatpush.bf16.msra.mxu0 0
      %1313 = vmatpush.bf16.msra.mxu0 %v1226
      %1314 = vmatmul.bf16.gmra.mxu0 %v1205
      %v1315 = vpop.f32.mrf.mxu0
      %v1316 = vadd.f32 0.0, %v1315
      %v1317 = vpop.f32.mrf.mxu0
      %1318 = vdwg.mxu0
      %v1319 = vadd.f32 %v1174, %v1238
      %v1320 = vadd.f32 %v1175, %v1251
      %v1321 = vadd.f32 %v1176, %v1264
      %v1322 = vadd.f32 %v1177, %v1277
      %v1323 = vadd.f32 %v1178, %v1290
      %v1324 = vadd.f32 %v1179, %v1303
      %v1325 = vadd.f32 %v1180, %v1316
      %s1326 = scalar_lea.vmem %s2, 14
      %v1327 = vld [vmem:[%s1326] sm:$0x3]
      %1328 = vrot.lane.b32.xlu0 %v341, 107
      %v1329 = vpop.permute.xlu0 %1328
      %1330 = vrot.lane.b32.xlu0 %v342, 107
      %v1331 = vpop.permute.xlu0 %1330
      %1332 = vrot.lane.b32.xlu0 %v343, 107
      %v1333 = vpop.permute.xlu0 %1332
      %1334 = vrot.lane.b32.xlu0 %v344, 107
      %v1335 = vpop.permute.xlu0 %1334
      %1336 = vrot.lane.b32.xlu0 %v345, 107
      %v1337 = vpop.permute.xlu0 %1336
      %1338 = vrot.lane.b32.xlu0 %v346, 107
      %v1339 = vpop.permute.xlu0 %1338
      %1340 = vrot.lane.b32.xlu0 %v347, 107
      %v1341 = vpop.permute.xlu0 %1340
      %vm1342 = vcmask 875520
      %v1343 = vsel %vm1342, %v1329, %v1331
      %v1344 = vsel %vm1342, %v1331, %v1333
      %v1345 = vsel %vm1342, %v1333, %v1335
      %v1346 = vsel %vm1342, %v1335, %v1337
      %v1347 = vsel %vm1342, %v1337, %v1339
      %v1348 = vsel %vm1342, %v1339, %v1341
      %v1350 = vsel %vm369, %v1327, 0
      %v1353 = vsel %vm373, %v1343, 0
      %v1356 = vsel %vm373, %v1344, 0
      %v1359 = vsel %vm373, %v1345, 0
      %v1362 = vsel %vm373, %v1346, 0
      %v1365 = vsel %vm373, %v1347, 0
      %v1368 = vsel %vm373, %v1348, 0
      %v1371 = vsel %vm373, %v1341, 0
      %1373 = vmatpush.bf16.msra.mxu0 0
      %1374 = vmatpush.bf16.msra.mxu0 0
      %1375 = vmatpush.bf16.msra.mxu0 0
      %1376 = vmatpush.bf16.msra.mxu0 0
      %1377 = vmatpush.bf16.msra.mxu0 0
      %1378 = vmatpush.bf16.msra.mxu0 0
      %1379 = vmatpush.bf16.msra.mxu0 0
      %1380 = vmatpush.bf16.msra.mxu0 %v1353
      %1381 = vmatmul.bf16.gmra.mxu0 %v1350
      %v1382 = vpop.f32.mrf.mxu0
      %v1383 = vadd.f32 0.0, %v1382
      %v1384 = vpop.f32.mrf.mxu0
      %1385 = vdwg.mxu0
      %1386 = vmatpush.bf16.msra.mxu0 0
      %1387 = vmatpush.bf16.msra.mxu0 0
      %1388 = vmatpush.bf16.msra.mxu0 0
      %1389 = vmatpush.bf16.msra.mxu0 0
      %1390 = vmatpush.bf16.msra.mxu0 0
      %1391 = vmatpush.bf16.msra.mxu0 0
      %1392 = vmatpush.bf16.msra.mxu0 0
      %1393 = vmatpush.bf16.msra.mxu0 %v1356
      %1394 = vmatmul.bf16.gmra.mxu0 %v1350
      %v1395 = vpop.f32.mrf.mxu0
      %v1396 = vadd.f32 0.0, %v1395
      %v1397 = vpop.f32.mrf.mxu0
      %1398 = vdwg.mxu0
      %1399 = vmatpush.bf16.msra.mxu0 0
      %1400 = vmatpush.bf16.msra.mxu0 0
      %1401 = vmatpush.bf16.msra.mxu0 0
      %1402 = vmatpush.bf16.msra.mxu0 0
      %1403 = vmatpush.bf16.msra.mxu0 0
      %1404 = vmatpush.bf16.msra.mxu0 0
      %1405 = vmatpush.bf16.msra.mxu0 0
      %1406 = vmatpush.bf16.msra.mxu0 %v1359
      %1407 = vmatmul.bf16.gmra.mxu0 %v1350
      %v1408 = vpop.f32.mrf.mxu0
      %v1409 = vadd.f32 0.0, %v1408
      %v1410 = vpop.f32.mrf.mxu0
      %1411 = vdwg.mxu0
      %1412 = vmatpush.bf16.msra.mxu0 0
      %1413 = vmatpush.bf16.msra.mxu0 0
      %1414 = vmatpush.bf16.msra.mxu0 0
      %1415 = vmatpush.bf16.msra.mxu0 0
      %1416 = vmatpush.bf16.msra.mxu0 0
      %1417 = vmatpush.bf16.msra.mxu0 0
      %1418 = vmatpush.bf16.msra.mxu0 0
      %1419 = vmatpush.bf16.msra.mxu0 %v1362
      %1420 = vmatmul.bf16.gmra.mxu0 %v1350
      %v1421 = vpop.f32.mrf.mxu0
      %v1422 = vadd.f32 0.0, %v1421
      %v1423 = vpop.f32.mrf.mxu0
      %1424 = vdwg.mxu0
      %1425 = vmatpush.bf16.msra.mxu0 0
      %1426 = vmatpush.bf16.msra.mxu0 0
      %1427 = vmatpush.bf16.msra.mxu0 0
      %1428 = vmatpush.bf16.msra.mxu0 0
      %1429 = vmatpush.bf16.msra.mxu0 0
      %1430 = vmatpush.bf16.msra.mxu0 0
      %1431 = vmatpush.bf16.msra.mxu0 0
      %1432 = vmatpush.bf16.msra.mxu0 %v1365
      %1433 = vmatmul.bf16.gmra.mxu0 %v1350
      %v1434 = vpop.f32.mrf.mxu0
      %v1435 = vadd.f32 0.0, %v1434
      %v1436 = vpop.f32.mrf.mxu0
      %1437 = vdwg.mxu0
      %1438 = vmatpush.bf16.msra.mxu0 0
      %1439 = vmatpush.bf16.msra.mxu0 0
      %1440 = vmatpush.bf16.msra.mxu0 0
      %1441 = vmatpush.bf16.msra.mxu0 0
      %1442 = vmatpush.bf16.msra.mxu0 0
      %1443 = vmatpush.bf16.msra.mxu0 0
      %1444 = vmatpush.bf16.msra.mxu0 0
      %1445 = vmatpush.bf16.msra.mxu0 %v1368
      %1446 = vmatmul.bf16.gmra.mxu0 %v1350
      %v1447 = vpop.f32.mrf.mxu0
      %v1448 = vadd.f32 0.0, %v1447
      %v1449 = vpop.f32.mrf.mxu0
      %1450 = vdwg.mxu0
      %1451 = vmatpush.bf16.msra.mxu0 0
      %1452 = vmatpush.bf16.msra.mxu0 0
      %1453 = vmatpush.bf16.msra.mxu0 0
      %1454 = vmatpush.bf16.msra.mxu0 0
      %1455 = vmatpush.bf16.msra.mxu0 0
      %1456 = vmatpush.bf16.msra.mxu0 0
      %1457 = vmatpush.bf16.msra.mxu0 0
      %1458 = vmatpush.bf16.msra.mxu0 %v1371
      %1459 = vmatmul.bf16.gmra.mxu0 %v1350
      %v1460 = vpop.f32.mrf.mxu0
      %v1461 = vadd.f32 0.0, %v1460
      %v1462 = vpop.f32.mrf.mxu0
      %1463 = vdwg.mxu0
      %v1464 = vadd.f32 %v1319, %v1383
      %v1465 = vadd.f32 %v1320, %v1396
      %v1466 = vadd.f32 %v1321, %v1409
      %v1467 = vadd.f32 %v1322, %v1422
      %v1468 = vadd.f32 %v1323, %v1435
      %v1469 = vadd.f32 %v1324, %v1448
      %v1470 = vadd.f32 %v1325, %v1461
      %s1471 = scalar_lea.vmem %s2, 16
      %v1472 = vld [vmem:[%s1471] sm:$0x3]
      %1473 = vrot.lane.b32.xlu0 %v341, 106
      %v1474 = vpop.permute.xlu0 %1473
      %1475 = vrot.lane.b32.xlu0 %v342, 106
      %v1476 = vpop.permute.xlu0 %1475
      %1477 = vrot.lane.b32.xlu0 %v343, 106
      %v1478 = vpop.permute.xlu0 %1477
      %1479 = vrot.lane.b32.xlu0 %v344, 106
      %v1480 = vpop.permute.xlu0 %1479
      %1481 = vrot.lane.b32.xlu0 %v345, 106
      %v1482 = vpop.permute.xlu0 %1481
      %1483 = vrot.lane.b32.xlu0 %v346, 106
      %v1484 = vpop.permute.xlu0 %1483
      %1485 = vrot.lane.b32.xlu0 %v347, 106
      %v1486 = vpop.permute.xlu0 %1485
      %vm1487 = vcmask 867328
      %v1488 = vsel %vm1487, %v1474, %v1476
      %v1489 = vsel %vm1487, %v1476, %v1478
      %v1490 = vsel %vm1487, %v1478, %v1480
      %v1491 = vsel %vm1487, %v1480, %v1482
      %v1492 = vsel %vm1487, %v1482, %v1484
      %v1493 = vsel %vm1487, %v1484, %v1486
      %v1495 = vsel %vm369, %v1472, 0
      %v1498 = vsel %vm373, %v1488, 0
      %v1501 = vsel %vm373, %v1489, 0
      %v1504 = vsel %vm373, %v1490, 0
      %v1507 = vsel %vm373, %v1491, 0
      %v1510 = vsel %vm373, %v1492, 0
      %v1513 = vsel %vm373, %v1493, 0
      %v1516 = vsel %vm373, %v1486, 0
      %1518 = vmatpush.bf16.msra.mxu0 0
      %1519 = vmatpush.bf16.msra.mxu0 0
      %1520 = vmatpush.bf16.msra.mxu0 0
      %1521 = vmatpush.bf16.msra.mxu0 0
      %1522 = vmatpush.bf16.msra.mxu0 0
      %1523 = vmatpush.bf16.msra.mxu0 0
      %1524 = vmatpush.bf16.msra.mxu0 0
      %1525 = vmatpush.bf16.msra.mxu0 %v1498
      %1526 = vmatmul.bf16.gmra.mxu0 %v1495
      %v1527 = vpop.f32.mrf.mxu0
      %v1528 = vadd.f32 0.0, %v1527
      %v1529 = vpop.f32.mrf.mxu0
      %1530 = vdwg.mxu0
      %1531 = vmatpush.bf16.msra.mxu0 0
      %1532 = vmatpush.bf16.msra.mxu0 0
      %1533 = vmatpush.bf16.msra.mxu0 0
      %1534 = vmatpush.bf16.msra.mxu0 0
      %1535 = vmatpush.bf16.msra.mxu0 0
      %1536 = vmatpush.bf16.msra.mxu0 0
      %1537 = vmatpush.bf16.msra.mxu0 0
      %1538 = vmatpush.bf16.msra.mxu0 %v1501
      %1539 = vmatmul.bf16.gmra.mxu0 %v1495
      %v1540 = vpop.f32.mrf.mxu0
      %v1541 = vadd.f32 0.0, %v1540
      %v1542 = vpop.f32.mrf.mxu0
      %1543 = vdwg.mxu0
      %1544 = vmatpush.bf16.msra.mxu0 0
      %1545 = vmatpush.bf16.msra.mxu0 0
      %1546 = vmatpush.bf16.msra.mxu0 0
      %1547 = vmatpush.bf16.msra.mxu0 0
      %1548 = vmatpush.bf16.msra.mxu0 0
      %1549 = vmatpush.bf16.msra.mxu0 0
      %1550 = vmatpush.bf16.msra.mxu0 0
      %1551 = vmatpush.bf16.msra.mxu0 %v1504
      %1552 = vmatmul.bf16.gmra.mxu0 %v1495
      %v1553 = vpop.f32.mrf.mxu0
      %v1554 = vadd.f32 0.0, %v1553
      %v1555 = vpop.f32.mrf.mxu0
      %1556 = vdwg.mxu0
      %1557 = vmatpush.bf16.msra.mxu0 0
      %1558 = vmatpush.bf16.msra.mxu0 0
      %1559 = vmatpush.bf16.msra.mxu0 0
      %1560 = vmatpush.bf16.msra.mxu0 0
      %1561 = vmatpush.bf16.msra.mxu0 0
      %1562 = vmatpush.bf16.msra.mxu0 0
      %1563 = vmatpush.bf16.msra.mxu0 0
      %1564 = vmatpush.bf16.msra.mxu0 %v1507
      %1565 = vmatmul.bf16.gmra.mxu0 %v1495
      %v1566 = vpop.f32.mrf.mxu0
      %v1567 = vadd.f32 0.0, %v1566
      %v1568 = vpop.f32.mrf.mxu0
      %1569 = vdwg.mxu0
      %1570 = vmatpush.bf16.msra.mxu0 0
      %1571 = vmatpush.bf16.msra.mxu0 0
      %1572 = vmatpush.bf16.msra.mxu0 0
      %1573 = vmatpush.bf16.msra.mxu0 0
      %1574 = vmatpush.bf16.msra.mxu0 0
      %1575 = vmatpush.bf16.msra.mxu0 0
      %1576 = vmatpush.bf16.msra.mxu0 0
      %1577 = vmatpush.bf16.msra.mxu0 %v1510
      %1578 = vmatmul.bf16.gmra.mxu0 %v1495
      %v1579 = vpop.f32.mrf.mxu0
      %v1580 = vadd.f32 0.0, %v1579
      %v1581 = vpop.f32.mrf.mxu0
      %1582 = vdwg.mxu0
      %1583 = vmatpush.bf16.msra.mxu0 0
      %1584 = vmatpush.bf16.msra.mxu0 0
      %1585 = vmatpush.bf16.msra.mxu0 0
      %1586 = vmatpush.bf16.msra.mxu0 0
      %1587 = vmatpush.bf16.msra.mxu0 0
      %1588 = vmatpush.bf16.msra.mxu0 0
      %1589 = vmatpush.bf16.msra.mxu0 0
      %1590 = vmatpush.bf16.msra.mxu0 %v1513
      %1591 = vmatmul.bf16.gmra.mxu0 %v1495
      %v1592 = vpop.f32.mrf.mxu0
      %v1593 = vadd.f32 0.0, %v1592
      %v1594 = vpop.f32.mrf.mxu0
      %1595 = vdwg.mxu0
      %1596 = vmatpush.bf16.msra.mxu0 0
      %1597 = vmatpush.bf16.msra.mxu0 0
      %1598 = vmatpush.bf16.msra.mxu0 0
      %1599 = vmatpush.bf16.msra.mxu0 0
      %1600 = vmatpush.bf16.msra.mxu0 0
      %1601 = vmatpush.bf16.msra.mxu0 0
      %1602 = vmatpush.bf16.msra.mxu0 0
      %1603 = vmatpush.bf16.msra.mxu0 %v1516
      %1604 = vmatmul.bf16.gmra.mxu0 %v1495
      %v1605 = vpop.f32.mrf.mxu0
      %v1606 = vadd.f32 0.0, %v1605
      %v1607 = vpop.f32.mrf.mxu0
      %1608 = vdwg.mxu0
      %v1609 = vadd.f32 %v1464, %v1528
      %v1610 = vadd.f32 %v1465, %v1541
      %v1611 = vadd.f32 %v1466, %v1554
      %v1612 = vadd.f32 %v1467, %v1567
      %v1613 = vadd.f32 %v1468, %v1580
      %v1614 = vadd.f32 %v1469, %v1593
      %v1615 = vadd.f32 %v1470, %v1606
      %s1616 = scalar_lea.vmem %s2, 18
      %v1617 = vld [vmem:[%s1616] sm:$0x3]
      %1618 = vrot.lane.b32.xlu0 %v341, 28
      %v1619 = vpop.permute.xlu0 %1618
      %1620 = vrot.lane.b32.xlu0 %v342, 28
      %v1621 = vpop.permute.xlu0 %1620
      %1622 = vrot.lane.b32.xlu0 %v343, 28
      %v1623 = vpop.permute.xlu0 %1622
      %1624 = vrot.lane.b32.xlu0 %v344, 28
      %v1625 = vpop.permute.xlu0 %1624
      %1626 = vrot.lane.b32.xlu0 %v345, 28
      %v1627 = vpop.permute.xlu0 %1626
      %1628 = vrot.lane.b32.xlu0 %v346, 28
      %v1629 = vpop.permute.xlu0 %1628
      %1630 = vrot.lane.b32.xlu0 %v347, 28
      %v1631 = vpop.permute.xlu0 %1630
      %vm1632 = vcmask 228352
      %v1633 = vsel %vm1632, %v1619, %v1621
      %v1634 = vsel %vm1632, %v1621, %v1623
      %v1635 = vsel %vm1632, %v1623, %v1625
      %v1636 = vsel %vm1632, %v1625, %v1627
      %v1637 = vsel %vm1632, %v1627, %v1629
      %v1638 = vsel %vm1632, %v1629, %v1631
      %v1640 = vsel %vm369, %v1617, 0
      %v1643 = vsel %vm373, %v1633, 0
      %v1646 = vsel %vm373, %v1634, 0
      %v1649 = vsel %vm373, %v1635, 0
      %v1652 = vsel %vm373, %v1636, 0
      %v1655 = vsel %vm373, %v1637, 0
      %v1658 = vsel %vm373, %v1638, 0
      %v1661 = vsel %vm373, %v1631, 0
      %1663 = vmatpush.bf16.msra.mxu0 0
      %1664 = vmatpush.bf16.msra.mxu0 0
      %1665 = vmatpush.bf16.msra.mxu0 0
      %1666 = vmatpush.bf16.msra.mxu0 0
      %1667 = vmatpush.bf16.msra.mxu0 0
      %1668 = vmatpush.bf16.msra.mxu0 0
      %1669 = vmatpush.bf16.msra.mxu0 0
      %1670 = vmatpush.bf16.msra.mxu0 %v1643
      %1671 = vmatmul.bf16.gmra.mxu0 %v1640
      %v1672 = vpop.f32.mrf.mxu0
      %v1673 = vadd.f32 0.0, %v1672
      %v1674 = vpop.f32.mrf.mxu0
      %1675 = vdwg.mxu0
      %1676 = vmatpush.bf16.msra.mxu0 0
      %1677 = vmatpush.bf16.msra.mxu0 0
      %1678 = vmatpush.bf16.msra.mxu0 0
      %1679 = vmatpush.bf16.msra.mxu0 0
      %1680 = vmatpush.bf16.msra.mxu0 0
      %1681 = vmatpush.bf16.msra.mxu0 0
      %1682 = vmatpush.bf16.msra.mxu0 0
      %1683 = vmatpush.bf16.msra.mxu0 %v1646
      %1684 = vmatmul.bf16.gmra.mxu0 %v1640
      %v1685 = vpop.f32.mrf.mxu0
      %v1686 = vadd.f32 0.0, %v1685
      %v1687 = vpop.f32.mrf.mxu0
      %1688 = vdwg.mxu0
      %1689 = vmatpush.bf16.msra.mxu0 0
      %1690 = vmatpush.bf16.msra.mxu0 0
      %1691 = vmatpush.bf16.msra.mxu0 0
      %1692 = vmatpush.bf16.msra.mxu0 0
      %1693 = vmatpush.bf16.msra.mxu0 0
      %1694 = vmatpush.bf16.msra.mxu0 0
      %1695 = vmatpush.bf16.msra.mxu0 0
      %1696 = vmatpush.bf16.msra.mxu0 %v1649
      %1697 = vmatmul.bf16.gmra.mxu0 %v1640
      %v1698 = vpop.f32.mrf.mxu0
      %v1699 = vadd.f32 0.0, %v1698
      %v1700 = vpop.f32.mrf.mxu0
      %1701 = vdwg.mxu0
      %1702 = vmatpush.bf16.msra.mxu0 0
      %1703 = vmatpush.bf16.msra.mxu0 0
      %1704 = vmatpush.bf16.msra.mxu0 0
      %1705 = vmatpush.bf16.msra.mxu0 0
      %1706 = vmatpush.bf16.msra.mxu0 0
      %1707 = vmatpush.bf16.msra.mxu0 0
      %1708 = vmatpush.bf16.msra.mxu0 0
      %1709 = vmatpush.bf16.msra.mxu0 %v1652
      %1710 = vmatmul.bf16.gmra.mxu0 %v1640
      %v1711 = vpop.f32.mrf.mxu0
      %v1712 = vadd.f32 0.0, %v1711
      %v1713 = vpop.f32.mrf.mxu0
      %1714 = vdwg.mxu0
      %1715 = vmatpush.bf16.msra.mxu0 0
      %1716 = vmatpush.bf16.msra.mxu0 0
      %1717 = vmatpush.bf16.msra.mxu0 0
      %1718 = vmatpush.bf16.msra.mxu0 0
      %1719 = vmatpush.bf16.msra.mxu0 0
      %1720 = vmatpush.bf16.msra.mxu0 0
      %1721 = vmatpush.bf16.msra.mxu0 0
      %1722 = vmatpush.bf16.msra.mxu0 %v1655
      %1723 = vmatmul.bf16.gmra.mxu0 %v1640
      %v1724 = vpop.f32.mrf.mxu0
      %v1725 = vadd.f32 0.0, %v1724
      %v1726 = vpop.f32.mrf.mxu0
      %1727 = vdwg.mxu0
      %1728 = vmatpush.bf16.msra.mxu0 0
      %1729 = vmatpush.bf16.msra.mxu0 0
      %1730 = vmatpush.bf16.msra.mxu0 0
      %1731 = vmatpush.bf16.msra.mxu0 0
      %1732 = vmatpush.bf16.msra.mxu0 0
      %1733 = vmatpush.bf16.msra.mxu0 0
      %1734 = vmatpush.bf16.msra.mxu0 0
      %1735 = vmatpush.bf16.msra.mxu0 %v1658
      %1736 = vmatmul.bf16.gmra.mxu0 %v1640
      %v1737 = vpop.f32.mrf.mxu0
      %v1738 = vadd.f32 0.0, %v1737
      %v1739 = vpop.f32.mrf.mxu0
      %1740 = vdwg.mxu0
      %1741 = vmatpush.bf16.msra.mxu0 0
      %1742 = vmatpush.bf16.msra.mxu0 0
      %1743 = vmatpush.bf16.msra.mxu0 0
      %1744 = vmatpush.bf16.msra.mxu0 0
      %1745 = vmatpush.bf16.msra.mxu0 0
      %1746 = vmatpush.bf16.msra.mxu0 0
      %1747 = vmatpush.bf16.msra.mxu0 0
      %1748 = vmatpush.bf16.msra.mxu0 %v1661
      %1749 = vmatmul.bf16.gmra.mxu0 %v1640
      %v1750 = vpop.f32.mrf.mxu0
      %v1751 = vadd.f32 0.0, %v1750
      %v1752 = vpop.f32.mrf.mxu0
      %1753 = vdwg.mxu0
      %v1754 = vadd.f32 %v1609, %v1673
      %v1755 = vadd.f32 %v1610, %v1686
      %v1756 = vadd.f32 %v1611, %v1699
      %v1757 = vadd.f32 %v1612, %v1712
      %v1758 = vadd.f32 %v1613, %v1725
      %v1759 = vadd.f32 %v1614, %v1738
      %v1760 = vadd.f32 %v1615, %v1751
      %s1761 = scalar_lea.vmem %s2, 20
      %v1762 = vld [vmem:[%s1761] sm:$0x3]
      %1763 = vrot.lane.b32.xlu0 %v341, 27
      %v1764 = vpop.permute.xlu0 %1763
      %1765 = vrot.lane.b32.xlu0 %v342, 27
      %v1766 = vpop.permute.xlu0 %1765
      %1767 = vrot.lane.b32.xlu0 %v343, 27
      %v1768 = vpop.permute.xlu0 %1767
      %1769 = vrot.lane.b32.xlu0 %v344, 27
      %v1770 = vpop.permute.xlu0 %1769
      %1771 = vrot.lane.b32.xlu0 %v345, 27
      %v1772 = vpop.permute.xlu0 %1771
      %1773 = vrot.lane.b32.xlu0 %v346, 27
      %v1774 = vpop.permute.xlu0 %1773
      %1775 = vrot.lane.b32.xlu0 %v347, 27
      %v1776 = vpop.permute.xlu0 %1775
      %vm1777 = vcmask 220160
      %v1778 = vsel %vm1777, %v1764, %v1766
      %v1779 = vsel %vm1777, %v1766, %v1768
      %v1780 = vsel %vm1777, %v1768, %v1770
      %v1781 = vsel %vm1777, %v1770, %v1772
      %v1782 = vsel %vm1777, %v1772, %v1774
      %v1783 = vsel %vm1777, %v1774, %v1776
      %v1785 = vsel %vm369, %v1762, 0
      %v1788 = vsel %vm373, %v1778, 0
      %v1791 = vsel %vm373, %v1779, 0
      %v1794 = vsel %vm373, %v1780, 0
      %v1797 = vsel %vm373, %v1781, 0
      %v1800 = vsel %vm373, %v1782, 0
      %v1803 = vsel %vm373, %v1783, 0
      %v1806 = vsel %vm373, %v1776, 0
      %1808 = vmatpush.bf16.msra.mxu0 0
      %1809 = vmatpush.bf16.msra.mxu0 0
      %1810 = vmatpush.bf16.msra.mxu0 0
      %1811 = vmatpush.bf16.msra.mxu0 0
      %1812 = vmatpush.bf16.msra.mxu0 0
      %1813 = vmatpush.bf16.msra.mxu0 0
      %1814 = vmatpush.bf16.msra.mxu0 0
      %1815 = vmatpush.bf16.msra.mxu0 %v1788
      %1816 = vmatmul.bf16.gmra.mxu0 %v1785
      %v1817 = vpop.f32.mrf.mxu0
      %v1818 = vadd.f32 0.0, %v1817
      %v1819 = vpop.f32.mrf.mxu0
      %1820 = vdwg.mxu0
      %1821 = vmatpush.bf16.msra.mxu0 0
      %1822 = vmatpush.bf16.msra.mxu0 0
      %1823 = vmatpush.bf16.msra.mxu0 0
      %1824 = vmatpush.bf16.msra.mxu0 0
      %1825 = vmatpush.bf16.msra.mxu0 0
      %1826 = vmatpush.bf16.msra.mxu0 0
      %1827 = vmatpush.bf16.msra.mxu0 0
      %1828 = vmatpush.bf16.msra.mxu0 %v1791
      %1829 = vmatmul.bf16.gmra.mxu0 %v1785
      %v1830 = vpop.f32.mrf.mxu0
      %v1831 = vadd.f32 0.0, %v1830
      %v1832 = vpop.f32.mrf.mxu0
      %1833 = vdwg.mxu0
      %1834 = vmatpush.bf16.msra.mxu0 0
      %1835 = vmatpush.bf16.msra.mxu0 0
      %1836 = vmatpush.bf16.msra.mxu0 0
      %1837 = vmatpush.bf16.msra.mxu0 0
      %1838 = vmatpush.bf16.msra.mxu0 0
      %1839 = vmatpush.bf16.msra.mxu0 0
      %1840 = vmatpush.bf16.msra.mxu0 0
      %1841 = vmatpush.bf16.msra.mxu0 %v1794
      %1842 = vmatmul.bf16.gmra.mxu0 %v1785
      %v1843 = vpop.f32.mrf.mxu0
      %v1844 = vadd.f32 0.0, %v1843
      %v1845 = vpop.f32.mrf.mxu0
      %1846 = vdwg.mxu0
      %1847 = vmatpush.bf16.msra.mxu0 0
      %1848 = vmatpush.bf16.msra.mxu0 0
      %1849 = vmatpush.bf16.msra.mxu0 0
      %1850 = vmatpush.bf16.msra.mxu0 0
      %1851 = vmatpush.bf16.msra.mxu0 0
      %1852 = vmatpush.bf16.msra.mxu0 0
      %1853 = vmatpush.bf16.msra.mxu0 0
      %1854 = vmatpush.bf16.msra.mxu0 %v1797
      %1855 = vmatmul.bf16.gmra.mxu0 %v1785
      %v1856 = vpop.f32.mrf.mxu0
      %v1857 = vadd.f32 0.0, %v1856
      %v1858 = vpop.f32.mrf.mxu0
      %1859 = vdwg.mxu0
      %1860 = vmatpush.bf16.msra.mxu0 0
      %1861 = vmatpush.bf16.msra.mxu0 0
      %1862 = vmatpush.bf16.msra.mxu0 0
      %1863 = vmatpush.bf16.msra.mxu0 0
      %1864 = vmatpush.bf16.msra.mxu0 0
      %1865 = vmatpush.bf16.msra.mxu0 0
      %1866 = vmatpush.bf16.msra.mxu0 0
      %1867 = vmatpush.bf16.msra.mxu0 %v1800
      %1868 = vmatmul.bf16.gmra.mxu0 %v1785
      %v1869 = vpop.f32.mrf.mxu0
      %v1870 = vadd.f32 0.0, %v1869
      %v1871 = vpop.f32.mrf.mxu0
      %1872 = vdwg.mxu0
      %1873 = vmatpush.bf16.msra.mxu0 0
      %1874 = vmatpush.bf16.msra.mxu0 0
      %1875 = vmatpush.bf16.msra.mxu0 0
      %1876 = vmatpush.bf16.msra.mxu0 0
      %1877 = vmatpush.bf16.msra.mxu0 0
      %1878 = vmatpush.bf16.msra.mxu0 0
      %1879 = vmatpush.bf16.msra.mxu0 0
      %1880 = vmatpush.bf16.msra.mxu0 %v1803
      %1881 = vmatmul.bf16.gmra.mxu0 %v1785
      %v1882 = vpop.f32.mrf.mxu0
      %v1883 = vadd.f32 0.0, %v1882
      %v1884 = vpop.f32.mrf.mxu0
      %1885 = vdwg.mxu0
      %1886 = vmatpush.bf16.msra.mxu0 0
      %1887 = vmatpush.bf16.msra.mxu0 0
      %1888 = vmatpush.bf16.msra.mxu0 0
      %1889 = vmatpush.bf16.msra.mxu0 0
      %1890 = vmatpush.bf16.msra.mxu0 0
      %1891 = vmatpush.bf16.msra.mxu0 0
      %1892 = vmatpush.bf16.msra.mxu0 0
      %1893 = vmatpush.bf16.msra.mxu0 %v1806
      %1894 = vmatmul.bf16.gmra.mxu0 %v1785
      %v1895 = vpop.f32.mrf.mxu0
      %v1896 = vadd.f32 0.0, %v1895
      %v1897 = vpop.f32.mrf.mxu0
      %1898 = vdwg.mxu0
      %v1899 = vadd.f32 %v1754, %v1818
      %v1900 = vadd.f32 %v1755, %v1831
      %v1901 = vadd.f32 %v1756, %v1844
      %v1902 = vadd.f32 %v1757, %v1857
      %v1903 = vadd.f32 %v1758, %v1870
      %v1904 = vadd.f32 %v1759, %v1883
      %v1905 = vadd.f32 %v1760, %v1896
      %s1906 = scalar_lea.vmem %s2, 22
      %v1907 = vld [vmem:[%s1906] sm:$0x3]
      %1908 = vrot.lane.b32.xlu0 %v341, 26
      %v1909 = vpop.permute.xlu0 %1908
      %1910 = vrot.lane.b32.xlu0 %v342, 26
      %v1911 = vpop.permute.xlu0 %1910
      %1912 = vrot.lane.b32.xlu0 %v343, 26
      %v1913 = vpop.permute.xlu0 %1912
      %1914 = vrot.lane.b32.xlu0 %v344, 26
      %v1915 = vpop.permute.xlu0 %1914
      %1916 = vrot.lane.b32.xlu0 %v345, 26
      %v1917 = vpop.permute.xlu0 %1916
      %1918 = vrot.lane.b32.xlu0 %v346, 26
      %v1919 = vpop.permute.xlu0 %1918
      %1920 = vrot.lane.b32.xlu0 %v347, 26
      %v1921 = vpop.permute.xlu0 %1920
      %vm1922 = vcmask 211968
      %v1923 = vsel %vm1922, %v1909, %v1911
      %v1924 = vsel %vm1922, %v1911, %v1913
      %v1925 = vsel %vm1922, %v1913, %v1915
      %v1926 = vsel %vm1922, %v1915, %v1917
      %v1927 = vsel %vm1922, %v1917, %v1919
      %v1928 = vsel %vm1922, %v1919, %v1921
      %v1930 = vsel %vm369, %v1907, 0
      %v1933 = vsel %vm373, %v1923, 0
      %v1936 = vsel %vm373, %v1924, 0
      %v1939 = vsel %vm373, %v1925, 0
      %v1942 = vsel %vm373, %v1926, 0
      %v1945 = vsel %vm373, %v1927, 0
      %v1948 = vsel %vm373, %v1928, 0
      %v1951 = vsel %vm373, %v1921, 0
      %1953 = vmatpush.bf16.msra.mxu0 0
      %1954 = vmatpush.bf16.msra.mxu0 0
      %1955 = vmatpush.bf16.msra.mxu0 0
      %1956 = vmatpush.bf16.msra.mxu0 0
      %1957 = vmatpush.bf16.msra.mxu0 0
      %1958 = vmatpush.bf16.msra.mxu0 0
      %1959 = vmatpush.bf16.msra.mxu0 0
      %1960 = vmatpush.bf16.msra.mxu0 %v1933
      %1961 = vmatmul.bf16.gmra.mxu0 %v1930
      %v1962 = vpop.f32.mrf.mxu0
      %v1963 = vadd.f32 0.0, %v1962
      %v1964 = vpop.f32.mrf.mxu0
      %1965 = vdwg.mxu0
      %1966 = vmatpush.bf16.msra.mxu0 0
      %1967 = vmatpush.bf16.msra.mxu0 0
      %1968 = vmatpush.bf16.msra.mxu0 0
      %1969 = vmatpush.bf16.msra.mxu0 0
      %1970 = vmatpush.bf16.msra.mxu0 0
      %1971 = vmatpush.bf16.msra.mxu0 0
      %1972 = vmatpush.bf16.msra.mxu0 0
      %1973 = vmatpush.bf16.msra.mxu0 %v1936
      %1974 = vmatmul.bf16.gmra.mxu0 %v1930
      %v1975 = vpop.f32.mrf.mxu0
      %v1976 = vadd.f32 0.0, %v1975
      %v1977 = vpop.f32.mrf.mxu0
      %1978 = vdwg.mxu0
      %1979 = vmatpush.bf16.msra.mxu0 0
      %1980 = vmatpush.bf16.msra.mxu0 0
      %1981 = vmatpush.bf16.msra.mxu0 0
      %1982 = vmatpush.bf16.msra.mxu0 0
      %1983 = vmatpush.bf16.msra.mxu0 0
      %1984 = vmatpush.bf16.msra.mxu0 0
      %1985 = vmatpush.bf16.msra.mxu0 0
      %1986 = vmatpush.bf16.msra.mxu0 %v1939
      %1987 = vmatmul.bf16.gmra.mxu0 %v1930
      %v1988 = vpop.f32.mrf.mxu0
      %v1989 = vadd.f32 0.0, %v1988
      %v1990 = vpop.f32.mrf.mxu0
      %1991 = vdwg.mxu0
      %1992 = vmatpush.bf16.msra.mxu0 0
      %1993 = vmatpush.bf16.msra.mxu0 0
      %1994 = vmatpush.bf16.msra.mxu0 0
      %1995 = vmatpush.bf16.msra.mxu0 0
      %1996 = vmatpush.bf16.msra.mxu0 0
      %1997 = vmatpush.bf16.msra.mxu0 0
      %1998 = vmatpush.bf16.msra.mxu0 0
      %1999 = vmatpush.bf16.msra.mxu0 %v1942
      %2000 = vmatmul.bf16.gmra.mxu0 %v1930
      %v2001 = vpop.f32.mrf.mxu0
      %v2002 = vadd.f32 0.0, %v2001
      %v2003 = vpop.f32.mrf.mxu0
      %2004 = vdwg.mxu0
      %2005 = vmatpush.bf16.msra.mxu0 0
      %2006 = vmatpush.bf16.msra.mxu0 0
      %2007 = vmatpush.bf16.msra.mxu0 0
      %2008 = vmatpush.bf16.msra.mxu0 0
      %2009 = vmatpush.bf16.msra.mxu0 0
      %2010 = vmatpush.bf16.msra.mxu0 0
      %2011 = vmatpush.bf16.msra.mxu0 0
      %2012 = vmatpush.bf16.msra.mxu0 %v1945
      %2013 = vmatmul.bf16.gmra.mxu0 %v1930
      %v2014 = vpop.f32.mrf.mxu0
      %v2015 = vadd.f32 0.0, %v2014
      %v2016 = vpop.f32.mrf.mxu0
      %2017 = vdwg.mxu0
      %2018 = vmatpush.bf16.msra.mxu0 0
      %2019 = vmatpush.bf16.msra.mxu0 0
      %2020 = vmatpush.bf16.msra.mxu0 0
      %2021 = vmatpush.bf16.msra.mxu0 0
      %2022 = vmatpush.bf16.msra.mxu0 0
      %2023 = vmatpush.bf16.msra.mxu0 0
      %2024 = vmatpush.bf16.msra.mxu0 0
      %2025 = vmatpush.bf16.msra.mxu0 %v1948
      %2026 = vmatmul.bf16.gmra.mxu0 %v1930
      %v2027 = vpop.f32.mrf.mxu0
      %v2028 = vadd.f32 0.0, %v2027
      %v2029 = vpop.f32.mrf.mxu0
      %2030 = vdwg.mxu0
      %2031 = vmatpush.bf16.msra.mxu0 0
      %2032 = vmatpush.bf16.msra.mxu0 0
      %2033 = vmatpush.bf16.msra.mxu0 0
      %2034 = vmatpush.bf16.msra.mxu0 0
      %2035 = vmatpush.bf16.msra.mxu0 0
      %2036 = vmatpush.bf16.msra.mxu0 0
      %2037 = vmatpush.bf16.msra.mxu0 0
      %2038 = vmatpush.bf16.msra.mxu0 %v1951
      %2039 = vmatmul.bf16.gmra.mxu0 %v1930
      %v2040 = vpop.f32.mrf.mxu0
      %v2041 = vadd.f32 0.0, %v2040
      %v2042 = vpop.f32.mrf.mxu0
      %2043 = vdwg.mxu0
      %v2044 = vadd.f32 %v1899, %v1963
      %v2045 = vadd.f32 %v1900, %v1976
      %v2046 = vadd.f32 %v1901, %v1989
      %v2047 = vadd.f32 %v1902, %v2002
      %v2048 = vadd.f32 %v1903, %v2015
      %v2049 = vadd.f32 %v1904, %v2028
      %v2050 = vadd.f32 %v1905, %v2041
      %s2051 = scalar_lea.vmem %s2, 24
      %v2052 = vld [vmem:[%s2051] sm:$0x3]
      %2053 = vrot.lane.b32.xlu0 %v341, 18
      %v2054 = vpop.permute.xlu0 %2053
      %2055 = vrot.lane.b32.xlu0 %v342, 18
      %v2056 = vpop.permute.xlu0 %2055
      %2057 = vrot.lane.b32.xlu0 %v343, 18
      %v2058 = vpop.permute.xlu0 %2057
      %2059 = vrot.lane.b32.xlu0 %v344, 18
      %v2060 = vpop.permute.xlu0 %2059
      %2061 = vrot.lane.b32.xlu0 %v345, 18
      %v2062 = vpop.permute.xlu0 %2061
      %2063 = vrot.lane.b32.xlu0 %v346, 18
      %v2064 = vpop.permute.xlu0 %2063
      %2065 = vrot.lane.b32.xlu0 %v347, 18
      %v2066 = vpop.permute.xlu0 %2065
      %vm2067 = vcmask 146432
      %v2068 = vsel %vm2067, %v2054, %v2056
      %v2069 = vsel %vm2067, %v2056, %v2058
      %v2070 = vsel %vm2067, %v2058, %v2060
      %v2071 = vsel %vm2067, %v2060, %v2062
      %v2072 = vsel %vm2067, %v2062, %v2064
      %v2073 = vsel %vm2067, %v2064, %v2066
      %v2075 = vsel %vm369, %v2052, 0
      %v2078 = vsel %vm373, %v2068, 0
      %v2081 = vsel %vm373, %v2069, 0
      %v2084 = vsel %vm373, %v2070, 0
      %v2087 = vsel %vm373, %v2071, 0
      %v2090 = vsel %vm373, %v2072, 0
      %v2093 = vsel %vm373, %v2073, 0
      %v2096 = vsel %vm373, %v2066, 0
      %2098 = vmatpush.bf16.msra.mxu0 0
      %2099 = vmatpush.bf16.msra.mxu0 0
      %2100 = vmatpush.bf16.msra.mxu0 0
      %2101 = vmatpush.bf16.msra.mxu0 0
      %2102 = vmatpush.bf16.msra.mxu0 0
      %2103 = vmatpush.bf16.msra.mxu0 0
      %2104 = vmatpush.bf16.msra.mxu0 0
      %2105 = vmatpush.bf16.msra.mxu0 %v2078
      %2106 = vmatmul.bf16.gmra.mxu0 %v2075
      %v2107 = vpop.f32.mrf.mxu0
      %v2108 = vadd.f32 0.0, %v2107
      %v2109 = vpop.f32.mrf.mxu0
      %2110 = vdwg.mxu0
      %2111 = vmatpush.bf16.msra.mxu0 0
      %2112 = vmatpush.bf16.msra.mxu0 0
      %2113 = vmatpush.bf16.msra.mxu0 0
      %2114 = vmatpush.bf16.msra.mxu0 0
      %2115 = vmatpush.bf16.msra.mxu0 0
      %2116 = vmatpush.bf16.msra.mxu0 0
      %2117 = vmatpush.bf16.msra.mxu0 0
      %2118 = vmatpush.bf16.msra.mxu0 %v2081
      %2119 = vmatmul.bf16.gmra.mxu0 %v2075
      %v2120 = vpop.f32.mrf.mxu0
      %v2121 = vadd.f32 0.0, %v2120
      %v2122 = vpop.f32.mrf.mxu0
      %2123 = vdwg.mxu0
      %2124 = vmatpush.bf16.msra.mxu0 0
      %2125 = vmatpush.bf16.msra.mxu0 0
      %2126 = vmatpush.bf16.msra.mxu0 0
      %2127 = vmatpush.bf16.msra.mxu0 0
      %2128 = vmatpush.bf16.msra.mxu0 0
      %2129 = vmatpush.bf16.msra.mxu0 0
      %2130 = vmatpush.bf16.msra.mxu0 0
      %2131 = vmatpush.bf16.msra.mxu0 %v2084
      %2132 = vmatmul.bf16.gmra.mxu0 %v2075
      %v2133 = vpop.f32.mrf.mxu0
      %v2134 = vadd.f32 0.0, %v2133
      %v2135 = vpop.f32.mrf.mxu0
      %2136 = vdwg.mxu0
      %2137 = vmatpush.bf16.msra.mxu0 0
      %2138 = vmatpush.bf16.msra.mxu0 0
      %2139 = vmatpush.bf16.msra.mxu0 0
      %2140 = vmatpush.bf16.msra.mxu0 0
      %2141 = vmatpush.bf16.msra.mxu0 0
      %2142 = vmatpush.bf16.msra.mxu0 0
      %2143 = vmatpush.bf16.msra.mxu0 0
      %2144 = vmatpush.bf16.msra.mxu0 %v2087
      %2145 = vmatmul.bf16.gmra.mxu0 %v2075
      %v2146 = vpop.f32.mrf.mxu0
      %v2147 = vadd.f32 0.0, %v2146
      %v2148 = vpop.f32.mrf.mxu0
      %2149 = vdwg.mxu0
      %2150 = vmatpush.bf16.msra.mxu0 0
      %2151 = vmatpush.bf16.msra.mxu0 0
      %2152 = vmatpush.bf16.msra.mxu0 0
      %2153 = vmatpush.bf16.msra.mxu0 0
      %2154 = vmatpush.bf16.msra.mxu0 0
      %2155 = vmatpush.bf16.msra.mxu0 0
      %2156 = vmatpush.bf16.msra.mxu0 0
      %2157 = vmatpush.bf16.msra.mxu0 %v2090
      %2158 = vmatmul.bf16.gmra.mxu0 %v2075
      %v2159 = vpop.f32.mrf.mxu0
      %v2160 = vadd.f32 0.0, %v2159
      %v2161 = vpop.f32.mrf.mxu0
      %2162 = vdwg.mxu0
      %2163 = vmatpush.bf16.msra.mxu0 0
      %2164 = vmatpush.bf16.msra.mxu0 0
      %2165 = vmatpush.bf16.msra.mxu0 0
      %2166 = vmatpush.bf16.msra.mxu0 0
      %2167 = vmatpush.bf16.msra.mxu0 0
      %2168 = vmatpush.bf16.msra.mxu0 0
      %2169 = vmatpush.bf16.msra.mxu0 0
      %2170 = vmatpush.bf16.msra.mxu0 %v2093
      %2171 = vmatmul.bf16.gmra.mxu0 %v2075
      %v2172 = vpop.f32.mrf.mxu0
      %v2173 = vadd.f32 0.0, %v2172
      %v2174 = vpop.f32.mrf.mxu0
      %2175 = vdwg.mxu0
      %2176 = vmatpush.bf16.msra.mxu0 0
      %2177 = vmatpush.bf16.msra.mxu0 0
      %2178 = vmatpush.bf16.msra.mxu0 0
      %2179 = vmatpush.bf16.msra.mxu0 0
      %2180 = vmatpush.bf16.msra.mxu0 0
      %2181 = vmatpush.bf16.msra.mxu0 0
      %2182 = vmatpush.bf16.msra.mxu0 0
      %2183 = vmatpush.bf16.msra.mxu0 %v2096
      %2184 = vmatmul.bf16.gmra.mxu0 %v2075
      %v2185 = vpop.f32.mrf.mxu0
      %v2186 = vadd.f32 0.0, %v2185
      %v2187 = vpop.f32.mrf.mxu0
      %2188 = vdwg.mxu0
      %v2189 = vadd.f32 %v2044, %v2108
      %v2190 = vadd.f32 %v2045, %v2121
      %v2191 = vadd.f32 %v2046, %v2134
      %v2192 = vadd.f32 %v2047, %v2147
      %v2193 = vadd.f32 %v2048, %v2160
      %v2194 = vadd.f32 %v2049, %v2173
      %v2195 = vadd.f32 %v2050, %v2186
      %s2196 = scalar_lea.vmem %s2, 26
      %v2197 = vld [vmem:[%s2196] sm:$0x3]
      %2198 = vrot.lane.b32.xlu0 %v341, 17
      %v2199 = vpop.permute.xlu0 %2198
      %2200 = vrot.lane.b32.xlu0 %v342, 17
      %v2201 = vpop.permute.xlu0 %2200
      %2202 = vrot.lane.b32.xlu0 %v343, 17
      %v2203 = vpop.permute.xlu0 %2202
      %2204 = vrot.lane.b32.xlu0 %v344, 17
      %v2205 = vpop.permute.xlu0 %2204
      %2206 = vrot.lane.b32.xlu0 %v345, 17
      %v2207 = vpop.permute.xlu0 %2206
      %2208 = vrot.lane.b32.xlu0 %v346, 17
      %v2209 = vpop.permute.xlu0 %2208
      %2210 = vrot.lane.b32.xlu0 %v347, 17
      %v2211 = vpop.permute.xlu0 %2210
      %vm2212 = vcmask 138240
      %v2213 = vsel %vm2212, %v2199, %v2201
      %v2214 = vsel %vm2212, %v2201, %v2203
      %v2215 = vsel %vm2212, %v2203, %v2205
      %v2216 = vsel %vm2212, %v2205, %v2207
      %v2217 = vsel %vm2212, %v2207, %v2209
      %v2218 = vsel %vm2212, %v2209, %v2211
      %v2220 = vsel %vm369, %v2197, 0
      %v2223 = vsel %vm373, %v2213, 0
      %v2226 = vsel %vm373, %v2214, 0
      %v2229 = vsel %vm373, %v2215, 0
      %v2232 = vsel %vm373, %v2216, 0
      %v2235 = vsel %vm373, %v2217, 0
      %v2238 = vsel %vm373, %v2218, 0
      %v2241 = vsel %vm373, %v2211, 0
      %2243 = vmatpush.bf16.msra.mxu0 0
      %2244 = vmatpush.bf16.msra.mxu0 0
      %2245 = vmatpush.bf16.msra.mxu0 0
      %2246 = vmatpush.bf16.msra.mxu0 0
      %2247 = vmatpush.bf16.msra.mxu0 0
      %2248 = vmatpush.bf16.msra.mxu0 0
      %2249 = vmatpush.bf16.msra.mxu0 0
      %2250 = vmatpush.bf16.msra.mxu0 %v2223
      %2251 = vmatmul.bf16.gmra.mxu0 %v2220
      %v2252 = vpop.f32.mrf.mxu0
      %v2253 = vadd.f32 0.0, %v2252
      %v2254 = vpop.f32.mrf.mxu0
      %2255 = vdwg.mxu0
      %2256 = vmatpush.bf16.msra.mxu0 0
      %2257 = vmatpush.bf16.msra.mxu0 0
      %2258 = vmatpush.bf16.msra.mxu0 0
      %2259 = vmatpush.bf16.msra.mxu0 0
      %2260 = vmatpush.bf16.msra.mxu0 0
      %2261 = vmatpush.bf16.msra.mxu0 0
      %2262 = vmatpush.bf16.msra.mxu0 0
      %2263 = vmatpush.bf16.msra.mxu0 %v2226
      %2264 = vmatmul.bf16.gmra.mxu0 %v2220
      %v2265 = vpop.f32.mrf.mxu0
      %v2266 = vadd.f32 0.0, %v2265
      %v2267 = vpop.f32.mrf.mxu0
      %2268 = vdwg.mxu0
      %2269 = vmatpush.bf16.msra.mxu0 0
      %2270 = vmatpush.bf16.msra.mxu0 0
      %2271 = vmatpush.bf16.msra.mxu0 0
      %2272 = vmatpush.bf16.msra.mxu0 0
      %2273 = vmatpush.bf16.msra.mxu0 0
      %2274 = vmatpush.bf16.msra.mxu0 0
      %2275 = vmatpush.bf16.msra.mxu0 0
      %2276 = vmatpush.bf16.msra.mxu0 %v2229
      %2277 = vmatmul.bf16.gmra.mxu0 %v2220
      %v2278 = vpop.f32.mrf.mxu0
      %v2279 = vadd.f32 0.0, %v2278
      %v2280 = vpop.f32.mrf.mxu0
      %2281 = vdwg.mxu0
      %2282 = vmatpush.bf16.msra.mxu0 0
      %2283 = vmatpush.bf16.msra.mxu0 0
      %2284 = vmatpush.bf16.msra.mxu0 0
      %2285 = vmatpush.bf16.msra.mxu0 0
      %2286 = vmatpush.bf16.msra.mxu0 0
      %2287 = vmatpush.bf16.msra.mxu0 0
      %2288 = vmatpush.bf16.msra.mxu0 0
      %2289 = vmatpush.bf16.msra.mxu0 %v2232
      %2290 = vmatmul.bf16.gmra.mxu0 %v2220
      %v2291 = vpop.f32.mrf.mxu0
      %v2292 = vadd.f32 0.0, %v2291
      %v2293 = vpop.f32.mrf.mxu0
      %2294 = vdwg.mxu0
      %2295 = vmatpush.bf16.msra.mxu0 0
      %2296 = vmatpush.bf16.msra.mxu0 0
      %2297 = vmatpush.bf16.msra.mxu0 0
      %2298 = vmatpush.bf16.msra.mxu0 0
      %2299 = vmatpush.bf16.msra.mxu0 0
      %2300 = vmatpush.bf16.msra.mxu0 0
      %2301 = vmatpush.bf16.msra.mxu0 0
      %2302 = vmatpush.bf16.msra.mxu0 %v2235
      %2303 = vmatmul.bf16.gmra.mxu0 %v2220
      %v2304 = vpop.f32.mrf.mxu0
      %v2305 = vadd.f32 0.0, %v2304
      %v2306 = vpop.f32.mrf.mxu0
      %2307 = vdwg.mxu0
      %2308 = vmatpush.bf16.msra.mxu0 0
      %2309 = vmatpush.bf16.msra.mxu0 0
      %2310 = vmatpush.bf16.msra.mxu0 0
      %2311 = vmatpush.bf16.msra.mxu0 0
      %2312 = vmatpush.bf16.msra.mxu0 0
      %2313 = vmatpush.bf16.msra.mxu0 0
      %2314 = vmatpush.bf16.msra.mxu0 0
      %2315 = vmatpush.bf16.msra.mxu0 %v2238
      %2316 = vmatmul.bf16.gmra.mxu0 %v2220
      %v2317 = vpop.f32.mrf.mxu0
      %v2318 = vadd.f32 0.0, %v2317
      %v2319 = vpop.f32.mrf.mxu0
      %2320 = vdwg.mxu0
      %2321 = vmatpush.bf16.msra.mxu0 0
      %2322 = vmatpush.bf16.msra.mxu0 0
      %2323 = vmatpush.bf16.msra.mxu0 0
      %2324 = vmatpush.bf16.msra.mxu0 0
      %2325 = vmatpush.bf16.msra.mxu0 0
      %2326 = vmatpush.bf16.msra.mxu0 0
      %2327 = vmatpush.bf16.msra.mxu0 0
      %2328 = vmatpush.bf16.msra.mxu0 %v2241
      %2329 = vmatmul.bf16.gmra.mxu0 %v2220
      %v2330 = vpop.f32.mrf.mxu0
      %v2331 = vadd.f32 0.0, %v2330
      %v2332 = vpop.f32.mrf.mxu0
      %2333 = vdwg.mxu0
      %v2334 = vadd.f32 %v2189, %v2253
      %v2335 = vadd.f32 %v2190, %v2266
      %v2336 = vadd.f32 %v2191, %v2279
      %v2337 = vadd.f32 %v2192, %v2292
      %v2338 = vadd.f32 %v2193, %v2305
      %v2339 = vadd.f32 %v2194, %v2318
      %v2340 = vadd.f32 %v2195, %v2331
      %s2341 = scalar_lea.vmem %s2, 28
      %v2342 = vld [vmem:[%s2341] sm:$0x3]
      %2343 = vrot.lane.b32.xlu0 %v341, 16
      %v2344 = vpop.permute.xlu0 %2343
      %2345 = vrot.lane.b32.xlu0 %v342, 16
      %v2346 = vpop.permute.xlu0 %2345
      %2347 = vrot.lane.b32.xlu0 %v343, 16
      %v2348 = vpop.permute.xlu0 %2347
      %2349 = vrot.lane.b32.xlu0 %v344, 16
      %v2350 = vpop.permute.xlu0 %2349
      %2351 = vrot.lane.b32.xlu0 %v345, 16
      %v2352 = vpop.permute.xlu0 %2351
      %2353 = vrot.lane.b32.xlu0 %v346, 16
      %v2354 = vpop.permute.xlu0 %2353
      %2355 = vrot.lane.b32.xlu0 %v347, 16
      %v2356 = vpop.permute.xlu0 %2355
      %vm2357 = vcmask 130048
      %v2358 = vsel %vm2357, %v2344, %v2346
      %v2359 = vsel %vm2357, %v2346, %v2348
      %v2360 = vsel %vm2357, %v2348, %v2350
      %v2361 = vsel %vm2357, %v2350, %v2352
      %v2362 = vsel %vm2357, %v2352, %v2354
      %v2363 = vsel %vm2357, %v2354, %v2356
      %v2365 = vsel %vm369, %v2342, 0
      %v2368 = vsel %vm373, %v2358, 0
      %v2371 = vsel %vm373, %v2359, 0
      %v2374 = vsel %vm373, %v2360, 0
      %v2377 = vsel %vm373, %v2361, 0
      %v2380 = vsel %vm373, %v2362, 0
      %v2383 = vsel %vm373, %v2363, 0
      %v2386 = vsel %vm373, %v2356, 0
      %2388 = vmatpush.bf16.msra.mxu0 0
      %2389 = vmatpush.bf16.msra.mxu0 0
      %2390 = vmatpush.bf16.msra.mxu0 0
      %2391 = vmatpush.bf16.msra.mxu0 0
      %2392 = vmatpush.bf16.msra.mxu0 0
      %2393 = vmatpush.bf16.msra.mxu0 0
      %2394 = vmatpush.bf16.msra.mxu0 0
      %2395 = vmatpush.bf16.msra.mxu0 %v2368
      %2396 = vmatmul.bf16.gmra.mxu0 %v2365
      %v2397 = vpop.f32.mrf.mxu0
      %v2398 = vadd.f32 0.0, %v2397
      %v2399 = vpop.f32.mrf.mxu0
      %2400 = vdwg.mxu0
      %2401 = vmatpush.bf16.msra.mxu0 0
      %2402 = vmatpush.bf16.msra.mxu0 0
      %2403 = vmatpush.bf16.msra.mxu0 0
      %2404 = vmatpush.bf16.msra.mxu0 0
      %2405 = vmatpush.bf16.msra.mxu0 0
      %2406 = vmatpush.bf16.msra.mxu0 0
      %2407 = vmatpush.bf16.msra.mxu0 0
      %2408 = vmatpush.bf16.msra.mxu0 %v2371
      %2409 = vmatmul.bf16.gmra.mxu0 %v2365
      %v2410 = vpop.f32.mrf.mxu0
      %v2411 = vadd.f32 0.0, %v2410
      %v2412 = vpop.f32.mrf.mxu0
      %2413 = vdwg.mxu0
      %2414 = vmatpush.bf16.msra.mxu0 0
      %2415 = vmatpush.bf16.msra.mxu0 0
      %2416 = vmatpush.bf16.msra.mxu0 0
      %2417 = vmatpush.bf16.msra.mxu0 0
      %2418 = vmatpush.bf16.msra.mxu0 0
      %2419 = vmatpush.bf16.msra.mxu0 0
      %2420 = vmatpush.bf16.msra.mxu0 0
      %2421 = vmatpush.bf16.msra.mxu0 %v2374
      %2422 = vmatmul.bf16.gmra.mxu0 %v2365
      %v2423 = vpop.f32.mrf.mxu0
      %v2424 = vadd.f32 0.0, %v2423
      %v2425 = vpop.f32.mrf.mxu0
      %2426 = vdwg.mxu0
      %2427 = vmatpush.bf16.msra.mxu0 0
      %2428 = vmatpush.bf16.msra.mxu0 0
      %2429 = vmatpush.bf16.msra.mxu0 0
      %2430 = vmatpush.bf16.msra.mxu0 0
      %2431 = vmatpush.bf16.msra.mxu0 0
      %2432 = vmatpush.bf16.msra.mxu0 0
      %2433 = vmatpush.bf16.msra.mxu0 0
      %2434 = vmatpush.bf16.msra.mxu0 %v2377
      %2435 = vmatmul.bf16.gmra.mxu0 %v2365
      %v2436 = vpop.f32.mrf.mxu0
      %v2437 = vadd.f32 0.0, %v2436
      %v2438 = vpop.f32.mrf.mxu0
      %2439 = vdwg.mxu0
      %2440 = vmatpush.bf16.msra.mxu0 0
      %2441 = vmatpush.bf16.msra.mxu0 0
      %2442 = vmatpush.bf16.msra.mxu0 0
      %2443 = vmatpush.bf16.msra.mxu0 0
      %2444 = vmatpush.bf16.msra.mxu0 0
      %2445 = vmatpush.bf16.msra.mxu0 0
      %2446 = vmatpush.bf16.msra.mxu0 0
      %2447 = vmatpush.bf16.msra.mxu0 %v2380
      %2448 = vmatmul.bf16.gmra.mxu0 %v2365
      %v2449 = vpop.f32.mrf.mxu0
      %v2450 = vadd.f32 0.0, %v2449
      %v2451 = vpop.f32.mrf.mxu0
      %2452 = vdwg.mxu0
      %2453 = vmatpush.bf16.msra.mxu0 0
      %2454 = vmatpush.bf16.msra.mxu0 0
      %2455 = vmatpush.bf16.msra.mxu0 0
      %2456 = vmatpush.bf16.msra.mxu0 0
      %2457 = vmatpush.bf16.msra.mxu0 0
      %2458 = vmatpush.bf16.msra.mxu0 0
      %2459 = vmatpush.bf16.msra.mxu0 0
      %2460 = vmatpush.bf16.msra.mxu0 %v2383
      %2461 = vmatmul.bf16.gmra.mxu0 %v2365
      %v2462 = vpop.f32.mrf.mxu0
      %v2463 = vadd.f32 0.0, %v2462
      %v2464 = vpop.f32.mrf.mxu0
      %2465 = vdwg.mxu0
      %2466 = vmatpush.bf16.msra.mxu0 0
      %2467 = vmatpush.bf16.msra.mxu0 0
      %2468 = vmatpush.bf16.msra.mxu0 0
      %2469 = vmatpush.bf16.msra.mxu0 0
      %2470 = vmatpush.bf16.msra.mxu0 0
      %2471 = vmatpush.bf16.msra.mxu0 0
      %2472 = vmatpush.bf16.msra.mxu0 0
      %2473 = vmatpush.bf16.msra.mxu0 %v2386
      %2474 = vmatmul.bf16.gmra.mxu0 %v2365
      %v2475 = vpop.f32.mrf.mxu0
      %v2476 = vadd.f32 0.0, %v2475
      %v2477 = vpop.f32.mrf.mxu0
      %2478 = vdwg.mxu0
      %v2479 = vadd.f32 %v2334, %v2398
      %v2480 = vadd.f32 %v2335, %v2411
      %v2481 = vadd.f32 %v2336, %v2424
      %v2482 = vadd.f32 %v2337, %v2437
      %v2483 = vadd.f32 %v2338, %v2450
      %v2484 = vadd.f32 %v2339, %v2463
      %v2485 = vadd.f32 %v2340, %v2476
      %s2486 = scalar_lea.vmem %s2, 30
      %v2487 = vld [vmem:[%s2486] sm:$0x3]
      %v2488 = vunpack.c.h.b16 %v310
      %v2489 = vunpack.c.h.b16 %v314
      %v2490 = vpack.c.b16 %v2489, %v2488
      %2491 = vrot.lane.b32.xlu0 %v341, 8
      %v2492 = vpop.permute.xlu0 %2491
      %2493 = vrot.lane.b32.xlu0 %v342, 8
      %v2494 = vpop.permute.xlu0 %2493
      %2495 = vrot.lane.b32.xlu0 %v343, 8
      %v2496 = vpop.permute.xlu0 %2495
      %2497 = vrot.lane.b32.xlu0 %v344, 8
      %v2498 = vpop.permute.xlu0 %2497
      %2499 = vrot.lane.b32.xlu0 %v345, 8
      %v2500 = vpop.permute.xlu0 %2499
      %2501 = vrot.lane.b32.xlu0 %v346, 8
      %v2502 = vpop.permute.xlu0 %2501
      %2503 = vrot.lane.b32.xlu0 %v347, 8
      %v2504 = vpop.permute.xlu0 %2503
      %2505 = vrot.lane.b32.xlu0 %v2490, 8
      %v2506 = vpop.permute.xlu0 %2505
      %vm2507 = vcmask 64512
      %v2508 = vsel %vm2507, %v2492, %v2494
      %v2509 = vsel %vm2507, %v2494, %v2496
      %v2510 = vsel %vm2507, %v2496, %v2498
      %v2511 = vsel %vm2507, %v2498, %v2500
      %v2512 = vsel %vm2507, %v2500, %v2502
      %v2513 = vsel %vm2507, %v2502, %v2504
      %v2514 = vsel %vm2507, %v2504, %v2506
      %v2516 = vsel %vm369, %v2487, 0
      %v2519 = vsel %vm373, %v2508, 0
      %v2522 = vsel %vm373, %v2509, 0
      %v2525 = vsel %vm373, %v2510, 0
      %v2528 = vsel %vm373, %v2511, 0
      %v2531 = vsel %vm373, %v2512, 0
      %v2534 = vsel %vm373, %v2513, 0
      %v2537 = vsel %vm373, %v2514, 0
      %2539 = vmatpush.bf16.msra.mxu0 0
      %2540 = vmatpush.bf16.msra.mxu0 0
      %2541 = vmatpush.bf16.msra.mxu0 0
      %2542 = vmatpush.bf16.msra.mxu0 0
      %2543 = vmatpush.bf16.msra.mxu0 0
      %2544 = vmatpush.bf16.msra.mxu0 0
      %2545 = vmatpush.bf16.msra.mxu0 0
      %2546 = vmatpush.bf16.msra.mxu0 %v2519
      %2547 = vmatmul.bf16.gmra.mxu0 %v2516
      %v2548 = vpop.f32.mrf.mxu0
      %v2549 = vadd.f32 0.0, %v2548
      %v2550 = vpop.f32.mrf.mxu0
      %2551 = vdwg.mxu0
      %2552 = vmatpush.bf16.msra.mxu0 0
      %2553 = vmatpush.bf16.msra.mxu0 0
      %2554 = vmatpush.bf16.msra.mxu0 0
      %2555 = vmatpush.bf16.msra.mxu0 0
      %2556 = vmatpush.bf16.msra.mxu0 0
      %2557 = vmatpush.bf16.msra.mxu0 0
      %2558 = vmatpush.bf16.msra.mxu0 0
      %2559 = vmatpush.bf16.msra.mxu0 %v2522
      %2560 = vmatmul.bf16.gmra.mxu0 %v2516
      %v2561 = vpop.f32.mrf.mxu0
      %v2562 = vadd.f32 0.0, %v2561
      %v2563 = vpop.f32.mrf.mxu0
      %2564 = vdwg.mxu0
      %2565 = vmatpush.bf16.msra.mxu0 0
      %2566 = vmatpush.bf16.msra.mxu0 0
      %2567 = vmatpush.bf16.msra.mxu0 0
      %2568 = vmatpush.bf16.msra.mxu0 0
      %2569 = vmatpush.bf16.msra.mxu0 0
      %2570 = vmatpush.bf16.msra.mxu0 0
      %2571 = vmatpush.bf16.msra.mxu0 0
      %2572 = vmatpush.bf16.msra.mxu0 %v2525
      %2573 = vmatmul.bf16.gmra.mxu0 %v2516
      %v2574 = vpop.f32.mrf.mxu0
      %v2575 = vadd.f32 0.0, %v2574
      %v2576 = vpop.f32.mrf.mxu0
      %2577 = vdwg.mxu0
      %2578 = vmatpush.bf16.msra.mxu0 0
      %2579 = vmatpush.bf16.msra.mxu0 0
      %2580 = vmatpush.bf16.msra.mxu0 0
      %2581 = vmatpush.bf16.msra.mxu0 0
      %2582 = vmatpush.bf16.msra.mxu0 0
      %2583 = vmatpush.bf16.msra.mxu0 0
      %2584 = vmatpush.bf16.msra.mxu0 0
      %2585 = vmatpush.bf16.msra.mxu0 %v2528
      %2586 = vmatmul.bf16.gmra.mxu0 %v2516
      %v2587 = vpop.f32.mrf.mxu0
      %v2588 = vadd.f32 0.0, %v2587
      %v2589 = vpop.f32.mrf.mxu0
      %2590 = vdwg.mxu0
      %2591 = vmatpush.bf16.msra.mxu0 0
      %2592 = vmatpush.bf16.msra.mxu0 0
      %2593 = vmatpush.bf16.msra.mxu0 0
      %2594 = vmatpush.bf16.msra.mxu0 0
      %2595 = vmatpush.bf16.msra.mxu0 0
      %2596 = vmatpush.bf16.msra.mxu0 0
      %2597 = vmatpush.bf16.msra.mxu0 0
      %2598 = vmatpush.bf16.msra.mxu0 %v2531
      %2599 = vmatmul.bf16.gmra.mxu0 %v2516
      %v2600 = vpop.f32.mrf.mxu0
      %v2601 = vadd.f32 0.0, %v2600
      %v2602 = vpop.f32.mrf.mxu0
      %2603 = vdwg.mxu0
      %2604 = vmatpush.bf16.msra.mxu0 0
      %2605 = vmatpush.bf16.msra.mxu0 0
      %2606 = vmatpush.bf16.msra.mxu0 0
      %2607 = vmatpush.bf16.msra.mxu0 0
      %2608 = vmatpush.bf16.msra.mxu0 0
      %2609 = vmatpush.bf16.msra.mxu0 0
      %2610 = vmatpush.bf16.msra.mxu0 0
      %2611 = vmatpush.bf16.msra.mxu0 %v2534
      %2612 = vmatmul.bf16.gmra.mxu0 %v2516
      %v2613 = vpop.f32.mrf.mxu0
      %v2614 = vadd.f32 0.0, %v2613
      %v2615 = vpop.f32.mrf.mxu0
      %2616 = vdwg.mxu0
      %2617 = vmatpush.bf16.msra.mxu0 0
      %2618 = vmatpush.bf16.msra.mxu0 0
      %2619 = vmatpush.bf16.msra.mxu0 0
      %2620 = vmatpush.bf16.msra.mxu0 0
      %2621 = vmatpush.bf16.msra.mxu0 0
      %2622 = vmatpush.bf16.msra.mxu0 0
      %2623 = vmatpush.bf16.msra.mxu0 0
      %2624 = vmatpush.bf16.msra.mxu0 %v2537
      %2625 = vmatmul.bf16.gmra.mxu0 %v2516
      %v2626 = vpop.f32.mrf.mxu0
      %v2627 = vadd.f32 0.0, %v2626
      %v2628 = vpop.f32.mrf.mxu0
      %2629 = vdwg.mxu0
      %v2630 = vadd.f32 %v2479, %v2549
      %v2631 = vadd.f32 %v2480, %v2562
      %v2632 = vadd.f32 %v2481, %v2575
      %v2633 = vadd.f32 %v2482, %v2588
      %v2634 = vadd.f32 %v2483, %v2601
      %v2635 = vadd.f32 %v2484, %v2614
      %v2636 = vadd.f32 %v2485, %v2627
      %s2637 = scalar_lea.vmem %s2, 32
      %v2638 = vld [vmem:[%s2637] sm:$0x3]
      %2639 = vrot.lane.b32.xlu0 %v341, 7
      %v2640 = vpop.permute.xlu0 %2639
      %2641 = vrot.lane.b32.xlu0 %v342, 7
      %v2642 = vpop.permute.xlu0 %2641
      %2643 = vrot.lane.b32.xlu0 %v343, 7
      %v2644 = vpop.permute.xlu0 %2643
      %2645 = vrot.lane.b32.xlu0 %v344, 7
      %v2646 = vpop.permute.xlu0 %2645
      %2647 = vrot.lane.b32.xlu0 %v345, 7
      %v2648 = vpop.permute.xlu0 %2647
      %2649 = vrot.lane.b32.xlu0 %v346, 7
      %v2650 = vpop.permute.xlu0 %2649
      %2651 = vrot.lane.b32.xlu0 %v347, 7
      %v2652 = vpop.permute.xlu0 %2651
      %2653 = vrot.lane.b32.xlu0 %v2490, 7
      %v2654 = vpop.permute.xlu0 %2653
      %vm2655 = vcmask 56320
      %v2656 = vsel %vm2655, %v2640, %v2642
      %v2657 = vsel %vm2655, %v2642, %v2644
      %v2658 = vsel %vm2655, %v2644, %v2646
      %v2659 = vsel %vm2655, %v2646, %v2648
      %v2660 = vsel %vm2655, %v2648, %v2650
      %v2661 = vsel %vm2655, %v2650, %v2652
      %v2662 = vsel %vm2655, %v2652, %v2654
      %v2664 = vsel %vm369, %v2638, 0
      %v2667 = vsel %vm373, %v2656, 0
      %v2670 = vsel %vm373, %v2657, 0
      %v2673 = vsel %vm373, %v2658, 0
      %v2676 = vsel %vm373, %v2659, 0
      %v2679 = vsel %vm373, %v2660, 0
      %v2682 = vsel %vm373, %v2661, 0
      %v2685 = vsel %vm373, %v2662, 0
      %2687 = vmatpush.bf16.msra.mxu0 0
      %2688 = vmatpush.bf16.msra.mxu0 0
      %2689 = vmatpush.bf16.msra.mxu0 0
      %2690 = vmatpush.bf16.msra.mxu0 0
      %2691 = vmatpush.bf16.msra.mxu0 0
      %2692 = vmatpush.bf16.msra.mxu0 0
      %2693 = vmatpush.bf16.msra.mxu0 0
      %2694 = vmatpush.bf16.msra.mxu0 %v2667
      %2695 = vmatmul.bf16.gmra.mxu0 %v2664
      %v2696 = vpop.f32.mrf.mxu0
      %v2697 = vadd.f32 0.0, %v2696
      %v2698 = vpop.f32.mrf.mxu0
      %2699 = vdwg.mxu0
      %2700 = vmatpush.bf16.msra.mxu0 0
      %2701 = vmatpush.bf16.msra.mxu0 0
      %2702 = vmatpush.bf16.msra.mxu0 0
      %2703 = vmatpush.bf16.msra.mxu0 0
      %2704 = vmatpush.bf16.msra.mxu0 0
      %2705 = vmatpush.bf16.msra.mxu0 0
      %2706 = vmatpush.bf16.msra.mxu0 0
      %2707 = vmatpush.bf16.msra.mxu0 %v2670
      %2708 = vmatmul.bf16.gmra.mxu0 %v2664
      %v2709 = vpop.f32.mrf.mxu0
      %v2710 = vadd.f32 0.0, %v2709
      %v2711 = vpop.f32.mrf.mxu0
      %2712 = vdwg.mxu0
      %2713 = vmatpush.bf16.msra.mxu0 0
      %2714 = vmatpush.bf16.msra.mxu0 0
      %2715 = vmatpush.bf16.msra.mxu0 0
      %2716 = vmatpush.bf16.msra.mxu0 0
      %2717 = vmatpush.bf16.msra.mxu0 0
      %2718 = vmatpush.bf16.msra.mxu0 0
      %2719 = vmatpush.bf16.msra.mxu0 0
      %2720 = vmatpush.bf16.msra.mxu0 %v2673
      %2721 = vmatmul.bf16.gmra.mxu0 %v2664
      %v2722 = vpop.f32.mrf.mxu0
      %v2723 = vadd.f32 0.0, %v2722
      %v2724 = vpop.f32.mrf.mxu0
      %2725 = vdwg.mxu0
      %2726 = vmatpush.bf16.msra.mxu0 0
      %2727 = vmatpush.bf16.msra.mxu0 0
      %2728 = vmatpush.bf16.msra.mxu0 0
      %2729 = vmatpush.bf16.msra.mxu0 0
      %2730 = vmatpush.bf16.msra.mxu0 0
      %2731 = vmatpush.bf16.msra.mxu0 0
      %2732 = vmatpush.bf16.msra.mxu0 0
      %2733 = vmatpush.bf16.msra.mxu0 %v2676
      %2734 = vmatmul.bf16.gmra.mxu0 %v2664
      %v2735 = vpop.f32.mrf.mxu0
      %v2736 = vadd.f32 0.0, %v2735
      %v2737 = vpop.f32.mrf.mxu0
      %2738 = vdwg.mxu0
      %2739 = vmatpush.bf16.msra.mxu0 0
      %2740 = vmatpush.bf16.msra.mxu0 0
      %2741 = vmatpush.bf16.msra.mxu0 0
      %2742 = vmatpush.bf16.msra.mxu0 0
      %2743 = vmatpush.bf16.msra.mxu0 0
      %2744 = vmatpush.bf16.msra.mxu0 0
      %2745 = vmatpush.bf16.msra.mxu0 0
      %2746 = vmatpush.bf16.msra.mxu0 %v2679
      %2747 = vmatmul.bf16.gmra.mxu0 %v2664
      %v2748 = vpop.f32.mrf.mxu0
      %v2749 = vadd.f32 0.0, %v2748
      %v2750 = vpop.f32.mrf.mxu0
      %2751 = vdwg.mxu0
      %2752 = vmatpush.bf16.msra.mxu0 0
      %2753 = vmatpush.bf16.msra.mxu0 0
      %2754 = vmatpush.bf16.msra.mxu0 0
      %2755 = vmatpush.bf16.msra.mxu0 0
      %2756 = vmatpush.bf16.msra.mxu0 0
      %2757 = vmatpush.bf16.msra.mxu0 0
      %2758 = vmatpush.bf16.msra.mxu0 0
      %2759 = vmatpush.bf16.msra.mxu0 %v2682
      %2760 = vmatmul.bf16.gmra.mxu0 %v2664
      %v2761 = vpop.f32.mrf.mxu0
      %v2762 = vadd.f32 0.0, %v2761
      %v2763 = vpop.f32.mrf.mxu0
      %2764 = vdwg.mxu0
      %2765 = vmatpush.bf16.msra.mxu0 0
      %2766 = vmatpush.bf16.msra.mxu0 0
      %2767 = vmatpush.bf16.msra.mxu0 0
      %2768 = vmatpush.bf16.msra.mxu0 0
      %2769 = vmatpush.bf16.msra.mxu0 0
      %2770 = vmatpush.bf16.msra.mxu0 0
      %2771 = vmatpush.bf16.msra.mxu0 0
      %2772 = vmatpush.bf16.msra.mxu0 %v2685
      %2773 = vmatmul.bf16.gmra.mxu0 %v2664
      %v2774 = vpop.f32.mrf.mxu0
      %v2775 = vadd.f32 0.0, %v2774
      %v2776 = vpop.f32.mrf.mxu0
      %2777 = vdwg.mxu0
      %v2778 = vadd.f32 %v2630, %v2697
      %v2779 = vadd.f32 %v2631, %v2710
      %v2780 = vadd.f32 %v2632, %v2723
      %v2781 = vadd.f32 %v2633, %v2736
      %v2782 = vadd.f32 %v2634, %v2749
      %v2783 = vadd.f32 %v2635, %v2762
      %v2784 = vadd.f32 %v2636, %v2775
      %s2785 = scalar_lea.vmem %s2, 34
      %v2786 = vld [vmem:[%s2785] sm:$0x3]
      %2787 = vrot.lane.b32.xlu0 %v341, 6
      %v2788 = vpop.permute.xlu0 %2787
      %2789 = vrot.lane.b32.xlu0 %v342, 6
      %v2790 = vpop.permute.xlu0 %2789
      %2791 = vrot.lane.b32.xlu0 %v343, 6
      %v2792 = vpop.permute.xlu0 %2791
      %2793 = vrot.lane.b32.xlu0 %v344, 6
      %v2794 = vpop.permute.xlu0 %2793
      %2795 = vrot.lane.b32.xlu0 %v345, 6
      %v2796 = vpop.permute.xlu0 %2795
      %2797 = vrot.lane.b32.xlu0 %v346, 6
      %v2798 = vpop.permute.xlu0 %2797
      %2799 = vrot.lane.b32.xlu0 %v347, 6
      %v2800 = vpop.permute.xlu0 %2799
      %2801 = vrot.lane.b32.xlu0 %v2490, 6
      %v2802 = vpop.permute.xlu0 %2801
      %vm2803 = vcmask 48128
      %v2804 = vsel %vm2803, %v2788, %v2790
      %v2805 = vsel %vm2803, %v2790, %v2792
      %v2806 = vsel %vm2803, %v2792, %v2794
      %v2807 = vsel %vm2803, %v2794, %v2796
      %v2808 = vsel %vm2803, %v2796, %v2798
      %v2809 = vsel %vm2803, %v2798, %v2800
      %v2810 = vsel %vm2803, %v2800, %v2802
      %v2812 = vsel %vm369, %v2786, 0
      %v2815 = vsel %vm373, %v2804, 0
      %v2818 = vsel %vm373, %v2805, 0
      %v2821 = vsel %vm373, %v2806, 0
      %v2824 = vsel %vm373, %v2807, 0
      %v2827 = vsel %vm373, %v2808, 0
      %v2830 = vsel %vm373, %v2809, 0
      %v2833 = vsel %vm373, %v2810, 0
      %2835 = vmatpush.bf16.msra.mxu0 0
      %2836 = vmatpush.bf16.msra.mxu0 0
      %2837 = vmatpush.bf16.msra.mxu0 0
      %2838 = vmatpush.bf16.msra.mxu0 0
      %2839 = vmatpush.bf16.msra.mxu0 0
      %2840 = vmatpush.bf16.msra.mxu0 0
      %2841 = vmatpush.bf16.msra.mxu0 0
      %2842 = vmatpush.bf16.msra.mxu0 %v2815
      %2843 = vmatmul.bf16.gmra.mxu0 %v2812
      %v2844 = vpop.f32.mrf.mxu0
      %v2845 = vadd.f32 0.0, %v2844
      %v2846 = vpop.f32.mrf.mxu0
      %2847 = vdwg.mxu0
      %2848 = vmatpush.bf16.msra.mxu0 0
      %2849 = vmatpush.bf16.msra.mxu0 0
      %2850 = vmatpush.bf16.msra.mxu0 0
      %2851 = vmatpush.bf16.msra.mxu0 0
      %2852 = vmatpush.bf16.msra.mxu0 0
      %2853 = vmatpush.bf16.msra.mxu0 0
      %2854 = vmatpush.bf16.msra.mxu0 0
      %2855 = vmatpush.bf16.msra.mxu0 %v2818
      %2856 = vmatmul.bf16.gmra.mxu0 %v2812
      %v2857 = vpop.f32.mrf.mxu0
      %v2858 = vadd.f32 0.0, %v2857
      %v2859 = vpop.f32.mrf.mxu0
      %2860 = vdwg.mxu0
      %2861 = vmatpush.bf16.msra.mxu0 0
      %2862 = vmatpush.bf16.msra.mxu0 0
      %2863 = vmatpush.bf16.msra.mxu0 0
      %2864 = vmatpush.bf16.msra.mxu0 0
      %2865 = vmatpush.bf16.msra.mxu0 0
      %2866 = vmatpush.bf16.msra.mxu0 0
      %2867 = vmatpush.bf16.msra.mxu0 0
      %2868 = vmatpush.bf16.msra.mxu0 %v2821
      %2869 = vmatmul.bf16.gmra.mxu0 %v2812
      %v2870 = vpop.f32.mrf.mxu0
      %v2871 = vadd.f32 0.0, %v2870
      %v2872 = vpop.f32.mrf.mxu0
      %2873 = vdwg.mxu0
      %2874 = vmatpush.bf16.msra.mxu0 0
      %2875 = vmatpush.bf16.msra.mxu0 0
      %2876 = vmatpush.bf16.msra.mxu0 0
      %2877 = vmatpush.bf16.msra.mxu0 0
      %2878 = vmatpush.bf16.msra.mxu0 0
      %2879 = vmatpush.bf16.msra.mxu0 0
      %2880 = vmatpush.bf16.msra.mxu0 0
      %2881 = vmatpush.bf16.msra.mxu0 %v2824
      %2882 = vmatmul.bf16.gmra.mxu0 %v2812
      %v2883 = vpop.f32.mrf.mxu0
      %v2884 = vadd.f32 0.0, %v2883
      %v2885 = vpop.f32.mrf.mxu0
      %2886 = vdwg.mxu0
      %2887 = vmatpush.bf16.msra.mxu0 0
      %2888 = vmatpush.bf16.msra.mxu0 0
      %2889 = vmatpush.bf16.msra.mxu0 0
      %2890 = vmatpush.bf16.msra.mxu0 0
      %2891 = vmatpush.bf16.msra.mxu0 0
      %2892 = vmatpush.bf16.msra.mxu0 0
      %2893 = vmatpush.bf16.msra.mxu0 0
      %2894 = vmatpush.bf16.msra.mxu0 %v2827
      %2895 = vmatmul.bf16.gmra.mxu0 %v2812
      %v2896 = vpop.f32.mrf.mxu0
      %v2897 = vadd.f32 0.0, %v2896
      %v2898 = vpop.f32.mrf.mxu0
      %2899 = vdwg.mxu0
      %2900 = vmatpush.bf16.msra.mxu0 0
      %2901 = vmatpush.bf16.msra.mxu0 0
      %2902 = vmatpush.bf16.msra.mxu0 0
      %2903 = vmatpush.bf16.msra.mxu0 0
      %2904 = vmatpush.bf16.msra.mxu0 0
      %2905 = vmatpush.bf16.msra.mxu0 0
      %2906 = vmatpush.bf16.msra.mxu0 0
      %2907 = vmatpush.bf16.msra.mxu0 %v2830
      %2908 = vmatmul.bf16.gmra.mxu0 %v2812
      %v2909 = vpop.f32.mrf.mxu0
      %v2910 = vadd.f32 0.0, %v2909
      %v2911 = vpop.f32.mrf.mxu0
      %2912 = vdwg.mxu0
      %2913 = vmatpush.bf16.msra.mxu0 0
      %2914 = vmatpush.bf16.msra.mxu0 0
      %2915 = vmatpush.bf16.msra.mxu0 0
      %2916 = vmatpush.bf16.msra.mxu0 0
      %2917 = vmatpush.bf16.msra.mxu0 0
      %2918 = vmatpush.bf16.msra.mxu0 0
      %2919 = vmatpush.bf16.msra.mxu0 0
      %2920 = vmatpush.bf16.msra.mxu0 %v2833
      %2921 = vmatmul.bf16.gmra.mxu0 %v2812
      %v2922 = vpop.f32.mrf.mxu0
      %v2923 = vadd.f32 0.0, %v2922
      %v2924 = vpop.f32.mrf.mxu0
      %2925 = vdwg.mxu0
      %v2926 = vadd.f32 %v2778, %v2845
      %v2927 = vadd.f32 %v2779, %v2858
      %v2928 = vadd.f32 %v2780, %v2871
      %v2929 = vadd.f32 %v2781, %v2884
      %v2930 = vadd.f32 %v2782, %v2897
      %v2931 = vadd.f32 %v2783, %v2910
      %v2932 = vadd.f32 %v2784, %v2923
      %s2933 = scalar_lea.vmem %s2, 36
      %v2934 = vld [vmem:[%s2933] sm:$0x3]
      %2935 = vrot.lane.b32.xlu0 %v342, 56
      %v2936 = vpop.permute.xlu0 %2935
      %2937 = vrot.lane.b32.xlu0 %v343, 56
      %v2938 = vpop.permute.xlu0 %2937
      %2939 = vrot.lane.b32.xlu0 %v344, 56
      %v2940 = vpop.permute.xlu0 %2939
      %2941 = vrot.lane.b32.xlu0 %v345, 56
      %v2942 = vpop.permute.xlu0 %2941
      %2943 = vrot.lane.b32.xlu0 %v346, 56
      %v2944 = vpop.permute.xlu0 %2943
      %2945 = vrot.lane.b32.xlu0 %v347, 56
      %v2946 = vpop.permute.xlu0 %2945
      %2947 = vrot.lane.b32.xlu0 %v2490, 56
      %v2948 = vpop.permute.xlu0 %2947
      %vm2949 = vcmask 457728
      %v2950 = vsel %vm2949, %v2936, %v2938
      %v2951 = vsel %vm2949, %v2938, %v2940
      %v2952 = vsel %vm2949, %v2940, %v2942
      %v2953 = vsel %vm2949, %v2942, %v2944
      %v2954 = vsel %vm2949, %v2944, %v2946
      %v2955 = vsel %vm2949, %v2946, %v2948
      %v2957 = vsel %vm369, %v2934, 0
      %v2960 = vsel %vm373, %v2950, 0
      %v2963 = vsel %vm373, %v2951, 0
      %v2966 = vsel %vm373, %v2952, 0
      %v2969 = vsel %vm373, %v2953, 0
      %v2972 = vsel %vm373, %v2954, 0
      %v2975 = vsel %vm373, %v2955, 0
      %v2978 = vsel %vm373, %v2948, 0
      %2980 = vmatpush.bf16.msra.mxu0 0
      %2981 = vmatpush.bf16.msra.mxu0 0
      %2982 = vmatpush.bf16.msra.mxu0 0
      %2983 = vmatpush.bf16.msra.mxu0 0
      %2984 = vmatpush.bf16.msra.mxu0 0
      %2985 = vmatpush.bf16.msra.mxu0 0
      %2986 = vmatpush.bf16.msra.mxu0 0
      %2987 = vmatpush.bf16.msra.mxu0 %v2960
      %2988 = vmatmul.bf16.gmra.mxu0 %v2957
      %v2989 = vpop.f32.mrf.mxu0
      %v2990 = vadd.f32 0.0, %v2989
      %v2991 = vpop.f32.mrf.mxu0
      %2992 = vdwg.mxu0
      %2993 = vmatpush.bf16.msra.mxu0 0
      %2994 = vmatpush.bf16.msra.mxu0 0
      %2995 = vmatpush.bf16.msra.mxu0 0
      %2996 = vmatpush.bf16.msra.mxu0 0
      %2997 = vmatpush.bf16.msra.mxu0 0
      %2998 = vmatpush.bf16.msra.mxu0 0
      %2999 = vmatpush.bf16.msra.mxu0 0
      %3000 = vmatpush.bf16.msra.mxu0 %v2963
      %3001 = vmatmul.bf16.gmra.mxu0 %v2957
      %v3002 = vpop.f32.mrf.mxu0
      %v3003 = vadd.f32 0.0, %v3002
      %v3004 = vpop.f32.mrf.mxu0
      %3005 = vdwg.mxu0
      %3006 = vmatpush.bf16.msra.mxu0 0
      %3007 = vmatpush.bf16.msra.mxu0 0
      %3008 = vmatpush.bf16.msra.mxu0 0
      %3009 = vmatpush.bf16.msra.mxu0 0
      %3010 = vmatpush.bf16.msra.mxu0 0
      %3011 = vmatpush.bf16.msra.mxu0 0
      %3012 = vmatpush.bf16.msra.mxu0 0
      %3013 = vmatpush.bf16.msra.mxu0 %v2966
      %3014 = vmatmul.bf16.gmra.mxu0 %v2957
      %v3015 = vpop.f32.mrf.mxu0
      %v3016 = vadd.f32 0.0, %v3015
      %v3017 = vpop.f32.mrf.mxu0
      %3018 = vdwg.mxu0
      %3019 = vmatpush.bf16.msra.mxu0 0
      %3020 = vmatpush.bf16.msra.mxu0 0
      %3021 = vmatpush.bf16.msra.mxu0 0
      %3022 = vmatpush.bf16.msra.mxu0 0
      %3023 = vmatpush.bf16.msra.mxu0 0
      %3024 = vmatpush.bf16.msra.mxu0 0
      %3025 = vmatpush.bf16.msra.mxu0 0
      %3026 = vmatpush.bf16.msra.mxu0 %v2969
      %3027 = vmatmul.bf16.gmra.mxu0 %v2957
      %v3028 = vpop.f32.mrf.mxu0
      %v3029 = vadd.f32 0.0, %v3028
      %v3030 = vpop.f32.mrf.mxu0
      %3031 = vdwg.mxu0
      %3032 = vmatpush.bf16.msra.mxu0 0
      %3033 = vmatpush.bf16.msra.mxu0 0
      %3034 = vmatpush.bf16.msra.mxu0 0
      %3035 = vmatpush.bf16.msra.mxu0 0
      %3036 = vmatpush.bf16.msra.mxu0 0
      %3037 = vmatpush.bf16.msra.mxu0 0
      %3038 = vmatpush.bf16.msra.mxu0 0
      %3039 = vmatpush.bf16.msra.mxu0 %v2972
      %3040 = vmatmul.bf16.gmra.mxu0 %v2957
      %v3041 = vpop.f32.mrf.mxu0
      %v3042 = vadd.f32 0.0, %v3041
      %v3043 = vpop.f32.mrf.mxu0
      %3044 = vdwg.mxu0
      %3045 = vmatpush.bf16.msra.mxu0 0
      %3046 = vmatpush.bf16.msra.mxu0 0
      %3047 = vmatpush.bf16.msra.mxu0 0
      %3048 = vmatpush.bf16.msra.mxu0 0
      %3049 = vmatpush.bf16.msra.mxu0 0
      %3050 = vmatpush.bf16.msra.mxu0 0
      %3051 = vmatpush.bf16.msra.mxu0 0
      %3052 = vmatpush.bf16.msra.mxu0 %v2975
      %3053 = vmatmul.bf16.gmra.mxu0 %v2957
      %v3054 = vpop.f32.mrf.mxu0
      %v3055 = vadd.f32 0.0, %v3054
      %v3056 = vpop.f32.mrf.mxu0
      %3057 = vdwg.mxu0
      %3058 = vmatpush.bf16.msra.mxu0 0
      %3059 = vmatpush.bf16.msra.mxu0 0
      %3060 = vmatpush.bf16.msra.mxu0 0
      %3061 = vmatpush.bf16.msra.mxu0 0
      %3062 = vmatpush.bf16.msra.mxu0 0
      %3063 = vmatpush.bf16.msra.mxu0 0
      %3064 = vmatpush.bf16.msra.mxu0 0
      %3065 = vmatpush.bf16.msra.mxu0 %v2978
      %3066 = vmatmul.bf16.gmra.mxu0 %v2957
      %v3067 = vpop.f32.mrf.mxu0
      %v3068 = vadd.f32 0.0, %v3067
      %v3069 = vpop.f32.mrf.mxu0
      %3070 = vdwg.mxu0
      %v3071 = vadd.f32 %v2926, %v2990
      %v3072 = vadd.f32 %v2927, %v3003
      %v3073 = vadd.f32 %v2928, %v3016
      %v3074 = vadd.f32 %v2929, %v3029
      %v3075 = vadd.f32 %v2930, %v3042
      %v3076 = vadd.f32 %v2931, %v3055
      %v3077 = vadd.f32 %v2932, %v3068
      %s3078 = scalar_lea.vmem %s2, 38
      %v3079 = vld [vmem:[%s3078] sm:$0x3]
      %3080 = vrot.lane.b32.xlu0 %v342, 55
      %v3081 = vpop.permute.xlu0 %3080
      %3082 = vrot.lane.b32.xlu0 %v343, 55
      %v3083 = vpop.permute.xlu0 %3082
      %3084 = vrot.lane.b32.xlu0 %v344, 55
      %v3085 = vpop.permute.xlu0 %3084
      %3086 = vrot.lane.b32.xlu0 %v345, 55
      %v3087 = vpop.permute.xlu0 %3086
      %3088 = vrot.lane.b32.xlu0 %v346, 55
      %v3089 = vpop.permute.xlu0 %3088
      %3090 = vrot.lane.b32.xlu0 %v347, 55
      %v3091 = vpop.permute.xlu0 %3090
      %3092 = vrot.lane.b32.xlu0 %v2490, 55
      %v3093 = vpop.permute.xlu0 %3092
      %vm3094 = vcmask 449536
      %v3095 = vsel %vm3094, %v3081, %v3083
      %v3096 = vsel %vm3094, %v3083, %v3085
      %v3097 = vsel %vm3094, %v3085, %v3087
      %v3098 = vsel %vm3094, %v3087, %v3089
      %v3099 = vsel %vm3094, %v3089, %v3091
      %v3100 = vsel %vm3094, %v3091, %v3093
      %v3102 = vsel %vm369, %v3079, 0
      %v3105 = vsel %vm373, %v3095, 0
      %v3108 = vsel %vm373, %v3096, 0
      %v3111 = vsel %vm373, %v3097, 0
      %v3114 = vsel %vm373, %v3098, 0
      %v3117 = vsel %vm373, %v3099, 0
      %v3120 = vsel %vm373, %v3100, 0
      %v3123 = vsel %vm373, %v3093, 0
      %3125 = vmatpush.bf16.msra.mxu0 0
      %3126 = vmatpush.bf16.msra.mxu0 0
      %3127 = vmatpush.bf16.msra.mxu0 0
      %3128 = vmatpush.bf16.msra.mxu0 0
      %3129 = vmatpush.bf16.msra.mxu0 0
      %3130 = vmatpush.bf16.msra.mxu0 0
      %3131 = vmatpush.bf16.msra.mxu0 0
      %3132 = vmatpush.bf16.msra.mxu0 %v3105
      %3133 = vmatmul.bf16.gmra.mxu0 %v3102
      %v3134 = vpop.f32.mrf.mxu0
      %v3135 = vadd.f32 0.0, %v3134
      %v3136 = vpop.f32.mrf.mxu0
      %3137 = vdwg.mxu0
      %3138 = vmatpush.bf16.msra.mxu0 0
      %3139 = vmatpush.bf16.msra.mxu0 0
      %3140 = vmatpush.bf16.msra.mxu0 0
      %3141 = vmatpush.bf16.msra.mxu0 0
      %3142 = vmatpush.bf16.msra.mxu0 0
      %3143 = vmatpush.bf16.msra.mxu0 0
      %3144 = vmatpush.bf16.msra.mxu0 0
      %3145 = vmatpush.bf16.msra.mxu0 %v3108
      %3146 = vmatmul.bf16.gmra.mxu0 %v3102
      %v3147 = vpop.f32.mrf.mxu0
      %v3148 = vadd.f32 0.0, %v3147
      %v3149 = vpop.f32.mrf.mxu0
      %3150 = vdwg.mxu0
      %3151 = vmatpush.bf16.msra.mxu0 0
      %3152 = vmatpush.bf16.msra.mxu0 0
      %3153 = vmatpush.bf16.msra.mxu0 0
      %3154 = vmatpush.bf16.msra.mxu0 0
      %3155 = vmatpush.bf16.msra.mxu0 0
      %3156 = vmatpush.bf16.msra.mxu0 0
      %3157 = vmatpush.bf16.msra.mxu0 0
      %3158 = vmatpush.bf16.msra.mxu0 %v3111
      %3159 = vmatmul.bf16.gmra.mxu0 %v3102
      %v3160 = vpop.f32.mrf.mxu0
      %v3161 = vadd.f32 0.0, %v3160
      %v3162 = vpop.f32.mrf.mxu0
      %3163 = vdwg.mxu0
      %3164 = vmatpush.bf16.msra.mxu0 0
      %3165 = vmatpush.bf16.msra.mxu0 0
      %3166 = vmatpush.bf16.msra.mxu0 0
      %3167 = vmatpush.bf16.msra.mxu0 0
      %3168 = vmatpush.bf16.msra.mxu0 0
      %3169 = vmatpush.bf16.msra.mxu0 0
      %3170 = vmatpush.bf16.msra.mxu0 0
      %3171 = vmatpush.bf16.msra.mxu0 %v3114
      %3172 = vmatmul.bf16.gmra.mxu0 %v3102
      %v3173 = vpop.f32.mrf.mxu0
      %v3174 = vadd.f32 0.0, %v3173
      %v3175 = vpop.f32.mrf.mxu0
      %3176 = vdwg.mxu0
      %3177 = vmatpush.bf16.msra.mxu0 0
      %3178 = vmatpush.bf16.msra.mxu0 0
      %3179 = vmatpush.bf16.msra.mxu0 0
      %3180 = vmatpush.bf16.msra.mxu0 0
      %3181 = vmatpush.bf16.msra.mxu0 0
      %3182 = vmatpush.bf16.msra.mxu0 0
      %3183 = vmatpush.bf16.msra.mxu0 0
      %3184 = vmatpush.bf16.msra.mxu0 %v3117
      %3185 = vmatmul.bf16.gmra.mxu0 %v3102
      %v3186 = vpop.f32.mrf.mxu0
      %v3187 = vadd.f32 0.0, %v3186
      %v3188 = vpop.f32.mrf.mxu0
      %3189 = vdwg.mxu0
      %3190 = vmatpush.bf16.msra.mxu0 0
      %3191 = vmatpush.bf16.msra.mxu0 0
      %3192 = vmatpush.bf16.msra.mxu0 0
      %3193 = vmatpush.bf16.msra.mxu0 0
      %3194 = vmatpush.bf16.msra.mxu0 0
      %3195 = vmatpush.bf16.msra.mxu0 0
      %3196 = vmatpush.bf16.msra.mxu0 0
      %3197 = vmatpush.bf16.msra.mxu0 %v3120
      %3198 = vmatmul.bf16.gmra.mxu0 %v3102
      %v3199 = vpop.f32.mrf.mxu0
      %v3200 = vadd.f32 0.0, %v3199
      %v3201 = vpop.f32.mrf.mxu0
      %3202 = vdwg.mxu0
      %3203 = vmatpush.bf16.msra.mxu0 0
      %3204 = vmatpush.bf16.msra.mxu0 0
      %3205 = vmatpush.bf16.msra.mxu0 0
      %3206 = vmatpush.bf16.msra.mxu0 0
      %3207 = vmatpush.bf16.msra.mxu0 0
      %3208 = vmatpush.bf16.msra.mxu0 0
      %3209 = vmatpush.bf16.msra.mxu0 0
      %3210 = vmatpush.bf16.msra.mxu0 %v3123
      %3211 = vmatmul.bf16.gmra.mxu0 %v3102
      %v3212 = vpop.f32.mrf.mxu0
      %v3213 = vadd.f32 0.0, %v3212
      %v3214 = vpop.f32.mrf.mxu0
      %3215 = vdwg.mxu0
      %v3216 = vadd.f32 %v3071, %v3135
      %v3217 = vadd.f32 %v3072, %v3148
      %v3218 = vadd.f32 %v3073, %v3161
      %v3219 = vadd.f32 %v3074, %v3174
      %v3220 = vadd.f32 %v3075, %v3187
      %v3221 = vadd.f32 %v3076, %v3200
      %v3222 = vadd.f32 %v3077, %v3213
      %s3223 = scalar_lea.vmem %s2, 40
      %v3224 = vld [vmem:[%s3223] sm:$0x3]
      %3225 = vrot.lane.b32.xlu0 %v342, 54
      %v3226 = vpop.permute.xlu0 %3225
      %3227 = vrot.lane.b32.xlu0 %v343, 54
      %v3228 = vpop.permute.xlu0 %3227
      %3229 = vrot.lane.b32.xlu0 %v344, 54
      %v3230 = vpop.permute.xlu0 %3229
      %3231 = vrot.lane.b32.xlu0 %v345, 54
      %v3232 = vpop.permute.xlu0 %3231
      %3233 = vrot.lane.b32.xlu0 %v346, 54
      %v3234 = vpop.permute.xlu0 %3233
      %3235 = vrot.lane.b32.xlu0 %v347, 54
      %v3236 = vpop.permute.xlu0 %3235
      %3237 = vrot.lane.b32.xlu0 %v2490, 54
      %v3238 = vpop.permute.xlu0 %3237
      %vm3239 = vcmask 441344
      %v3240 = vsel %vm3239, %v3226, %v3228
      %v3241 = vsel %vm3239, %v3228, %v3230
      %v3242 = vsel %vm3239, %v3230, %v3232
      %v3243 = vsel %vm3239, %v3232, %v3234
      %v3244 = vsel %vm3239, %v3234, %v3236
      %v3245 = vsel %vm3239, %v3236, %v3238
      %v3247 = vsel %vm369, %v3224, 0
      %v3250 = vsel %vm373, %v3240, 0
      %v3253 = vsel %vm373, %v3241, 0
      %v3256 = vsel %vm373, %v3242, 0
      %v3259 = vsel %vm373, %v3243, 0
      %v3262 = vsel %vm373, %v3244, 0
      %v3265 = vsel %vm373, %v3245, 0
      %v3268 = vsel %vm373, %v3238, 0
      %3270 = vmatpush.bf16.msra.mxu0 0
      %3271 = vmatpush.bf16.msra.mxu0 0
      %3272 = vmatpush.bf16.msra.mxu0 0
      %3273 = vmatpush.bf16.msra.mxu0 0
      %3274 = vmatpush.bf16.msra.mxu0 0
      %3275 = vmatpush.bf16.msra.mxu0 0
      %3276 = vmatpush.bf16.msra.mxu0 0
      %3277 = vmatpush.bf16.msra.mxu0 %v3250
      %3278 = vmatmul.bf16.gmra.mxu0 %v3247
      %v3279 = vpop.f32.mrf.mxu0
      %v3280 = vadd.f32 0.0, %v3279
      %v3281 = vpop.f32.mrf.mxu0
      %3282 = vdwg.mxu0
      %3283 = vmatpush.bf16.msra.mxu0 0
      %3284 = vmatpush.bf16.msra.mxu0 0
      %3285 = vmatpush.bf16.msra.mxu0 0
      %3286 = vmatpush.bf16.msra.mxu0 0
      %3287 = vmatpush.bf16.msra.mxu0 0
      %3288 = vmatpush.bf16.msra.mxu0 0
      %3289 = vmatpush.bf16.msra.mxu0 0
      %3290 = vmatpush.bf16.msra.mxu0 %v3253
      %3291 = vmatmul.bf16.gmra.mxu0 %v3247
      %v3292 = vpop.f32.mrf.mxu0
      %v3293 = vadd.f32 0.0, %v3292
      %v3294 = vpop.f32.mrf.mxu0
      %3295 = vdwg.mxu0
      %3296 = vmatpush.bf16.msra.mxu0 0
      %3297 = vmatpush.bf16.msra.mxu0 0
      %3298 = vmatpush.bf16.msra.mxu0 0
      %3299 = vmatpush.bf16.msra.mxu0 0
      %3300 = vmatpush.bf16.msra.mxu0 0
      %3301 = vmatpush.bf16.msra.mxu0 0
      %3302 = vmatpush.bf16.msra.mxu0 0
      %3303 = vmatpush.bf16.msra.mxu0 %v3256
      %3304 = vmatmul.bf16.gmra.mxu0 %v3247
      %v3305 = vpop.f32.mrf.mxu0
      %v3306 = vadd.f32 0.0, %v3305
      %v3307 = vpop.f32.mrf.mxu0
      %3308 = vdwg.mxu0
      %3309 = vmatpush.bf16.msra.mxu0 0
      %3310 = vmatpush.bf16.msra.mxu0 0
      %3311 = vmatpush.bf16.msra.mxu0 0
      %3312 = vmatpush.bf16.msra.mxu0 0
      %3313 = vmatpush.bf16.msra.mxu0 0
      %3314 = vmatpush.bf16.msra.mxu0 0
      %3315 = vmatpush.bf16.msra.mxu0 0
      %3316 = vmatpush.bf16.msra.mxu0 %v3259
      %3317 = vmatmul.bf16.gmra.mxu0 %v3247
      %v3318 = vpop.f32.mrf.mxu0
      %v3319 = vadd.f32 0.0, %v3318
      %v3320 = vpop.f32.mrf.mxu0
      %3321 = vdwg.mxu0
      %3322 = vmatpush.bf16.msra.mxu0 0
      %3323 = vmatpush.bf16.msra.mxu0 0
      %3324 = vmatpush.bf16.msra.mxu0 0
      %3325 = vmatpush.bf16.msra.mxu0 0
      %3326 = vmatpush.bf16.msra.mxu0 0
      %3327 = vmatpush.bf16.msra.mxu0 0
      %3328 = vmatpush.bf16.msra.mxu0 0
      %3329 = vmatpush.bf16.msra.mxu0 %v3262
      %3330 = vmatmul.bf16.gmra.mxu0 %v3247
      %v3331 = vpop.f32.mrf.mxu0
      %v3332 = vadd.f32 0.0, %v3331
      %v3333 = vpop.f32.mrf.mxu0
      %3334 = vdwg.mxu0
      %3335 = vmatpush.bf16.msra.mxu0 0
      %3336 = vmatpush.bf16.msra.mxu0 0
      %3337 = vmatpush.bf16.msra.mxu0 0
      %3338 = vmatpush.bf16.msra.mxu0 0
      %3339 = vmatpush.bf16.msra.mxu0 0
      %3340 = vmatpush.bf16.msra.mxu0 0
      %3341 = vmatpush.bf16.msra.mxu0 0
      %3342 = vmatpush.bf16.msra.mxu0 %v3265
      %3343 = vmatmul.bf16.gmra.mxu0 %v3247
      %v3344 = vpop.f32.mrf.mxu0
      %v3345 = vadd.f32 0.0, %v3344
      %v3346 = vpop.f32.mrf.mxu0
      %3347 = vdwg.mxu0
      %3348 = vmatpush.bf16.msra.mxu0 0
      %3349 = vmatpush.bf16.msra.mxu0 0
      %3350 = vmatpush.bf16.msra.mxu0 0
      %3351 = vmatpush.bf16.msra.mxu0 0
      %3352 = vmatpush.bf16.msra.mxu0 0
      %3353 = vmatpush.bf16.msra.mxu0 0
      %3354 = vmatpush.bf16.msra.mxu0 0
      %3355 = vmatpush.bf16.msra.mxu0 %v3268
      %3356 = vmatmul.bf16.gmra.mxu0 %v3247
      %v3357 = vpop.f32.mrf.mxu0
      %v3358 = vadd.f32 0.0, %v3357
      %v3359 = vpop.f32.mrf.mxu0
      %3360 = vdwg.mxu0
      %v3361 = vadd.f32 %v3216, %v3280
      %v3362 = vadd.f32 %v3217, %v3293
      %v3363 = vadd.f32 %v3218, %v3306
      %v3364 = vadd.f32 %v3219, %v3319
      %v3365 = vadd.f32 %v3220, %v3332
      %v3366 = vadd.f32 %v3221, %v3345
      %v3367 = vadd.f32 %v3222, %v3358
      %s3368 = scalar_lea.vmem %s2, 42
      %v3369 = vld [vmem:[%s3368] sm:$0x3]
      %3370 = vrot.lane.b32.xlu0 %v342, 46
      %v3371 = vpop.permute.xlu0 %3370
      %3372 = vrot.lane.b32.xlu0 %v343, 46
      %v3373 = vpop.permute.xlu0 %3372
      %3374 = vrot.lane.b32.xlu0 %v344, 46
      %v3375 = vpop.permute.xlu0 %3374
      %3376 = vrot.lane.b32.xlu0 %v345, 46
      %v3377 = vpop.permute.xlu0 %3376
      %3378 = vrot.lane.b32.xlu0 %v346, 46
      %v3379 = vpop.permute.xlu0 %3378
      %3380 = vrot.lane.b32.xlu0 %v347, 46
      %v3381 = vpop.permute.xlu0 %3380
      %3382 = vrot.lane.b32.xlu0 %v2490, 46
      %v3383 = vpop.permute.xlu0 %3382
      %vm3384 = vcmask 375808
      %v3385 = vsel %vm3384, %v3371, %v3373
      %v3386 = vsel %vm3384, %v3373, %v3375
      %v3387 = vsel %vm3384, %v3375, %v3377
      %v3388 = vsel %vm3384, %v3377, %v3379
      %v3389 = vsel %vm3384, %v3379, %v3381
      %v3390 = vsel %vm3384, %v3381, %v3383
      %v3392 = vsel %vm369, %v3369, 0
      %v3395 = vsel %vm373, %v3385, 0
      %v3398 = vsel %vm373, %v3386, 0
      %v3401 = vsel %vm373, %v3387, 0
      %v3404 = vsel %vm373, %v3388, 0
      %v3407 = vsel %vm373, %v3389, 0
      %v3410 = vsel %vm373, %v3390, 0
      %v3413 = vsel %vm373, %v3383, 0
      %3415 = vmatpush.bf16.msra.mxu0 0
      %3416 = vmatpush.bf16.msra.mxu0 0
      %3417 = vmatpush.bf16.msra.mxu0 0
      %3418 = vmatpush.bf16.msra.mxu0 0
      %3419 = vmatpush.bf16.msra.mxu0 0
      %3420 = vmatpush.bf16.msra.mxu0 0
      %3421 = vmatpush.bf16.msra.mxu0 0
      %3422 = vmatpush.bf16.msra.mxu0 %v3395
      %3423 = vmatmul.bf16.gmra.mxu0 %v3392
      %v3424 = vpop.f32.mrf.mxu0
      %v3425 = vadd.f32 0.0, %v3424
      %v3426 = vpop.f32.mrf.mxu0
      %3427 = vdwg.mxu0
      %3428 = vmatpush.bf16.msra.mxu0 0
      %3429 = vmatpush.bf16.msra.mxu0 0
      %3430 = vmatpush.bf16.msra.mxu0 0
      %3431 = vmatpush.bf16.msra.mxu0 0
      %3432 = vmatpush.bf16.msra.mxu0 0
      %3433 = vmatpush.bf16.msra.mxu0 0
      %3434 = vmatpush.bf16.msra.mxu0 0
      %3435 = vmatpush.bf16.msra.mxu0 %v3398
      %3436 = vmatmul.bf16.gmra.mxu0 %v3392
      %v3437 = vpop.f32.mrf.mxu0
      %v3438 = vadd.f32 0.0, %v3437
      %v3439 = vpop.f32.mrf.mxu0
      %3440 = vdwg.mxu0
      %3441 = vmatpush.bf16.msra.mxu0 0
      %3442 = vmatpush.bf16.msra.mxu0 0
      %3443 = vmatpush.bf16.msra.mxu0 0
      %3444 = vmatpush.bf16.msra.mxu0 0
      %3445 = vmatpush.bf16.msra.mxu0 0
      %3446 = vmatpush.bf16.msra.mxu0 0
      %3447 = vmatpush.bf16.msra.mxu0 0
      %3448 = vmatpush.bf16.msra.mxu0 %v3401
      %3449 = vmatmul.bf16.gmra.mxu0 %v3392
      %v3450 = vpop.f32.mrf.mxu0
      %v3451 = vadd.f32 0.0, %v3450
      %v3452 = vpop.f32.mrf.mxu0
      %3453 = vdwg.mxu0
      %3454 = vmatpush.bf16.msra.mxu0 0
      %3455 = vmatpush.bf16.msra.mxu0 0
      %3456 = vmatpush.bf16.msra.mxu0 0
      %3457 = vmatpush.bf16.msra.mxu0 0
      %3458 = vmatpush.bf16.msra.mxu0 0
      %3459 = vmatpush.bf16.msra.mxu0 0
      %3460 = vmatpush.bf16.msra.mxu0 0
      %3461 = vmatpush.bf16.msra.mxu0 %v3404
      %3462 = vmatmul.bf16.gmra.mxu0 %v3392
      %v3463 = vpop.f32.mrf.mxu0
      %v3464 = vadd.f32 0.0, %v3463
      %v3465 = vpop.f32.mrf.mxu0
      %3466 = vdwg.mxu0
      %3467 = vmatpush.bf16.msra.mxu0 0
      %3468 = vmatpush.bf16.msra.mxu0 0
      %3469 = vmatpush.bf16.msra.mxu0 0
      %3470 = vmatpush.bf16.msra.mxu0 0
      %3471 = vmatpush.bf16.msra.mxu0 0
      %3472 = vmatpush.bf16.msra.mxu0 0
      %3473 = vmatpush.bf16.msra.mxu0 0
      %3474 = vmatpush.bf16.msra.mxu0 %v3407
      %3475 = vmatmul.bf16.gmra.mxu0 %v3392
      %v3476 = vpop.f32.mrf.mxu0
      %v3477 = vadd.f32 0.0, %v3476
      %v3478 = vpop.f32.mrf.mxu0
      %3479 = vdwg.mxu0
      %3480 = vmatpush.bf16.msra.mxu0 0
      %3481 = vmatpush.bf16.msra.mxu0 0
      %3482 = vmatpush.bf16.msra.mxu0 0
      %3483 = vmatpush.bf16.msra.mxu0 0
      %3484 = vmatpush.bf16.msra.mxu0 0
      %3485 = vmatpush.bf16.msra.mxu0 0
      %3486 = vmatpush.bf16.msra.mxu0 0
      %3487 = vmatpush.bf16.msra.mxu0 %v3410
      %3488 = vmatmul.bf16.gmra.mxu0 %v3392
      %v3489 = vpop.f32.mrf.mxu0
      %v3490 = vadd.f32 0.0, %v3489
      %v3491 = vpop.f32.mrf.mxu0
      %3492 = vdwg.mxu0
      %3493 = vmatpush.bf16.msra.mxu0 0
      %3494 = vmatpush.bf16.msra.mxu0 0
      %3495 = vmatpush.bf16.msra.mxu0 0
      %3496 = vmatpush.bf16.msra.mxu0 0
      %3497 = vmatpush.bf16.msra.mxu0 0
      %3498 = vmatpush.bf16.msra.mxu0 0
      %3499 = vmatpush.bf16.msra.mxu0 0
      %3500 = vmatpush.bf16.msra.mxu0 %v3413
      %3501 = vmatmul.bf16.gmra.mxu0 %v3392
      %v3502 = vpop.f32.mrf.mxu0
      %v3503 = vadd.f32 0.0, %v3502
      %v3504 = vpop.f32.mrf.mxu0
      %3505 = vdwg.mxu0
      %v3506 = vadd.f32 %v3361, %v3425
      %v3507 = vadd.f32 %v3362, %v3438
      %v3508 = vadd.f32 %v3363, %v3451
      %v3509 = vadd.f32 %v3364, %v3464
      %v3510 = vadd.f32 %v3365, %v3477
      %v3511 = vadd.f32 %v3366, %v3490
      %v3512 = vadd.f32 %v3367, %v3503
      %s3513 = scalar_lea.vmem %s2, 44
      %v3514 = vld [vmem:[%s3513] sm:$0x3]
      %3515 = vrot.lane.b32.xlu0 %v342, 45
      %v3516 = vpop.permute.xlu0 %3515
      %3517 = vrot.lane.b32.xlu0 %v343, 45
      %v3518 = vpop.permute.xlu0 %3517
      %3519 = vrot.lane.b32.xlu0 %v344, 45
      %v3520 = vpop.permute.xlu0 %3519
      %3521 = vrot.lane.b32.xlu0 %v345, 45
      %v3522 = vpop.permute.xlu0 %3521
      %3523 = vrot.lane.b32.xlu0 %v346, 45
      %v3524 = vpop.permute.xlu0 %3523
      %3525 = vrot.lane.b32.xlu0 %v347, 45
      %v3526 = vpop.permute.xlu0 %3525
      %3527 = vrot.lane.b32.xlu0 %v2490, 45
      %v3528 = vpop.permute.xlu0 %3527
      %vm3529 = vcmask 367616
      %v3530 = vsel %vm3529, %v3516, %v3518
      %v3531 = vsel %vm3529, %v3518, %v3520
      %v3532 = vsel %vm3529, %v3520, %v3522
      %v3533 = vsel %vm3529, %v3522, %v3524
      %v3534 = vsel %vm3529, %v3524, %v3526
      %v3535 = vsel %vm3529, %v3526, %v3528
      %v3537 = vsel %vm369, %v3514, 0
      %v3540 = vsel %vm373, %v3530, 0
      %v3543 = vsel %vm373, %v3531, 0
      %v3546 = vsel %vm373, %v3532, 0
      %v3549 = vsel %vm373, %v3533, 0
      %v3552 = vsel %vm373, %v3534, 0
      %v3555 = vsel %vm373, %v3535, 0
      %v3558 = vsel %vm373, %v3528, 0
      %3560 = vmatpush.bf16.msra.mxu0 0
      %3561 = vmatpush.bf16.msra.mxu0 0
      %3562 = vmatpush.bf16.msra.mxu0 0
      %3563 = vmatpush.bf16.msra.mxu0 0
      %3564 = vmatpush.bf16.msra.mxu0 0
      %3565 = vmatpush.bf16.msra.mxu0 0
      %3566 = vmatpush.bf16.msra.mxu0 0
      %3567 = vmatpush.bf16.msra.mxu0 %v3540
      %3568 = vmatmul.bf16.gmra.mxu0 %v3537
      %v3569 = vpop.f32.mrf.mxu0
      %v3570 = vadd.f32 0.0, %v3569
      %v3571 = vpop.f32.mrf.mxu0
      %3572 = vdwg.mxu0
      %3573 = vmatpush.bf16.msra.mxu0 0
      %3574 = vmatpush.bf16.msra.mxu0 0
      %3575 = vmatpush.bf16.msra.mxu0 0
      %3576 = vmatpush.bf16.msra.mxu0 0
      %3577 = vmatpush.bf16.msra.mxu0 0
      %3578 = vmatpush.bf16.msra.mxu0 0
      %3579 = vmatpush.bf16.msra.mxu0 0
      %3580 = vmatpush.bf16.msra.mxu0 %v3543
      %3581 = vmatmul.bf16.gmra.mxu0 %v3537
      %v3582 = vpop.f32.mrf.mxu0
      %v3583 = vadd.f32 0.0, %v3582
      %v3584 = vpop.f32.mrf.mxu0
      %3585 = vdwg.mxu0
      %3586 = vmatpush.bf16.msra.mxu0 0
      %3587 = vmatpush.bf16.msra.mxu0 0
      %3588 = vmatpush.bf16.msra.mxu0 0
      %3589 = vmatpush.bf16.msra.mxu0 0
      %3590 = vmatpush.bf16.msra.mxu0 0
      %3591 = vmatpush.bf16.msra.mxu0 0
      %3592 = vmatpush.bf16.msra.mxu0 0
      %3593 = vmatpush.bf16.msra.mxu0 %v3546
      %3594 = vmatmul.bf16.gmra.mxu0 %v3537
      %v3595 = vpop.f32.mrf.mxu0
      %v3596 = vadd.f32 0.0, %v3595
      %v3597 = vpop.f32.mrf.mxu0
      %3598 = vdwg.mxu0
      %3599 = vmatpush.bf16.msra.mxu0 0
      %3600 = vmatpush.bf16.msra.mxu0 0
      %3601 = vmatpush.bf16.msra.mxu0 0
      %3602 = vmatpush.bf16.msra.mxu0 0
      %3603 = vmatpush.bf16.msra.mxu0 0
      %3604 = vmatpush.bf16.msra.mxu0 0
      %3605 = vmatpush.bf16.msra.mxu0 0
      %3606 = vmatpush.bf16.msra.mxu0 %v3549
      %3607 = vmatmul.bf16.gmra.mxu0 %v3537
      %v3608 = vpop.f32.mrf.mxu0
      %v3609 = vadd.f32 0.0, %v3608
      %v3610 = vpop.f32.mrf.mxu0
      %3611 = vdwg.mxu0
      %3612 = vmatpush.bf16.msra.mxu0 0
      %3613 = vmatpush.bf16.msra.mxu0 0
      %3614 = vmatpush.bf16.msra.mxu0 0
      %3615 = vmatpush.bf16.msra.mxu0 0
      %3616 = vmatpush.bf16.msra.mxu0 0
      %3617 = vmatpush.bf16.msra.mxu0 0
      %3618 = vmatpush.bf16.msra.mxu0 0
      %3619 = vmatpush.bf16.msra.mxu0 %v3552
      %3620 = vmatmul.bf16.gmra.mxu0 %v3537
      %v3621 = vpop.f32.mrf.mxu0
      %v3622 = vadd.f32 0.0, %v3621
      %v3623 = vpop.f32.mrf.mxu0
      %3624 = vdwg.mxu0
      %3625 = vmatpush.bf16.msra.mxu0 0
      %3626 = vmatpush.bf16.msra.mxu0 0
      %3627 = vmatpush.bf16.msra.mxu0 0
      %3628 = vmatpush.bf16.msra.mxu0 0
      %3629 = vmatpush.bf16.msra.mxu0 0
      %3630 = vmatpush.bf16.msra.mxu0 0
      %3631 = vmatpush.bf16.msra.mxu0 0
      %3632 = vmatpush.bf16.msra.mxu0 %v3555
      %3633 = vmatmul.bf16.gmra.mxu0 %v3537
      %v3634 = vpop.f32.mrf.mxu0
      %v3635 = vadd.f32 0.0, %v3634
      %v3636 = vpop.f32.mrf.mxu0
      %3637 = vdwg.mxu0
      %3638 = vmatpush.bf16.msra.mxu0 0
      %3639 = vmatpush.bf16.msra.mxu0 0
      %3640 = vmatpush.bf16.msra.mxu0 0
      %3641 = vmatpush.bf16.msra.mxu0 0
      %3642 = vmatpush.bf16.msra.mxu0 0
      %3643 = vmatpush.bf16.msra.mxu0 0
      %3644 = vmatpush.bf16.msra.mxu0 0
      %3645 = vmatpush.bf16.msra.mxu0 %v3558
      %3646 = vmatmul.bf16.gmra.mxu0 %v3537
      %v3647 = vpop.f32.mrf.mxu0
      %v3648 = vadd.f32 0.0, %v3647
      %v3649 = vpop.f32.mrf.mxu0
      %3650 = vdwg.mxu0
      %v3651 = vadd.f32 %v3506, %v3570
      %v3652 = vadd.f32 %v3507, %v3583
      %v3653 = vadd.f32 %v3508, %v3596
      %v3654 = vadd.f32 %v3509, %v3609
      %v3655 = vadd.f32 %v3510, %v3622
      %v3656 = vadd.f32 %v3511, %v3635
      %v3657 = vadd.f32 %v3512, %v3648
      %s3658 = scalar_lea.vmem %s2, 46
      %v3659 = vld [vmem:[%s3658] sm:$0x3]
      %3660 = vrot.lane.b32.xlu0 %v342, 44
      %v3661 = vpop.permute.xlu0 %3660
      %3662 = vrot.lane.b32.xlu0 %v343, 44
      %v3663 = vpop.permute.xlu0 %3662
      %3664 = vrot.lane.b32.xlu0 %v344, 44
      %v3665 = vpop.permute.xlu0 %3664
      %3666 = vrot.lane.b32.xlu0 %v345, 44
      %v3667 = vpop.permute.xlu0 %3666
      %3668 = vrot.lane.b32.xlu0 %v346, 44
      %v3669 = vpop.permute.xlu0 %3668
      %3670 = vrot.lane.b32.xlu0 %v347, 44
      %v3671 = vpop.permute.xlu0 %3670
      %3672 = vrot.lane.b32.xlu0 %v2490, 44
      %v3673 = vpop.permute.xlu0 %3672
      %vm3674 = vcmask 359424
      %v3675 = vsel %vm3674, %v3661, %v3663
      %v3676 = vsel %vm3674, %v3663, %v3665
      %v3677 = vsel %vm3674, %v3665, %v3667
      %v3678 = vsel %vm3674, %v3667, %v3669
      %v3679 = vsel %vm3674, %v3669, %v3671
      %v3680 = vsel %vm3674, %v3671, %v3673
      %v3682 = vsel %vm369, %v3659, 0
      %v3685 = vsel %vm373, %v3675, 0
      %v3688 = vsel %vm373, %v3676, 0
      %v3691 = vsel %vm373, %v3677, 0
      %v3694 = vsel %vm373, %v3678, 0
      %v3697 = vsel %vm373, %v3679, 0
      %v3700 = vsel %vm373, %v3680, 0
      %v3703 = vsel %vm373, %v3673, 0
      %3705 = vmatpush.bf16.msra.mxu0 0
      %3706 = vmatpush.bf16.msra.mxu0 0
      %3707 = vmatpush.bf16.msra.mxu0 0
      %3708 = vmatpush.bf16.msra.mxu0 0
      %3709 = vmatpush.bf16.msra.mxu0 0
      %3710 = vmatpush.bf16.msra.mxu0 0
      %3711 = vmatpush.bf16.msra.mxu0 0
      %3712 = vmatpush.bf16.msra.mxu0 %v3685
      %3713 = vmatmul.bf16.gmra.mxu0 %v3682
      %v3714 = vpop.f32.mrf.mxu0
      %v3715 = vadd.f32 0.0, %v3714
      %v3716 = vpop.f32.mrf.mxu0
      %3717 = vdwg.mxu0
      %3718 = vmatpush.bf16.msra.mxu0 0
      %3719 = vmatpush.bf16.msra.mxu0 0
      %3720 = vmatpush.bf16.msra.mxu0 0
      %3721 = vmatpush.bf16.msra.mxu0 0
      %3722 = vmatpush.bf16.msra.mxu0 0
      %3723 = vmatpush.bf16.msra.mxu0 0
      %3724 = vmatpush.bf16.msra.mxu0 0
      %3725 = vmatpush.bf16.msra.mxu0 %v3688
      %3726 = vmatmul.bf16.gmra.mxu0 %v3682
      %v3727 = vpop.f32.mrf.mxu0
      %v3728 = vadd.f32 0.0, %v3727
      %v3729 = vpop.f32.mrf.mxu0
      %3730 = vdwg.mxu0
      %3731 = vmatpush.bf16.msra.mxu0 0
      %3732 = vmatpush.bf16.msra.mxu0 0
      %3733 = vmatpush.bf16.msra.mxu0 0
      %3734 = vmatpush.bf16.msra.mxu0 0
      %3735 = vmatpush.bf16.msra.mxu0 0
      %3736 = vmatpush.bf16.msra.mxu0 0
      %3737 = vmatpush.bf16.msra.mxu0 0
      %3738 = vmatpush.bf16.msra.mxu0 %v3691
      %3739 = vmatmul.bf16.gmra.mxu0 %v3682
      %v3740 = vpop.f32.mrf.mxu0
      %v3741 = vadd.f32 0.0, %v3740
      %v3742 = vpop.f32.mrf.mxu0
      %3743 = vdwg.mxu0
      %3744 = vmatpush.bf16.msra.mxu0 0
      %3745 = vmatpush.bf16.msra.mxu0 0
      %3746 = vmatpush.bf16.msra.mxu0 0
      %3747 = vmatpush.bf16.msra.mxu0 0
      %3748 = vmatpush.bf16.msra.mxu0 0
      %3749 = vmatpush.bf16.msra.mxu0 0
      %3750 = vmatpush.bf16.msra.mxu0 0
      %3751 = vmatpush.bf16.msra.mxu0 %v3694
      %3752 = vmatmul.bf16.gmra.mxu0 %v3682
      %v3753 = vpop.f32.mrf.mxu0
      %v3754 = vadd.f32 0.0, %v3753
      %v3755 = vpop.f32.mrf.mxu0
      %3756 = vdwg.mxu0
      %3757 = vmatpush.bf16.msra.mxu0 0
      %3758 = vmatpush.bf16.msra.mxu0 0
      %3759 = vmatpush.bf16.msra.mxu0 0
      %3760 = vmatpush.bf16.msra.mxu0 0
      %3761 = vmatpush.bf16.msra.mxu0 0
      %3762 = vmatpush.bf16.msra.mxu0 0
      %3763 = vmatpush.bf16.msra.mxu0 0
      %3764 = vmatpush.bf16.msra.mxu0 %v3697
      %3765 = vmatmul.bf16.gmra.mxu0 %v3682
      %v3766 = vpop.f32.mrf.mxu0
      %v3767 = vadd.f32 0.0, %v3766
      %v3768 = vpop.f32.mrf.mxu0
      %3769 = vdwg.mxu0
      %3770 = vmatpush.bf16.msra.mxu0 0
      %3771 = vmatpush.bf16.msra.mxu0 0
      %3772 = vmatpush.bf16.msra.mxu0 0
      %3773 = vmatpush.bf16.msra.mxu0 0
      %3774 = vmatpush.bf16.msra.mxu0 0
      %3775 = vmatpush.bf16.msra.mxu0 0
      %3776 = vmatpush.bf16.msra.mxu0 0
      %3777 = vmatpush.bf16.msra.mxu0 %v3700
      %3778 = vmatmul.bf16.gmra.mxu0 %v3682
      %v3779 = vpop.f32.mrf.mxu0
      %v3780 = vadd.f32 0.0, %v3779
      %v3781 = vpop.f32.mrf.mxu0
      %3782 = vdwg.mxu0
      %3783 = vmatpush.bf16.msra.mxu0 0
      %3784 = vmatpush.bf16.msra.mxu0 0
      %3785 = vmatpush.bf16.msra.mxu0 0
      %3786 = vmatpush.bf16.msra.mxu0 0
      %3787 = vmatpush.bf16.msra.mxu0 0
      %3788 = vmatpush.bf16.msra.mxu0 0
      %3789 = vmatpush.bf16.msra.mxu0 0
      %3790 = vmatpush.bf16.msra.mxu0 %v3703
      %3791 = vmatmul.bf16.gmra.mxu0 %v3682
      %v3792 = vpop.f32.mrf.mxu0
      %v3793 = vadd.f32 0.0, %v3792
      %v3794 = vpop.f32.mrf.mxu0
      %3795 = vdwg.mxu0
      %v3796 = vadd.f32 %v3651, %v3715
      %v3797 = vadd.f32 %v3652, %v3728
      %v3798 = vadd.f32 %v3653, %v3741
      %v3799 = vadd.f32 %v3654, %v3754
      %v3800 = vadd.f32 %v3655, %v3767
      %v3801 = vadd.f32 %v3656, %v3780
      %v3802 = vadd.f32 %v3657, %v3793
      %s3803 = scalar_lea.vmem %s2, 48
      %v3804 = vld [vmem:[%s3803] sm:$0x3]
      %3805 = vrot.lane.b32.xlu0 %v342, 36
      %v3806 = vpop.permute.xlu0 %3805
      %3807 = vrot.lane.b32.xlu0 %v343, 36
      %v3808 = vpop.permute.xlu0 %3807
      %3809 = vrot.lane.b32.xlu0 %v344, 36
      %v3810 = vpop.permute.xlu0 %3809
      %3811 = vrot.lane.b32.xlu0 %v345, 36
      %v3812 = vpop.permute.xlu0 %3811
      %3813 = vrot.lane.b32.xlu0 %v346, 36
      %v3814 = vpop.permute.xlu0 %3813
      %3815 = vrot.lane.b32.xlu0 %v347, 36
      %v3816 = vpop.permute.xlu0 %3815
      %3817 = vrot.lane.b32.xlu0 %v2490, 36
      %v3818 = vpop.permute.xlu0 %3817
      %vm3819 = vcmask 293888
      %v3820 = vsel %vm3819, %v3806, %v3808
      %v3821 = vsel %vm3819, %v3808, %v3810
      %v3822 = vsel %vm3819, %v3810, %v3812
      %v3823 = vsel %vm3819, %v3812, %v3814
      %v3824 = vsel %vm3819, %v3814, %v3816
      %v3825 = vsel %vm3819, %v3816, %v3818
      %v3827 = vsel %vm369, %v3804, 0
      %v3830 = vsel %vm373, %v3820, 0
      %v3833 = vsel %vm373, %v3821, 0
      %v3836 = vsel %vm373, %v3822, 0
      %v3839 = vsel %vm373, %v3823, 0
      %v3842 = vsel %vm373, %v3824, 0
      %v3845 = vsel %vm373, %v3825, 0
      %v3848 = vsel %vm373, %v3818, 0
      %3850 = vmatpush.bf16.msra.mxu0 0
      %3851 = vmatpush.bf16.msra.mxu0 0
      %3852 = vmatpush.bf16.msra.mxu0 0
      %3853 = vmatpush.bf16.msra.mxu0 0
      %3854 = vmatpush.bf16.msra.mxu0 0
      %3855 = vmatpush.bf16.msra.mxu0 0
      %3856 = vmatpush.bf16.msra.mxu0 0
      %3857 = vmatpush.bf16.msra.mxu0 %v3830
      %3858 = vmatmul.bf16.gmra.mxu0 %v3827
      %v3859 = vpop.f32.mrf.mxu0
      %v3860 = vadd.f32 0.0, %v3859
      %v3861 = vpop.f32.mrf.mxu0
      %3862 = vdwg.mxu0
      %3863 = vmatpush.bf16.msra.mxu0 0
      %3864 = vmatpush.bf16.msra.mxu0 0
      %3865 = vmatpush.bf16.msra.mxu0 0
      %3866 = vmatpush.bf16.msra.mxu0 0
      %3867 = vmatpush.bf16.msra.mxu0 0
      %3868 = vmatpush.bf16.msra.mxu0 0
      %3869 = vmatpush.bf16.msra.mxu0 0
      %3870 = vmatpush.bf16.msra.mxu0 %v3833
      %3871 = vmatmul.bf16.gmra.mxu0 %v3827
      %v3872 = vpop.f32.mrf.mxu0
      %v3873 = vadd.f32 0.0, %v3872
      %v3874 = vpop.f32.mrf.mxu0
      %3875 = vdwg.mxu0
      %3876 = vmatpush.bf16.msra.mxu0 0
      %3877 = vmatpush.bf16.msra.mxu0 0
      %3878 = vmatpush.bf16.msra.mxu0 0
      %3879 = vmatpush.bf16.msra.mxu0 0
      %3880 = vmatpush.bf16.msra.mxu0 0
      %3881 = vmatpush.bf16.msra.mxu0 0
      %3882 = vmatpush.bf16.msra.mxu0 0
      %3883 = vmatpush.bf16.msra.mxu0 %v3836
      %3884 = vmatmul.bf16.gmra.mxu0 %v3827
      %v3885 = vpop.f32.mrf.mxu0
      %v3886 = vadd.f32 0.0, %v3885
      %v3887 = vpop.f32.mrf.mxu0
      %3888 = vdwg.mxu0
      %3889 = vmatpush.bf16.msra.mxu0 0
      %3890 = vmatpush.bf16.msra.mxu0 0
      %3891 = vmatpush.bf16.msra.mxu0 0
      %3892 = vmatpush.bf16.msra.mxu0 0
      %3893 = vmatpush.bf16.msra.mxu0 0
      %3894 = vmatpush.bf16.msra.mxu0 0
      %3895 = vmatpush.bf16.msra.mxu0 0
      %3896 = vmatpush.bf16.msra.mxu0 %v3839
      %3897 = vmatmul.bf16.gmra.mxu0 %v3827
      %v3898 = vpop.f32.mrf.mxu0
      %v3899 = vadd.f32 0.0, %v3898
      %v3900 = vpop.f32.mrf.mxu0
      %3901 = vdwg.mxu0
      %3902 = vmatpush.bf16.msra.mxu0 0
      %3903 = vmatpush.bf16.msra.mxu0 0
      %3904 = vmatpush.bf16.msra.mxu0 0
      %3905 = vmatpush.bf16.msra.mxu0 0
      %3906 = vmatpush.bf16.msra.mxu0 0
      %3907 = vmatpush.bf16.msra.mxu0 0
      %3908 = vmatpush.bf16.msra.mxu0 0
      %3909 = vmatpush.bf16.msra.mxu0 %v3842
      %3910 = vmatmul.bf16.gmra.mxu0 %v3827
      %v3911 = vpop.f32.mrf.mxu0
      %v3912 = vadd.f32 0.0, %v3911
      %v3913 = vpop.f32.mrf.mxu0
      %3914 = vdwg.mxu0
      %3915 = vmatpush.bf16.msra.mxu0 0
      %3916 = vmatpush.bf16.msra.mxu0 0
      %3917 = vmatpush.bf16.msra.mxu0 0
      %3918 = vmatpush.bf16.msra.mxu0 0
      %3919 = vmatpush.bf16.msra.mxu0 0
      %3920 = vmatpush.bf16.msra.mxu0 0
      %3921 = vmatpush.bf16.msra.mxu0 0
      %3922 = vmatpush.bf16.msra.mxu0 %v3845
      %3923 = vmatmul.bf16.gmra.mxu0 %v3827
      %v3924 = vpop.f32.mrf.mxu0
      %v3925 = vadd.f32 0.0, %v3924
      %v3926 = vpop.f32.mrf.mxu0
      %3927 = vdwg.mxu0
      %3928 = vmatpush.bf16.msra.mxu0 0
      %3929 = vmatpush.bf16.msra.mxu0 0
      %3930 = vmatpush.bf16.msra.mxu0 0
      %3931 = vmatpush.bf16.msra.mxu0 0
      %3932 = vmatpush.bf16.msra.mxu0 0
      %3933 = vmatpush.bf16.msra.mxu0 0
      %3934 = vmatpush.bf16.msra.mxu0 0
      %3935 = vmatpush.bf16.msra.mxu0 %v3848
      %3936 = vmatmul.bf16.gmra.mxu0 %v3827
      %v3937 = vpop.f32.mrf.mxu0
      %v3938 = vadd.f32 0.0, %v3937
      %v3939 = vpop.f32.mrf.mxu0
      %3940 = vdwg.mxu0
      %v3941 = vadd.f32 %v3796, %v3860
      %v3942 = vadd.f32 %v3797, %v3873
      %v3943 = vadd.f32 %v3798, %v3886
      %v3944 = vadd.f32 %v3799, %v3899
      %v3945 = vadd.f32 %v3800, %v3912
      %v3946 = vadd.f32 %v3801, %v3925
      %v3947 = vadd.f32 %v3802, %v3938
      %s3948 = scalar_lea.vmem %s2, 50
      %v3949 = vld [vmem:[%s3948] sm:$0x3]
      %3950 = vrot.lane.b32.xlu0 %v342, 35
      %v3951 = vpop.permute.xlu0 %3950
      %3952 = vrot.lane.b32.xlu0 %v343, 35
      %v3953 = vpop.permute.xlu0 %3952
      %3954 = vrot.lane.b32.xlu0 %v344, 35
      %v3955 = vpop.permute.xlu0 %3954
      %3956 = vrot.lane.b32.xlu0 %v345, 35
      %v3957 = vpop.permute.xlu0 %3956
      %3958 = vrot.lane.b32.xlu0 %v346, 35
      %v3959 = vpop.permute.xlu0 %3958
      %3960 = vrot.lane.b32.xlu0 %v347, 35
      %v3961 = vpop.permute.xlu0 %3960
      %3962 = vrot.lane.b32.xlu0 %v2490, 35
      %v3963 = vpop.permute.xlu0 %3962
      %vm3964 = vcmask 285696
      %v3965 = vsel %vm3964, %v3951, %v3953
      %v3966 = vsel %vm3964, %v3953, %v3955
      %v3967 = vsel %vm3964, %v3955, %v3957
      %v3968 = vsel %vm3964, %v3957, %v3959
      %v3969 = vsel %vm3964, %v3959, %v3961
      %v3970 = vsel %vm3964, %v3961, %v3963
      %v3972 = vsel %vm369, %v3949, 0
      %v3975 = vsel %vm373, %v3965, 0
      %v3978 = vsel %vm373, %v3966, 0
      %v3981 = vsel %vm373, %v3967, 0
      %v3984 = vsel %vm373, %v3968, 0
      %v3987 = vsel %vm373, %v3969, 0
      %v3990 = vsel %vm373, %v3970, 0
      %v3993 = vsel %vm373, %v3963, 0
      %3995 = vmatpush.bf16.msra.mxu0 0
      %3996 = vmatpush.bf16.msra.mxu0 0
      %3997 = vmatpush.bf16.msra.mxu0 0
      %3998 = vmatpush.bf16.msra.mxu0 0
      %3999 = vmatpush.bf16.msra.mxu0 0
      %4000 = vmatpush.bf16.msra.mxu0 0
      %4001 = vmatpush.bf16.msra.mxu0 0
      %4002 = vmatpush.bf16.msra.mxu0 %v3975
      %4003 = vmatmul.bf16.gmra.mxu0 %v3972
      %v4004 = vpop.f32.mrf.mxu0
      %v4005 = vadd.f32 0.0, %v4004
      %v4006 = vpop.f32.mrf.mxu0
      %4007 = vdwg.mxu0
      %4008 = vmatpush.bf16.msra.mxu0 0
      %4009 = vmatpush.bf16.msra.mxu0 0
      %4010 = vmatpush.bf16.msra.mxu0 0
      %4011 = vmatpush.bf16.msra.mxu0 0
      %4012 = vmatpush.bf16.msra.mxu0 0
      %4013 = vmatpush.bf16.msra.mxu0 0
      %4014 = vmatpush.bf16.msra.mxu0 0
      %4015 = vmatpush.bf16.msra.mxu0 %v3978
      %4016 = vmatmul.bf16.gmra.mxu0 %v3972
      %v4017 = vpop.f32.mrf.mxu0
      %v4018 = vadd.f32 0.0, %v4017
      %v4019 = vpop.f32.mrf.mxu0
      %4020 = vdwg.mxu0
      %4021 = vmatpush.bf16.msra.mxu0 0
      %4022 = vmatpush.bf16.msra.mxu0 0
      %4023 = vmatpush.bf16.msra.mxu0 0
      %4024 = vmatpush.bf16.msra.mxu0 0
      %4025 = vmatpush.bf16.msra.mxu0 0
      %4026 = vmatpush.bf16.msra.mxu0 0
      %4027 = vmatpush.bf16.msra.mxu0 0
      %4028 = vmatpush.bf16.msra.mxu0 %v3981
      %4029 = vmatmul.bf16.gmra.mxu0 %v3972
      %v4030 = vpop.f32.mrf.mxu0
      %v4031 = vadd.f32 0.0, %v4030
      %v4032 = vpop.f32.mrf.mxu0
      %4033 = vdwg.mxu0
      %4034 = vmatpush.bf16.msra.mxu0 0
      %4035 = vmatpush.bf16.msra.mxu0 0
      %4036 = vmatpush.bf16.msra.mxu0 0
      %4037 = vmatpush.bf16.msra.mxu0 0
      %4038 = vmatpush.bf16.msra.mxu0 0
      %4039 = vmatpush.bf16.msra.mxu0 0
      %4040 = vmatpush.bf16.msra.mxu0 0
      %4041 = vmatpush.bf16.msra.mxu0 %v3984
      %4042 = vmatmul.bf16.gmra.mxu0 %v3972
      %v4043 = vpop.f32.mrf.mxu0
      %v4044 = vadd.f32 0.0, %v4043
      %v4045 = vpop.f32.mrf.mxu0
      %4046 = vdwg.mxu0
      %4047 = vmatpush.bf16.msra.mxu0 0
      %4048 = vmatpush.bf16.msra.mxu0 0
      %4049 = vmatpush.bf16.msra.mxu0 0
      %4050 = vmatpush.bf16.msra.mxu0 0
      %4051 = vmatpush.bf16.msra.mxu0 0
      %4052 = vmatpush.bf16.msra.mxu0 0
      %4053 = vmatpush.bf16.msra.mxu0 0
      %4054 = vmatpush.bf16.msra.mxu0 %v3987
      %4055 = vmatmul.bf16.gmra.mxu0 %v3972
      %v4056 = vpop.f32.mrf.mxu0
      %v4057 = vadd.f32 0.0, %v4056
      %v4058 = vpop.f32.mrf.mxu0
      %4059 = vdwg.mxu0
      %4060 = vmatpush.bf16.msra.mxu0 0
      %4061 = vmatpush.bf16.msra.mxu0 0
      %4062 = vmatpush.bf16.msra.mxu0 0
      %4063 = vmatpush.bf16.msra.mxu0 0
      %4064 = vmatpush.bf16.msra.mxu0 0
      %4065 = vmatpush.bf16.msra.mxu0 0
      %4066 = vmatpush.bf16.msra.mxu0 0
      %4067 = vmatpush.bf16.msra.mxu0 %v3990
      %4068 = vmatmul.bf16.gmra.mxu0 %v3972
      %v4069 = vpop.f32.mrf.mxu0
      %v4070 = vadd.f32 0.0, %v4069
      %v4071 = vpop.f32.mrf.mxu0
      %4072 = vdwg.mxu0
      %4073 = vmatpush.bf16.msra.mxu0 0
      %4074 = vmatpush.bf16.msra.mxu0 0
      %4075 = vmatpush.bf16.msra.mxu0 0
      %4076 = vmatpush.bf16.msra.mxu0 0
      %4077 = vmatpush.bf16.msra.mxu0 0
      %4078 = vmatpush.bf16.msra.mxu0 0
      %4079 = vmatpush.bf16.msra.mxu0 0
      %4080 = vmatpush.bf16.msra.mxu0 %v3993
      %4081 = vmatmul.bf16.gmra.mxu0 %v3972
      %v4082 = vpop.f32.mrf.mxu0
      %v4083 = vadd.f32 0.0, %v4082
      %v4084 = vpop.f32.mrf.mxu0
      %4085 = vdwg.mxu0
      %v4086 = vadd.f32 %v3941, %v4005
      %v4087 = vadd.f32 %v3942, %v4018
      %v4088 = vadd.f32 %v3943, %v4031
      %v4089 = vadd.f32 %v3944, %v4044
      %v4090 = vadd.f32 %v3945, %v4057
      %v4091 = vadd.f32 %v3946, %v4070
      %v4092 = vadd.f32 %v3947, %v4083
      %s4093 = scalar_lea.vmem %s2, 52
      %v4094 = vld [vmem:[%s4093] sm:$0x3]
      %4095 = vrot.lane.b32.xlu0 %v342, 34
      %v4096 = vpop.permute.xlu0 %4095
      %4097 = vrot.lane.b32.xlu0 %v343, 34
      %v4098 = vpop.permute.xlu0 %4097
      %4099 = vrot.lane.b32.xlu0 %v344, 34
      %v4100 = vpop.permute.xlu0 %4099
      %4101 = vrot.lane.b32.xlu0 %v345, 34
      %v4102 = vpop.permute.xlu0 %4101
      %4103 = vrot.lane.b32.xlu0 %v346, 34
      %v4104 = vpop.permute.xlu0 %4103
      %4105 = vrot.lane.b32.xlu0 %v347, 34
      %v4106 = vpop.permute.xlu0 %4105
      %4107 = vrot.lane.b32.xlu0 %v2490, 34
      %v4108 = vpop.permute.xlu0 %4107
      %vm4109 = vcmask 277504
      %v4110 = vsel %vm4109, %v4096, %v4098
      %v4111 = vsel %vm4109, %v4098, %v4100
      %v4112 = vsel %vm4109, %v4100, %v4102
      %v4113 = vsel %vm4109, %v4102, %v4104
      %v4114 = vsel %vm4109, %v4104, %v4106
      %v4115 = vsel %vm4109, %v4106, %v4108
      %v4117 = vsel %vm369, %v4094, 0
      %v4120 = vsel %vm373, %v4110, 0
      %v4123 = vsel %vm373, %v4111, 0
      %v4126 = vsel %vm373, %v4112, 0
      %v4129 = vsel %vm373, %v4113, 0
      %v4132 = vsel %vm373, %v4114, 0
      %v4135 = vsel %vm373, %v4115, 0
      %v4138 = vsel %vm373, %v4108, 0
      %4140 = vmatpush.bf16.msra.mxu0 0
      %4141 = vmatpush.bf16.msra.mxu0 0
      %4142 = vmatpush.bf16.msra.mxu0 0
      %4143 = vmatpush.bf16.msra.mxu0 0
      %4144 = vmatpush.bf16.msra.mxu0 0
      %4145 = vmatpush.bf16.msra.mxu0 0
      %4146 = vmatpush.bf16.msra.mxu0 0
      %4147 = vmatpush.bf16.msra.mxu0 %v4120
      %4148 = vmatmul.bf16.gmra.mxu0 %v4117
      %v4149 = vpop.f32.mrf.mxu0
      %v4150 = vadd.f32 0.0, %v4149
      %v4151 = vpop.f32.mrf.mxu0
      %4152 = vdwg.mxu0
      %4153 = vmatpush.bf16.msra.mxu0 0
      %4154 = vmatpush.bf16.msra.mxu0 0
      %4155 = vmatpush.bf16.msra.mxu0 0
      %4156 = vmatpush.bf16.msra.mxu0 0
      %4157 = vmatpush.bf16.msra.mxu0 0
      %4158 = vmatpush.bf16.msra.mxu0 0
      %4159 = vmatpush.bf16.msra.mxu0 0
      %4160 = vmatpush.bf16.msra.mxu0 %v4123
      %4161 = vmatmul.bf16.gmra.mxu0 %v4117
      %v4162 = vpop.f32.mrf.mxu0
      %v4163 = vadd.f32 0.0, %v4162
      %v4164 = vpop.f32.mrf.mxu0
      %4165 = vdwg.mxu0
      %4166 = vmatpush.bf16.msra.mxu0 0
      %4167 = vmatpush.bf16.msra.mxu0 0
      %4168 = vmatpush.bf16.msra.mxu0 0
      %4169 = vmatpush.bf16.msra.mxu0 0
      %4170 = vmatpush.bf16.msra.mxu0 0
      %4171 = vmatpush.bf16.msra.mxu0 0
      %4172 = vmatpush.bf16.msra.mxu0 0
      %4173 = vmatpush.bf16.msra.mxu0 %v4126
      %4174 = vmatmul.bf16.gmra.mxu0 %v4117
      %v4175 = vpop.f32.mrf.mxu0
      %v4176 = vadd.f32 0.0, %v4175
      %v4177 = vpop.f32.mrf.mxu0
      %4178 = vdwg.mxu0
      %4179 = vmatpush.bf16.msra.mxu0 0
      %4180 = vmatpush.bf16.msra.mxu0 0
      %4181 = vmatpush.bf16.msra.mxu0 0
      %4182 = vmatpush.bf16.msra.mxu0 0
      %4183 = vmatpush.bf16.msra.mxu0 0
      %4184 = vmatpush.bf16.msra.mxu0 0
      %4185 = vmatpush.bf16.msra.mxu0 0
      %4186 = vmatpush.bf16.msra.mxu0 %v4129
      %4187 = vmatmul.bf16.gmra.mxu0 %v4117
      %v4188 = vpop.f32.mrf.mxu0
      %v4189 = vadd.f32 0.0, %v4188
      %v4190 = vpop.f32.mrf.mxu0
      %4191 = vdwg.mxu0
      %4192 = vmatpush.bf16.msra.mxu0 0
      %4193 = vmatpush.bf16.msra.mxu0 0
      %4194 = vmatpush.bf16.msra.mxu0 0
      %4195 = vmatpush.bf16.msra.mxu0 0
      %4196 = vmatpush.bf16.msra.mxu0 0
      %4197 = vmatpush.bf16.msra.mxu0 0
      %4198 = vmatpush.bf16.msra.mxu0 0
      %4199 = vmatpush.bf16.msra.mxu0 %v4132
      %4200 = vmatmul.bf16.gmra.mxu0 %v4117
      %v4201 = vpop.f32.mrf.mxu0
      %v4202 = vadd.f32 0.0, %v4201
      %v4203 = vpop.f32.mrf.mxu0
      %4204 = vdwg.mxu0
      %4205 = vmatpush.bf16.msra.mxu0 0
      %4206 = vmatpush.bf16.msra.mxu0 0
      %4207 = vmatpush.bf16.msra.mxu0 0
      %4208 = vmatpush.bf16.msra.mxu0 0
      %4209 = vmatpush.bf16.msra.mxu0 0
      %4210 = vmatpush.bf16.msra.mxu0 0
      %4211 = vmatpush.bf16.msra.mxu0 0
      %4212 = vmatpush.bf16.msra.mxu0 %v4135
      %4213 = vmatmul.bf16.gmra.mxu0 %v4117
      %v4214 = vpop.f32.mrf.mxu0
      %v4215 = vadd.f32 0.0, %v4214
      %v4216 = vpop.f32.mrf.mxu0
      %4217 = vdwg.mxu0
      %4218 = vmatpush.bf16.msra.mxu0 0
      %4219 = vmatpush.bf16.msra.mxu0 0
      %4220 = vmatpush.bf16.msra.mxu0 0
      %4221 = vmatpush.bf16.msra.mxu0 0
      %4222 = vmatpush.bf16.msra.mxu0 0
      %4223 = vmatpush.bf16.msra.mxu0 0
      %4224 = vmatpush.bf16.msra.mxu0 0
      %4225 = vmatpush.bf16.msra.mxu0 %v4138
      %4226 = vmatmul.bf16.gmra.mxu0 %v4117
      %v4227 = vpop.f32.mrf.mxu0
      %v4228 = vadd.f32 0.0, %v4227
      %v4229 = vpop.f32.mrf.mxu0
      %4230 = vdwg.mxu0
      %v4231 = vadd.f32 %v4086, %v4150
      %v4232 = vadd.f32 %v4087, %v4163
      %v4233 = vadd.f32 %v4088, %v4176
      %v4234 = vadd.f32 %v4089, %v4189
      %v4235 = vadd.f32 %v4090, %v4202
      %v4236 = vadd.f32 %v4091, %v4215
      %v4237 = vadd.f32 %v4092, %v4228
      %v4239 = vperm.slane %v315, 0
      %v4240 = vperm.slane %v315, 1
      %v4241 = vperm.slane %v315, 2
      %v4242 = vperm.slane %v315, 3
      %v4243 = vperm.slane %v315, 4
      %v4244 = vperm.slane %v315, 5
      %v4245 = vperm.slane %v315, 6
      %v4253 = vmul.f32 %v4231, %v4239
      %v4254 = vmul.f32 %v4232, %v4240
      %v4255 = vmul.f32 %v4233, %v4241
      %v4256 = vmul.f32 %v4234, %v4242
      %v4257 = vmul.f32 %v4235, %v4243
      %v4258 = vmul.f32 %v4236, %v4244
      %v4259 = vmul.f32 %v4237, %v4245
      %vm4260 = vcmask 1043456
      %v4261 = vsel %vm4260, %v4253, 0.0
      %v4262 = vsel %vm4260, %v4254, 0.0
      %v4263 = vadd.f32 %v4261, %v4262
      %v4264 = vsel %vm4260, %v4255, 0.0
      %v4265 = vadd.f32 %v4263, %v4264
      %v4266 = vsel %vm4260, %v4256, 0.0
      %v4267 = vadd.f32 %v4265, %v4266
      %v4268 = vsel %vm4260, %v4257, 0.0
      %v4269 = vadd.f32 %v4267, %v4268
      %v4270 = vsel %vm4260, %v4258, 0.0
      %v4271 = vadd.f32 %v4269, %v4270
      %vm4272 = vcmask 76800
      %v4273 = vsel %vm4272, %v4259, 0.0
      %v4274 = vadd.f32 %v4271, %v4273
      %4275 = vadd.xlane.f32.xlu0 %v4274
      %v4276 = vpop.xlane.xlu0 %4275
      %v4277 = vmul.f32 %v4276, 0.001953125
      %v4278 = vmul.f32 %v4253, %v4231
      %v4279 = vmul.f32 %v4254, %v4232
      %v4280 = vmul.f32 %v4255, %v4233
      %v4281 = vmul.f32 %v4256, %v4234
      %v4282 = vmul.f32 %v4257, %v4235
      %v4283 = vmul.f32 %v4258, %v4236
      %v4284 = vmul.f32 %v4259, %v4237
      %v4285 = vsel %vm4260, %v4278, 0.0
      %v4286 = vsel %vm4260, %v4279, 0.0
      %v4287 = vadd.f32 %v4285, %v4286
      %v4288 = vsel %vm4260, %v4280, 0.0
      %v4289 = vadd.f32 %v4287, %v4288
      %v4290 = vsel %vm4260, %v4281, 0.0
      %v4291 = vadd.f32 %v4289, %v4290
      %v4292 = vsel %vm4260, %v4282, 0.0
      %v4293 = vadd.f32 %v4291, %v4292
      %v4294 = vsel %vm4260, %v4283, 0.0
      %v4295 = vadd.f32 %v4293, %v4294
      %v4296 = vsel %vm4272, %v4284, 0.0
      %v4297 = vadd.f32 %v4295, %v4296
      %4298 = vadd.xlane.f32.xlu0 %v4297
      %v4299 = vpop.xlane.xlu0 %4298
      %v4300 = vmul.f32 %v4299, 0.001953125
      %v4301 = vmul.f32 %v4277, %v4277
      %v4302 = vsub.f32 %v4300, %v4301
      %v4303 = vmax.f32 %v4302, 0.0
      %v4304 = vsub.f32 %v4231, %v4277
      %v4305 = vsub.f32 %v4232, %v4277
      %v4306 = vsub.f32 %v4233, %v4277
      %v4307 = vsub.f32 %v4234, %v4277
      %v4308 = vsub.f32 %v4235, %v4277
      %v4309 = vsub.f32 %v4236, %v4277
      %v4310 = vsub.f32 %v4237, %v4277
      %v4311 = vadd.f32 %v4303, 1e-05
      %v4312 = vrsqrt.pop %v4311
      %v4313 = vmul.f32 %v4312, %v4311
      %v4314 = vmul.f32 %v4313, %v4312
      %v4315 = vmul.f32 0.5, %v4314
      %v4316 = vsub.f32 1.5, %v4315
      %v4317 = vmul.f32 %v4312, %v4316
      %vm4318 = vweird.f32 %v4311
      %vm4319 = vweird.f32 %v4312
      %vm4320 = vmor %vm4318, %vm4319
      %v4321 = vsel %vm4320, %v4312, %v4317
      %v4322 = vmul.f32 %v4304, %v4321
      %v4323 = vmul.f32 %v4305, %v4321
      %v4324 = vmul.f32 %v4306, %v4321
      %v4325 = vmul.f32 %v4307, %v4321
      %v4326 = vmul.f32 %v4308, %v4321
      %v4327 = vmul.f32 %v4309, %v4321
      %v4328 = vmul.f32 %v4310, %v4321
      %v4329 = vld [vmem:[%s3] sm:$0xf]
      %4331 = vset.pattern.permute.xlu0 0
      %4332 = vperm.xlu0 %4331, %v4329
      %v4333 = vpop.permute.xlu0 %4332
      %v4335 = vmul.f32 %v4322, %v4333
      %v4336 = vmul.f32 %v4323, %v4333
      %v4337 = vmul.f32 %v4324, %v4333
      %v4338 = vmul.f32 %v4325, %v4333
      %v4339 = vmul.f32 %v4326, %v4333
      %v4340 = vmul.f32 %v4327, %v4333
      %v4341 = vmul.f32 %v4328, %v4333
      %v4342 = vld [vmem:[%s4] sm:$0xf]
      %4344 = vset.pattern.permute.xlu0 0
      %4345 = vperm.xlu0 %4344, %v4342
      %v4346 = vpop.permute.xlu0 %4345
      %v4348 = vadd.f32 %v4335, %v4346
      %v4349 = vadd.f32 %v4336, %v4346
      %v4350 = vadd.f32 %v4337, %v4346
      %v4351 = vadd.f32 %v4338, %v4346
      %v4352 = vadd.f32 %v4339, %v4346
      %v4353 = vadd.f32 %v4340, %v4346
      %v4354 = vadd.f32 %v4341, %v4346
      %vm4355 = vcmp.ge.f32.partialorder %v4348, 0.0
      %vm4356 = vcmp.ge.f32.partialorder %v4349, 0.0
      %vm4357 = vcmp.ge.f32.partialorder %v4350, 0.0
      %vm4358 = vcmp.ge.f32.partialorder %v4351, 0.0
      %vm4359 = vcmp.ge.f32.partialorder %v4352, 0.0
      %vm4360 = vcmp.ge.f32.partialorder %v4353, 0.0
      %vm4361 = vcmp.ge.f32.partialorder %v4354, 0.0
      %v4362 = vmul.f32 %v4348, 0.01
      %v4363 = vmul.f32 %v4349, 0.01
      %v4364 = vmul.f32 %v4350, 0.01
      %v4365 = vmul.f32 %v4351, 0.01
      %v4366 = vmul.f32 %v4352, 0.01
      %v4367 = vmul.f32 %v4353, 0.01
      %v4368 = vmul.f32 %v4354, 0.01
      %v4369 = vsel %vm4355, %v4348, %v4362
      %v4370 = vsel %vm4356, %v4349, %v4363
      %v4371 = vsel %vm4357, %v4350, %v4364
      %v4372 = vsel %vm4358, %v4351, %v4365
      %v4373 = vsel %vm4359, %v4352, %v4366
      %v4374 = vsel %vm4360, %v4353, %v4367
      %v4375 = vsel %vm4361, %v4354, %v4368
      %v4376 = vmul.f32 %v4369, %v4239
      %v4377 = vmul.f32 %v4370, %v4240
      %v4378 = vmul.f32 %v4371, %v4241
      %v4379 = vmul.f32 %v4372, %v4242
      %v4380 = vmul.f32 %v4373, %v4243
      %v4381 = vmul.f32 %v4374, %v4244
      %v4382 = vmul.f32 %v4375, %v4245
      %4383 = vst [vmem:[#allocation2] sm:$0xff] 0
      %4384 = vst [vmem:[#allocation2 + $0x8] sm:$0xff] 0
      %v4385 = vpack.c.bf16 %v4377, %v4376
      %v4386 = vpack.c.bf16 %v4379, %v4378
      %v4387 = vpack.c.bf16 %v4381, %v4380
      %v4388 = vpack.c.bf16 %v4382, %v4382
      %v4393 = vrot.slane %v4385, 2
      %v4394 = vrot.slane %v4386, 4
      %v4395 = vrot.slane %v4386, 6
      %v4396 = vrot.slane %v4387, 2
      %v4397 = vrot.slane %v4388, 4
      %v4398 = vrot.slane %v4388, 6
      %vm4399 = vcmask 1041408
      %v4402 = vsel %vm4399, %v4385, %v4393
      %vm4403 = vcmask 1045508
      %v4406 = vsel %vm4403, %v4394, %v4395
      %v4407 = vsel %vm4260, %v4402, %v4406
      %v4410 = vsel %vm4399, %v4387, %v4396
      %v4413 = vsel %vm4403, %v4397, %v4398
      %v4414 = vsel %vm4260, %v4410, %v4413
      %4417 = vst [vmem:[#allocation2 + $0x2] sm:$0xff] %v4407
      %vm4418 = vcmask 1043458
      %vm4419 = vmor %vm4418, %vm4399
      %vm4420 = vcmask 78852
      %vm4421 = vmor %vm4420, %vm4419
      %4422 = vst.msk [vmem:[#allocation2 + $0xa] sm:$0x3f] %vm4421, %v4414
      %v4423 = vld [vmem:[#allocation2] sm:$0xff]
      %v4424 = vld [vmem:[#allocation2 + $0x8] sm:$0xff]
      %v4425 = vld [vmem:[%s5] sm:$0x3]
      %s4426 = scalar_lea.vmem %s5, 2
      %v4427 = vld [vmem:[%s4426] sm:$0x3]
      %4429 = vst [vmem:[#allocation1] ss:$4 sm:$0xff] %v4423
      %s4431 = scalar_lea.vmem [#allocation1], 32
      %4432 = vst [vmem:[%s4431] ss:$4 sm:$0xff] %v4424
      %v4433 = vld.sshfl [vmem:[#allocation1] sm:$0xff pattern:$0x73625140]
      %v4435 = vld.sshfl [vmem:[#allocation1 + $0x8] sm:$0xff pattern:$0x73625140]
      %v4437 = vld.sshfl [vmem:[#allocation1 + $0x10] sm:$0xff pattern:$0x73625140]
      %v4439 = vld.sshfl [vmem:[#allocation1 + $0x18] sm:$0xff pattern:$0x73625140]
      %v4441 = vld.sshfl [vmem:[#allocation1 + $0x20] sm:$0xff pattern:$0x73625140]
      %v4443 = vld.sshfl [vmem:[#allocation1 + $0x28] sm:$0xff pattern:$0x73625140]
      %v4445 = vld.sshfl [vmem:[#allocation1 + $0x30] sm:$0xff pattern:$0x73625140]
      %4447 = vrot.lane.b32.xlu0 %v4433, 110
      %v4448 = vpop.permute.xlu0 %4447
      %4449 = vrot.lane.b32.xlu0 %v4435, 110
      %v4450 = vpop.permute.xlu0 %4449
      %4451 = vrot.lane.b32.xlu0 %v4437, 110
      %v4452 = vpop.permute.xlu0 %4451
      %4453 = vrot.lane.b32.xlu0 %v4439, 110
      %v4454 = vpop.permute.xlu0 %4453
      %4455 = vrot.lane.b32.xlu0 %v4441, 110
      %v4456 = vpop.permute.xlu0 %4455
      %4457 = vrot.lane.b32.xlu0 %v4443, 110
      %v4458 = vpop.permute.xlu0 %4457
      %4459 = vrot.lane.b32.xlu0 %v4445, 110
      %v4460 = vpop.permute.xlu0 %4459
      %vm4461 = vcmask 900096
      %v4462 = vsel %vm4461, %v4448, %v4450
      %v4463 = vsel %vm4461, %v4450, %v4452
      %v4464 = vsel %vm4461, %v4452, %v4454
      %v4465 = vsel %vm4461, %v4454, %v4456
      %v4466 = vsel %vm4461, %v4456, %v4458
      %v4467 = vsel %vm4461, %v4458, %v4460
      %vm4468 = vcmask 31744
      %v4470 = vsel %vm4468, %v4427, 0
      %v4473 = vsel %vm4399, %v4462, 0
      %v4476 = vsel %vm4399, %v4463, 0
      %v4479 = vsel %vm4399, %v4464, 0
      %v4482 = vsel %vm4399, %v4465, 0
      %v4485 = vsel %vm4399, %v4466, 0
      %v4488 = vsel %vm4399, %v4467, 0
      %v4491 = vsel %vm4399, %v4460, 0
      %4493 = vmatpush.bf16.msra.mxu0 0
      %4494 = vmatpush.bf16.msra.mxu0 0
      %4495 = vmatpush.bf16.msra.mxu0 0
      %4496 = vmatpush.bf16.msra.mxu0 0
      %4497 = vmatpush.bf16.msra.mxu0 0
      %4498 = vmatpush.bf16.msra.mxu0 0
      %4499 = vmatpush.bf16.msra.mxu0 0
      %4500 = vmatpush.bf16.msra.mxu0 %v4473
      %4501 = vmatmul.bf16.gmra.mxu0 %v4470
      %v4502 = vpop.f32.mrf.mxu0
      %v4503 = vadd.f32 0.0, %v4502
      %v4504 = vpop.f32.mrf.mxu0
      %4505 = vdwg.mxu0
      %4506 = vmatpush.bf16.msra.mxu0 0
      %4507 = vmatpush.bf16.msra.mxu0 0
      %4508 = vmatpush.bf16.msra.mxu0 0
      %4509 = vmatpush.bf16.msra.mxu0 0
      %4510 = vmatpush.bf16.msra.mxu0 0
      %4511 = vmatpush.bf16.msra.mxu0 0
      %4512 = vmatpush.bf16.msra.mxu0 0
      %4513 = vmatpush.bf16.msra.mxu0 %v4476
      %4514 = vmatmul.bf16.gmra.mxu0 %v4470
      %v4515 = vpop.f32.mrf.mxu0
      %v4516 = vadd.f32 0.0, %v4515
      %v4517 = vpop.f32.mrf.mxu0
      %4518 = vdwg.mxu0
      %4519 = vmatpush.bf16.msra.mxu0 0
      %4520 = vmatpush.bf16.msra.mxu0 0
      %4521 = vmatpush.bf16.msra.mxu0 0
      %4522 = vmatpush.bf16.msra.mxu0 0
      %4523 = vmatpush.bf16.msra.mxu0 0
      %4524 = vmatpush.bf16.msra.mxu0 0
      %4525 = vmatpush.bf16.msra.mxu0 0
      %4526 = vmatpush.bf16.msra.mxu0 %v4479
      %4527 = vmatmul.bf16.gmra.mxu0 %v4470
      %v4528 = vpop.f32.mrf.mxu0
      %v4529 = vadd.f32 0.0, %v4528
      %v4530 = vpop.f32.mrf.mxu0
      %4531 = vdwg.mxu0
      %4532 = vmatpush.bf16.msra.mxu0 0
      %4533 = vmatpush.bf16.msra.mxu0 0
      %4534 = vmatpush.bf16.msra.mxu0 0
      %4535 = vmatpush.bf16.msra.mxu0 0
      %4536 = vmatpush.bf16.msra.mxu0 0
      %4537 = vmatpush.bf16.msra.mxu0 0
      %4538 = vmatpush.bf16.msra.mxu0 0
      %4539 = vmatpush.bf16.msra.mxu0 %v4482
      %4540 = vmatmul.bf16.gmra.mxu0 %v4470
      %v4541 = vpop.f32.mrf.mxu0
      %v4542 = vadd.f32 0.0, %v4541
      %v4543 = vpop.f32.mrf.mxu0
      %4544 = vdwg.mxu0
      %4545 = vmatpush.bf16.msra.mxu0 0
      %4546 = vmatpush.bf16.msra.mxu0 0
      %4547 = vmatpush.bf16.msra.mxu0 0
      %4548 = vmatpush.bf16.msra.mxu0 0
      %4549 = vmatpush.bf16.msra.mxu0 0
      %4550 = vmatpush.bf16.msra.mxu0 0
      %4551 = vmatpush.bf16.msra.mxu0 0
      %4552 = vmatpush.bf16.msra.mxu0 %v4485
      %4553 = vmatmul.bf16.gmra.mxu0 %v4470
      %v4554 = vpop.f32.mrf.mxu0
      %v4555 = vadd.f32 0.0, %v4554
      %v4556 = vpop.f32.mrf.mxu0
      %4557 = vdwg.mxu0
      %4558 = vmatpush.bf16.msra.mxu0 0
      %4559 = vmatpush.bf16.msra.mxu0 0
      %4560 = vmatpush.bf16.msra.mxu0 0
      %4561 = vmatpush.bf16.msra.mxu0 0
      %4562 = vmatpush.bf16.msra.mxu0 0
      %4563 = vmatpush.bf16.msra.mxu0 0
      %4564 = vmatpush.bf16.msra.mxu0 0
      %4565 = vmatpush.bf16.msra.mxu0 %v4488
      %4566 = vmatmul.bf16.gmra.mxu0 %v4470
      %v4567 = vpop.f32.mrf.mxu0
      %v4568 = vadd.f32 0.0, %v4567
      %v4569 = vpop.f32.mrf.mxu0
      %4570 = vdwg.mxu0
      %4571 = vmatpush.bf16.msra.mxu0 0
      %4572 = vmatpush.bf16.msra.mxu0 0
      %4573 = vmatpush.bf16.msra.mxu0 0
      %4574 = vmatpush.bf16.msra.mxu0 0
      %4575 = vmatpush.bf16.msra.mxu0 0
      %4576 = vmatpush.bf16.msra.mxu0 0
      %4577 = vmatpush.bf16.msra.mxu0 0
      %4578 = vmatpush.bf16.msra.mxu0 %v4491
      %4579 = vmatmul.bf16.gmra.mxu0 %v4470
      %v4580 = vpop.f32.mrf.mxu0
      %v4581 = vadd.f32 0.0, %v4580
      %v4582 = vpop.f32.mrf.mxu0
      %4583 = vdwg.mxu0
      %4584 = vst [vmem:[#allocation1] ss:$4 sm:$0xff] %v4423
      %s4585 = scalar_lea.vmem [#allocation1], 32
      %4586 = vst [vmem:[%s4585] ss:$4 sm:$0xff] %v4424
      %v4587 = vld.sshfl [vmem:[#allocation1] sm:$0xff pattern:$0x73625140]
      %v4589 = vld.sshfl [vmem:[#allocation1 + $0x8] sm:$0xff pattern:$0x73625140]
      %v4591 = vld.sshfl [vmem:[#allocation1 + $0x10] sm:$0xff pattern:$0x73625140]
      %v4593 = vld.sshfl [vmem:[#allocation1 + $0x18] sm:$0xff pattern:$0x73625140]
      %v4595 = vld.sshfl [vmem:[#allocation1 + $0x20] sm:$0xff pattern:$0x73625140]
      %v4597 = vld.sshfl [vmem:[#allocation1 + $0x28] sm:$0xff pattern:$0x73625140]
      %v4599 = vld.sshfl [vmem:[#allocation1 + $0x30] sm:$0xff pattern:$0x73625140]
      %4601 = vrot.lane.b32.xlu0 %v4587, 111
      %v4602 = vpop.permute.xlu0 %4601
      %4603 = vrot.lane.b32.xlu0 %v4589, 111
      %v4604 = vpop.permute.xlu0 %4603
      %4605 = vrot.lane.b32.xlu0 %v4591, 111
      %v4606 = vpop.permute.xlu0 %4605
      %4607 = vrot.lane.b32.xlu0 %v4593, 111
      %v4608 = vpop.permute.xlu0 %4607
      %4609 = vrot.lane.b32.xlu0 %v4595, 111
      %v4610 = vpop.permute.xlu0 %4609
      %4611 = vrot.lane.b32.xlu0 %v4597, 111
      %v4612 = vpop.permute.xlu0 %4611
      %4613 = vrot.lane.b32.xlu0 %v4599, 111
      %v4614 = vpop.permute.xlu0 %4613
      %vm4615 = vcmask 908288
      %v4616 = vsel %vm4615, %v4602, %v4604
      %v4617 = vsel %vm4615, %v4604, %v4606
      %v4618 = vsel %vm4615, %v4606, %v4608
      %v4619 = vsel %vm4615, %v4608, %v4610
      %v4620 = vsel %vm4615, %v4610, %v4612
      %v4621 = vsel %vm4615, %v4612, %v4614
      %v4623 = vsel %vm4468, %v4425, 0
      %v4626 = vsel %vm4399, %v4616, 0
      %v4629 = vsel %vm4399, %v4617, 0
      %v4632 = vsel %vm4399, %v4618, 0
      %v4635 = vsel %vm4399, %v4619, 0
      %v4638 = vsel %vm4399, %v4620, 0
      %v4641 = vsel %vm4399, %v4621, 0
      %v4644 = vsel %vm4399, %v4614, 0
      %4646 = vmatpush.bf16.msra.mxu0 0
      %4647 = vmatpush.bf16.msra.mxu0 0
      %4648 = vmatpush.bf16.msra.mxu0 0
      %4649 = vmatpush.bf16.msra.mxu0 0
      %4650 = vmatpush.bf16.msra.mxu0 0
      %4651 = vmatpush.bf16.msra.mxu0 0
      %4652 = vmatpush.bf16.msra.mxu0 0
      %4653 = vmatpush.bf16.msra.mxu0 %v4626
      %4654 = vmatmul.bf16.gmra.mxu0 %v4623
      %v4655 = vpop.f32.mrf.mxu0
      %v4656 = vadd.f32 %v4503, %v4655
      %v4657 = vpop.f32.mrf.mxu0
      %4658 = vdwg.mxu0
      %4659 = vmatpush.bf16.msra.mxu0 0
      %4660 = vmatpush.bf16.msra.mxu0 0
      %4661 = vmatpush.bf16.msra.mxu0 0
      %4662 = vmatpush.bf16.msra.mxu0 0
      %4663 = vmatpush.bf16.msra.mxu0 0
      %4664 = vmatpush.bf16.msra.mxu0 0
      %4665 = vmatpush.bf16.msra.mxu0 0
      %4666 = vmatpush.bf16.msra.mxu0 %v4629
      %4667 = vmatmul.bf16.gmra.mxu0 %v4623
      %v4668 = vpop.f32.mrf.mxu0
      %v4669 = vadd.f32 %v4516, %v4668
      %v4670 = vpop.f32.mrf.mxu0
      %4671 = vdwg.mxu0
      %4672 = vmatpush.bf16.msra.mxu0 0
      %4673 = vmatpush.bf16.msra.mxu0 0
      %4674 = vmatpush.bf16.msra.mxu0 0
      %4675 = vmatpush.bf16.msra.mxu0 0
      %4676 = vmatpush.bf16.msra.mxu0 0
      %4677 = vmatpush.bf16.msra.mxu0 0
      %4678 = vmatpush.bf16.msra.mxu0 0
      %4679 = vmatpush.bf16.msra.mxu0 %v4632
      %4680 = vmatmul.bf16.gmra.mxu0 %v4623
      %v4681 = vpop.f32.mrf.mxu0
      %v4682 = vadd.f32 %v4529, %v4681
      %v4683 = vpop.f32.mrf.mxu0
      %4684 = vdwg.mxu0
      %4685 = vmatpush.bf16.msra.mxu0 0
      %4686 = vmatpush.bf16.msra.mxu0 0
      %4687 = vmatpush.bf16.msra.mxu0 0
      %4688 = vmatpush.bf16.msra.mxu0 0
      %4689 = vmatpush.bf16.msra.mxu0 0
      %4690 = vmatpush.bf16.msra.mxu0 0
      %4691 = vmatpush.bf16.msra.mxu0 0
      %4692 = vmatpush.bf16.msra.mxu0 %v4635
      %4693 = vmatmul.bf16.gmra.mxu0 %v4623
      %v4694 = vpop.f32.mrf.mxu0
      %v4695 = vadd.f32 %v4542, %v4694
      %v4696 = vpop.f32.mrf.mxu0
      %4697 = vdwg.mxu0
      %4698 = vmatpush.bf16.msra.mxu0 0
      %4699 = vmatpush.bf16.msra.mxu0 0
      %4700 = vmatpush.bf16.msra.mxu0 0
      %4701 = vmatpush.bf16.msra.mxu0 0
      %4702 = vmatpush.bf16.msra.mxu0 0
      %4703 = vmatpush.bf16.msra.mxu0 0
      %4704 = vmatpush.bf16.msra.mxu0 0
      %4705 = vmatpush.bf16.msra.mxu0 %v4638
      %4706 = vmatmul.bf16.gmra.mxu0 %v4623
      %v4707 = vpop.f32.mrf.mxu0
      %v4708 = vadd.f32 %v4555, %v4707
      %v4709 = vpop.f32.mrf.mxu0
      %4710 = vdwg.mxu0
      %4711 = vmatpush.bf16.msra.mxu0 0
      %4712 = vmatpush.bf16.msra.mxu0 0
      %4713 = vmatpush.bf16.msra.mxu0 0
      %4714 = vmatpush.bf16.msra.mxu0 0
      %4715 = vmatpush.bf16.msra.mxu0 0
      %4716 = vmatpush.bf16.msra.mxu0 0
      %4717 = vmatpush.bf16.msra.mxu0 0
      %4718 = vmatpush.bf16.msra.mxu0 %v4641
      %4719 = vmatmul.bf16.gmra.mxu0 %v4623
      %v4720 = vpop.f32.mrf.mxu0
      %v4721 = vadd.f32 %v4568, %v4720
      %v4722 = vpop.f32.mrf.mxu0
      %4723 = vdwg.mxu0
      %4724 = vmatpush.bf16.msra.mxu0 0
      %4725 = vmatpush.bf16.msra.mxu0 0
      %4726 = vmatpush.bf16.msra.mxu0 0
      %4727 = vmatpush.bf16.msra.mxu0 0
      %4728 = vmatpush.bf16.msra.mxu0 0
      %4729 = vmatpush.bf16.msra.mxu0 0
      %4730 = vmatpush.bf16.msra.mxu0 0
      %4731 = vmatpush.bf16.msra.mxu0 %v4644
      %4732 = vmatmul.bf16.gmra.mxu0 %v4623
      %v4733 = vpop.f32.mrf.mxu0
      %v4734 = vadd.f32 %v4581, %v4733
      %v4735 = vpop.f32.mrf.mxu0
      %4736 = vdwg.mxu0
      %s4737 = scalar_lea.vmem %s5, 4
      %v4738 = vld [vmem:[%s4737] sm:$0x3]
      %4739 = vst [vmem:[#allocation1] ss:$4 sm:$0xff] %v4423
      %s4740 = scalar_lea.vmem [#allocation1], 32
      %4741 = vst [vmem:[%s4740] ss:$4 sm:$0xff] %v4424
      %v4742 = vld.sshfl [vmem:[#allocation1] sm:$0xff pattern:$0x73625140]
      %v4744 = vld.sshfl [vmem:[#allocation1 + $0x8] sm:$0xff pattern:$0x73625140]
      %v4746 = vld.sshfl [vmem:[#allocation1 + $0x10] sm:$0xff pattern:$0x73625140]
      %v4748 = vld.sshfl [vmem:[#allocation1 + $0x18] sm:$0xff pattern:$0x73625140]
      %v4750 = vld.sshfl [vmem:[#allocation1 + $0x20] sm:$0xff pattern:$0x73625140]
      %v4752 = vld.sshfl [vmem:[#allocation1 + $0x28] sm:$0xff pattern:$0x73625140]
      %v4754 = vld.sshfl [vmem:[#allocation1 + $0x30] sm:$0xff pattern:$0x73625140]
      %4756 = vrot.lane.b32.xlu0 %v4742, 109
      %v4757 = vpop.permute.xlu0 %4756
      %4758 = vrot.lane.b32.xlu0 %v4744, 109
      %v4759 = vpop.permute.xlu0 %4758
      %4760 = vrot.lane.b32.xlu0 %v4746, 109
      %v4761 = vpop.permute.xlu0 %4760
      %4762 = vrot.lane.b32.xlu0 %v4748, 109
      %v4763 = vpop.permute.xlu0 %4762
      %4764 = vrot.lane.b32.xlu0 %v4750, 109
      %v4765 = vpop.permute.xlu0 %4764
      %4766 = vrot.lane.b32.xlu0 %v4752, 109
      %v4767 = vpop.permute.xlu0 %4766
      %4768 = vrot.lane.b32.xlu0 %v4754, 109
      %v4769 = vpop.permute.xlu0 %4768
      %vm4770 = vcmask 891904
      %v4771 = vsel %vm4770, %v4757, %v4759
      %v4772 = vsel %vm4770, %v4759, %v4761
      %v4773 = vsel %vm4770, %v4761, %v4763
      %v4774 = vsel %vm4770, %v4763, %v4765
      %v4775 = vsel %vm4770, %v4765, %v4767
      %v4776 = vsel %vm4770, %v4767, %v4769
      %v4778 = vsel %vm4468, %v4738, 0
      %v4781 = vsel %vm4399, %v4771, 0
      %v4784 = vsel %vm4399, %v4772, 0
      %v4787 = vsel %vm4399, %v4773, 0
      %v4790 = vsel %vm4399, %v4774, 0
      %v4793 = vsel %vm4399, %v4775, 0
      %v4796 = vsel %vm4399, %v4776, 0
      %v4799 = vsel %vm4399, %v4769, 0
      %4801 = vmatpush.bf16.msra.mxu0 0
      %4802 = vmatpush.bf16.msra.mxu0 0
      %4803 = vmatpush.bf16.msra.mxu0 0
      %4804 = vmatpush.bf16.msra.mxu0 0
      %4805 = vmatpush.bf16.msra.mxu0 0
      %4806 = vmatpush.bf16.msra.mxu0 0
      %4807 = vmatpush.bf16.msra.mxu0 0
      %4808 = vmatpush.bf16.msra.mxu0 %v4781
      %4809 = vmatmul.bf16.gmra.mxu0 %v4778
      %v4810 = vpop.f32.mrf.mxu0
      %v4811 = vadd.f32 0.0, %v4810
      %v4812 = vpop.f32.mrf.mxu0
      %4813 = vdwg.mxu0
      %4814 = vmatpush.bf16.msra.mxu0 0
      %4815 = vmatpush.bf16.msra.mxu0 0
      %4816 = vmatpush.bf16.msra.mxu0 0
      %4817 = vmatpush.bf16.msra.mxu0 0
      %4818 = vmatpush.bf16.msra.mxu0 0
      %4819 = vmatpush.bf16.msra.mxu0 0
      %4820 = vmatpush.bf16.msra.mxu0 0
      %4821 = vmatpush.bf16.msra.mxu0 %v4784
      %4822 = vmatmul.bf16.gmra.mxu0 %v4778
      %v4823 = vpop.f32.mrf.mxu0
      %v4824 = vadd.f32 0.0, %v4823
      %v4825 = vpop.f32.mrf.mxu0
      %4826 = vdwg.mxu0
      %4827 = vmatpush.bf16.msra.mxu0 0
      %4828 = vmatpush.bf16.msra.mxu0 0
      %4829 = vmatpush.bf16.msra.mxu0 0
      %4830 = vmatpush.bf16.msra.mxu0 0
      %4831 = vmatpush.bf16.msra.mxu0 0
      %4832 = vmatpush.bf16.msra.mxu0 0
      %4833 = vmatpush.bf16.msra.mxu0 0
      %4834 = vmatpush.bf16.msra.mxu0 %v4787
      %4835 = vmatmul.bf16.gmra.mxu0 %v4778
      %v4836 = vpop.f32.mrf.mxu0
      %v4837 = vadd.f32 0.0, %v4836
      %v4838 = vpop.f32.mrf.mxu0
      %4839 = vdwg.mxu0
      %4840 = vmatpush.bf16.msra.mxu0 0
      %4841 = vmatpush.bf16.msra.mxu0 0
      %4842 = vmatpush.bf16.msra.mxu0 0
      %4843 = vmatpush.bf16.msra.mxu0 0
      %4844 = vmatpush.bf16.msra.mxu0 0
      %4845 = vmatpush.bf16.msra.mxu0 0
      %4846 = vmatpush.bf16.msra.mxu0 0
      %4847 = vmatpush.bf16.msra.mxu0 %v4790
      %4848 = vmatmul.bf16.gmra.mxu0 %v4778
      %v4849 = vpop.f32.mrf.mxu0
      %v4850 = vadd.f32 0.0, %v4849
      %v4851 = vpop.f32.mrf.mxu0
      %4852 = vdwg.mxu0
      %4853 = vmatpush.bf16.msra.mxu0 0
      %4854 = vmatpush.bf16.msra.mxu0 0
      %4855 = vmatpush.bf16.msra.mxu0 0
      %4856 = vmatpush.bf16.msra.mxu0 0
      %4857 = vmatpush.bf16.msra.mxu0 0
      %4858 = vmatpush.bf16.msra.mxu0 0
      %4859 = vmatpush.bf16.msra.mxu0 0
      %4860 = vmatpush.bf16.msra.mxu0 %v4793
      %4861 = vmatmul.bf16.gmra.mxu0 %v4778
      %v4862 = vpop.f32.mrf.mxu0
      %v4863 = vadd.f32 0.0, %v4862
      %v4864 = vpop.f32.mrf.mxu0
      %4865 = vdwg.mxu0
      %4866 = vmatpush.bf16.msra.mxu0 0
      %4867 = vmatpush.bf16.msra.mxu0 0
      %4868 = vmatpush.bf16.msra.mxu0 0
      %4869 = vmatpush.bf16.msra.mxu0 0
      %4870 = vmatpush.bf16.msra.mxu0 0
      %4871 = vmatpush.bf16.msra.mxu0 0
      %4872 = vmatpush.bf16.msra.mxu0 0
      %4873 = vmatpush.bf16.msra.mxu0 %v4796
      %4874 = vmatmul.bf16.gmra.mxu0 %v4778
      %v4875 = vpop.f32.mrf.mxu0
      %v4876 = vadd.f32 0.0, %v4875
      %v4877 = vpop.f32.mrf.mxu0
      %4878 = vdwg.mxu0
      %4879 = vmatpush.bf16.msra.mxu0 0
      %4880 = vmatpush.bf16.msra.mxu0 0
      %4881 = vmatpush.bf16.msra.mxu0 0
      %4882 = vmatpush.bf16.msra.mxu0 0
      %4883 = vmatpush.bf16.msra.mxu0 0
      %4884 = vmatpush.bf16.msra.mxu0 0
      %4885 = vmatpush.bf16.msra.mxu0 0
      %4886 = vmatpush.bf16.msra.mxu0 %v4799
      %4887 = vmatmul.bf16.gmra.mxu0 %v4778
      %v4888 = vpop.f32.mrf.mxu0
      %v4889 = vadd.f32 0.0, %v4888
      %v4890 = vpop.f32.mrf.mxu0
      %4891 = vdwg.mxu0
      %v4892 = vadd.f32 %v4656, %v4811
      %v4893 = vadd.f32 %v4669, %v4824
      %v4894 = vadd.f32 %v4682, %v4837
      %v4895 = vadd.f32 %v4695, %v4850
      %v4896 = vadd.f32 %v4708, %v4863
      %v4897 = vadd.f32 %v4721, %v4876
      %v4898 = vadd.f32 %v4734, %v4889
      %s4899 = scalar_lea.vmem %s5, 6
      %v4900 = vld [vmem:[%s4899] sm:$0x3]
      %4901 = vst [vmem:[#allocation1] ss:$4 sm:$0xff] %v4423
      %s4902 = scalar_lea.vmem [#allocation1], 32
      %4903 = vst [vmem:[%s4902] ss:$4 sm:$0xff] %v4424
      %v4904 = vld.sshfl [vmem:[#allocation1] sm:$0xff pattern:$0x73625140]
      %v4906 = vld.sshfl [vmem:[#allocation1 + $0x8] sm:$0xff pattern:$0x73625140]
      %v4908 = vld.sshfl [vmem:[#allocation1 + $0x10] sm:$0xff pattern:$0x73625140]
      %v4910 = vld.sshfl [vmem:[#allocation1 + $0x18] sm:$0xff pattern:$0x73625140]
      %v4912 = vld.sshfl [vmem:[#allocation1 + $0x20] sm:$0xff pattern:$0x73625140]
      %v4914 = vld.sshfl [vmem:[#allocation1 + $0x28] sm:$0xff pattern:$0x73625140]
      %v4916 = vld.sshfl [vmem:[#allocation1 + $0x30] sm:$0xff pattern:$0x73625140]
      %4918 = vrot.lane.b32.xlu0 %v4904, 101
      %v4919 = vpop.permute.xlu0 %4918
      %4920 = vrot.lane.b32.xlu0 %v4906, 101
      %v4921 = vpop.permute.xlu0 %4920
      %4922 = vrot.lane.b32.xlu0 %v4908, 101
      %v4923 = vpop.permute.xlu0 %4922
      %4924 = vrot.lane.b32.xlu0 %v4910, 101
      %v4925 = vpop.permute.xlu0 %4924
      %4926 = vrot.lane.b32.xlu0 %v4912, 101
      %v4927 = vpop.permute.xlu0 %4926
      %4928 = vrot.lane.b32.xlu0 %v4914, 101
      %v4929 = vpop.permute.xlu0 %4928
      %4930 = vrot.lane.b32.xlu0 %v4916, 101
      %v4931 = vpop.permute.xlu0 %4930
      %vm4932 = vcmask 826368
      %v4933 = vsel %vm4932, %v4919, %v4921
      %v4934 = vsel %vm4932, %v4921, %v4923
      %v4935 = vsel %vm4932, %v4923, %v4925
      %v4936 = vsel %vm4932, %v4925, %v4927
      %v4937 = vsel %vm4932, %v4927, %v4929
      %v4938 = vsel %vm4932, %v4929, %v4931
      %v4940 = vsel %vm4468, %v4900, 0
      %v4943 = vsel %vm4399, %v4933, 0
      %v4946 = vsel %vm4399, %v4934, 0
      %v4949 = vsel %vm4399, %v4935, 0
      %v4952 = vsel %vm4399, %v4936, 0
      %v4955 = vsel %vm4399, %v4937, 0
      %v4958 = vsel %vm4399, %v4938, 0
      %v4961 = vsel %vm4399, %v4931, 0
      %4963 = vmatpush.bf16.msra.mxu0 0
      %4964 = vmatpush.bf16.msra.mxu0 0
      %4965 = vmatpush.bf16.msra.mxu0 0
      %4966 = vmatpush.bf16.msra.mxu0 0
      %4967 = vmatpush.bf16.msra.mxu0 0
      %4968 = vmatpush.bf16.msra.mxu0 0
      %4969 = vmatpush.bf16.msra.mxu0 0
      %4970 = vmatpush.bf16.msra.mxu0 %v4943
      %4971 = vmatmul.bf16.gmra.mxu0 %v4940
      %v4972 = vpop.f32.mrf.mxu0
      %v4973 = vadd.f32 0.0, %v4972
      %v4974 = vpop.f32.mrf.mxu0
      %4975 = vdwg.mxu0
      %4976 = vmatpush.bf16.msra.mxu0 0
      %4977 = vmatpush.bf16.msra.mxu0 0
      %4978 = vmatpush.bf16.msra.mxu0 0
      %4979 = vmatpush.bf16.msra.mxu0 0
      %4980 = vmatpush.bf16.msra.mxu0 0
      %4981 = vmatpush.bf16.msra.mxu0 0
      %4982 = vmatpush.bf16.msra.mxu0 0
      %4983 = vmatpush.bf16.msra.mxu0 %v4946
      %4984 = vmatmul.bf16.gmra.mxu0 %v4940
      %v4985 = vpop.f32.mrf.mxu0
      %v4986 = vadd.f32 0.0, %v4985
      %v4987 = vpop.f32.mrf.mxu0
      %4988 = vdwg.mxu0
      %4989 = vmatpush.bf16.msra.mxu0 0
      %4990 = vmatpush.bf16.msra.mxu0 0
      %4991 = vmatpush.bf16.msra.mxu0 0
      %4992 = vmatpush.bf16.msra.mxu0 0
      %4993 = vmatpush.bf16.msra.mxu0 0
      %4994 = vmatpush.bf16.msra.mxu0 0
      %4995 = vmatpush.bf16.msra.mxu0 0
      %4996 = vmatpush.bf16.msra.mxu0 %v4949
      %4997 = vmatmul.bf16.gmra.mxu0 %v4940
      %v4998 = vpop.f32.mrf.mxu0
      %v4999 = vadd.f32 0.0, %v4998
      %v5000 = vpop.f32.mrf.mxu0
      %5001 = vdwg.mxu0
      %5002 = vmatpush.bf16.msra.mxu0 0
      %5003 = vmatpush.bf16.msra.mxu0 0
      %5004 = vmatpush.bf16.msra.mxu0 0
      %5005 = vmatpush.bf16.msra.mxu0 0
      %5006 = vmatpush.bf16.msra.mxu0 0
      %5007 = vmatpush.bf16.msra.mxu0 0
      %5008 = vmatpush.bf16.msra.mxu0 0
      %5009 = vmatpush.bf16.msra.mxu0 %v4952
      %5010 = vmatmul.bf16.gmra.mxu0 %v4940
      %v5011 = vpop.f32.mrf.mxu0
      %v5012 = vadd.f32 0.0, %v5011
      %v5013 = vpop.f32.mrf.mxu0
      %5014 = vdwg.mxu0
      %5015 = vmatpush.bf16.msra.mxu0 0
      %5016 = vmatpush.bf16.msra.mxu0 0
      %5017 = vmatpush.bf16.msra.mxu0 0
      %5018 = vmatpush.bf16.msra.mxu0 0
      %5019 = vmatpush.bf16.msra.mxu0 0
      %5020 = vmatpush.bf16.msra.mxu0 0
      %5021 = vmatpush.bf16.msra.mxu0 0
      %5022 = vmatpush.bf16.msra.mxu0 %v4955
      %5023 = vmatmul.bf16.gmra.mxu0 %v4940
      %v5024 = vpop.f32.mrf.mxu0
      %v5025 = vadd.f32 0.0, %v5024
      %v5026 = vpop.f32.mrf.mxu0
      %5027 = vdwg.mxu0
      %5028 = vmatpush.bf16.msra.mxu0 0
      %5029 = vmatpush.bf16.msra.mxu0 0
      %5030 = vmatpush.bf16.msra.mxu0 0
      %5031 = vmatpush.bf16.msra.mxu0 0
      %5032 = vmatpush.bf16.msra.mxu0 0
      %5033 = vmatpush.bf16.msra.mxu0 0
      %5034 = vmatpush.bf16.msra.mxu0 0
      %5035 = vmatpush.bf16.msra.mxu0 %v4958
      %5036 = vmatmul.bf16.gmra.mxu0 %v4940
      %v5037 = vpop.f32.mrf.mxu0
      %v5038 = vadd.f32 0.0, %v5037
      %v5039 = vpop.f32.mrf.mxu0
      %5040 = vdwg.mxu0
      %5041 = vmatpush.bf16.msra.mxu0 0
      %5042 = vmatpush.bf16.msra.mxu0 0
      %5043 = vmatpush.bf16.msra.mxu0 0
      %5044 = vmatpush.bf16.msra.mxu0 0
      %5045 = vmatpush.bf16.msra.mxu0 0
      %5046 = vmatpush.bf16.msra.mxu0 0
      %5047 = vmatpush.bf16.msra.mxu0 0
      %5048 = vmatpush.bf16.msra.mxu0 %v4961
      %5049 = vmatmul.bf16.gmra.mxu0 %v4940
      %v5050 = vpop.f32.mrf.mxu0
      %v5051 = vadd.f32 0.0, %v5050
      %v5052 = vpop.f32.mrf.mxu0
      %5053 = vdwg.mxu0
      %v5054 = vadd.f32 %v4892, %v4973
      %v5055 = vadd.f32 %v4893, %v4986
      %v5056 = vadd.f32 %v4894, %v4999
      %v5057 = vadd.f32 %v4895, %v5012
      %v5058 = vadd.f32 %v4896, %v5025
      %v5059 = vadd.f32 %v4897, %v5038
      %v5060 = vadd.f32 %v4898, %v5051
      %s5061 = scalar_lea.vmem %s5, 8
      %v5062 = vld [vmem:[%s5061] sm:$0x3]
      %5063 = vst [vmem:[#allocation1] ss:$4 sm:$0xff] %v4423
      %s5064 = scalar_lea.vmem [#allocation1], 32
      %5065 = vst [vmem:[%s5064] ss:$4 sm:$0xff] %v4424
      %v5066 = vld.sshfl [vmem:[#allocation1] sm:$0xff pattern:$0x73625140]
      %v5068 = vld.sshfl [vmem:[#allocation1 + $0x8] sm:$0xff pattern:$0x73625140]
      %v5070 = vld.sshfl [vmem:[#allocation1 + $0x10] sm:$0xff pattern:$0x73625140]
      %v5072 = vld.sshfl [vmem:[#allocation1 + $0x18] sm:$0xff pattern:$0x73625140]
      %v5074 = vld.sshfl [vmem:[#allocation1 + $0x20] sm:$0xff pattern:$0x73625140]
      %v5076 = vld.sshfl [vmem:[#allocation1 + $0x28] sm:$0xff pattern:$0x73625140]
      %v5078 = vld.sshfl [vmem:[#allocation1 + $0x30] sm:$0xff pattern:$0x73625140]
      %5080 = vrot.lane.b32.xlu0 %v5066, 100
      %v5081 = vpop.permute.xlu0 %5080
      %5082 = vrot.lane.b32.xlu0 %v5068, 100
      %v5083 = vpop.permute.xlu0 %5082
      %5084 = vrot.lane.b32.xlu0 %v5070, 100
      %v5085 = vpop.permute.xlu0 %5084
      %5086 = vrot.lane.b32.xlu0 %v5072, 100
      %v5087 = vpop.permute.xlu0 %5086
      %5088 = vrot.lane.b32.xlu0 %v5074, 100
      %v5089 = vpop.permute.xlu0 %5088
      %5090 = vrot.lane.b32.xlu0 %v5076, 100
      %v5091 = vpop.permute.xlu0 %5090
      %5092 = vrot.lane.b32.xlu0 %v5078, 100
      %v5093 = vpop.permute.xlu0 %5092
      %vm5094 = vcmask 818176
      %v5095 = vsel %vm5094, %v5081, %v5083
      %v5096 = vsel %vm5094, %v5083, %v5085
      %v5097 = vsel %vm5094, %v5085, %v5087
      %v5098 = vsel %vm5094, %v5087, %v5089
      %v5099 = vsel %vm5094, %v5089, %v5091
      %v5100 = vsel %vm5094, %v5091, %v5093
      %v5102 = vsel %vm4468, %v5062, 0
      %v5105 = vsel %vm4399, %v5095, 0
      %v5108 = vsel %vm4399, %v5096, 0
      %v5111 = vsel %vm4399, %v5097, 0
      %v5114 = vsel %vm4399, %v5098, 0
      %v5117 = vsel %vm4399, %v5099, 0
      %v5120 = vsel %vm4399, %v5100, 0
      %v5123 = vsel %vm4399, %v5093, 0
      %5125 = vmatpush.bf16.msra.mxu0 0
      %5126 = vmatpush.bf16.msra.mxu0 0
      %5127 = vmatpush.bf16.msra.mxu0 0
      %5128 = vmatpush.bf16.msra.mxu0 0
      %5129 = vmatpush.bf16.msra.mxu0 0
      %5130 = vmatpush.bf16.msra.mxu0 0
      %5131 = vmatpush.bf16.msra.mxu0 0
      %5132 = vmatpush.bf16.msra.mxu0 %v5105
      %5133 = vmatmul.bf16.gmra.mxu0 %v5102
      %v5134 = vpop.f32.mrf.mxu0
      %v5135 = vadd.f32 0.0, %v5134
      %v5136 = vpop.f32.mrf.mxu0
      %5137 = vdwg.mxu0
      %5138 = vmatpush.bf16.msra.mxu0 0
      %5139 = vmatpush.bf16.msra.mxu0 0
      %5140 = vmatpush.bf16.msra.mxu0 0
      %5141 = vmatpush.bf16.msra.mxu0 0
      %5142 = vmatpush.bf16.msra.mxu0 0
      %5143 = vmatpush.bf16.msra.mxu0 0
      %5144 = vmatpush.bf16.msra.mxu0 0
      %5145 = vmatpush.bf16.msra.mxu0 %v5108
      %5146 = vmatmul.bf16.gmra.mxu0 %v5102
      %v5147 = vpop.f32.mrf.mxu0
      %v5148 = vadd.f32 0.0, %v5147
      %v5149 = vpop.f32.mrf.mxu0
      %5150 = vdwg.mxu0
      %5151 = vmatpush.bf16.msra.mxu0 0
      %5152 = vmatpush.bf16.msra.mxu0 0
      %5153 = vmatpush.bf16.msra.mxu0 0
      %5154 = vmatpush.bf16.msra.mxu0 0
      %5155 = vmatpush.bf16.msra.mxu0 0
      %5156 = vmatpush.bf16.msra.mxu0 0
      %5157 = vmatpush.bf16.msra.mxu0 0
      %5158 = vmatpush.bf16.msra.mxu0 %v5111
      %5159 = vmatmul.bf16.gmra.mxu0 %v5102
      %v5160 = vpop.f32.mrf.mxu0
      %v5161 = vadd.f32 0.0, %v5160
      %v5162 = vpop.f32.mrf.mxu0
      %5163 = vdwg.mxu0
      %5164 = vmatpush.bf16.msra.mxu0 0
      %5165 = vmatpush.bf16.msra.mxu0 0
      %5166 = vmatpush.bf16.msra.mxu0 0
      %5167 = vmatpush.bf16.msra.mxu0 0
      %5168 = vmatpush.bf16.msra.mxu0 0
      %5169 = vmatpush.bf16.msra.mxu0 0
      %5170 = vmatpush.bf16.msra.mxu0 0
      %5171 = vmatpush.bf16.msra.mxu0 %v5114
      %5172 = vmatmul.bf16.gmra.mxu0 %v5102
      %v5173 = vpop.f32.mrf.mxu0
      %v5174 = vadd.f32 0.0, %v5173
      %v5175 = vpop.f32.mrf.mxu0
      %5176 = vdwg.mxu0
      %5177 = vmatpush.bf16.msra.mxu0 0
      %5178 = vmatpush.bf16.msra.mxu0 0
      %5179 = vmatpush.bf16.msra.mxu0 0
      %5180 = vmatpush.bf16.msra.mxu0 0
      %5181 = vmatpush.bf16.msra.mxu0 0
      %5182 = vmatpush.bf16.msra.mxu0 0
      %5183 = vmatpush.bf16.msra.mxu0 0
      %5184 = vmatpush.bf16.msra.mxu0 %v5117
      %5185 = vmatmul.bf16.gmra.mxu0 %v5102
      %v5186 = vpop.f32.mrf.mxu0
      %v5187 = vadd.f32 0.0, %v5186
      %v5188 = vpop.f32.mrf.mxu0
      %5189 = vdwg.mxu0
      %5190 = vmatpush.bf16.msra.mxu0 0
      %5191 = vmatpush.bf16.msra.mxu0 0
      %5192 = vmatpush.bf16.msra.mxu0 0
      %5193 = vmatpush.bf16.msra.mxu0 0
      %5194 = vmatpush.bf16.msra.mxu0 0
      %5195 = vmatpush.bf16.msra.mxu0 0
      %5196 = vmatpush.bf16.msra.mxu0 0
      %5197 = vmatpush.bf16.msra.mxu0 %v5120
      %5198 = vmatmul.bf16.gmra.mxu0 %v5102
      %v5199 = vpop.f32.mrf.mxu0
      %v5200 = vadd.f32 0.0, %v5199
      %v5201 = vpop.f32.mrf.mxu0
      %5202 = vdwg.mxu0
      %5203 = vmatpush.bf16.msra.mxu0 0
      %5204 = vmatpush.bf16.msra.mxu0 0
      %5205 = vmatpush.bf16.msra.mxu0 0
      %5206 = vmatpush.bf16.msra.mxu0 0
      %5207 = vmatpush.bf16.msra.mxu0 0
      %5208 = vmatpush.bf16.msra.mxu0 0
      %5209 = vmatpush.bf16.msra.mxu0 0
      %5210 = vmatpush.bf16.msra.mxu0 %v5123
      %5211 = vmatmul.bf16.gmra.mxu0 %v5102
      %v5212 = vpop.f32.mrf.mxu0
      %v5213 = vadd.f32 0.0, %v5212
      %v5214 = vpop.f32.mrf.mxu0
      %5215 = vdwg.mxu0
      %v5216 = vadd.f32 %v5054, %v5135
      %v5217 = vadd.f32 %v5055, %v5148
      %v5218 = vadd.f32 %v5056, %v5161
      %v5219 = vadd.f32 %v5057, %v5174
      %v5220 = vadd.f32 %v5058, %v5187
      %v5221 = vadd.f32 %v5059, %v5200
      %v5222 = vadd.f32 %v5060, %v5213
      %s5223 = scalar_lea.vmem %s5, 10
      %v5224 = vld [vmem:[%s5223] sm:$0x3]
      %5225 = vst [vmem:[#allocation1] ss:$4 sm:$0xff] %v4423
      %s5226 = scalar_lea.vmem [#allocation1], 32
      %5227 = vst [vmem:[%s5226] ss:$4 sm:$0xff] %v4424
      %v5228 = vld.sshfl [vmem:[#allocation1] sm:$0xff pattern:$0x73625140]
      %v5230 = vld.sshfl [vmem:[#allocation1 + $0x8] sm:$0xff pattern:$0x73625140]
      %v5232 = vld.sshfl [vmem:[#allocation1 + $0x10] sm:$0xff pattern:$0x73625140]
      %v5234 = vld.sshfl [vmem:[#allocation1 + $0x18] sm:$0xff pattern:$0x73625140]
      %v5236 = vld.sshfl [vmem:[#allocation1 + $0x20] sm:$0xff pattern:$0x73625140]
      %v5238 = vld.sshfl [vmem:[#allocation1 + $0x28] sm:$0xff pattern:$0x73625140]
      %v5240 = vld.sshfl [vmem:[#allocation1 + $0x30] sm:$0xff pattern:$0x73625140]
      %5242 = vrot.lane.b32.xlu0 %v5228, 99
      %v5243 = vpop.permute.xlu0 %5242
      %5244 = vrot.lane.b32.xlu0 %v5230, 99
      %v5245 = vpop.permute.xlu0 %5244
      %5246 = vrot.lane.b32.xlu0 %v5232, 99
      %v5247 = vpop.permute.xlu0 %5246
      %5248 = vrot.lane.b32.xlu0 %v5234, 99
      %v5249 = vpop.permute.xlu0 %5248
      %5250 = vrot.lane.b32.xlu0 %v5236, 99
      %v5251 = vpop.permute.xlu0 %5250
      %5252 = vrot.lane.b32.xlu0 %v5238, 99
      %v5253 = vpop.permute.xlu0 %5252
      %5254 = vrot.lane.b32.xlu0 %v5240, 99
      %v5255 = vpop.permute.xlu0 %5254
      %vm5256 = vcmask 809984
      %v5257 = vsel %vm5256, %v5243, %v5245
      %v5258 = vsel %vm5256, %v5245, %v5247
      %v5259 = vsel %vm5256, %v5247, %v5249
      %v5260 = vsel %vm5256, %v5249, %v5251
      %v5261 = vsel %vm5256, %v5251, %v5253
      %v5262 = vsel %vm5256, %v5253, %v5255
      %v5264 = vsel %vm4468, %v5224, 0
      %v5267 = vsel %vm4399, %v5257, 0
      %v5270 = vsel %vm4399, %v5258, 0
      %v5273 = vsel %vm4399, %v5259, 0
      %v5276 = vsel %vm4399, %v5260, 0
      %v5279 = vsel %vm4399, %v5261, 0
      %v5282 = vsel %vm4399, %v5262, 0
      %v5285 = vsel %vm4399, %v5255, 0
      %5287 = vmatpush.bf16.msra.mxu0 0
      %5288 = vmatpush.bf16.msra.mxu0 0
      %5289 = vmatpush.bf16.msra.mxu0 0
      %5290 = vmatpush.bf16.msra.mxu0 0
      %5291 = vmatpush.bf16.msra.mxu0 0
      %5292 = vmatpush.bf16.msra.mxu0 0
      %5293 = vmatpush.bf16.msra.mxu0 0
      %5294 = vmatpush.bf16.msra.mxu0 %v5267
      %5295 = vmatmul.bf16.gmra.mxu0 %v5264
      %v5296 = vpop.f32.mrf.mxu0
      %v5297 = vadd.f32 0.0, %v5296
      %v5298 = vpop.f32.mrf.mxu0
      %5299 = vdwg.mxu0
      %5300 = vmatpush.bf16.msra.mxu0 0
      %5301 = vmatpush.bf16.msra.mxu0 0
      %5302 = vmatpush.bf16.msra.mxu0 0
      %5303 = vmatpush.bf16.msra.mxu0 0
      %5304 = vmatpush.bf16.msra.mxu0 0
      %5305 = vmatpush.bf16.msra.mxu0 0
      %5306 = vmatpush.bf16.msra.mxu0 0
      %5307 = vmatpush.bf16.msra.mxu0 %v5270
      %5308 = vmatmul.bf16.gmra.mxu0 %v5264
      %v5309 = vpop.f32.mrf.mxu0
      %v5310 = vadd.f32 0.0, %v5309
      %v5311 = vpop.f32.mrf.mxu0
      %5312 = vdwg.mxu0
      %5313 = vmatpush.bf16.msra.mxu0 0
      %5314 = vmatpush.bf16.msra.mxu0 0
      %5315 = vmatpush.bf16.msra.mxu0 0
      %5316 = vmatpush.bf16.msra.mxu0 0
      %5317 = vmatpush.bf16.msra.mxu0 0
      %5318 = vmatpush.bf16.msra.mxu0 0
      %5319 = vmatpush.bf16.msra.mxu0 0
      %5320 = vmatpush.bf16.msra.mxu0 %v5273
      %5321 = vmatmul.bf16.gmra.mxu0 %v5264
      %v5322 = vpop.f32.mrf.mxu0
      %v5323 = vadd.f32 0.0, %v5322
      %v5324 = vpop.f32.mrf.mxu0
      %5325 = vdwg.mxu0
      %5326 = vmatpush.bf16.msra.mxu0 0
      %5327 = vmatpush.bf16.msra.mxu0 0
      %5328 = vmatpush.bf16.msra.mxu0 0
      %5329 = vmatpush.bf16.msra.mxu0 0
      %5330 = vmatpush.bf16.msra.mxu0 0
      %5331 = vmatpush.bf16.msra.mxu0 0
      %5332 = vmatpush.bf16.msra.mxu0 0
      %5333 = vmatpush.bf16.msra.mxu0 %v5276
      %5334 = vmatmul.bf16.gmra.mxu0 %v5264
      %v5335 = vpop.f32.mrf.mxu0
      %v5336 = vadd.f32 0.0, %v5335
      %v5337 = vpop.f32.mrf.mxu0
      %5338 = vdwg.mxu0
      %5339 = vmatpush.bf16.msra.mxu0 0
      %5340 = vmatpush.bf16.msra.mxu0 0
      %5341 = vmatpush.bf16.msra.mxu0 0
      %5342 = vmatpush.bf16.msra.mxu0 0
      %5343 = vmatpush.bf16.msra.mxu0 0
      %5344 = vmatpush.bf16.msra.mxu0 0
      %5345 = vmatpush.bf16.msra.mxu0 0
      %5346 = vmatpush.bf16.msra.mxu0 %v5279
      %5347 = vmatmul.bf16.gmra.mxu0 %v5264
      %v5348 = vpop.f32.mrf.mxu0
      %v5349 = vadd.f32 0.0, %v5348
      %v5350 = vpop.f32.mrf.mxu0
      %5351 = vdwg.mxu0
      %5352 = vmatpush.bf16.msra.mxu0 0
      %5353 = vmatpush.bf16.msra.mxu0 0
      %5354 = vmatpush.bf16.msra.mxu0 0
      %5355 = vmatpush.bf16.msra.mxu0 0
      %5356 = vmatpush.bf16.msra.mxu0 0
      %5357 = vmatpush.bf16.msra.mxu0 0
      %5358 = vmatpush.bf16.msra.mxu0 0
      %5359 = vmatpush.bf16.msra.mxu0 %v5282
      %5360 = vmatmul.bf16.gmra.mxu0 %v5264
      %v5361 = vpop.f32.mrf.mxu0
      %v5362 = vadd.f32 0.0, %v5361
      %v5363 = vpop.f32.mrf.mxu0
      %5364 = vdwg.mxu0
      %5365 = vmatpush.bf16.msra.mxu0 0
      %5366 = vmatpush.bf16.msra.mxu0 0
      %5367 = vmatpush.bf16.msra.mxu0 0
      %5368 = vmatpush.bf16.msra.mxu0 0
      %5369 = vmatpush.bf16.msra.mxu0 0
      %5370 = vmatpush.bf16.msra.mxu0 0
      %5371 = vmatpush.bf16.msra.mxu0 0
      %5372 = vmatpush.bf16.msra.mxu0 %v5285
      %5373 = vmatmul.bf16.gmra.mxu0 %v5264
      %v5374 = vpop.f32.mrf.mxu0
      %v5375 = vadd.f32 0.0, %v5374
      %v5376 = vpop.f32.mrf.mxu0
      %5377 = vdwg.mxu0
      %v5378 = vadd.f32 %v5216, %v5297
      %v5379 = vadd.f32 %v5217, %v5310
      %v5380 = vadd.f32 %v5218, %v5323
      %v5381 = vadd.f32 %v5219, %v5336
      %v5382 = vadd.f32 %v5220, %v5349
      %v5383 = vadd.f32 %v5221, %v5362
      %v5384 = vadd.f32 %v5222, %v5375
      %s5385 = scalar_lea.vmem %s5, 12
      %v5386 = vld [vmem:[%s5385] sm:$0x3]
      %5387 = vst [vmem:[#allocation1] ss:$4 sm:$0xff] %v4423
      %s5388 = scalar_lea.vmem [#allocation1], 32
      %5389 = vst [vmem:[%s5388] ss:$4 sm:$0xff] %v4424
      %v5390 = vld.sshfl [vmem:[#allocation1] sm:$0xff pattern:$0x73625140]
      %v5392 = vld.sshfl [vmem:[#allocation1 + $0x8] sm:$0xff pattern:$0x73625140]
      %v5394 = vld.sshfl [vmem:[#allocation1 + $0x10] sm:$0xff pattern:$0x73625140]
      %v5396 = vld.sshfl [vmem:[#allocation1 + $0x18] sm:$0xff pattern:$0x73625140]
      %v5398 = vld.sshfl [vmem:[#allocation1 + $0x20] sm:$0xff pattern:$0x73625140]
      %v5400 = vld.sshfl [vmem:[#allocation1 + $0x28] sm:$0xff pattern:$0x73625140]
      %v5402 = vld.sshfl [vmem:[#allocation1 + $0x30] sm:$0xff pattern:$0x73625140]
      %5404 = vrot.lane.b32.xlu0 %v5390, 91
      %v5405 = vpop.permute.xlu0 %5404
      %5406 = vrot.lane.b32.xlu0 %v5392, 91
      %v5407 = vpop.permute.xlu0 %5406
      %5408 = vrot.lane.b32.xlu0 %v5394, 91
      %v5409 = vpop.permute.xlu0 %5408
      %5410 = vrot.lane.b32.xlu0 %v5396, 91
      %v5411 = vpop.permute.xlu0 %5410
      %5412 = vrot.lane.b32.xlu0 %v5398, 91
      %v5413 = vpop.permute.xlu0 %5412
      %5414 = vrot.lane.b32.xlu0 %v5400, 91
      %v5415 = vpop.permute.xlu0 %5414
      %5416 = vrot.lane.b32.xlu0 %v5402, 91
      %v5417 = vpop.permute.xlu0 %5416
      %vm5418 = vcmask 744448
      %v5419 = vsel %vm5418, %v5405, %v5407
      %v5420 = vsel %vm5418, %v5407, %v5409
      %v5421 = vsel %vm5418, %v5409, %v5411
      %v5422 = vsel %vm5418, %v5411, %v5413
      %v5423 = vsel %vm5418, %v5413, %v5415
      %v5424 = vsel %vm5418, %v5415, %v5417
      %v5426 = vsel %vm4468, %v5386, 0
      %v5429 = vsel %vm4399, %v5419, 0
      %v5432 = vsel %vm4399, %v5420, 0
      %v5435 = vsel %vm4399, %v5421, 0
      %v5438 = vsel %vm4399, %v5422, 0
      %v5441 = vsel %vm4399, %v5423, 0
      %v5444 = vsel %vm4399, %v5424, 0
      %v5447 = vsel %vm4399, %v5417, 0
      %5449 = vmatpush.bf16.msra.mxu0 0
      %5450 = vmatpush.bf16.msra.mxu0 0
      %5451 = vmatpush.bf16.msra.mxu0 0
      %5452 = vmatpush.bf16.msra.mxu0 0
      %5453 = vmatpush.bf16.msra.mxu0 0
      %5454 = vmatpush.bf16.msra.mxu0 0
      %5455 = vmatpush.bf16.msra.mxu0 0
      %5456 = vmatpush.bf16.msra.mxu0 %v5429
      %5457 = vmatmul.bf16.gmra.mxu0 %v5426
      %v5458 = vpop.f32.mrf.mxu0
      %v5459 = vadd.f32 0.0, %v5458
      %v5460 = vpop.f32.mrf.mxu0
      %5461 = vdwg.mxu0
      %5462 = vmatpush.bf16.msra.mxu0 0
      %5463 = vmatpush.bf16.msra.mxu0 0
      %5464 = vmatpush.bf16.msra.mxu0 0
      %5465 = vmatpush.bf16.msra.mxu0 0
      %5466 = vmatpush.bf16.msra.mxu0 0
      %5467 = vmatpush.bf16.msra.mxu0 0
      %5468 = vmatpush.bf16.msra.mxu0 0
      %5469 = vmatpush.bf16.msra.mxu0 %v5432
      %5470 = vmatmul.bf16.gmra.mxu0 %v5426
      %v5471 = vpop.f32.mrf.mxu0
      %v5472 = vadd.f32 0.0, %v5471
      %v5473 = vpop.f32.mrf.mxu0
      %5474 = vdwg.mxu0
      %5475 = vmatpush.bf16.msra.mxu0 0
      %5476 = vmatpush.bf16.msra.mxu0 0
      %5477 = vmatpush.bf16.msra.mxu0 0
      %5478 = vmatpush.bf16.msra.mxu0 0
      %5479 = vmatpush.bf16.msra.mxu0 0
      %5480 = vmatpush.bf16.msra.mxu0 0
      %5481 = vmatpush.bf16.msra.mxu0 0
      %5482 = vmatpush.bf16.msra.mxu0 %v5435
      %5483 = vmatmul.bf16.gmra.mxu0 %v5426
      %v5484 = vpop.f32.mrf.mxu0
      %v5485 = vadd.f32 0.0, %v5484
      %v5486 = vpop.f32.mrf.mxu0
      %5487 = vdwg.mxu0
      %5488 = vmatpush.bf16.msra.mxu0 0
      %5489 = vmatpush.bf16.msra.mxu0 0
      %5490 = vmatpush.bf16.msra.mxu0 0
      %5491 = vmatpush.bf16.msra.mxu0 0
      %5492 = vmatpush.bf16.msra.mxu0 0
      %5493 = vmatpush.bf16.msra.mxu0 0
      %5494 = vmatpush.bf16.msra.mxu0 0
      %5495 = vmatpush.bf16.msra.mxu0 %v5438
      %5496 = vmatmul.bf16.gmra.mxu0 %v5426
      %v5497 = vpop.f32.mrf.mxu0
      %v5498 = vadd.f32 0.0, %v5497
      %v5499 = vpop.f32.mrf.mxu0
      %5500 = vdwg.mxu0
      %5501 = vmatpush.bf16.msra.mxu0 0
      %5502 = vmatpush.bf16.msra.mxu0 0
      %5503 = vmatpush.bf16.msra.mxu0 0
      %5504 = vmatpush.bf16.msra.mxu0 0
      %5505 = vmatpush.bf16.msra.mxu0 0
      %5506 = vmatpush.bf16.msra.mxu0 0
      %5507 = vmatpush.bf16.msra.mxu0 0
      %5508 = vmatpush.bf16.msra.mxu0 %v5441
      %5509 = vmatmul.bf16.gmra.mxu0 %v5426
      %v5510 = vpop.f32.mrf.mxu0
      %v5511 = vadd.f32 0.0, %v5510
      %v5512 = vpop.f32.mrf.mxu0
      %5513 = vdwg.mxu0
      %5514 = vmatpush.bf16.msra.mxu0 0
      %5515 = vmatpush.bf16.msra.mxu0 0
      %5516 = vmatpush.bf16.msra.mxu0 0
      %5517 = vmatpush.bf16.msra.mxu0 0
      %5518 = vmatpush.bf16.msra.mxu0 0
      %5519 = vmatpush.bf16.msra.mxu0 0
      %5520 = vmatpush.bf16.msra.mxu0 0
      %5521 = vmatpush.bf16.msra.mxu0 %v5444
      %5522 = vmatmul.bf16.gmra.mxu0 %v5426
      %v5523 = vpop.f32.mrf.mxu0
      %v5524 = vadd.f32 0.0, %v5523
      %v5525 = vpop.f32.mrf.mxu0
      %5526 = vdwg.mxu0
      %5527 = vmatpush.bf16.msra.mxu0 0
      %5528 = vmatpush.bf16.msra.mxu0 0
      %5529 = vmatpush.bf16.msra.mxu0 0
      %5530 = vmatpush.bf16.msra.mxu0 0
      %5531 = vmatpush.bf16.msra.mxu0 0
      %5532 = vmatpush.bf16.msra.mxu0 0
      %5533 = vmatpush.bf16.msra.mxu0 0
      %5534 = vmatpush.bf16.msra.mxu0 %v5447
      %5535 = vmatmul.bf16.gmra.mxu0 %v5426
      %v5536 = vpop.f32.mrf.mxu0
      %v5537 = vadd.f32 0.0, %v5536
      %v5538 = vpop.f32.mrf.mxu0
      %5539 = vdwg.mxu0
      %v5540 = vadd.f32 %v5378, %v5459
      %v5541 = vadd.f32 %v5379, %v5472
      %v5542 = vadd.f32 %v5380, %v5485
      %v5543 = vadd.f32 %v5381, %v5498
      %v5544 = vadd.f32 %v5382, %v5511
      %v5545 = vadd.f32 %v5383, %v5524
      %v5546 = vadd.f32 %v5384, %v5537
      %s5547 = scalar_lea.vmem %s5, 14
      %v5548 = vld [vmem:[%s5547] sm:$0x3]
      %5549 = vst [vmem:[#allocation1] ss:$4 sm:$0xff] %v4423
      %s5550 = scalar_lea.vmem [#allocation1], 32
      %5551 = vst [vmem:[%s5550] ss:$4 sm:$0xff] %v4424
      %v5552 = vld.sshfl [vmem:[#allocation1] sm:$0xff pattern:$0x73625140]
      %v5554 = vld.sshfl [vmem:[#allocation1 + $0x8] sm:$0xff pattern:$0x73625140]
      %v5556 = vld.sshfl [vmem:[#allocation1 + $0x10] sm:$0xff pattern:$0x73625140]
      %v5558 = vld.sshfl [vmem:[#allocation1 + $0x18] sm:$0xff pattern:$0x73625140]
      %v5560 = vld.sshfl [vmem:[#allocation1 + $0x20] sm:$0xff pattern:$0x73625140]
      %v5562 = vld.sshfl [vmem:[#allocation1 + $0x28] sm:$0xff pattern:$0x73625140]
      %v5564 = vld.sshfl [vmem:[#allocation1 + $0x30] sm:$0xff pattern:$0x73625140]
      %5566 = vrot.lane.b32.xlu0 %v5552, 90
      %v5567 = vpop.permute.xlu0 %5566
      %5568 = vrot.lane.b32.xlu0 %v5554, 90
      %v5569 = vpop.permute.xlu0 %5568
      %5570 = vrot.lane.b32.xlu0 %v5556, 90
      %v5571 = vpop.permute.xlu0 %5570
      %5572 = vrot.lane.b32.xlu0 %v5558, 90
      %v5573 = vpop.permute.xlu0 %5572
      %5574 = vrot.lane.b32.xlu0 %v5560, 90
      %v5575 = vpop.permute.xlu0 %5574
      %5576 = vrot.lane.b32.xlu0 %v5562, 90
      %v5577 = vpop.permute.xlu0 %5576
      %5578 = vrot.lane.b32.xlu0 %v5564, 90
      %v5579 = vpop.permute.xlu0 %5578
      %vm5580 = vcmask 736256
      %v5581 = vsel %vm5580, %v5567, %v5569
      %v5582 = vsel %vm5580, %v5569, %v5571
      %v5583 = vsel %vm5580, %v5571, %v5573
      %v5584 = vsel %vm5580, %v5573, %v5575
      %v5585 = vsel %vm5580, %v5575, %v5577
      %v5586 = vsel %vm5580, %v5577, %v5579
      %v5588 = vsel %vm4468, %v5548, 0
      %v5591 = vsel %vm4399, %v5581, 0
      %v5594 = vsel %vm4399, %v5582, 0
      %v5597 = vsel %vm4399, %v5583, 0
      %v5600 = vsel %vm4399, %v5584, 0
      %v5603 = vsel %vm4399, %v5585, 0
      %v5606 = vsel %vm4399, %v5586, 0
      %v5609 = vsel %vm4399, %v5579, 0
      %5611 = vmatpush.bf16.msra.mxu0 0
      %5612 = vmatpush.bf16.msra.mxu0 0
      %5613 = vmatpush.bf16.msra.mxu0 0
      %5614 = vmatpush.bf16.msra.mxu0 0
      %5615 = vmatpush.bf16.msra.mxu0 0
      %5616 = vmatpush.bf16.msra.mxu0 0
      %5617 = vmatpush.bf16.msra.mxu0 0
      %5618 = vmatpush.bf16.msra.mxu0 %v5591
      %5619 = vmatmul.bf16.gmra.mxu0 %v5588
      %v5620 = vpop.f32.mrf.mxu0
      %v5621 = vadd.f32 0.0, %v5620
      %v5622 = vpop.f32.mrf.mxu0
      %5623 = vdwg.mxu0
      %5624 = vmatpush.bf16.msra.mxu0 0
      %5625 = vmatpush.bf16.msra.mxu0 0
      %5626 = vmatpush.bf16.msra.mxu0 0
      %5627 = vmatpush.bf16.msra.mxu0 0
      %5628 = vmatpush.bf16.msra.mxu0 0
      %5629 = vmatpush.bf16.msra.mxu0 0
      %5630 = vmatpush.bf16.msra.mxu0 0
      %5631 = vmatpush.bf16.msra.mxu0 %v5594
      %5632 = vmatmul.bf16.gmra.mxu0 %v5588
      %v5633 = vpop.f32.mrf.mxu0
      %v5634 = vadd.f32 0.0, %v5633
      %v5635 = vpop.f32.mrf.mxu0
      %5636 = vdwg.mxu0
      %5637 = vmatpush.bf16.msra.mxu0 0
      %5638 = vmatpush.bf16.msra.mxu0 0
      %5639 = vmatpush.bf16.msra.mxu0 0
      %5640 = vmatpush.bf16.msra.mxu0 0
      %5641 = vmatpush.bf16.msra.mxu0 0
      %5642 = vmatpush.bf16.msra.mxu0 0
      %5643 = vmatpush.bf16.msra.mxu0 0
      %5644 = vmatpush.bf16.msra.mxu0 %v5597
      %5645 = vmatmul.bf16.gmra.mxu0 %v5588
      %v5646 = vpop.f32.mrf.mxu0
      %v5647 = vadd.f32 0.0, %v5646
      %v5648 = vpop.f32.mrf.mxu0
      %5649 = vdwg.mxu0
      %5650 = vmatpush.bf16.msra.mxu0 0
      %5651 = vmatpush.bf16.msra.mxu0 0
      %5652 = vmatpush.bf16.msra.mxu0 0
      %5653 = vmatpush.bf16.msra.mxu0 0
      %5654 = vmatpush.bf16.msra.mxu0 0
      %5655 = vmatpush.bf16.msra.mxu0 0
      %5656 = vmatpush.bf16.msra.mxu0 0
      %5657 = vmatpush.bf16.msra.mxu0 %v5600
      %5658 = vmatmul.bf16.gmra.mxu0 %v5588
      %v5659 = vpop.f32.mrf.mxu0
      %v5660 = vadd.f32 0.0, %v5659
      %v5661 = vpop.f32.mrf.mxu0
      %5662 = vdwg.mxu0
      %5663 = vmatpush.bf16.msra.mxu0 0
      %5664 = vmatpush.bf16.msra.mxu0 0
      %5665 = vmatpush.bf16.msra.mxu0 0
      %5666 = vmatpush.bf16.msra.mxu0 0
      %5667 = vmatpush.bf16.msra.mxu0 0
      %5668 = vmatpush.bf16.msra.mxu0 0
      %5669 = vmatpush.bf16.msra.mxu0 0
      %5670 = vmatpush.bf16.msra.mxu0 %v5603
      %5671 = vmatmul.bf16.gmra.mxu0 %v5588
      %v5672 = vpop.f32.mrf.mxu0
      %v5673 = vadd.f32 0.0, %v5672
      %v5674 = vpop.f32.mrf.mxu0
      %5675 = vdwg.mxu0
      %5676 = vmatpush.bf16.msra.mxu0 0
      %5677 = vmatpush.bf16.msra.mxu0 0
      %5678 = vmatpush.bf16.msra.mxu0 0
      %5679 = vmatpush.bf16.msra.mxu0 0
      %5680 = vmatpush.bf16.msra.mxu0 0
      %5681 = vmatpush.bf16.msra.mxu0 0
      %5682 = vmatpush.bf16.msra.mxu0 0
      %5683 = vmatpush.bf16.msra.mxu0 %v5606
      %5684 = vmatmul.bf16.gmra.mxu0 %v5588
      %v5685 = vpop.f32.mrf.mxu0
      %v5686 = vadd.f32 0.0, %v5685
      %v5687 = vpop.f32.mrf.mxu0
      %5688 = vdwg.mxu0
      %5689 = vmatpush.bf16.msra.mxu0 0
      %5690 = vmatpush.bf16.msra.mxu0 0
      %5691 = vmatpush.bf16.msra.mxu0 0
      %5692 = vmatpush.bf16.msra.mxu0 0
      %5693 = vmatpush.bf16.msra.mxu0 0
      %5694 = vmatpush.bf16.msra.mxu0 0
      %5695 = vmatpush.bf16.msra.mxu0 0
      %5696 = vmatpush.bf16.msra.mxu0 %v5609
      %5697 = vmatmul.bf16.gmra.mxu0 %v5588
      %v5698 = vpop.f32.mrf.mxu0
      %v5699 = vadd.f32 0.0, %v5698
      %v5700 = vpop.f32.mrf.mxu0
      %5701 = vdwg.mxu0
      %v5702 = vadd.f32 %v5540, %v5621
      %v5703 = vadd.f32 %v5541, %v5634
      %v5704 = vadd.f32 %v5542, %v5647
      %v5705 = vadd.f32 %v5543, %v5660
      %v5706 = vadd.f32 %v5544, %v5673
      %v5707 = vadd.f32 %v5545, %v5686
      %v5708 = vadd.f32 %v5546, %v5699
      %s5709 = scalar_lea.vmem %s5, 16
      %v5710 = vld [vmem:[%s5709] sm:$0x3]
      %5711 = vst [vmem:[#allocation1] ss:$4 sm:$0xff] %v4423
      %s5712 = scalar_lea.vmem [#allocation1], 32
      %5713 = vst [vmem:[%s5712] ss:$4 sm:$0xff] %v4424
      %v5714 = vld.sshfl [vmem:[#allocation1] sm:$0xff pattern:$0x73625140]
      %v5716 = vld.sshfl [vmem:[#allocation1 + $0x8] sm:$0xff pattern:$0x73625140]
      %v5718 = vld.sshfl [vmem:[#allocation1 + $0x10] sm:$0xff pattern:$0x73625140]
      %v5720 = vld.sshfl [vmem:[#allocation1 + $0x18] sm:$0xff pattern:$0x73625140]
      %v5722 = vld.sshfl [vmem:[#allocation1 + $0x20] sm:$0xff pattern:$0x73625140]
      %v5724 = vld.sshfl [vmem:[#allocation1 + $0x28] sm:$0xff pattern:$0x73625140]
      %v5726 = vld.sshfl [vmem:[#allocation1 + $0x30] sm:$0xff pattern:$0x73625140]
      %5728 = vrot.lane.b32.xlu0 %v5714, 89
      %v5729 = vpop.permute.xlu0 %5728
      %5730 = vrot.lane.b32.xlu0 %v5716, 89
      %v5731 = vpop.permute.xlu0 %5730
      %5732 = vrot.lane.b32.xlu0 %v5718, 89
      %v5733 = vpop.permute.xlu0 %5732
      %5734 = vrot.lane.b32.xlu0 %v5720, 89
      %v5735 = vpop.permute.xlu0 %5734
      %5736 = vrot.lane.b32.xlu0 %v5722, 89
      %v5737 = vpop.permute.xlu0 %5736
      %5738 = vrot.lane.b32.xlu0 %v5724, 89
      %v5739 = vpop.permute.xlu0 %5738
      %5740 = vrot.lane.b32.xlu0 %v5726, 89
      %v5741 = vpop.permute.xlu0 %5740
      %vm5742 = vcmask 728064
      %v5743 = vsel %vm5742, %v5729, %v5731
      %v5744 = vsel %vm5742, %v5731, %v5733
      %v5745 = vsel %vm5742, %v5733, %v5735
      %v5746 = vsel %vm5742, %v5735, %v5737
      %v5747 = vsel %vm5742, %v5737, %v5739
      %v5748 = vsel %vm5742, %v5739, %v5741
      %v5750 = vsel %vm4468, %v5710, 0
      %v5753 = vsel %vm4399, %v5743, 0
      %v5756 = vsel %vm4399, %v5744, 0
      %v5759 = vsel %vm4399, %v5745, 0
      %v5762 = vsel %vm4399, %v5746, 0
      %v5765 = vsel %vm4399, %v5747, 0
      %v5768 = vsel %vm4399, %v5748, 0
      %v5771 = vsel %vm4399, %v5741, 0
      %5773 = vmatpush.bf16.msra.mxu0 0
      %5774 = vmatpush.bf16.msra.mxu0 0
      %5775 = vmatpush.bf16.msra.mxu0 0
      %5776 = vmatpush.bf16.msra.mxu0 0
      %5777 = vmatpush.bf16.msra.mxu0 0
      %5778 = vmatpush.bf16.msra.mxu0 0
      %5779 = vmatpush.bf16.msra.mxu0 0
      %5780 = vmatpush.bf16.msra.mxu0 %v5753
      %5781 = vmatmul.bf16.gmra.mxu0 %v5750
      %v5782 = vpop.f32.mrf.mxu0
      %v5783 = vadd.f32 0.0, %v5782
      %v5784 = vpop.f32.mrf.mxu0
      %5785 = vdwg.mxu0
      %5786 = vmatpush.bf16.msra.mxu0 0
      %5787 = vmatpush.bf16.msra.mxu0 0
      %5788 = vmatpush.bf16.msra.mxu0 0
      %5789 = vmatpush.bf16.msra.mxu0 0
      %5790 = vmatpush.bf16.msra.mxu0 0
      %5791 = vmatpush.bf16.msra.mxu0 0
      %5792 = vmatpush.bf16.msra.mxu0 0
      %5793 = vmatpush.bf16.msra.mxu0 %v5756
      %5794 = vmatmul.bf16.gmra.mxu0 %v5750
      %v5795 = vpop.f32.mrf.mxu0
      %v5796 = vadd.f32 0.0, %v5795
      %v5797 = vpop.f32.mrf.mxu0
      %5798 = vdwg.mxu0
      %5799 = vmatpush.bf16.msra.mxu0 0
      %5800 = vmatpush.bf16.msra.mxu0 0
      %5801 = vmatpush.bf16.msra.mxu0 0
      %5802 = vmatpush.bf16.msra.mxu0 0
      %5803 = vmatpush.bf16.msra.mxu0 0
      %5804 = vmatpush.bf16.msra.mxu0 0
      %5805 = vmatpush.bf16.msra.mxu0 0
      %5806 = vmatpush.bf16.msra.mxu0 %v5759
      %5807 = vmatmul.bf16.gmra.mxu0 %v5750
      %v5808 = vpop.f32.mrf.mxu0
      %v5809 = vadd.f32 0.0, %v5808
      %v5810 = vpop.f32.mrf.mxu0
      %5811 = vdwg.mxu0
      %5812 = vmatpush.bf16.msra.mxu0 0
      %5813 = vmatpush.bf16.msra.mxu0 0
      %5814 = vmatpush.bf16.msra.mxu0 0
      %5815 = vmatpush.bf16.msra.mxu0 0
      %5816 = vmatpush.bf16.msra.mxu0 0
      %5817 = vmatpush.bf16.msra.mxu0 0
      %5818 = vmatpush.bf16.msra.mxu0 0
      %5819 = vmatpush.bf16.msra.mxu0 %v5762
      %5820 = vmatmul.bf16.gmra.mxu0 %v5750
      %v5821 = vpop.f32.mrf.mxu0
      %v5822 = vadd.f32 0.0, %v5821
      %v5823 = vpop.f32.mrf.mxu0
      %5824 = vdwg.mxu0
      %5825 = vmatpush.bf16.msra.mxu0 0
      %5826 = vmatpush.bf16.msra.mxu0 0
      %5827 = vmatpush.bf16.msra.mxu0 0
      %5828 = vmatpush.bf16.msra.mxu0 0
      %5829 = vmatpush.bf16.msra.mxu0 0
      %5830 = vmatpush.bf16.msra.mxu0 0
      %5831 = vmatpush.bf16.msra.mxu0 0
      %5832 = vmatpush.bf16.msra.mxu0 %v5765
      %5833 = vmatmul.bf16.gmra.mxu0 %v5750
      %v5834 = vpop.f32.mrf.mxu0
      %v5835 = vadd.f32 0.0, %v5834
      %v5836 = vpop.f32.mrf.mxu0
      %5837 = vdwg.mxu0
      %5838 = vmatpush.bf16.msra.mxu0 0
      %5839 = vmatpush.bf16.msra.mxu0 0
      %5840 = vmatpush.bf16.msra.mxu0 0
      %5841 = vmatpush.bf16.msra.mxu0 0
      %5842 = vmatpush.bf16.msra.mxu0 0
      %5843 = vmatpush.bf16.msra.mxu0 0
      %5844 = vmatpush.bf16.msra.mxu0 0
      %5845 = vmatpush.bf16.msra.mxu0 %v5768
      %5846 = vmatmul.bf16.gmra.mxu0 %v5750
      %v5847 = vpop.f32.mrf.mxu0
      %v5848 = vadd.f32 0.0, %v5847
      %v5849 = vpop.f32.mrf.mxu0
      %5850 = vdwg.mxu0
      %5851 = vmatpush.bf16.msra.mxu0 0
      %5852 = vmatpush.bf16.msra.mxu0 0
      %5853 = vmatpush.bf16.msra.mxu0 0
      %5854 = vmatpush.bf16.msra.mxu0 0
      %5855 = vmatpush.bf16.msra.mxu0 0
      %5856 = vmatpush.bf16.msra.mxu0 0
      %5857 = vmatpush.bf16.msra.mxu0 0
      %5858 = vmatpush.bf16.msra.mxu0 %v5771
      %5859 = vmatmul.bf16.gmra.mxu0 %v5750
      %v5860 = vpop.f32.mrf.mxu0
      %v5861 = vadd.f32 0.0, %v5860
      %v5862 = vpop.f32.mrf.mxu0
      %5863 = vdwg.mxu0
      %v5864 = vadd.f32 %v5702, %v5783
      %v5865 = vadd.f32 %v5703, %v5796
      %v5866 = vadd.f32 %v5704, %v5809
      %v5867 = vadd.f32 %v5705, %v5822
      %v5868 = vadd.f32 %v5706, %v5835
      %v5869 = vadd.f32 %v5707, %v5848
      %v5870 = vadd.f32 %v5708, %v5861
      %s5871 = scalar_lea.vmem %s5, 18
      %v5872 = vld [vmem:[%s5871] sm:$0x3]
      %5873 = vst [vmem:[#allocation1] ss:$4 sm:$0xff] %v4423
      %s5874 = scalar_lea.vmem [#allocation1], 32
      %5875 = vst [vmem:[%s5874] ss:$4 sm:$0xff] %v4424
      %v5876 = vld.sshfl [vmem:[#allocation1] sm:$0xff pattern:$0x73625140]
      %v5878 = vld.sshfl [vmem:[#allocation1 + $0x8] sm:$0xff pattern:$0x73625140]
      %v5880 = vld.sshfl [vmem:[#allocation1 + $0x10] sm:$0xff pattern:$0x73625140]
      %v5882 = vld.sshfl [vmem:[#allocation1 + $0x18] sm:$0xff pattern:$0x73625140]
      %v5884 = vld.sshfl [vmem:[#allocation1 + $0x20] sm:$0xff pattern:$0x73625140]
      %v5886 = vld.sshfl [vmem:[#allocation1 + $0x28] sm:$0xff pattern:$0x73625140]
      %v5888 = vld.sshfl [vmem:[#allocation1 + $0x30] sm:$0xff pattern:$0x73625140]
      %5890 = vrot.lane.b32.xlu0 %v5876, 11
      %v5891 = vpop.permute.xlu0 %5890
      %5892 = vrot.lane.b32.xlu0 %v5878, 11
      %v5893 = vpop.permute.xlu0 %5892
      %5894 = vrot.lane.b32.xlu0 %v5880, 11
      %v5895 = vpop.permute.xlu0 %5894
      %5896 = vrot.lane.b32.xlu0 %v5882, 11
      %v5897 = vpop.permute.xlu0 %5896
      %5898 = vrot.lane.b32.xlu0 %v5884, 11
      %v5899 = vpop.permute.xlu0 %5898
      %5900 = vrot.lane.b32.xlu0 %v5886, 11
      %v5901 = vpop.permute.xlu0 %5900
      %5902 = vrot.lane.b32.xlu0 %v5888, 11
      %v5903 = vpop.permute.xlu0 %5902
      %vm5904 = vcmask 89088
      %v5905 = vsel %vm5904, %v5891, %v5893
      %v5906 = vsel %vm5904, %v5893, %v5895
      %v5907 = vsel %vm5904, %v5895, %v5897
      %v5908 = vsel %vm5904, %v5897, %v5899
      %v5909 = vsel %vm5904, %v5899, %v5901
      %v5910 = vsel %vm5904, %v5901, %v5903
      %v5912 = vsel %vm4468, %v5872, 0
      %v5915 = vsel %vm4399, %v5905, 0
      %v5918 = vsel %vm4399, %v5906, 0
      %v5921 = vsel %vm4399, %v5907, 0
      %v5924 = vsel %vm4399, %v5908, 0
      %v5927 = vsel %vm4399, %v5909, 0
      %v5930 = vsel %vm4399, %v5910, 0
      %v5933 = vsel %vm4399, %v5903, 0
      %5935 = vmatpush.bf16.msra.mxu0 0
      %5936 = vmatpush.bf16.msra.mxu0 0
      %5937 = vmatpush.bf16.msra.mxu0 0
      %5938 = vmatpush.bf16.msra.mxu0 0
      %5939 = vmatpush.bf16.msra.mxu0 0
      %5940 = vmatpush.bf16.msra.mxu0 0
      %5941 = vmatpush.bf16.msra.mxu0 0
      %5942 = vmatpush.bf16.msra.mxu0 %v5915
      %5943 = vmatmul.bf16.gmra.mxu0 %v5912
      %v5944 = vpop.f32.mrf.mxu0
      %v5945 = vadd.f32 0.0, %v5944
      %v5946 = vpop.f32.mrf.mxu0
      %5947 = vdwg.mxu0
      %5948 = vmatpush.bf16.msra.mxu0 0
      %5949 = vmatpush.bf16.msra.mxu0 0
      %5950 = vmatpush.bf16.msra.mxu0 0
      %5951 = vmatpush.bf16.msra.mxu0 0
      %5952 = vmatpush.bf16.msra.mxu0 0
      %5953 = vmatpush.bf16.msra.mxu0 0
      %5954 = vmatpush.bf16.msra.mxu0 0
      %5955 = vmatpush.bf16.msra.mxu0 %v5918
      %5956 = vmatmul.bf16.gmra.mxu0 %v5912
      %v5957 = vpop.f32.mrf.mxu0
      %v5958 = vadd.f32 0.0, %v5957
      %v5959 = vpop.f32.mrf.mxu0
      %5960 = vdwg.mxu0
      %5961 = vmatpush.bf16.msra.mxu0 0
      %5962 = vmatpush.bf16.msra.mxu0 0
      %5963 = vmatpush.bf16.msra.mxu0 0
      %5964 = vmatpush.bf16.msra.mxu0 0
      %5965 = vmatpush.bf16.msra.mxu0 0
      %5966 = vmatpush.bf16.msra.mxu0 0
      %5967 = vmatpush.bf16.msra.mxu0 0
      %5968 = vmatpush.bf16.msra.mxu0 %v5921
      %5969 = vmatmul.bf16.gmra.mxu0 %v5912
      %v5970 = vpop.f32.mrf.mxu0
      %v5971 = vadd.f32 0.0, %v5970
      %v5972 = vpop.f32.mrf.mxu0
      %5973 = vdwg.mxu0
      %5974 = vmatpush.bf16.msra.mxu0 0
      %5975 = vmatpush.bf16.msra.mxu0 0
      %5976 = vmatpush.bf16.msra.mxu0 0
      %5977 = vmatpush.bf16.msra.mxu0 0
      %5978 = vmatpush.bf16.msra.mxu0 0
      %5979 = vmatpush.bf16.msra.mxu0 0
      %5980 = vmatpush.bf16.msra.mxu0 0
      %5981 = vmatpush.bf16.msra.mxu0 %v5924
      %5982 = vmatmul.bf16.gmra.mxu0 %v5912
      %v5983 = vpop.f32.mrf.mxu0
      %v5984 = vadd.f32 0.0, %v5983
      %v5985 = vpop.f32.mrf.mxu0
      %5986 = vdwg.mxu0
      %5987 = vmatpush.bf16.msra.mxu0 0
      %5988 = vmatpush.bf16.msra.mxu0 0
      %5989 = vmatpush.bf16.msra.mxu0 0
      %5990 = vmatpush.bf16.msra.mxu0 0
      %5991 = vmatpush.bf16.msra.mxu0 0
      %5992 = vmatpush.bf16.msra.mxu0 0
      %5993 = vmatpush.bf16.msra.mxu0 0
      %5994 = vmatpush.bf16.msra.mxu0 %v5927
      %5995 = vmatmul.bf16.gmra.mxu0 %v5912
      %v5996 = vpop.f32.mrf.mxu0
      %v5997 = vadd.f32 0.0, %v5996
      %v5998 = vpop.f32.mrf.mxu0
      %5999 = vdwg.mxu0
      %6000 = vmatpush.bf16.msra.mxu0 0
      %6001 = vmatpush.bf16.msra.mxu0 0
      %6002 = vmatpush.bf16.msra.mxu0 0
      %6003 = vmatpush.bf16.msra.mxu0 0
      %6004 = vmatpush.bf16.msra.mxu0 0
      %6005 = vmatpush.bf16.msra.mxu0 0
      %6006 = vmatpush.bf16.msra.mxu0 0
      %6007 = vmatpush.bf16.msra.mxu0 %v5930
      %6008 = vmatmul.bf16.gmra.mxu0 %v5912
      %v6009 = vpop.f32.mrf.mxu0
      %v6010 = vadd.f32 0.0, %v6009
      %v6011 = vpop.f32.mrf.mxu0
      %6012 = vdwg.mxu0
      %6013 = vmatpush.bf16.msra.mxu0 0
      %6014 = vmatpush.bf16.msra.mxu0 0
      %6015 = vmatpush.bf16.msra.mxu0 0
      %6016 = vmatpush.bf16.msra.mxu0 0
      %6017 = vmatpush.bf16.msra.mxu0 0
      %6018 = vmatpush.bf16.msra.mxu0 0
      %6019 = vmatpush.bf16.msra.mxu0 0
      %6020 = vmatpush.bf16.msra.mxu0 %v5933
      %6021 = vmatmul.bf16.gmra.mxu0 %v5912
      %v6022 = vpop.f32.mrf.mxu0
      %v6023 = vadd.f32 0.0, %v6022
      %v6024 = vpop.f32.mrf.mxu0
      %6025 = vdwg.mxu0
      %v6026 = vadd.f32 %v5864, %v5945
      %v6027 = vadd.f32 %v5865, %v5958
      %v6028 = vadd.f32 %v5866, %v5971
      %v6029 = vadd.f32 %v5867, %v5984
      %v6030 = vadd.f32 %v5868, %v5997
      %v6031 = vadd.f32 %v5869, %v6010
      %v6032 = vadd.f32 %v5870, %v6023
      %s6033 = scalar_lea.vmem %s5, 20
      %v6034 = vld [vmem:[%s6033] sm:$0x3]
      %6035 = vst [vmem:[#allocation1] ss:$4 sm:$0xff] %v4423
      %s6036 = scalar_lea.vmem [#allocation1], 32
      %6037 = vst [vmem:[%s6036] ss:$4 sm:$0xff] %v4424
      %v6038 = vld.sshfl [vmem:[#allocation1] sm:$0xff pattern:$0x73625140]
      %v6040 = vld.sshfl [vmem:[#allocation1 + $0x8] sm:$0xff pattern:$0x73625140]
      %v6042 = vld.sshfl [vmem:[#allocation1 + $0x10] sm:$0xff pattern:$0x73625140]
      %v6044 = vld.sshfl [vmem:[#allocation1 + $0x18] sm:$0xff pattern:$0x73625140]
      %v6046 = vld.sshfl [vmem:[#allocation1 + $0x20] sm:$0xff pattern:$0x73625140]
      %v6048 = vld.sshfl [vmem:[#allocation1 + $0x28] sm:$0xff pattern:$0x73625140]
      %v6050 = vld.sshfl [vmem:[#allocation1 + $0x30] sm:$0xff pattern:$0x73625140]
      %6052 = vrot.lane.b32.xlu0 %v6038, 10
      %v6053 = vpop.permute.xlu0 %6052
      %6054 = vrot.lane.b32.xlu0 %v6040, 10
      %v6055 = vpop.permute.xlu0 %6054
      %6056 = vrot.lane.b32.xlu0 %v6042, 10
      %v6057 = vpop.permute.xlu0 %6056
      %6058 = vrot.lane.b32.xlu0 %v6044, 10
      %v6059 = vpop.permute.xlu0 %6058
      %6060 = vrot.lane.b32.xlu0 %v6046, 10
      %v6061 = vpop.permute.xlu0 %6060
      %6062 = vrot.lane.b32.xlu0 %v6048, 10
      %v6063 = vpop.permute.xlu0 %6062
      %6064 = vrot.lane.b32.xlu0 %v6050, 10
      %v6065 = vpop.permute.xlu0 %6064
      %vm6066 = vcmask 80896
      %v6067 = vsel %vm6066, %v6053, %v6055
      %v6068 = vsel %vm6066, %v6055, %v6057
      %v6069 = vsel %vm6066, %v6057, %v6059
      %v6070 = vsel %vm6066, %v6059, %v6061
      %v6071 = vsel %vm6066, %v6061, %v6063
      %v6072 = vsel %vm6066, %v6063, %v6065
      %v6074 = vsel %vm4468, %v6034, 0
      %v6077 = vsel %vm4399, %v6067, 0
      %v6080 = vsel %vm4399, %v6068, 0
      %v6083 = vsel %vm4399, %v6069, 0
      %v6086 = vsel %vm4399, %v6070, 0
      %v6089 = vsel %vm4399, %v6071, 0
      %v6092 = vsel %vm4399, %v6072, 0
      %v6095 = vsel %vm4399, %v6065, 0
      %6097 = vmatpush.bf16.msra.mxu0 0
      %6098 = vmatpush.bf16.msra.mxu0 0
      %6099 = vmatpush.bf16.msra.mxu0 0
      %6100 = vmatpush.bf16.msra.mxu0 0
      %6101 = vmatpush.bf16.msra.mxu0 0
      %6102 = vmatpush.bf16.msra.mxu0 0
      %6103 = vmatpush.bf16.msra.mxu0 0
      %6104 = vmatpush.bf16.msra.mxu0 %v6077
      %6105 = vmatmul.bf16.gmra.mxu0 %v6074
      %v6106 = vpop.f32.mrf.mxu0
      %v6107 = vadd.f32 0.0, %v6106
      %v6108 = vpop.f32.mrf.mxu0
      %6109 = vdwg.mxu0
      %6110 = vmatpush.bf16.msra.mxu0 0
      %6111 = vmatpush.bf16.msra.mxu0 0
      %6112 = vmatpush.bf16.msra.mxu0 0
      %6113 = vmatpush.bf16.msra.mxu0 0
      %6114 = vmatpush.bf16.msra.mxu0 0
      %6115 = vmatpush.bf16.msra.mxu0 0
      %6116 = vmatpush.bf16.msra.mxu0 0
      %6117 = vmatpush.bf16.msra.mxu0 %v6080
      %6118 = vmatmul.bf16.gmra.mxu0 %v6074
      %v6119 = vpop.f32.mrf.mxu0
      %v6120 = vadd.f32 0.0, %v6119
      %v6121 = vpop.f32.mrf.mxu0
      %6122 = vdwg.mxu0
      %6123 = vmatpush.bf16.msra.mxu0 0
      %6124 = vmatpush.bf16.msra.mxu0 0
      %6125 = vmatpush.bf16.msra.mxu0 0
      %6126 = vmatpush.bf16.msra.mxu0 0
      %6127 = vmatpush.bf16.msra.mxu0 0
      %6128 = vmatpush.bf16.msra.mxu0 0
      %6129 = vmatpush.bf16.msra.mxu0 0
      %6130 = vmatpush.bf16.msra.mxu0 %v6083
      %6131 = vmatmul.bf16.gmra.mxu0 %v6074
      %v6132 = vpop.f32.mrf.mxu0
      %v6133 = vadd.f32 0.0, %v6132
      %v6134 = vpop.f32.mrf.mxu0
      %6135 = vdwg.mxu0
      %6136 = vmatpush.bf16.msra.mxu0 0
      %6137 = vmatpush.bf16.msra.mxu0 0
      %6138 = vmatpush.bf16.msra.mxu0 0
      %6139 = vmatpush.bf16.msra.mxu0 0
      %6140 = vmatpush.bf16.msra.mxu0 0
      %6141 = vmatpush.bf16.msra.mxu0 0
      %6142 = vmatpush.bf16.msra.mxu0 0
      %6143 = vmatpush.bf16.msra.mxu0 %v6086
      %6144 = vmatmul.bf16.gmra.mxu0 %v6074
      %v6145 = vpop.f32.mrf.mxu0
      %v6146 = vadd.f32 0.0, %v6145
      %v6147 = vpop.f32.mrf.mxu0
      %6148 = vdwg.mxu0
      %6149 = vmatpush.bf16.msra.mxu0 0
      %6150 = vmatpush.bf16.msra.mxu0 0
      %6151 = vmatpush.bf16.msra.mxu0 0
      %6152 = vmatpush.bf16.msra.mxu0 0
      %6153 = vmatpush.bf16.msra.mxu0 0
      %6154 = vmatpush.bf16.msra.mxu0 0
      %6155 = vmatpush.bf16.msra.mxu0 0
      %6156 = vmatpush.bf16.msra.mxu0 %v6089
      %6157 = vmatmul.bf16.gmra.mxu0 %v6074
      %v6158 = vpop.f32.mrf.mxu0
      %v6159 = vadd.f32 0.0, %v6158
      %v6160 = vpop.f32.mrf.mxu0
      %6161 = vdwg.mxu0
      %6162 = vmatpush.bf16.msra.mxu0 0
      %6163 = vmatpush.bf16.msra.mxu0 0
      %6164 = vmatpush.bf16.msra.mxu0 0
      %6165 = vmatpush.bf16.msra.mxu0 0
      %6166 = vmatpush.bf16.msra.mxu0 0
      %6167 = vmatpush.bf16.msra.mxu0 0
      %6168 = vmatpush.bf16.msra.mxu0 0
      %6169 = vmatpush.bf16.msra.mxu0 %v6092
      %6170 = vmatmul.bf16.gmra.mxu0 %v6074
      %v6171 = vpop.f32.mrf.mxu0
      %v6172 = vadd.f32 0.0, %v6171
      %v6173 = vpop.f32.mrf.mxu0
      %6174 = vdwg.mxu0
      %6175 = vmatpush.bf16.msra.mxu0 0
      %6176 = vmatpush.bf16.msra.mxu0 0
      %6177 = vmatpush.bf16.msra.mxu0 0
      %6178 = vmatpush.bf16.msra.mxu0 0
      %6179 = vmatpush.bf16.msra.mxu0 0
      %6180 = vmatpush.bf16.msra.mxu0 0
      %6181 = vmatpush.bf16.msra.mxu0 0
      %6182 = vmatpush.bf16.msra.mxu0 %v6095
      %6183 = vmatmul.bf16.gmra.mxu0 %v6074
      %v6184 = vpop.f32.mrf.mxu0
      %v6185 = vadd.f32 0.0, %v6184
      %v6186 = vpop.f32.mrf.mxu0
      %6187 = vdwg.mxu0
      %v6188 = vadd.f32 %v6026, %v6107
      %v6189 = vadd.f32 %v6027, %v6120
      %v6190 = vadd.f32 %v6028, %v6133
      %v6191 = vadd.f32 %v6029, %v6146
      %v6192 = vadd.f32 %v6030, %v6159
      %v6193 = vadd.f32 %v6031, %v6172
      %v6194 = vadd.f32 %v6032, %v6185
      %s6195 = scalar_lea.vmem %s5, 22
      %v6196 = vld [vmem:[%s6195] sm:$0x3]
      %6197 = vst [vmem:[#allocation1] ss:$4 sm:$0xff] %v4423
      %s6198 = scalar_lea.vmem [#allocation1], 32
      %6199 = vst [vmem:[%s6198] ss:$4 sm:$0xff] %v4424
      %v6200 = vld.sshfl [vmem:[#allocation1] sm:$0xff pattern:$0x73625140]
      %v6202 = vld.sshfl [vmem:[#allocation1 + $0x8] sm:$0xff pattern:$0x73625140]
      %v6204 = vld.sshfl [vmem:[#allocation1 + $0x10] sm:$0xff pattern:$0x73625140]
      %v6206 = vld.sshfl [vmem:[#allocation1 + $0x18] sm:$0xff pattern:$0x73625140]
      %v6208 = vld.sshfl [vmem:[#allocation1 + $0x20] sm:$0xff pattern:$0x73625140]
      %v6210 = vld.sshfl [vmem:[#allocation1 + $0x28] sm:$0xff pattern:$0x73625140]
      %v6212 = vld.sshfl [vmem:[#allocation1 + $0x30] sm:$0xff pattern:$0x73625140]
      %v6214 = vld.sshfl [vmem:[#allocation1 + $0x38] sm:$0xff pattern:$0x73625140]
      %6216 = vrot.lane.b32.xlu0 %v6200, 9
      %v6217 = vpop.permute.xlu0 %6216
      %6218 = vrot.lane.b32.xlu0 %v6202, 9
      %v6219 = vpop.permute.xlu0 %6218
      %6220 = vrot.lane.b32.xlu0 %v6204, 9
      %v6221 = vpop.permute.xlu0 %6220
      %6222 = vrot.lane.b32.xlu0 %v6206, 9
      %v6223 = vpop.permute.xlu0 %6222
      %6224 = vrot.lane.b32.xlu0 %v6208, 9
      %v6225 = vpop.permute.xlu0 %6224
      %6226 = vrot.lane.b32.xlu0 %v6210, 9
      %v6227 = vpop.permute.xlu0 %6226
      %6228 = vrot.lane.b32.xlu0 %v6212, 9
      %v6229 = vpop.permute.xlu0 %6228
      %6230 = vrot.lane.b32.xlu0 %v6214, 9
      %v6231 = vpop.permute.xlu0 %6230
      %vm6232 = vcmask 72704
      %v6233 = vsel %vm6232, %v6217, %v6219
      %v6234 = vsel %vm6232, %v6219, %v6221
      %v6235 = vsel %vm6232, %v6221, %v6223
      %v6236 = vsel %vm6232, %v6223, %v6225
      %v6237 = vsel %vm6232, %v6225, %v6227
      %v6238 = vsel %vm6232, %v6227, %v6229
      %v6239 = vsel %vm6232, %v6229, %v6231
      %v6241 = vsel %vm4468, %v6196, 0
      %v6244 = vsel %vm4399, %v6233, 0
      %v6247 = vsel %vm4399, %v6234, 0
      %v6250 = vsel %vm4399, %v6235, 0
      %v6253 = vsel %vm4399, %v6236, 0
      %v6256 = vsel %vm4399, %v6237, 0
      %v6259 = vsel %vm4399, %v6238, 0
      %v6262 = vsel %vm4399, %v6239, 0
      %6264 = vmatpush.bf16.msra.mxu0 0
      %6265 = vmatpush.bf16.msra.mxu0 0
      %6266 = vmatpush.bf16.msra.mxu0 0
      %6267 = vmatpush.bf16.msra.mxu0 0
      %6268 = vmatpush.bf16.msra.mxu0 0
      %6269 = vmatpush.bf16.msra.mxu0 0
      %6270 = vmatpush.bf16.msra.mxu0 0
      %6271 = vmatpush.bf16.msra.mxu0 %v6244
      %6272 = vmatmul.bf16.gmra.mxu0 %v6241
      %v6273 = vpop.f32.mrf.mxu0
      %v6274 = vadd.f32 0.0, %v6273
      %v6275 = vpop.f32.mrf.mxu0
      %6276 = vdwg.mxu0
      %6277 = vmatpush.bf16.msra.mxu0 0
      %6278 = vmatpush.bf16.msra.mxu0 0
      %6279 = vmatpush.bf16.msra.mxu0 0
      %6280 = vmatpush.bf16.msra.mxu0 0
      %6281 = vmatpush.bf16.msra.mxu0 0
      %6282 = vmatpush.bf16.msra.mxu0 0
      %6283 = vmatpush.bf16.msra.mxu0 0
      %6284 = vmatpush.bf16.msra.mxu0 %v6247
      %6285 = vmatmul.bf16.gmra.mxu0 %v6241
      %v6286 = vpop.f32.mrf.mxu0
      %v6287 = vadd.f32 0.0, %v6286
      %v6288 = vpop.f32.mrf.mxu0
      %6289 = vdwg.mxu0
      %6290 = vmatpush.bf16.msra.mxu0 0
      %6291 = vmatpush.bf16.msra.mxu0 0
      %6292 = vmatpush.bf16.msra.mxu0 0
      %6293 = vmatpush.bf16.msra.mxu0 0
      %6294 = vmatpush.bf16.msra.mxu0 0
      %6295 = vmatpush.bf16.msra.mxu0 0
      %6296 = vmatpush.bf16.msra.mxu0 0
      %6297 = vmatpush.bf16.msra.mxu0 %v6250
      %6298 = vmatmul.bf16.gmra.mxu0 %v6241
      %v6299 = vpop.f32.mrf.mxu0
      %v6300 = vadd.f32 0.0, %v6299
      %v6301 = vpop.f32.mrf.mxu0
      %6302 = vdwg.mxu0
      %6303 = vmatpush.bf16.msra.mxu0 0
      %6304 = vmatpush.bf16.msra.mxu0 0
      %6305 = vmatpush.bf16.msra.mxu0 0
      %6306 = vmatpush.bf16.msra.mxu0 0
      %6307 = vmatpush.bf16.msra.mxu0 0
      %6308 = vmatpush.bf16.msra.mxu0 0
      %6309 = vmatpush.bf16.msra.mxu0 0
      %6310 = vmatpush.bf16.msra.mxu0 %v6253
      %6311 = vmatmul.bf16.gmra.mxu0 %v6241
      %v6312 = vpop.f32.mrf.mxu0
      %v6313 = vadd.f32 0.0, %v6312
      %v6314 = vpop.f32.mrf.mxu0
      %6315 = vdwg.mxu0
      %6316 = vmatpush.bf16.msra.mxu0 0
      %6317 = vmatpush.bf16.msra.mxu0 0
      %6318 = vmatpush.bf16.msra.mxu0 0
      %6319 = vmatpush.bf16.msra.mxu0 0
      %6320 = vmatpush.bf16.msra.mxu0 0
      %6321 = vmatpush.bf16.msra.mxu0 0
      %6322 = vmatpush.bf16.msra.mxu0 0
      %6323 = vmatpush.bf16.msra.mxu0 %v6256
      %6324 = vmatmul.bf16.gmra.mxu0 %v6241
      %v6325 = vpop.f32.mrf.mxu0
      %v6326 = vadd.f32 0.0, %v6325
      %v6327 = vpop.f32.mrf.mxu0
      %6328 = vdwg.mxu0
      %6329 = vmatpush.bf16.msra.mxu0 0
      %6330 = vmatpush.bf16.msra.mxu0 0
      %6331 = vmatpush.bf16.msra.mxu0 0
      %6332 = vmatpush.bf16.msra.mxu0 0
      %6333 = vmatpush.bf16.msra.mxu0 0
      %6334 = vmatpush.bf16.msra.mxu0 0
      %6335 = vmatpush.bf16.msra.mxu0 0
      %6336 = vmatpush.bf16.msra.mxu0 %v6259
      %6337 = vmatmul.bf16.gmra.mxu0 %v6241
      %v6338 = vpop.f32.mrf.mxu0
      %v6339 = vadd.f32 0.0, %v6338
      %v6340 = vpop.f32.mrf.mxu0
      %6341 = vdwg.mxu0
      %6342 = vmatpush.bf16.msra.mxu0 0
      %6343 = vmatpush.bf16.msra.mxu0 0
      %6344 = vmatpush.bf16.msra.mxu0 0
      %6345 = vmatpush.bf16.msra.mxu0 0
      %6346 = vmatpush.bf16.msra.mxu0 0
      %6347 = vmatpush.bf16.msra.mxu0 0
      %6348 = vmatpush.bf16.msra.mxu0 0
      %6349 = vmatpush.bf16.msra.mxu0 %v6262
      %6350 = vmatmul.bf16.gmra.mxu0 %v6241
      %v6351 = vpop.f32.mrf.mxu0
      %v6352 = vadd.f32 0.0, %v6351
      %v6353 = vpop.f32.mrf.mxu0
      %6354 = vdwg.mxu0
      %v6355 = vadd.f32 %v6188, %v6274
      %v6356 = vadd.f32 %v6189, %v6287
      %v6357 = vadd.f32 %v6190, %v6300
      %v6358 = vadd.f32 %v6191, %v6313
      %v6359 = vadd.f32 %v6192, %v6326
      %v6360 = vadd.f32 %v6193, %v6339
      %v6361 = vadd.f32 %v6194, %v6352
      %s6362 = scalar_lea.vmem %s5, 24
      %v6363 = vld [vmem:[%s6362] sm:$0x3]
      %6364 = vst [vmem:[#allocation1] ss:$4 sm:$0xff] %v4423
      %s6365 = scalar_lea.vmem [#allocation1], 32
      %6366 = vst [vmem:[%s6365] ss:$4 sm:$0xff] %v4424
      %v6367 = vld.sshfl [vmem:[#allocation1] sm:$0xff pattern:$0x73625140]
      %v6369 = vld.sshfl [vmem:[#allocation1 + $0x8] sm:$0xff pattern:$0x73625140]
      %v6371 = vld.sshfl [vmem:[#allocation1 + $0x10] sm:$0xff pattern:$0x73625140]
      %v6373 = vld.sshfl [vmem:[#allocation1 + $0x18] sm:$0xff pattern:$0x73625140]
      %v6375 = vld.sshfl [vmem:[#allocation1 + $0x20] sm:$0xff pattern:$0x73625140]
      %v6377 = vld.sshfl [vmem:[#allocation1 + $0x28] sm:$0xff pattern:$0x73625140]
      %v6379 = vld.sshfl [vmem:[#allocation1 + $0x30] sm:$0xff pattern:$0x73625140]
      %v6381 = vld.sshfl [vmem:[#allocation1 + $0x38] sm:$0xff pattern:$0x73625140]
      %6383 = vrot.lane.b32.xlu0 %v6367, 1
      %v6384 = vpop.permute.xlu0 %6383
      %6385 = vrot.lane.b32.xlu0 %v6369, 1
      %v6386 = vpop.permute.xlu0 %6385
      %6387 = vrot.lane.b32.xlu0 %v6371, 1
      %v6388 = vpop.permute.xlu0 %6387
      %6389 = vrot.lane.b32.xlu0 %v6373, 1
      %v6390 = vpop.permute.xlu0 %6389
      %6391 = vrot.lane.b32.xlu0 %v6375, 1
      %v6392 = vpop.permute.xlu0 %6391
      %6393 = vrot.lane.b32.xlu0 %v6377, 1
      %v6394 = vpop.permute.xlu0 %6393
      %6395 = vrot.lane.b32.xlu0 %v6379, 1
      %v6396 = vpop.permute.xlu0 %6395
      %6397 = vrot.lane.b32.xlu0 %v6381, 1
      %v6398 = vpop.permute.xlu0 %6397
      %vm6399 = vcmask 7168
      %v6400 = vsel %vm6399, %v6384, %v6386
      %v6401 = vsel %vm6399, %v6386, %v6388
      %v6402 = vsel %vm6399, %v6388, %v6390
      %v6403 = vsel %vm6399, %v6390, %v6392
      %v6404 = vsel %vm6399, %v6392, %v6394
      %v6405 = vsel %vm6399, %v6394, %v6396
      %v6406 = vsel %vm6399, %v6396, %v6398
      %v6408 = vsel %vm4468, %v6363, 0
      %v6411 = vsel %vm4399, %v6400, 0
      %v6414 = vsel %vm4399, %v6401, 0
      %v6417 = vsel %vm4399, %v6402, 0
      %v6420 = vsel %vm4399, %v6403, 0
      %v6423 = vsel %vm4399, %v6404, 0
      %v6426 = vsel %vm4399, %v6405, 0
      %v6429 = vsel %vm4399, %v6406, 0
      %6431 = vmatpush.bf16.msra.mxu0 0
      %6432 = vmatpush.bf16.msra.mxu0 0
      %6433 = vmatpush.bf16.msra.mxu0 0
      %6434 = vmatpush.bf16.msra.mxu0 0
      %6435 = vmatpush.bf16.msra.mxu0 0
      %6436 = vmatpush.bf16.msra.mxu0 0
      %6437 = vmatpush.bf16.msra.mxu0 0
      %6438 = vmatpush.bf16.msra.mxu0 %v6411
      %6439 = vmatmul.bf16.gmra.mxu0 %v6408
      %v6440 = vpop.f32.mrf.mxu0
      %v6441 = vadd.f32 0.0, %v6440
      %v6442 = vpop.f32.mrf.mxu0
      %6443 = vdwg.mxu0
      %6444 = vmatpush.bf16.msra.mxu0 0
      %6445 = vmatpush.bf16.msra.mxu0 0
      %6446 = vmatpush.bf16.msra.mxu0 0
      %6447 = vmatpush.bf16.msra.mxu0 0
      %6448 = vmatpush.bf16.msra.mxu0 0
      %6449 = vmatpush.bf16.msra.mxu0 0
      %6450 = vmatpush.bf16.msra.mxu0 0
      %6451 = vmatpush.bf16.msra.mxu0 %v6414
      %6452 = vmatmul.bf16.gmra.mxu0 %v6408
      %v6453 = vpop.f32.mrf.mxu0
      %v6454 = vadd.f32 0.0, %v6453
      %v6455 = vpop.f32.mrf.mxu0
      %6456 = vdwg.mxu0
      %6457 = vmatpush.bf16.msra.mxu0 0
      %6458 = vmatpush.bf16.msra.mxu0 0
      %6459 = vmatpush.bf16.msra.mxu0 0
      %6460 = vmatpush.bf16.msra.mxu0 0
      %6461 = vmatpush.bf16.msra.mxu0 0
      %6462 = vmatpush.bf16.msra.mxu0 0
      %6463 = vmatpush.bf16.msra.mxu0 0
      %6464 = vmatpush.bf16.msra.mxu0 %v6417
      %6465 = vmatmul.bf16.gmra.mxu0 %v6408
      %v6466 = vpop.f32.mrf.mxu0
      %v6467 = vadd.f32 0.0, %v6466
      %v6468 = vpop.f32.mrf.mxu0
      %6469 = vdwg.mxu0
      %6470 = vmatpush.bf16.msra.mxu0 0
      %6471 = vmatpush.bf16.msra.mxu0 0
      %6472 = vmatpush.bf16.msra.mxu0 0
      %6473 = vmatpush.bf16.msra.mxu0 0
      %6474 = vmatpush.bf16.msra.mxu0 0
      %6475 = vmatpush.bf16.msra.mxu0 0
      %6476 = vmatpush.bf16.msra.mxu0 0
      %6477 = vmatpush.bf16.msra.mxu0 %v6420
      %6478 = vmatmul.bf16.gmra.mxu0 %v6408
      %v6479 = vpop.f32.mrf.mxu0
      %v6480 = vadd.f32 0.0, %v6479
      %v6481 = vpop.f32.mrf.mxu0
      %6482 = vdwg.mxu0
      %6483 = vmatpush.bf16.msra.mxu0 0
      %6484 = vmatpush.bf16.msra.mxu0 0
      %6485 = vmatpush.bf16.msra.mxu0 0
      %6486 = vmatpush.bf16.msra.mxu0 0
      %6487 = vmatpush.bf16.msra.mxu0 0
      %6488 = vmatpush.bf16.msra.mxu0 0
      %6489 = vmatpush.bf16.msra.mxu0 0
      %6490 = vmatpush.bf16.msra.mxu0 %v6423
      %6491 = vmatmul.bf16.gmra.mxu0 %v6408
      %v6492 = vpop.f32.mrf.mxu0
      %v6493 = vadd.f32 0.0, %v6492
      %v6494 = vpop.f32.mrf.mxu0
      %6495 = vdwg.mxu0
      %6496 = vmatpush.bf16.msra.mxu0 0
      %6497 = vmatpush.bf16.msra.mxu0 0
      %6498 = vmatpush.bf16.msra.mxu0 0
      %6499 = vmatpush.bf16.msra.mxu0 0
      %6500 = vmatpush.bf16.msra.mxu0 0
      %6501 = vmatpush.bf16.msra.mxu0 0
      %6502 = vmatpush.bf16.msra.mxu0 0
      %6503 = vmatpush.bf16.msra.mxu0 %v6426
      %6504 = vmatmul.bf16.gmra.mxu0 %v6408
      %v6505 = vpop.f32.mrf.mxu0
      %v6506 = vadd.f32 0.0, %v6505
      %v6507 = vpop.f32.mrf.mxu0
      %6508 = vdwg.mxu0
      %6509 = vmatpush.bf16.msra.mxu0 0
      %6510 = vmatpush.bf16.msra.mxu0 0
      %6511 = vmatpush.bf16.msra.mxu0 0
      %6512 = vmatpush.bf16.msra.mxu0 0
      %6513 = vmatpush.bf16.msra.mxu0 0
      %6514 = vmatpush.bf16.msra.mxu0 0
      %6515 = vmatpush.bf16.msra.mxu0 0
      %6516 = vmatpush.bf16.msra.mxu0 %v6429
      %6517 = vmatmul.bf16.gmra.mxu0 %v6408
      %v6518 = vpop.f32.mrf.mxu0
      %v6519 = vadd.f32 0.0, %v6518
      %v6520 = vpop.f32.mrf.mxu0
      %6521 = vdwg.mxu0
      %v6522 = vadd.f32 %v6355, %v6441
      %v6523 = vadd.f32 %v6356, %v6454
      %v6524 = vadd.f32 %v6357, %v6467
      %v6525 = vadd.f32 %v6358, %v6480
      %v6526 = vadd.f32 %v6359, %v6493
      %v6527 = vadd.f32 %v6360, %v6506
      %v6528 = vadd.f32 %v6361, %v6519
      %s6529 = scalar_lea.vmem %s5, 26
      %v6530 = vld [vmem:[%s6529] sm:$0x3]
      %6531 = vst [vmem:[#allocation1] ss:$4 sm:$0xff] %v4423
      %s6532 = scalar_lea.vmem [#allocation1], 32
      %6533 = vst [vmem:[%s6532] ss:$4 sm:$0xff] %v4424
      %v6534 = vld.sshfl [vmem:[#allocation1 + $0x8] sm:$0xff pattern:$0x73625140]
      %v6535 = vld.sshfl [vmem:[#allocation1 + $0x10] sm:$0xff pattern:$0x73625140]
      %v6536 = vld.sshfl [vmem:[#allocation1 + $0x18] sm:$0xff pattern:$0x73625140]
      %v6537 = vld.sshfl [vmem:[#allocation1 + $0x20] sm:$0xff pattern:$0x73625140]
      %v6538 = vld.sshfl [vmem:[#allocation1 + $0x28] sm:$0xff pattern:$0x73625140]
      %v6539 = vld.sshfl [vmem:[#allocation1 + $0x30] sm:$0xff pattern:$0x73625140]
      %v6540 = vld.sshfl [vmem:[#allocation1 + $0x38] sm:$0xff pattern:$0x73625140]
      %v6542 = vsel %vm4468, %v6530, 0
      %v6544 = vsel %vm4399, %v6534, 0
      %v6546 = vsel %vm4399, %v6535, 0
      %v6548 = vsel %vm4399, %v6536, 0
      %v6550 = vsel %vm4399, %v6537, 0
      %v6552 = vsel %vm4399, %v6538, 0
      %v6554 = vsel %vm4399, %v6539, 0
      %v6556 = vsel %vm4399, %v6540, 0
      %6558 = vmatpush.bf16.msra.mxu0 0
      %6559 = vmatpush.bf16.msra.mxu0 0
      %6560 = vmatpush.bf16.msra.mxu0 0
      %6561 = vmatpush.bf16.msra.mxu0 0
      %6562 = vmatpush.bf16.msra.mxu0 0
      %6563 = vmatpush.bf16.msra.mxu0 0
      %6564 = vmatpush.bf16.msra.mxu0 0
      %6565 = vmatpush.bf16.msra.mxu0 %v6544
      %6566 = vmatmul.bf16.gmra.mxu0 %v6542
      %v6567 = vpop.f32.mrf.mxu0
      %v6568 = vadd.f32 0.0, %v6567
      %v6569 = vpop.f32.mrf.mxu0
      %6570 = vdwg.mxu0
      %6571 = vmatpush.bf16.msra.mxu0 0
      %6572 = vmatpush.bf16.msra.mxu0 0
      %6573 = vmatpush.bf16.msra.mxu0 0
      %6574 = vmatpush.bf16.msra.mxu0 0
      %6575 = vmatpush.bf16.msra.mxu0 0
      %6576 = vmatpush.bf16.msra.mxu0 0
      %6577 = vmatpush.bf16.msra.mxu0 0
      %6578 = vmatpush.bf16.msra.mxu0 %v6546
      %6579 = vmatmul.bf16.gmra.mxu0 %v6542
      %v6580 = vpop.f32.mrf.mxu0
      %v6581 = vadd.f32 0.0, %v6580
      %v6582 = vpop.f32.mrf.mxu0
      %6583 = vdwg.mxu0
      %6584 = vmatpush.bf16.msra.mxu0 0
      %6585 = vmatpush.bf16.msra.mxu0 0
      %6586 = vmatpush.bf16.msra.mxu0 0
      %6587 = vmatpush.bf16.msra.mxu0 0
      %6588 = vmatpush.bf16.msra.mxu0 0
      %6589 = vmatpush.bf16.msra.mxu0 0
      %6590 = vmatpush.bf16.msra.mxu0 0
      %6591 = vmatpush.bf16.msra.mxu0 %v6548
      %6592 = vmatmul.bf16.gmra.mxu0 %v6542
      %v6593 = vpop.f32.mrf.mxu0
      %v6594 = vadd.f32 0.0, %v6593
      %v6595 = vpop.f32.mrf.mxu0
      %6596 = vdwg.mxu0
      %6597 = vmatpush.bf16.msra.mxu0 0
      %6598 = vmatpush.bf16.msra.mxu0 0
      %6599 = vmatpush.bf16.msra.mxu0 0
      %6600 = vmatpush.bf16.msra.mxu0 0
      %6601 = vmatpush.bf16.msra.mxu0 0
      %6602 = vmatpush.bf16.msra.mxu0 0
      %6603 = vmatpush.bf16.msra.mxu0 0
      %6604 = vmatpush.bf16.msra.mxu0 %v6550
      %6605 = vmatmul.bf16.gmra.mxu0 %v6542
      %v6606 = vpop.f32.mrf.mxu0
      %v6607 = vadd.f32 0.0, %v6606
      %v6608 = vpop.f32.mrf.mxu0
      %6609 = vdwg.mxu0
      %6610 = vmatpush.bf16.msra.mxu0 0
      %6611 = vmatpush.bf16.msra.mxu0 0
      %6612 = vmatpush.bf16.msra.mxu0 0
      %6613 = vmatpush.bf16.msra.mxu0 0
      %6614 = vmatpush.bf16.msra.mxu0 0
      %6615 = vmatpush.bf16.msra.mxu0 0
      %6616 = vmatpush.bf16.msra.mxu0 0
      %6617 = vmatpush.bf16.msra.mxu0 %v6552
      %6618 = vmatmul.bf16.gmra.mxu0 %v6542
      %v6619 = vpop.f32.mrf.mxu0
      %v6620 = vadd.f32 0.0, %v6619
      %v6621 = vpop.f32.mrf.mxu0
      %6622 = vdwg.mxu0
      %6623 = vmatpush.bf16.msra.mxu0 0
      %6624 = vmatpush.bf16.msra.mxu0 0
      %6625 = vmatpush.bf16.msra.mxu0 0
      %6626 = vmatpush.bf16.msra.mxu0 0
      %6627 = vmatpush.bf16.msra.mxu0 0
      %6628 = vmatpush.bf16.msra.mxu0 0
      %6629 = vmatpush.bf16.msra.mxu0 0
      %6630 = vmatpush.bf16.msra.mxu0 %v6554
      %6631 = vmatmul.bf16.gmra.mxu0 %v6542
      %v6632 = vpop.f32.mrf.mxu0
      %v6633 = vadd.f32 0.0, %v6632
      %v6634 = vpop.f32.mrf.mxu0
      %6635 = vdwg.mxu0
      %6636 = vmatpush.bf16.msra.mxu0 0
      %6637 = vmatpush.bf16.msra.mxu0 0
      %6638 = vmatpush.bf16.msra.mxu0 0
      %6639 = vmatpush.bf16.msra.mxu0 0
      %6640 = vmatpush.bf16.msra.mxu0 0
      %6641 = vmatpush.bf16.msra.mxu0 0
      %6642 = vmatpush.bf16.msra.mxu0 0
      %6643 = vmatpush.bf16.msra.mxu0 %v6556
      %6644 = vmatmul.bf16.gmra.mxu0 %v6542
      %v6645 = vpop.f32.mrf.mxu0
      %v6646 = vadd.f32 0.0, %v6645
      %v6647 = vpop.f32.mrf.mxu0
      %6648 = vdwg.mxu0
      %v6649 = vadd.f32 %v6522, %v6568
      %v6650 = vadd.f32 %v6523, %v6581
      %v6651 = vadd.f32 %v6524, %v6594
      %v6652 = vadd.f32 %v6525, %v6607
      %v6653 = vadd.f32 %v6526, %v6620
      %v6654 = vadd.f32 %v6527, %v6633
      %v6655 = vadd.f32 %v6528, %v6646
      %s6656 = scalar_lea.vmem %s5, 28
      %v6657 = vld [vmem:[%s6656] sm:$0x3]
      %6658 = vst [vmem:[#allocation1] ss:$4 sm:$0xff] %v4423
      %s6659 = scalar_lea.vmem [#allocation1], 32
      %6660 = vst [vmem:[%s6659] ss:$4 sm:$0xff] %v4424
      %v6661 = vld.sshfl [vmem:[#allocation1 + $0x8] sm:$0xff pattern:$0x73625140]
      %v6663 = vld.sshfl [vmem:[#allocation1 + $0x10] sm:$0xff pattern:$0x73625140]
      %v6665 = vld.sshfl [vmem:[#allocation1 + $0x18] sm:$0xff pattern:$0x73625140]
      %v6667 = vld.sshfl [vmem:[#allocation1 + $0x20] sm:$0xff pattern:$0x73625140]
      %v6669 = vld.sshfl [vmem:[#allocation1 + $0x28] sm:$0xff pattern:$0x73625140]
      %v6671 = vld.sshfl [vmem:[#allocation1 + $0x30] sm:$0xff pattern:$0x73625140]
      %v6673 = vld.sshfl [vmem:[#allocation1 + $0x38] sm:$0xff pattern:$0x73625140]
      %6675 = vrot.lane.b32.xlu0 %v6661, 127
      %v6676 = vpop.permute.xlu0 %6675
      %6677 = vrot.lane.b32.xlu0 %v6663, 127
      %v6678 = vpop.permute.xlu0 %6677
      %6679 = vrot.lane.b32.xlu0 %v6665, 127
      %v6680 = vpop.permute.xlu0 %6679
      %6681 = vrot.lane.b32.xlu0 %v6667, 127
      %v6682 = vpop.permute.xlu0 %6681
      %6683 = vrot.lane.b32.xlu0 %v6669, 127
      %v6684 = vpop.permute.xlu0 %6683
      %6685 = vrot.lane.b32.xlu0 %v6671, 127
      %v6686 = vpop.permute.xlu0 %6685
      %6687 = vrot.lane.b32.xlu0 %v6673, 127
      %v6688 = vpop.permute.xlu0 %6687
      %v6689 = vsel %vm362, %v6676, %v6678
      %v6690 = vsel %vm362, %v6678, %v6680
      %v6691 = vsel %vm362, %v6680, %v6682
      %v6692 = vsel %vm362, %v6682, %v6684
      %v6693 = vsel %vm362, %v6684, %v6686
      %v6694 = vsel %vm362, %v6686, %v6688
      %v6696 = vsel %vm4468, %v6657, 0
      %v6699 = vsel %vm4399, %v6689, 0
      %v6702 = vsel %vm4399, %v6690, 0
      %v6705 = vsel %vm4399, %v6691, 0
      %v6708 = vsel %vm4399, %v6692, 0
      %v6711 = vsel %vm4399, %v6693, 0
      %v6714 = vsel %vm4399, %v6694, 0
      %v6717 = vsel %vm4399, %v6688, 0
      %6719 = vmatpush.bf16.msra.mxu0 0
      %6720 = vmatpush.bf16.msra.mxu0 0
      %6721 = vmatpush.bf16.msra.mxu0 0
      %6722 = vmatpush.bf16.msra.mxu0 0
      %6723 = vmatpush.bf16.msra.mxu0 0
      %6724 = vmatpush.bf16.msra.mxu0 0
      %6725 = vmatpush.bf16.msra.mxu0 0
      %6726 = vmatpush.bf16.msra.mxu0 %v6699
      %6727 = vmatmul.bf16.gmra.mxu0 %v6696
      %v6728 = vpop.f32.mrf.mxu0
      %v6729 = vadd.f32 0.0, %v6728
      %v6730 = vpop.f32.mrf.mxu0
      %6731 = vdwg.mxu0
      %6732 = vmatpush.bf16.msra.mxu0 0
      %6733 = vmatpush.bf16.msra.mxu0 0
      %6734 = vmatpush.bf16.msra.mxu0 0
      %6735 = vmatpush.bf16.msra.mxu0 0
      %6736 = vmatpush.bf16.msra.mxu0 0
      %6737 = vmatpush.bf16.msra.mxu0 0
      %6738 = vmatpush.bf16.msra.mxu0 0
      %6739 = vmatpush.bf16.msra.mxu0 %v6702
      %6740 = vmatmul.bf16.gmra.mxu0 %v6696
      %v6741 = vpop.f32.mrf.mxu0
      %v6742 = vadd.f32 0.0, %v6741
      %v6743 = vpop.f32.mrf.mxu0
      %6744 = vdwg.mxu0
      %6745 = vmatpush.bf16.msra.mxu0 0
      %6746 = vmatpush.bf16.msra.mxu0 0
      %6747 = vmatpush.bf16.msra.mxu0 0
      %6748 = vmatpush.bf16.msra.mxu0 0
      %6749 = vmatpush.bf16.msra.mxu0 0
      %6750 = vmatpush.bf16.msra.mxu0 0
      %6751 = vmatpush.bf16.msra.mxu0 0
      %6752 = vmatpush.bf16.msra.mxu0 %v6705
      %6753 = vmatmul.bf16.gmra.mxu0 %v6696
      %v6754 = vpop.f32.mrf.mxu0
      %v6755 = vadd.f32 0.0, %v6754
      %v6756 = vpop.f32.mrf.mxu0
      %6757 = vdwg.mxu0
      %6758 = vmatpush.bf16.msra.mxu0 0
      %6759 = vmatpush.bf16.msra.mxu0 0
      %6760 = vmatpush.bf16.msra.mxu0 0
      %6761 = vmatpush.bf16.msra.mxu0 0
      %6762 = vmatpush.bf16.msra.mxu0 0
      %6763 = vmatpush.bf16.msra.mxu0 0
      %6764 = vmatpush.bf16.msra.mxu0 0
      %6765 = vmatpush.bf16.msra.mxu0 %v6708
      %6766 = vmatmul.bf16.gmra.mxu0 %v6696
      %v6767 = vpop.f32.mrf.mxu0
      %v6768 = vadd.f32 0.0, %v6767
      %v6769 = vpop.f32.mrf.mxu0
      %6770 = vdwg.mxu0
      %6771 = vmatpush.bf16.msra.mxu0 0
      %6772 = vmatpush.bf16.msra.mxu0 0
      %6773 = vmatpush.bf16.msra.mxu0 0
      %6774 = vmatpush.bf16.msra.mxu0 0
      %6775 = vmatpush.bf16.msra.mxu0 0
      %6776 = vmatpush.bf16.msra.mxu0 0
      %6777 = vmatpush.bf16.msra.mxu0 0
      %6778 = vmatpush.bf16.msra.mxu0 %v6711
      %6779 = vmatmul.bf16.gmra.mxu0 %v6696
      %v6780 = vpop.f32.mrf.mxu0
      %v6781 = vadd.f32 0.0, %v6780
      %v6782 = vpop.f32.mrf.mxu0
      %6783 = vdwg.mxu0
      %6784 = vmatpush.bf16.msra.mxu0 0
      %6785 = vmatpush.bf16.msra.mxu0 0
      %6786 = vmatpush.bf16.msra.mxu0 0
      %6787 = vmatpush.bf16.msra.mxu0 0
      %6788 = vmatpush.bf16.msra.mxu0 0
      %6789 = vmatpush.bf16.msra.mxu0 0
      %6790 = vmatpush.bf16.msra.mxu0 0
      %6791 = vmatpush.bf16.msra.mxu0 %v6714
      %6792 = vmatmul.bf16.gmra.mxu0 %v6696
      %v6793 = vpop.f32.mrf.mxu0
      %v6794 = vadd.f32 0.0, %v6793
      %v6795 = vpop.f32.mrf.mxu0
      %6796 = vdwg.mxu0
      %6797 = vmatpush.bf16.msra.mxu0 0
      %6798 = vmatpush.bf16.msra.mxu0 0
      %6799 = vmatpush.bf16.msra.mxu0 0
      %6800 = vmatpush.bf16.msra.mxu0 0
      %6801 = vmatpush.bf16.msra.mxu0 0
      %6802 = vmatpush.bf16.msra.mxu0 0
      %6803 = vmatpush.bf16.msra.mxu0 0
      %6804 = vmatpush.bf16.msra.mxu0 %v6717
      %6805 = vmatmul.bf16.gmra.mxu0 %v6696
      %v6806 = vpop.f32.mrf.mxu0
      %v6807 = vadd.f32 0.0, %v6806
      %v6808 = vpop.f32.mrf.mxu0
      %6809 = vdwg.mxu0
      %v6810 = vadd.f32 %v6649, %v6729
      %v6811 = vadd.f32 %v6650, %v6742
      %v6812 = vadd.f32 %v6651, %v6755
      %v6813 = vadd.f32 %v6652, %v6768
      %v6814 = vadd.f32 %v6653, %v6781
      %v6815 = vadd.f32 %v6654, %v6794
      %v6816 = vadd.f32 %v6655, %v6807
      %s6817 = scalar_lea.vmem %s5, 30
      %v6818 = vld [vmem:[%s6817] sm:$0x3]
      %6819 = vst [vmem:[#allocation1] ss:$4 sm:$0xff] %v4423
      %s6820 = scalar_lea.vmem [#allocation1], 32
      %6821 = vst [vmem:[%s6820] ss:$4 sm:$0xff] %v4424
      %v6822 = vld.sshfl [vmem:[#allocation1 + $0x8] sm:$0xff pattern:$0x73625140]
      %v6824 = vld.sshfl [vmem:[#allocation1 + $0x10] sm:$0xff pattern:$0x73625140]
      %v6826 = vld.sshfl [vmem:[#allocation1 + $0x18] sm:$0xff pattern:$0x73625140]
      %v6828 = vld.sshfl [vmem:[#allocation1 + $0x20] sm:$0xff pattern:$0x73625140]
      %v6830 = vld.sshfl [vmem:[#allocation1 + $0x28] sm:$0xff pattern:$0x73625140]
      %v6832 = vld.sshfl [vmem:[#allocation1 + $0x30] sm:$0xff pattern:$0x73625140]
      %v6834 = vld.sshfl [vmem:[#allocation1 + $0x38] sm:$0xff pattern:$0x73625140]
      %6836 = vrot.lane.b32.xlu0 %v6822, 119
      %v6837 = vpop.permute.xlu0 %6836
      %6838 = vrot.lane.b32.xlu0 %v6824, 119
      %v6839 = vpop.permute.xlu0 %6838
      %6840 = vrot.lane.b32.xlu0 %v6826, 119
      %v6841 = vpop.permute.xlu0 %6840
      %6842 = vrot.lane.b32.xlu0 %v6828, 119
      %v6843 = vpop.permute.xlu0 %6842
      %6844 = vrot.lane.b32.xlu0 %v6830, 119
      %v6845 = vpop.permute.xlu0 %6844
      %6846 = vrot.lane.b32.xlu0 %v6832, 119
      %v6847 = vpop.permute.xlu0 %6846
      %6848 = vrot.lane.b32.xlu0 %v6834, 119
      %v6849 = vpop.permute.xlu0 %6848
      %vm6850 = vcmask 973824
      %v6851 = vsel %vm6850, %v6837, %v6839
      %v6852 = vsel %vm6850, %v6839, %v6841
      %v6853 = vsel %vm6850, %v6841, %v6843
      %v6854 = vsel %vm6850, %v6843, %v6845
      %v6855 = vsel %vm6850, %v6845, %v6847
      %v6856 = vsel %vm6850, %v6847, %v6849
      %v6858 = vsel %vm4468, %v6818, 0
      %v6861 = vsel %vm4399, %v6851, 0
      %v6864 = vsel %vm4399, %v6852, 0
      %v6867 = vsel %vm4399, %v6853, 0
      %v6870 = vsel %vm4399, %v6854, 0
      %v6873 = vsel %vm4399, %v6855, 0
      %v6876 = vsel %vm4399, %v6856, 0
      %v6879 = vsel %vm4399, %v6849, 0
      %6881 = vmatpush.bf16.msra.mxu0 0
      %6882 = vmatpush.bf16.msra.mxu0 0
      %6883 = vmatpush.bf16.msra.mxu0 0
      %6884 = vmatpush.bf16.msra.mxu0 0
      %6885 = vmatpush.bf16.msra.mxu0 0
      %6886 = vmatpush.bf16.msra.mxu0 0
      %6887 = vmatpush.bf16.msra.mxu0 0
      %6888 = vmatpush.bf16.msra.mxu0 %v6861
      %6889 = vmatmul.bf16.gmra.mxu0 %v6858
      %v6890 = vpop.f32.mrf.mxu0
      %v6891 = vadd.f32 0.0, %v6890
      %v6892 = vpop.f32.mrf.mxu0
      %6893 = vdwg.mxu0
      %6894 = vmatpush.bf16.msra.mxu0 0
      %6895 = vmatpush.bf16.msra.mxu0 0
      %6896 = vmatpush.bf16.msra.mxu0 0
      %6897 = vmatpush.bf16.msra.mxu0 0
      %6898 = vmatpush.bf16.msra.mxu0 0
      %6899 = vmatpush.bf16.msra.mxu0 0
      %6900 = vmatpush.bf16.msra.mxu0 0
      %6901 = vmatpush.bf16.msra.mxu0 %v6864
      %6902 = vmatmul.bf16.gmra.mxu0 %v6858
      %v6903 = vpop.f32.mrf.mxu0
      %v6904 = vadd.f32 0.0, %v6903
      %v6905 = vpop.f32.mrf.mxu0
      %6906 = vdwg.mxu0
      %6907 = vmatpush.bf16.msra.mxu0 0
      %6908 = vmatpush.bf16.msra.mxu0 0
      %6909 = vmatpush.bf16.msra.mxu0 0
      %6910 = vmatpush.bf16.msra.mxu0 0
      %6911 = vmatpush.bf16.msra.mxu0 0
      %6912 = vmatpush.bf16.msra.mxu0 0
      %6913 = vmatpush.bf16.msra.mxu0 0
      %6914 = vmatpush.bf16.msra.mxu0 %v6867
      %6915 = vmatmul.bf16.gmra.mxu0 %v6858
      %v6916 = vpop.f32.mrf.mxu0
      %v6917 = vadd.f32 0.0, %v6916
      %v6918 = vpop.f32.mrf.mxu0
      %6919 = vdwg.mxu0
      %6920 = vmatpush.bf16.msra.mxu0 0
      %6921 = vmatpush.bf16.msra.mxu0 0
      %6922 = vmatpush.bf16.msra.mxu0 0
      %6923 = vmatpush.bf16.msra.mxu0 0
      %6924 = vmatpush.bf16.msra.mxu0 0
      %6925 = vmatpush.bf16.msra.mxu0 0
      %6926 = vmatpush.bf16.msra.mxu0 0
      %6927 = vmatpush.bf16.msra.mxu0 %v6870
      %6928 = vmatmul.bf16.gmra.mxu0 %v6858
      %v6929 = vpop.f32.mrf.mxu0
      %v6930 = vadd.f32 0.0, %v6929
      %v6931 = vpop.f32.mrf.mxu0
      %6932 = vdwg.mxu0
      %6933 = vmatpush.bf16.msra.mxu0 0
      %6934 = vmatpush.bf16.msra.mxu0 0
      %6935 = vmatpush.bf16.msra.mxu0 0
      %6936 = vmatpush.bf16.msra.mxu0 0
      %6937 = vmatpush.bf16.msra.mxu0 0
      %6938 = vmatpush.bf16.msra.mxu0 0
      %6939 = vmatpush.bf16.msra.mxu0 0
      %6940 = vmatpush.bf16.msra.mxu0 %v6873
      %6941 = vmatmul.bf16.gmra.mxu0 %v6858
      %v6942 = vpop.f32.mrf.mxu0
      %v6943 = vadd.f32 0.0, %v6942
      %v6944 = vpop.f32.mrf.mxu0
      %6945 = vdwg.mxu0
      %6946 = vmatpush.bf16.msra.mxu0 0
      %6947 = vmatpush.bf16.msra.mxu0 0
      %6948 = vmatpush.bf16.msra.mxu0 0
      %6949 = vmatpush.bf16.msra.mxu0 0
      %6950 = vmatpush.bf16.msra.mxu0 0
      %6951 = vmatpush.bf16.msra.mxu0 0
      %6952 = vmatpush.bf16.msra.mxu0 0
      %6953 = vmatpush.bf16.msra.mxu0 %v6876
      %6954 = vmatmul.bf16.gmra.mxu0 %v6858
      %v6955 = vpop.f32.mrf.mxu0
      %v6956 = vadd.f32 0.0, %v6955
      %v6957 = vpop.f32.mrf.mxu0
      %6958 = vdwg.mxu0
      %6959 = vmatpush.bf16.msra.mxu0 0
      %6960 = vmatpush.bf16.msra.mxu0 0
      %6961 = vmatpush.bf16.msra.mxu0 0
      %6962 = vmatpush.bf16.msra.mxu0 0
      %6963 = vmatpush.bf16.msra.mxu0 0
      %6964 = vmatpush.bf16.msra.mxu0 0
      %6965 = vmatpush.bf16.msra.mxu0 0
      %6966 = vmatpush.bf16.msra.mxu0 %v6879
      %6967 = vmatmul.bf16.gmra.mxu0 %v6858
      %v6968 = vpop.f32.mrf.mxu0
      %v6969 = vadd.f32 0.0, %v6968
      %v6970 = vpop.f32.mrf.mxu0
      %6971 = vdwg.mxu0
      %v6972 = vadd.f32 %v6810, %v6891
      %v6973 = vadd.f32 %v6811, %v6904
      %v6974 = vadd.f32 %v6812, %v6917
      %v6975 = vadd.f32 %v6813, %v6930
      %v6976 = vadd.f32 %v6814, %v6943
      %v6977 = vadd.f32 %v6815, %v6956
      %v6978 = vadd.f32 %v6816, %v6969
      %s6979 = scalar_lea.vmem %s5, 32
      %v6980 = vld [vmem:[%s6979] sm:$0x3]
      %6981 = vst [vmem:[#allocation1] ss:$4 sm:$0xff] %v4423
      %s6982 = scalar_lea.vmem [#allocation1], 32
      %6983 = vst [vmem:[%s6982] ss:$4 sm:$0xff] %v4424
      %v6984 = vld.sshfl [vmem:[#allocation1 + $0x8] sm:$0xff pattern:$0x73625140]
      %v6986 = vld.sshfl [vmem:[#allocation1 + $0x10] sm:$0xff pattern:$0x73625140]
      %v6988 = vld.sshfl [vmem:[#allocation1 + $0x18] sm:$0xff pattern:$0x73625140]
      %v6990 = vld.sshfl [vmem:[#allocation1 + $0x20] sm:$0xff pattern:$0x73625140]
      %v6992 = vld.sshfl [vmem:[#allocation1 + $0x28] sm:$0xff pattern:$0x73625140]
      %v6994 = vld.sshfl [vmem:[#allocation1 + $0x30] sm:$0xff pattern:$0x73625140]
      %v6996 = vld.sshfl [vmem:[#allocation1 + $0x38] sm:$0xff pattern:$0x73625140]
      %6998 = vrot.lane.b32.xlu0 %v6984, 118
      %v6999 = vpop.permute.xlu0 %6998
      %7000 = vrot.lane.b32.xlu0 %v6986, 118
      %v7001 = vpop.permute.xlu0 %7000
      %7002 = vrot.lane.b32.xlu0 %v6988, 118
      %v7003 = vpop.permute.xlu0 %7002
      %7004 = vrot.lane.b32.xlu0 %v6990, 118
      %v7005 = vpop.permute.xlu0 %7004
      %7006 = vrot.lane.b32.xlu0 %v6992, 118
      %v7007 = vpop.permute.xlu0 %7006
      %7008 = vrot.lane.b32.xlu0 %v6994, 118
      %v7009 = vpop.permute.xlu0 %7008
      %7010 = vrot.lane.b32.xlu0 %v6996, 118
      %v7011 = vpop.permute.xlu0 %7010
      %v7012 = vsel %vm762, %v6999, %v7001
      %v7013 = vsel %vm762, %v7001, %v7003
      %v7014 = vsel %vm762, %v7003, %v7005
      %v7015 = vsel %vm762, %v7005, %v7007
      %v7016 = vsel %vm762, %v7007, %v7009
      %v7017 = vsel %vm762, %v7009, %v7011
      %v7019 = vsel %vm4468, %v6980, 0
      %v7022 = vsel %vm4399, %v7012, 0
      %v7025 = vsel %vm4399, %v7013, 0
      %v7028 = vsel %vm4399, %v7014, 0
      %v7031 = vsel %vm4399, %v7015, 0
      %v7034 = vsel %vm4399, %v7016, 0
      %v7037 = vsel %vm4399, %v7017, 0
      %v7040 = vsel %vm4399, %v7011, 0
      %7042 = vmatpush.bf16.msra.mxu0 0
      %7043 = vmatpush.bf16.msra.mxu0 0
      %7044 = vmatpush.bf16.msra.mxu0 0
      %7045 = vmatpush.bf16.msra.mxu0 0
      %7046 = vmatpush.bf16.msra.mxu0 0
      %7047 = vmatpush.bf16.msra.mxu0 0
      %7048 = vmatpush.bf16.msra.mxu0 0
      %7049 = vmatpush.bf16.msra.mxu0 %v7022
      %7050 = vmatmul.bf16.gmra.mxu0 %v7019
      %v7051 = vpop.f32.mrf.mxu0
      %v7052 = vadd.f32 0.0, %v7051
      %v7053 = vpop.f32.mrf.mxu0
      %7054 = vdwg.mxu0
      %7055 = vmatpush.bf16.msra.mxu0 0
      %7056 = vmatpush.bf16.msra.mxu0 0
      %7057 = vmatpush.bf16.msra.mxu0 0
      %7058 = vmatpush.bf16.msra.mxu0 0
      %7059 = vmatpush.bf16.msra.mxu0 0
      %7060 = vmatpush.bf16.msra.mxu0 0
      %7061 = vmatpush.bf16.msra.mxu0 0
      %7062 = vmatpush.bf16.msra.mxu0 %v7025
      %7063 = vmatmul.bf16.gmra.mxu0 %v7019
      %v7064 = vpop.f32.mrf.mxu0
      %v7065 = vadd.f32 0.0, %v7064
      %v7066 = vpop.f32.mrf.mxu0
      %7067 = vdwg.mxu0
      %7068 = vmatpush.bf16.msra.mxu0 0
      %7069 = vmatpush.bf16.msra.mxu0 0
      %7070 = vmatpush.bf16.msra.mxu0 0
      %7071 = vmatpush.bf16.msra.mxu0 0
      %7072 = vmatpush.bf16.msra.mxu0 0
      %7073 = vmatpush.bf16.msra.mxu0 0
      %7074 = vmatpush.bf16.msra.mxu0 0
      %7075 = vmatpush.bf16.msra.mxu0 %v7028
      %7076 = vmatmul.bf16.gmra.mxu0 %v7019
      %v7077 = vpop.f32.mrf.mxu0
      %v7078 = vadd.f32 0.0, %v7077
      %v7079 = vpop.f32.mrf.mxu0
      %7080 = vdwg.mxu0
      %7081 = vmatpush.bf16.msra.mxu0 0
      %7082 = vmatpush.bf16.msra.mxu0 0
      %7083 = vmatpush.bf16.msra.mxu0 0
      %7084 = vmatpush.bf16.msra.mxu0 0
      %7085 = vmatpush.bf16.msra.mxu0 0
      %7086 = vmatpush.bf16.msra.mxu0 0
      %7087 = vmatpush.bf16.msra.mxu0 0
      %7088 = vmatpush.bf16.msra.mxu0 %v7031
      %7089 = vmatmul.bf16.gmra.mxu0 %v7019
      %v7090 = vpop.f32.mrf.mxu0
      %v7091 = vadd.f32 0.0, %v7090
      %v7092 = vpop.f32.mrf.mxu0
      %7093 = vdwg.mxu0
      %7094 = vmatpush.bf16.msra.mxu0 0
      %7095 = vmatpush.bf16.msra.mxu0 0
      %7096 = vmatpush.bf16.msra.mxu0 0
      %7097 = vmatpush.bf16.msra.mxu0 0
      %7098 = vmatpush.bf16.msra.mxu0 0
      %7099 = vmatpush.bf16.msra.mxu0 0
      %7100 = vmatpush.bf16.msra.mxu0 0
      %7101 = vmatpush.bf16.msra.mxu0 %v7034
      %7102 = vmatmul.bf16.gmra.mxu0 %v7019
      %v7103 = vpop.f32.mrf.mxu0
      %v7104 = vadd.f32 0.0, %v7103
      %v7105 = vpop.f32.mrf.mxu0
      %7106 = vdwg.mxu0
      %7107 = vmatpush.bf16.msra.mxu0 0
      %7108 = vmatpush.bf16.msra.mxu0 0
      %7109 = vmatpush.bf16.msra.mxu0 0
      %7110 = vmatpush.bf16.msra.mxu0 0
      %7111 = vmatpush.bf16.msra.mxu0 0
      %7112 = vmatpush.bf16.msra.mxu0 0
      %7113 = vmatpush.bf16.msra.mxu0 0
      %7114 = vmatpush.bf16.msra.mxu0 %v7037
      %7115 = vmatmul.bf16.gmra.mxu0 %v7019
      %v7116 = vpop.f32.mrf.mxu0
      %v7117 = vadd.f32 0.0, %v7116
      %v7118 = vpop.f32.mrf.mxu0
      %7119 = vdwg.mxu0
      %7120 = vmatpush.bf16.msra.mxu0 0
      %7121 = vmatpush.bf16.msra.mxu0 0
      %7122 = vmatpush.bf16.msra.mxu0 0
      %7123 = vmatpush.bf16.msra.mxu0 0
      %7124 = vmatpush.bf16.msra.mxu0 0
      %7125 = vmatpush.bf16.msra.mxu0 0
      %7126 = vmatpush.bf16.msra.mxu0 0
      %7127 = vmatpush.bf16.msra.mxu0 %v7040
      %7128 = vmatmul.bf16.gmra.mxu0 %v7019
      %v7129 = vpop.f32.mrf.mxu0
      %v7130 = vadd.f32 0.0, %v7129
      %v7131 = vpop.f32.mrf.mxu0
      %7132 = vdwg.mxu0
      %v7133 = vadd.f32 %v6972, %v7052
      %v7134 = vadd.f32 %v6973, %v7065
      %v7135 = vadd.f32 %v6974, %v7078
      %v7136 = vadd.f32 %v6975, %v7091
      %v7137 = vadd.f32 %v6976, %v7104
      %v7138 = vadd.f32 %v6977, %v7117
      %v7139 = vadd.f32 %v6978, %v7130
      %s7140 = scalar_lea.vmem %s5, 34
      %v7141 = vld [vmem:[%s7140] sm:$0x3]
      %7142 = vst [vmem:[#allocation1] ss:$4 sm:$0xff] %v4423
      %s7143 = scalar_lea.vmem [#allocation1], 32
      %7144 = vst [vmem:[%s7143] ss:$4 sm:$0xff] %v4424
      %v7145 = vld.sshfl [vmem:[#allocation1 + $0x8] sm:$0xff pattern:$0x73625140]
      %v7147 = vld.sshfl [vmem:[#allocation1 + $0x10] sm:$0xff pattern:$0x73625140]
      %v7149 = vld.sshfl [vmem:[#allocation1 + $0x18] sm:$0xff pattern:$0x73625140]
      %v7151 = vld.sshfl [vmem:[#allocation1 + $0x20] sm:$0xff pattern:$0x73625140]
      %v7153 = vld.sshfl [vmem:[#allocation1 + $0x28] sm:$0xff pattern:$0x73625140]
      %v7155 = vld.sshfl [vmem:[#allocation1 + $0x30] sm:$0xff pattern:$0x73625140]
      %v7157 = vld.sshfl [vmem:[#allocation1 + $0x38] sm:$0xff pattern:$0x73625140]
      %7159 = vrot.lane.b32.xlu0 %v7145, 117
      %v7160 = vpop.permute.xlu0 %7159
      %7161 = vrot.lane.b32.xlu0 %v7147, 117
      %v7162 = vpop.permute.xlu0 %7161
      %7163 = vrot.lane.b32.xlu0 %v7149, 117
      %v7164 = vpop.permute.xlu0 %7163
      %7165 = vrot.lane.b32.xlu0 %v7151, 117
      %v7166 = vpop.permute.xlu0 %7165
      %7167 = vrot.lane.b32.xlu0 %v7153, 117
      %v7168 = vpop.permute.xlu0 %7167
      %7169 = vrot.lane.b32.xlu0 %v7155, 117
      %v7170 = vpop.permute.xlu0 %7169
      %7171 = vrot.lane.b32.xlu0 %v7157, 117
      %v7172 = vpop.permute.xlu0 %7171
      %v7173 = vsel %vm907, %v7160, %v7162
      %v7174 = vsel %vm907, %v7162, %v7164
      %v7175 = vsel %vm907, %v7164, %v7166
      %v7176 = vsel %vm907, %v7166, %v7168
      %v7177 = vsel %vm907, %v7168, %v7170
      %v7178 = vsel %vm907, %v7170, %v7172
      %v7180 = vsel %vm4468, %v7141, 0
      %v7183 = vsel %vm4399, %v7173, 0
      %v7186 = vsel %vm4399, %v7174, 0
      %v7189 = vsel %vm4399, %v7175, 0
      %v7192 = vsel %vm4399, %v7176, 0
      %v7195 = vsel %vm4399, %v7177, 0
      %v7198 = vsel %vm4399, %v7178, 0
      %v7201 = vsel %vm4399, %v7172, 0
      %7203 = vmatpush.bf16.msra.mxu0 0
      %7204 = vmatpush.bf16.msra.mxu0 0
      %7205 = vmatpush.bf16.msra.mxu0 0
      %7206 = vmatpush.bf16.msra.mxu0 0
      %7207 = vmatpush.bf16.msra.mxu0 0
      %7208 = vmatpush.bf16.msra.mxu0 0
      %7209 = vmatpush.bf16.msra.mxu0 0
      %7210 = vmatpush.bf16.msra.mxu0 %v7183
      %7211 = vmatmul.bf16.gmra.mxu0 %v7180
      %v7212 = vpop.f32.mrf.mxu0
      %v7213 = vadd.f32 0.0, %v7212
      %v7214 = vpop.f32.mrf.mxu0
      %7215 = vdwg.mxu0
      %7216 = vmatpush.bf16.msra.mxu0 0
      %7217 = vmatpush.bf16.msra.mxu0 0
      %7218 = vmatpush.bf16.msra.mxu0 0
      %7219 = vmatpush.bf16.msra.mxu0 0
      %7220 = vmatpush.bf16.msra.mxu0 0
      %7221 = vmatpush.bf16.msra.mxu0 0
      %7222 = vmatpush.bf16.msra.mxu0 0
      %7223 = vmatpush.bf16.msra.mxu0 %v7186
      %7224 = vmatmul.bf16.gmra.mxu0 %v7180
      %v7225 = vpop.f32.mrf.mxu0
      %v7226 = vadd.f32 0.0, %v7225
      %v7227 = vpop.f32.mrf.mxu0
      %7228 = vdwg.mxu0
      %7229 = vmatpush.bf16.msra.mxu0 0
      %7230 = vmatpush.bf16.msra.mxu0 0
      %7231 = vmatpush.bf16.msra.mxu0 0
      %7232 = vmatpush.bf16.msra.mxu0 0
      %7233 = vmatpush.bf16.msra.mxu0 0
      %7234 = vmatpush.bf16.msra.mxu0 0
      %7235 = vmatpush.bf16.msra.mxu0 0
      %7236 = vmatpush.bf16.msra.mxu0 %v7189
      %7237 = vmatmul.bf16.gmra.mxu0 %v7180
      %v7238 = vpop.f32.mrf.mxu0
      %v7239 = vadd.f32 0.0, %v7238
      %v7240 = vpop.f32.mrf.mxu0
      %7241 = vdwg.mxu0
      %7242 = vmatpush.bf16.msra.mxu0 0
      %7243 = vmatpush.bf16.msra.mxu0 0
      %7244 = vmatpush.bf16.msra.mxu0 0
      %7245 = vmatpush.bf16.msra.mxu0 0
      %7246 = vmatpush.bf16.msra.mxu0 0
      %7247 = vmatpush.bf16.msra.mxu0 0
      %7248 = vmatpush.bf16.msra.mxu0 0
      %7249 = vmatpush.bf16.msra.mxu0 %v7192
      %7250 = vmatmul.bf16.gmra.mxu0 %v7180
      %v7251 = vpop.f32.mrf.mxu0
      %v7252 = vadd.f32 0.0, %v7251
      %v7253 = vpop.f32.mrf.mxu0
      %7254 = vdwg.mxu0
      %7255 = vmatpush.bf16.msra.mxu0 0
      %7256 = vmatpush.bf16.msra.mxu0 0
      %7257 = vmatpush.bf16.msra.mxu0 0
      %7258 = vmatpush.bf16.msra.mxu0 0
      %7259 = vmatpush.bf16.msra.mxu0 0
      %7260 = vmatpush.bf16.msra.mxu0 0
      %7261 = vmatpush.bf16.msra.mxu0 0
      %7262 = vmatpush.bf16.msra.mxu0 %v7195
      %7263 = vmatmul.bf16.gmra.mxu0 %v7180
      %v7264 = vpop.f32.mrf.mxu0
      %v7265 = vadd.f32 0.0, %v7264
      %v7266 = vpop.f32.mrf.mxu0
      %7267 = vdwg.mxu0
      %7268 = vmatpush.bf16.msra.mxu0 0
      %7269 = vmatpush.bf16.msra.mxu0 0
      %7270 = vmatpush.bf16.msra.mxu0 0
      %7271 = vmatpush.bf16.msra.mxu0 0
      %7272 = vmatpush.bf16.msra.mxu0 0
      %7273 = vmatpush.bf16.msra.mxu0 0
      %7274 = vmatpush.bf16.msra.mxu0 0
      %7275 = vmatpush.bf16.msra.mxu0 %v7198
      %7276 = vmatmul.bf16.gmra.mxu0 %v7180
      %v7277 = vpop.f32.mrf.mxu0
      %v7278 = vadd.f32 0.0, %v7277
      %v7279 = vpop.f32.mrf.mxu0
      %7280 = vdwg.mxu0
      %7281 = vmatpush.bf16.msra.mxu0 0
      %7282 = vmatpush.bf16.msra.mxu0 0
      %7283 = vmatpush.bf16.msra.mxu0 0
      %7284 = vmatpush.bf16.msra.mxu0 0
      %7285 = vmatpush.bf16.msra.mxu0 0
      %7286 = vmatpush.bf16.msra.mxu0 0
      %7287 = vmatpush.bf16.msra.mxu0 0
      %7288 = vmatpush.bf16.msra.mxu0 %v7201
      %7289 = vmatmul.bf16.gmra.mxu0 %v7180
      %v7290 = vpop.f32.mrf.mxu0
      %v7291 = vadd.f32 0.0, %v7290
      %v7292 = vpop.f32.mrf.mxu0
      %7293 = vdwg.mxu0
      %v7294 = vadd.f32 %v7133, %v7213
      %v7295 = vadd.f32 %v7134, %v7226
      %v7296 = vadd.f32 %v7135, %v7239
      %v7297 = vadd.f32 %v7136, %v7252
      %v7298 = vadd.f32 %v7137, %v7265
      %v7299 = vadd.f32 %v7138, %v7278
      %v7300 = vadd.f32 %v7139, %v7291
      %s7301 = scalar_lea.vmem %s5, 36
      %v7302 = vld [vmem:[%s7301] sm:$0x3]
      %7303 = vst [vmem:[#allocation1] ss:$4 sm:$0xff] %v4423
      %s7304 = scalar_lea.vmem [#allocation1], 32
      %7305 = vst [vmem:[%s7304] ss:$4 sm:$0xff] %v4424
      %v7306 = vld.sshfl [vmem:[#allocation1 + $0x8] sm:$0xff pattern:$0x73625140]
      %v7308 = vld.sshfl [vmem:[#allocation1 + $0x10] sm:$0xff pattern:$0x73625140]
      %v7310 = vld.sshfl [vmem:[#allocation1 + $0x18] sm:$0xff pattern:$0x73625140]
      %v7312 = vld.sshfl [vmem:[#allocation1 + $0x20] sm:$0xff pattern:$0x73625140]
      %v7314 = vld.sshfl [vmem:[#allocation1 + $0x28] sm:$0xff pattern:$0x73625140]
      %v7316 = vld.sshfl [vmem:[#allocation1 + $0x30] sm:$0xff pattern:$0x73625140]
      %v7318 = vld.sshfl [vmem:[#allocation1 + $0x38] sm:$0xff pattern:$0x73625140]
      %7320 = vrot.lane.b32.xlu0 %v7306, 39
      %v7321 = vpop.permute.xlu0 %7320
      %7322 = vrot.lane.b32.xlu0 %v7308, 39
      %v7323 = vpop.permute.xlu0 %7322
      %7324 = vrot.lane.b32.xlu0 %v7310, 39
      %v7325 = vpop.permute.xlu0 %7324
      %7326 = vrot.lane.b32.xlu0 %v7312, 39
      %v7327 = vpop.permute.xlu0 %7326
      %7328 = vrot.lane.b32.xlu0 %v7314, 39
      %v7329 = vpop.permute.xlu0 %7328
      %7330 = vrot.lane.b32.xlu0 %v7316, 39
      %v7331 = vpop.permute.xlu0 %7330
      %7332 = vrot.lane.b32.xlu0 %v7318, 39
      %v7333 = vpop.permute.xlu0 %7332
      %vm7334 = vcmask 318464
      %v7335 = vsel %vm7334, %v7321, %v7323
      %v7336 = vsel %vm7334, %v7323, %v7325
      %v7337 = vsel %vm7334, %v7325, %v7327
      %v7338 = vsel %vm7334, %v7327, %v7329
      %v7339 = vsel %vm7334, %v7329, %v7331
      %v7340 = vsel %vm7334, %v7331, %v7333
      %v7342 = vsel %vm4468, %v7302, 0
      %v7345 = vsel %vm4399, %v7335, 0
      %v7348 = vsel %vm4399, %v7336, 0
      %v7351 = vsel %vm4399, %v7337, 0
      %v7354 = vsel %vm4399, %v7338, 0
      %v7357 = vsel %vm4399, %v7339, 0
      %v7360 = vsel %vm4399, %v7340, 0
      %v7363 = vsel %vm4399, %v7333, 0
      %7365 = vmatpush.bf16.msra.mxu0 0
      %7366 = vmatpush.bf16.msra.mxu0 0
      %7367 = vmatpush.bf16.msra.mxu0 0
      %7368 = vmatpush.bf16.msra.mxu0 0
      %7369 = vmatpush.bf16.msra.mxu0 0
      %7370 = vmatpush.bf16.msra.mxu0 0
      %7371 = vmatpush.bf16.msra.mxu0 0
      %7372 = vmatpush.bf16.msra.mxu0 %v7345
      %7373 = vmatmul.bf16.gmra.mxu0 %v7342
      %v7374 = vpop.f32.mrf.mxu0
      %v7375 = vadd.f32 0.0, %v7374
      %v7376 = vpop.f32.mrf.mxu0
      %7377 = vdwg.mxu0
      %7378 = vmatpush.bf16.msra.mxu0 0
      %7379 = vmatpush.bf16.msra.mxu0 0
      %7380 = vmatpush.bf16.msra.mxu0 0
      %7381 = vmatpush.bf16.msra.mxu0 0
      %7382 = vmatpush.bf16.msra.mxu0 0
      %7383 = vmatpush.bf16.msra.mxu0 0
      %7384 = vmatpush.bf16.msra.mxu0 0
      %7385 = vmatpush.bf16.msra.mxu0 %v7348
      %7386 = vmatmul.bf16.gmra.mxu0 %v7342
      %v7387 = vpop.f32.mrf.mxu0
      %v7388 = vadd.f32 0.0, %v7387
      %v7389 = vpop.f32.mrf.mxu0
      %7390 = vdwg.mxu0
      %7391 = vmatpush.bf16.msra.mxu0 0
      %7392 = vmatpush.bf16.msra.mxu0 0
      %7393 = vmatpush.bf16.msra.mxu0 0
      %7394 = vmatpush.bf16.msra.mxu0 0
      %7395 = vmatpush.bf16.msra.mxu0 0
      %7396 = vmatpush.bf16.msra.mxu0 0
      %7397 = vmatpush.bf16.msra.mxu0 0
      %7398 = vmatpush.bf16.msra.mxu0 %v7351
      %7399 = vmatmul.bf16.gmra.mxu0 %v7342
      %v7400 = vpop.f32.mrf.mxu0
      %v7401 = vadd.f32 0.0, %v7400
      %v7402 = vpop.f32.mrf.mxu0
      %7403 = vdwg.mxu0
      %7404 = vmatpush.bf16.msra.mxu0 0
      %7405 = vmatpush.bf16.msra.mxu0 0
      %7406 = vmatpush.bf16.msra.mxu0 0
      %7407 = vmatpush.bf16.msra.mxu0 0
      %7408 = vmatpush.bf16.msra.mxu0 0
      %7409 = vmatpush.bf16.msra.mxu0 0
      %7410 = vmatpush.bf16.msra.mxu0 0
      %7411 = vmatpush.bf16.msra.mxu0 %v7354
      %7412 = vmatmul.bf16.gmra.mxu0 %v7342
      %v7413 = vpop.f32.mrf.mxu0
      %v7414 = vadd.f32 0.0, %v7413
      %v7415 = vpop.f32.mrf.mxu0
      %7416 = vdwg.mxu0
      %7417 = vmatpush.bf16.msra.mxu0 0
      %7418 = vmatpush.bf16.msra.mxu0 0
      %7419 = vmatpush.bf16.msra.mxu0 0
      %7420 = vmatpush.bf16.msra.mxu0 0
      %7421 = vmatpush.bf16.msra.mxu0 0
      %7422 = vmatpush.bf16.msra.mxu0 0
      %7423 = vmatpush.bf16.msra.mxu0 0
      %7424 = vmatpush.bf16.msra.mxu0 %v7357
      %7425 = vmatmul.bf16.gmra.mxu0 %v7342
      %v7426 = vpop.f32.mrf.mxu0
      %v7427 = vadd.f32 0.0, %v7426
      %v7428 = vpop.f32.mrf.mxu0
      %7429 = vdwg.mxu0
      %7430 = vmatpush.bf16.msra.mxu0 0
      %7431 = vmatpush.bf16.msra.mxu0 0
      %7432 = vmatpush.bf16.msra.mxu0 0
      %7433 = vmatpush.bf16.msra.mxu0 0
      %7434 = vmatpush.bf16.msra.mxu0 0
      %7435 = vmatpush.bf16.msra.mxu0 0
      %7436 = vmatpush.bf16.msra.mxu0 0
      %7437 = vmatpush.bf16.msra.mxu0 %v7360
      %7438 = vmatmul.bf16.gmra.mxu0 %v7342
      %v7439 = vpop.f32.mrf.mxu0
      %v7440 = vadd.f32 0.0, %v7439
      %v7441 = vpop.f32.mrf.mxu0
      %7442 = vdwg.mxu0
      %7443 = vmatpush.bf16.msra.mxu0 0
      %7444 = vmatpush.bf16.msra.mxu0 0
      %7445 = vmatpush.bf16.msra.mxu0 0
      %7446 = vmatpush.bf16.msra.mxu0 0
      %7447 = vmatpush.bf16.msra.mxu0 0
      %7448 = vmatpush.bf16.msra.mxu0 0
      %7449 = vmatpush.bf16.msra.mxu0 0
      %7450 = vmatpush.bf16.msra.mxu0 %v7363
      %7451 = vmatmul.bf16.gmra.mxu0 %v7342
      %v7452 = vpop.f32.mrf.mxu0
      %v7453 = vadd.f32 0.0, %v7452
      %v7454 = vpop.f32.mrf.mxu0
      %7455 = vdwg.mxu0
      %v7456 = vadd.f32 %v7294, %v7375
      %v7457 = vadd.f32 %v7295, %v7388
      %v7458 = vadd.f32 %v7296, %v7401
      %v7459 = vadd.f32 %v7297, %v7414
      %v7460 = vadd.f32 %v7298, %v7427
      %v7461 = vadd.f32 %v7299, %v7440
      %v7462 = vadd.f32 %v7300, %v7453
      %s7463 = scalar_lea.vmem %s5, 38
      %v7464 = vld [vmem:[%s7463] sm:$0x3]
      %7465 = vst [vmem:[#allocation1] ss:$4 sm:$0xff] %v4423
      %s7466 = scalar_lea.vmem [#allocation1], 32
      %7467 = vst [vmem:[%s7466] ss:$4 sm:$0xff] %v4424
      %v7468 = vld.sshfl [vmem:[#allocation1 + $0x8] sm:$0xff pattern:$0x73625140]
      %v7470 = vld.sshfl [vmem:[#allocation1 + $0x10] sm:$0xff pattern:$0x73625140]
      %v7472 = vld.sshfl [vmem:[#allocation1 + $0x18] sm:$0xff pattern:$0x73625140]
      %v7474 = vld.sshfl [vmem:[#allocation1 + $0x20] sm:$0xff pattern:$0x73625140]
      %v7476 = vld.sshfl [vmem:[#allocation1 + $0x28] sm:$0xff pattern:$0x73625140]
      %v7478 = vld.sshfl [vmem:[#allocation1 + $0x30] sm:$0xff pattern:$0x73625140]
      %v7480 = vld.sshfl [vmem:[#allocation1 + $0x38] sm:$0xff pattern:$0x73625140]
      %7482 = vrot.lane.b32.xlu0 %v7468, 38
      %v7483 = vpop.permute.xlu0 %7482
      %7484 = vrot.lane.b32.xlu0 %v7470, 38
      %v7485 = vpop.permute.xlu0 %7484
      %7486 = vrot.lane.b32.xlu0 %v7472, 38
      %v7487 = vpop.permute.xlu0 %7486
      %7488 = vrot.lane.b32.xlu0 %v7474, 38
      %v7489 = vpop.permute.xlu0 %7488
      %7490 = vrot.lane.b32.xlu0 %v7476, 38
      %v7491 = vpop.permute.xlu0 %7490
      %7492 = vrot.lane.b32.xlu0 %v7478, 38
      %v7493 = vpop.permute.xlu0 %7492
      %7494 = vrot.lane.b32.xlu0 %v7480, 38
      %v7495 = vpop.permute.xlu0 %7494
      %vm7496 = vcmask 310272
      %v7497 = vsel %vm7496, %v7483, %v7485
      %v7498 = vsel %vm7496, %v7485, %v7487
      %v7499 = vsel %vm7496, %v7487, %v7489
      %v7500 = vsel %vm7496, %v7489, %v7491
      %v7501 = vsel %vm7496, %v7491, %v7493
      %v7502 = vsel %vm7496, %v7493, %v7495
      %v7504 = vsel %vm4468, %v7464, 0
      %v7507 = vsel %vm4399, %v7497, 0
      %v7510 = vsel %vm4399, %v7498, 0
      %v7513 = vsel %vm4399, %v7499, 0
      %v7516 = vsel %vm4399, %v7500, 0
      %v7519 = vsel %vm4399, %v7501, 0
      %v7522 = vsel %vm4399, %v7502, 0
      %v7525 = vsel %vm4399, %v7495, 0
      %7527 = vmatpush.bf16.msra.mxu0 0
      %7528 = vmatpush.bf16.msra.mxu0 0
      %7529 = vmatpush.bf16.msra.mxu0 0
      %7530 = vmatpush.bf16.msra.mxu0 0
      %7531 = vmatpush.bf16.msra.mxu0 0
      %7532 = vmatpush.bf16.msra.mxu0 0
      %7533 = vmatpush.bf16.msra.mxu0 0
      %7534 = vmatpush.bf16.msra.mxu0 %v7507
      %7535 = vmatmul.bf16.gmra.mxu0 %v7504
      %v7536 = vpop.f32.mrf.mxu0
      %v7537 = vadd.f32 0.0, %v7536
      %v7538 = vpop.f32.mrf.mxu0
      %7539 = vdwg.mxu0
      %7540 = vmatpush.bf16.msra.mxu0 0
      %7541 = vmatpush.bf16.msra.mxu0 0
      %7542 = vmatpush.bf16.msra.mxu0 0
      %7543 = vmatpush.bf16.msra.mxu0 0
      %7544 = vmatpush.bf16.msra.mxu0 0
      %7545 = vmatpush.bf16.msra.mxu0 0
      %7546 = vmatpush.bf16.msra.mxu0 0
      %7547 = vmatpush.bf16.msra.mxu0 %v7510
      %7548 = vmatmul.bf16.gmra.mxu0 %v7504
      %v7549 = vpop.f32.mrf.mxu0
      %v7550 = vadd.f32 0.0, %v7549
      %v7551 = vpop.f32.mrf.mxu0
      %7552 = vdwg.mxu0
      %7553 = vmatpush.bf16.msra.mxu0 0
      %7554 = vmatpush.bf16.msra.mxu0 0
      %7555 = vmatpush.bf16.msra.mxu0 0
      %7556 = vmatpush.bf16.msra.mxu0 0
      %7557 = vmatpush.bf16.msra.mxu0 0
      %7558 = vmatpush.bf16.msra.mxu0 0
      %7559 = vmatpush.bf16.msra.mxu0 0
      %7560 = vmatpush.bf16.msra.mxu0 %v7513
      %7561 = vmatmul.bf16.gmra.mxu0 %v7504
      %v7562 = vpop.f32.mrf.mxu0
      %v7563 = vadd.f32 0.0, %v7562
      %v7564 = vpop.f32.mrf.mxu0
      %7565 = vdwg.mxu0
      %7566 = vmatpush.bf16.msra.mxu0 0
      %7567 = vmatpush.bf16.msra.mxu0 0
      %7568 = vmatpush.bf16.msra.mxu0 0
      %7569 = vmatpush.bf16.msra.mxu0 0
      %7570 = vmatpush.bf16.msra.mxu0 0
      %7571 = vmatpush.bf16.msra.mxu0 0
      %7572 = vmatpush.bf16.msra.mxu0 0
      %7573 = vmatpush.bf16.msra.mxu0 %v7516
      %7574 = vmatmul.bf16.gmra.mxu0 %v7504
      %v7575 = vpop.f32.mrf.mxu0
      %v7576 = vadd.f32 0.0, %v7575
      %v7577 = vpop.f32.mrf.mxu0
      %7578 = vdwg.mxu0
      %7579 = vmatpush.bf16.msra.mxu0 0
      %7580 = vmatpush.bf16.msra.mxu0 0
      %7581 = vmatpush.bf16.msra.mxu0 0
      %7582 = vmatpush.bf16.msra.mxu0 0
      %7583 = vmatpush.bf16.msra.mxu0 0
      %7584 = vmatpush.bf16.msra.mxu0 0
      %7585 = vmatpush.bf16.msra.mxu0 0
      %7586 = vmatpush.bf16.msra.mxu0 %v7519
      %7587 = vmatmul.bf16.gmra.mxu0 %v7504
      %v7588 = vpop.f32.mrf.mxu0
      %v7589 = vadd.f32 0.0, %v7588
      %v7590 = vpop.f32.mrf.mxu0
      %7591 = vdwg.mxu0
      %7592 = vmatpush.bf16.msra.mxu0 0
      %7593 = vmatpush.bf16.msra.mxu0 0
      %7594 = vmatpush.bf16.msra.mxu0 0
      %7595 = vmatpush.bf16.msra.mxu0 0
      %7596 = vmatpush.bf16.msra.mxu0 0
      %7597 = vmatpush.bf16.msra.mxu0 0
      %7598 = vmatpush.bf16.msra.mxu0 0
      %7599 = vmatpush.bf16.msra.mxu0 %v7522
      %7600 = vmatmul.bf16.gmra.mxu0 %v7504
      %v7601 = vpop.f32.mrf.mxu0
      %v7602 = vadd.f32 0.0, %v7601
      %v7603 = vpop.f32.mrf.mxu0
      %7604 = vdwg.mxu0
      %7605 = vmatpush.bf16.msra.mxu0 0
      %7606 = vmatpush.bf16.msra.mxu0 0
      %7607 = vmatpush.bf16.msra.mxu0 0
      %7608 = vmatpush.bf16.msra.mxu0 0
      %7609 = vmatpush.bf16.msra.mxu0 0
      %7610 = vmatpush.bf16.msra.mxu0 0
      %7611 = vmatpush.bf16.msra.mxu0 0
      %7612 = vmatpush.bf16.msra.mxu0 %v7525
      %7613 = vmatmul.bf16.gmra.mxu0 %v7504
      %v7614 = vpop.f32.mrf.mxu0
      %v7615 = vadd.f32 0.0, %v7614
      %v7616 = vpop.f32.mrf.mxu0
      %7617 = vdwg.mxu0
      %v7618 = vadd.f32 %v7456, %v7537
      %v7619 = vadd.f32 %v7457, %v7550
      %v7620 = vadd.f32 %v7458, %v7563
      %v7621 = vadd.f32 %v7459, %v7576
      %v7622 = vadd.f32 %v7460, %v7589
      %v7623 = vadd.f32 %v7461, %v7602
      %v7624 = vadd.f32 %v7462, %v7615
      %s7625 = scalar_lea.vmem %s5, 40
      %v7626 = vld [vmem:[%s7625] sm:$0x3]
      %7627 = vst [vmem:[#allocation1] ss:$4 sm:$0xff] %v4423
      %s7628 = scalar_lea.vmem [#allocation1], 32
      %7629 = vst [vmem:[%s7628] ss:$4 sm:$0xff] %v4424
      %v7630 = vld.sshfl [vmem:[#allocation1 + $0x8] sm:$0xff pattern:$0x73625140]
      %v7632 = vld.sshfl [vmem:[#allocation1 + $0x10] sm:$0xff pattern:$0x73625140]
      %v7634 = vld.sshfl [vmem:[#allocation1 + $0x18] sm:$0xff pattern:$0x73625140]
      %v7636 = vld.sshfl [vmem:[#allocation1 + $0x20] sm:$0xff pattern:$0x73625140]
      %v7638 = vld.sshfl [vmem:[#allocation1 + $0x28] sm:$0xff pattern:$0x73625140]
      %v7640 = vld.sshfl [vmem:[#allocation1 + $0x30] sm:$0xff pattern:$0x73625140]
      %v7642 = vld.sshfl [vmem:[#allocation1 + $0x38] sm:$0xff pattern:$0x73625140]
      %7644 = vrot.lane.b32.xlu0 %v7630, 37
      %v7645 = vpop.permute.xlu0 %7644
      %7646 = vrot.lane.b32.xlu0 %v7632, 37
      %v7647 = vpop.permute.xlu0 %7646
      %7648 = vrot.lane.b32.xlu0 %v7634, 37
      %v7649 = vpop.permute.xlu0 %7648
      %7650 = vrot.lane.b32.xlu0 %v7636, 37
      %v7651 = vpop.permute.xlu0 %7650
      %7652 = vrot.lane.b32.xlu0 %v7638, 37
      %v7653 = vpop.permute.xlu0 %7652
      %7654 = vrot.lane.b32.xlu0 %v7640, 37
      %v7655 = vpop.permute.xlu0 %7654
      %7656 = vrot.lane.b32.xlu0 %v7642, 37
      %v7657 = vpop.permute.xlu0 %7656
      %vm7658 = vcmask 302080
      %v7659 = vsel %vm7658, %v7645, %v7647
      %v7660 = vsel %vm7658, %v7647, %v7649
      %v7661 = vsel %vm7658, %v7649, %v7651
      %v7662 = vsel %vm7658, %v7651, %v7653
      %v7663 = vsel %vm7658, %v7653, %v7655
      %v7664 = vsel %vm7658, %v7655, %v7657
      %v7666 = vsel %vm4468, %v7626, 0
      %v7669 = vsel %vm4399, %v7659, 0
      %v7672 = vsel %vm4399, %v7660, 0
      %v7675 = vsel %vm4399, %v7661, 0
      %v7678 = vsel %vm4399, %v7662, 0
      %v7681 = vsel %vm4399, %v7663, 0
      %v7684 = vsel %vm4399, %v7664, 0
      %v7687 = vsel %vm4399, %v7657, 0
      %7689 = vmatpush.bf16.msra.mxu0 0
      %7690 = vmatpush.bf16.msra.mxu0 0
      %7691 = vmatpush.bf16.msra.mxu0 0
      %7692 = vmatpush.bf16.msra.mxu0 0
      %7693 = vmatpush.bf16.msra.mxu0 0
      %7694 = vmatpush.bf16.msra.mxu0 0
      %7695 = vmatpush.bf16.msra.mxu0 0
      %7696 = vmatpush.bf16.msra.mxu0 %v7669
      %7697 = vmatmul.bf16.gmra.mxu0 %v7666
      %v7698 = vpop.f32.mrf.mxu0
      %v7699 = vadd.f32 0.0, %v7698
      %v7700 = vpop.f32.mrf.mxu0
      %7701 = vdwg.mxu0
      %7702 = vmatpush.bf16.msra.mxu0 0
      %7703 = vmatpush.bf16.msra.mxu0 0
      %7704 = vmatpush.bf16.msra.mxu0 0
      %7705 = vmatpush.bf16.msra.mxu0 0
      %7706 = vmatpush.bf16.msra.mxu0 0
      %7707 = vmatpush.bf16.msra.mxu0 0
      %7708 = vmatpush.bf16.msra.mxu0 0
      %7709 = vmatpush.bf16.msra.mxu0 %v7672
      %7710 = vmatmul.bf16.gmra.mxu0 %v7666
      %v7711 = vpop.f32.mrf.mxu0
      %v7712 = vadd.f32 0.0, %v7711
      %v7713 = vpop.f32.mrf.mxu0
      %7714 = vdwg.mxu0
      %7715 = vmatpush.bf16.msra.mxu0 0
      %7716 = vmatpush.bf16.msra.mxu0 0
      %7717 = vmatpush.bf16.msra.mxu0 0
      %7718 = vmatpush.bf16.msra.mxu0 0
      %7719 = vmatpush.bf16.msra.mxu0 0
      %7720 = vmatpush.bf16.msra.mxu0 0
      %7721 = vmatpush.bf16.msra.mxu0 0
      %7722 = vmatpush.bf16.msra.mxu0 %v7675
      %7723 = vmatmul.bf16.gmra.mxu0 %v7666
      %v7724 = vpop.f32.mrf.mxu0
      %v7725 = vadd.f32 0.0, %v7724
      %v7726 = vpop.f32.mrf.mxu0
      %7727 = vdwg.mxu0
      %7728 = vmatpush.bf16.msra.mxu0 0
      %7729 = vmatpush.bf16.msra.mxu0 0
      %7730 = vmatpush.bf16.msra.mxu0 0
      %7731 = vmatpush.bf16.msra.mxu0 0
      %7732 = vmatpush.bf16.msra.mxu0 0
      %7733 = vmatpush.bf16.msra.mxu0 0
      %7734 = vmatpush.bf16.msra.mxu0 0
      %7735 = vmatpush.bf16.msra.mxu0 %v7678
      %7736 = vmatmul.bf16.gmra.mxu0 %v7666
      %v7737 = vpop.f32.mrf.mxu0
      %v7738 = vadd.f32 0.0, %v7737
      %v7739 = vpop.f32.mrf.mxu0
      %7740 = vdwg.mxu0
      %7741 = vmatpush.bf16.msra.mxu0 0
      %7742 = vmatpush.bf16.msra.mxu0 0
      %7743 = vmatpush.bf16.msra.mxu0 0
      %7744 = vmatpush.bf16.msra.mxu0 0
      %7745 = vmatpush.bf16.msra.mxu0 0
      %7746 = vmatpush.bf16.msra.mxu0 0
      %7747 = vmatpush.bf16.msra.mxu0 0
      %7748 = vmatpush.bf16.msra.mxu0 %v7681
      %7749 = vmatmul.bf16.gmra.mxu0 %v7666
      %v7750 = vpop.f32.mrf.mxu0
      %v7751 = vadd.f32 0.0, %v7750
      %v7752 = vpop.f32.mrf.mxu0
      %7753 = vdwg.mxu0
      %7754 = vmatpush.bf16.msra.mxu0 0
      %7755 = vmatpush.bf16.msra.mxu0 0
      %7756 = vmatpush.bf16.msra.mxu0 0
      %7757 = vmatpush.bf16.msra.mxu0 0
      %7758 = vmatpush.bf16.msra.mxu0 0
      %7759 = vmatpush.bf16.msra.mxu0 0
      %7760 = vmatpush.bf16.msra.mxu0 0
      %7761 = vmatpush.bf16.msra.mxu0 %v7684
      %7762 = vmatmul.bf16.gmra.mxu0 %v7666
      %v7763 = vpop.f32.mrf.mxu0
      %v7764 = vadd.f32 0.0, %v7763
      %v7765 = vpop.f32.mrf.mxu0
      %7766 = vdwg.mxu0
      %7767 = vmatpush.bf16.msra.mxu0 0
      %7768 = vmatpush.bf16.msra.mxu0 0
      %7769 = vmatpush.bf16.msra.mxu0 0
      %7770 = vmatpush.bf16.msra.mxu0 0
      %7771 = vmatpush.bf16.msra.mxu0 0
      %7772 = vmatpush.bf16.msra.mxu0 0
      %7773 = vmatpush.bf16.msra.mxu0 0
      %7774 = vmatpush.bf16.msra.mxu0 %v7687
      %7775 = vmatmul.bf16.gmra.mxu0 %v7666
      %v7776 = vpop.f32.mrf.mxu0
      %v7777 = vadd.f32 0.0, %v7776
      %v7778 = vpop.f32.mrf.mxu0
      %7779 = vdwg.mxu0
      %v7780 = vadd.f32 %v7618, %v7699
      %v7781 = vadd.f32 %v7619, %v7712
      %v7782 = vadd.f32 %v7620, %v7725
      %v7783 = vadd.f32 %v7621, %v7738
      %v7784 = vadd.f32 %v7622, %v7751
      %v7785 = vadd.f32 %v7623, %v7764
      %v7786 = vadd.f32 %v7624, %v7777
      %s7787 = scalar_lea.vmem %s5, 42
      %v7788 = vld [vmem:[%s7787] sm:$0x3]
      %7789 = vst [vmem:[#allocation1] ss:$4 sm:$0xff] %v4423
      %s7790 = scalar_lea.vmem [#allocation1], 32
      %7791 = vst [vmem:[%s7790] ss:$4 sm:$0xff] %v4424
      %v7792 = vld.sshfl [vmem:[#allocation1 + $0x8] sm:$0xff pattern:$0x73625140]
      %v7794 = vld.sshfl [vmem:[#allocation1 + $0x10] sm:$0xff pattern:$0x73625140]
      %v7796 = vld.sshfl [vmem:[#allocation1 + $0x18] sm:$0xff pattern:$0x73625140]
      %v7798 = vld.sshfl [vmem:[#allocation1 + $0x20] sm:$0xff pattern:$0x73625140]
      %v7800 = vld.sshfl [vmem:[#allocation1 + $0x28] sm:$0xff pattern:$0x73625140]
      %v7802 = vld.sshfl [vmem:[#allocation1 + $0x30] sm:$0xff pattern:$0x73625140]
      %v7804 = vld.sshfl [vmem:[#allocation1 + $0x38] sm:$0xff pattern:$0x73625140]
      %7806 = vrot.lane.b32.xlu0 %v7792, 29
      %v7807 = vpop.permute.xlu0 %7806
      %7808 = vrot.lane.b32.xlu0 %v7794, 29
      %v7809 = vpop.permute.xlu0 %7808
      %7810 = vrot.lane.b32.xlu0 %v7796, 29
      %v7811 = vpop.permute.xlu0 %7810
      %7812 = vrot.lane.b32.xlu0 %v7798, 29
      %v7813 = vpop.permute.xlu0 %7812
      %7814 = vrot.lane.b32.xlu0 %v7800, 29
      %v7815 = vpop.permute.xlu0 %7814
      %7816 = vrot.lane.b32.xlu0 %v7802, 29
      %v7817 = vpop.permute.xlu0 %7816
      %7818 = vrot.lane.b32.xlu0 %v7804, 29
      %v7819 = vpop.permute.xlu0 %7818
      %vm7820 = vcmask 236544
      %v7821 = vsel %vm7820, %v7807, %v7809
      %v7822 = vsel %vm7820, %v7809, %v7811
      %v7823 = vsel %vm7820, %v7811, %v7813
      %v7824 = vsel %vm7820, %v7813, %v7815
      %v7825 = vsel %vm7820, %v7815, %v7817
      %v7826 = vsel %vm7820, %v7817, %v7819
      %v7828 = vsel %vm4468, %v7788, 0
      %v7831 = vsel %vm4399, %v7821, 0
      %v7834 = vsel %vm4399, %v7822, 0
      %v7837 = vsel %vm4399, %v7823, 0
      %v7840 = vsel %vm4399, %v7824, 0
      %v7843 = vsel %vm4399, %v7825, 0
      %v7846 = vsel %vm4399, %v7826, 0
      %v7849 = vsel %vm4399, %v7819, 0
      %7851 = vmatpush.bf16.msra.mxu0 0
      %7852 = vmatpush.bf16.msra.mxu0 0
      %7853 = vmatpush.bf16.msra.mxu0 0
      %7854 = vmatpush.bf16.msra.mxu0 0
      %7855 = vmatpush.bf16.msra.mxu0 0
      %7856 = vmatpush.bf16.msra.mxu0 0
      %7857 = vmatpush.bf16.msra.mxu0 0
      %7858 = vmatpush.bf16.msra.mxu0 %v7831
      %7859 = vmatmul.bf16.gmra.mxu0 %v7828
      %v7860 = vpop.f32.mrf.mxu0
      %v7861 = vadd.f32 0.0, %v7860
      %v7862 = vpop.f32.mrf.mxu0
      %7863 = vdwg.mxu0
      %7864 = vmatpush.bf16.msra.mxu0 0
      %7865 = vmatpush.bf16.msra.mxu0 0
      %7866 = vmatpush.bf16.msra.mxu0 0
      %7867 = vmatpush.bf16.msra.mxu0 0
      %7868 = vmatpush.bf16.msra.mxu0 0
      %7869 = vmatpush.bf16.msra.mxu0 0
      %7870 = vmatpush.bf16.msra.mxu0 0
      %7871 = vmatpush.bf16.msra.mxu0 %v7834
      %7872 = vmatmul.bf16.gmra.mxu0 %v7828
      %v7873 = vpop.f32.mrf.mxu0
      %v7874 = vadd.f32 0.0, %v7873
      %v7875 = vpop.f32.mrf.mxu0
      %7876 = vdwg.mxu0
      %7877 = vmatpush.bf16.msra.mxu0 0
      %7878 = vmatpush.bf16.msra.mxu0 0
      %7879 = vmatpush.bf16.msra.mxu0 0
      %7880 = vmatpush.bf16.msra.mxu0 0
      %7881 = vmatpush.bf16.msra.mxu0 0
      %7882 = vmatpush.bf16.msra.mxu0 0
      %7883 = vmatpush.bf16.msra.mxu0 0
      %7884 = vmatpush.bf16.msra.mxu0 %v7837
      %7885 = vmatmul.bf16.gmra.mxu0 %v7828
      %v7886 = vpop.f32.mrf.mxu0
      %v7887 = vadd.f32 0.0, %v7886
      %v7888 = vpop.f32.mrf.mxu0
      %7889 = vdwg.mxu0
      %7890 = vmatpush.bf16.msra.mxu0 0
      %7891 = vmatpush.bf16.msra.mxu0 0
      %7892 = vmatpush.bf16.msra.mxu0 0
      %7893 = vmatpush.bf16.msra.mxu0 0
      %7894 = vmatpush.bf16.msra.mxu0 0
      %7895 = vmatpush.bf16.msra.mxu0 0
      %7896 = vmatpush.bf16.msra.mxu0 0
      %7897 = vmatpush.bf16.msra.mxu0 %v7840
      %7898 = vmatmul.bf16.gmra.mxu0 %v7828
      %v7899 = vpop.f32.mrf.mxu0
      %v7900 = vadd.f32 0.0, %v7899
      %v7901 = vpop.f32.mrf.mxu0
      %7902 = vdwg.mxu0
      %7903 = vmatpush.bf16.msra.mxu0 0
      %7904 = vmatpush.bf16.msra.mxu0 0
      %7905 = vmatpush.bf16.msra.mxu0 0
      %7906 = vmatpush.bf16.msra.mxu0 0
      %7907 = vmatpush.bf16.msra.mxu0 0
      %7908 = vmatpush.bf16.msra.mxu0 0
      %7909 = vmatpush.bf16.msra.mxu0 0
      %7910 = vmatpush.bf16.msra.mxu0 %v7843
      %7911 = vmatmul.bf16.gmra.mxu0 %v7828
      %v7912 = vpop.f32.mrf.mxu0
      %v7913 = vadd.f32 0.0, %v7912
      %v7914 = vpop.f32.mrf.mxu0
      %7915 = vdwg.mxu0
      %7916 = vmatpush.bf16.msra.mxu0 0
      %7917 = vmatpush.bf16.msra.mxu0 0
      %7918 = vmatpush.bf16.msra.mxu0 0
      %7919 = vmatpush.bf16.msra.mxu0 0
      %7920 = vmatpush.bf16.msra.mxu0 0
      %7921 = vmatpush.bf16.msra.mxu0 0
      %7922 = vmatpush.bf16.msra.mxu0 0
      %7923 = vmatpush.bf16.msra.mxu0 %v7846
      %7924 = vmatmul.bf16.gmra.mxu0 %v7828
      %v7925 = vpop.f32.mrf.mxu0
      %v7926 = vadd.f32 0.0, %v7925
      %v7927 = vpop.f32.mrf.mxu0
      %7928 = vdwg.mxu0
      %7929 = vmatpush.bf16.msra.mxu0 0
      %7930 = vmatpush.bf16.msra.mxu0 0
      %7931 = vmatpush.bf16.msra.mxu0 0
      %7932 = vmatpush.bf16.msra.mxu0 0
      %7933 = vmatpush.bf16.msra.mxu0 0
      %7934 = vmatpush.bf16.msra.mxu0 0
      %7935 = vmatpush.bf16.msra.mxu0 0
      %7936 = vmatpush.bf16.msra.mxu0 %v7849
      %7937 = vmatmul.bf16.gmra.mxu0 %v7828
      %v7938 = vpop.f32.mrf.mxu0
      %v7939 = vadd.f32 0.0, %v7938
      %v7940 = vpop.f32.mrf.mxu0
      %7941 = vdwg.mxu0
      %v7942 = vadd.f32 %v7780, %v7861
      %v7943 = vadd.f32 %v7781, %v7874
      %v7944 = vadd.f32 %v7782, %v7887
      %v7945 = vadd.f32 %v7783, %v7900
      %v7946 = vadd.f32 %v7784, %v7913
      %v7947 = vadd.f32 %v7785, %v7926
      %v7948 = vadd.f32 %v7786, %v7939
      %s7949 = scalar_lea.vmem %s5, 44
      %v7950 = vld [vmem:[%s7949] sm:$0x3]
      %7951 = vst [vmem:[#allocation1] ss:$4 sm:$0xff] %v4423
      %s7952 = scalar_lea.vmem [#allocation1], 32
      %7953 = vst [vmem:[%s7952] ss:$4 sm:$0xff] %v4424
      %v7954 = vld.sshfl [vmem:[#allocation1 + $0x8] sm:$0xff pattern:$0x73625140]
      %v7956 = vld.sshfl [vmem:[#allocation1 + $0x10] sm:$0xff pattern:$0x73625140]
      %v7958 = vld.sshfl [vmem:[#allocation1 + $0x18] sm:$0xff pattern:$0x73625140]
      %v7960 = vld.sshfl [vmem:[#allocation1 + $0x20] sm:$0xff pattern:$0x73625140]
      %v7962 = vld.sshfl [vmem:[#allocation1 + $0x28] sm:$0xff pattern:$0x73625140]
      %v7964 = vld.sshfl [vmem:[#allocation1 + $0x30] sm:$0xff pattern:$0x73625140]
      %v7966 = vld.sshfl [vmem:[#allocation1 + $0x38] sm:$0xff pattern:$0x73625140]
      %7968 = vrot.lane.b32.xlu0 %v7954, 28
      %v7969 = vpop.permute.xlu0 %7968
      %7970 = vrot.lane.b32.xlu0 %v7956, 28
      %v7971 = vpop.permute.xlu0 %7970
      %7972 = vrot.lane.b32.xlu0 %v7958, 28
      %v7973 = vpop.permute.xlu0 %7972
      %7974 = vrot.lane.b32.xlu0 %v7960, 28
      %v7975 = vpop.permute.xlu0 %7974
      %7976 = vrot.lane.b32.xlu0 %v7962, 28
      %v7977 = vpop.permute.xlu0 %7976
      %7978 = vrot.lane.b32.xlu0 %v7964, 28
      %v7979 = vpop.permute.xlu0 %7978
      %7980 = vrot.lane.b32.xlu0 %v7966, 28
      %v7981 = vpop.permute.xlu0 %7980
      %v7982 = vsel %vm1632, %v7969, %v7971
      %v7983 = vsel %vm1632, %v7971, %v7973
      %v7984 = vsel %vm1632, %v7973, %v7975
      %v7985 = vsel %vm1632, %v7975, %v7977
      %v7986 = vsel %vm1632, %v7977, %v7979
      %v7987 = vsel %vm1632, %v7979, %v7981
      %v7989 = vsel %vm4468, %v7950, 0
      %v7992 = vsel %vm4399, %v7982, 0
      %v7995 = vsel %vm4399, %v7983, 0
      %v7998 = vsel %vm4399, %v7984, 0
      %v8001 = vsel %vm4399, %v7985, 0
      %v8004 = vsel %vm4399, %v7986, 0
      %v8007 = vsel %vm4399, %v7987, 0
      %v8010 = vsel %vm4399, %v7981, 0
      %8012 = vmatpush.bf16.msra.mxu0 0
      %8013 = vmatpush.bf16.msra.mxu0 0
      %8014 = vmatpush.bf16.msra.mxu0 0
      %8015 = vmatpush.bf16.msra.mxu0 0
      %8016 = vmatpush.bf16.msra.mxu0 0
      %8017 = vmatpush.bf16.msra.mxu0 0
      %8018 = vmatpush.bf16.msra.mxu0 0
      %8019 = vmatpush.bf16.msra.mxu0 %v7992
      %8020 = vmatmul.bf16.gmra.mxu0 %v7989
      %v8021 = vpop.f32.mrf.mxu0
      %v8022 = vadd.f32 0.0, %v8021
      %v8023 = vpop.f32.mrf.mxu0
      %8024 = vdwg.mxu0
      %8025 = vmatpush.bf16.msra.mxu0 0
      %8026 = vmatpush.bf16.msra.mxu0 0
      %8027 = vmatpush.bf16.msra.mxu0 0
      %8028 = vmatpush.bf16.msra.mxu0 0
      %8029 = vmatpush.bf16.msra.mxu0 0
      %8030 = vmatpush.bf16.msra.mxu0 0
      %8031 = vmatpush.bf16.msra.mxu0 0
      %8032 = vmatpush.bf16.msra.mxu0 %v7995
      %8033 = vmatmul.bf16.gmra.mxu0 %v7989
      %v8034 = vpop.f32.mrf.mxu0
      %v8035 = vadd.f32 0.0, %v8034
      %v8036 = vpop.f32.mrf.mxu0
      %8037 = vdwg.mxu0
      %8038 = vmatpush.bf16.msra.mxu0 0
      %8039 = vmatpush.bf16.msra.mxu0 0
      %8040 = vmatpush.bf16.msra.mxu0 0
      %8041 = vmatpush.bf16.msra.mxu0 0
      %8042 = vmatpush.bf16.msra.mxu0 0
      %8043 = vmatpush.bf16.msra.mxu0 0
      %8044 = vmatpush.bf16.msra.mxu0 0
      %8045 = vmatpush.bf16.msra.mxu0 %v7998
      %8046 = vmatmul.bf16.gmra.mxu0 %v7989
      %v8047 = vpop.f32.mrf.mxu0
      %v8048 = vadd.f32 0.0, %v8047
      %v8049 = vpop.f32.mrf.mxu0
      %8050 = vdwg.mxu0
      %8051 = vmatpush.bf16.msra.mxu0 0
      %8052 = vmatpush.bf16.msra.mxu0 0
      %8053 = vmatpush.bf16.msra.mxu0 0
      %8054 = vmatpush.bf16.msra.mxu0 0
      %8055 = vmatpush.bf16.msra.mxu0 0
      %8056 = vmatpush.bf16.msra.mxu0 0
      %8057 = vmatpush.bf16.msra.mxu0 0
      %8058 = vmatpush.bf16.msra.mxu0 %v8001
      %8059 = vmatmul.bf16.gmra.mxu0 %v7989
      %v8060 = vpop.f32.mrf.mxu0
      %v8061 = vadd.f32 0.0, %v8060
      %v8062 = vpop.f32.mrf.mxu0
      %8063 = vdwg.mxu0
      %8064 = vmatpush.bf16.msra.mxu0 0
      %8065 = vmatpush.bf16.msra.mxu0 0
      %8066 = vmatpush.bf16.msra.mxu0 0
      %8067 = vmatpush.bf16.msra.mxu0 0
      %8068 = vmatpush.bf16.msra.mxu0 0
      %8069 = vmatpush.bf16.msra.mxu0 0
      %8070 = vmatpush.bf16.msra.mxu0 0
      %8071 = vmatpush.bf16.msra.mxu0 %v8004
      %8072 = vmatmul.bf16.gmra.mxu0 %v7989
      %v8073 = vpop.f32.mrf.mxu0
      %v8074 = vadd.f32 0.0, %v8073
      %v8075 = vpop.f32.mrf.mxu0
      %8076 = vdwg.mxu0
      %8077 = vmatpush.bf16.msra.mxu0 0
      %8078 = vmatpush.bf16.msra.mxu0 0
      %8079 = vmatpush.bf16.msra.mxu0 0
      %8080 = vmatpush.bf16.msra.mxu0 0
      %8081 = vmatpush.bf16.msra.mxu0 0
      %8082 = vmatpush.bf16.msra.mxu0 0
      %8083 = vmatpush.bf16.msra.mxu0 0
      %8084 = vmatpush.bf16.msra.mxu0 %v8007
      %8085 = vmatmul.bf16.gmra.mxu0 %v7989
      %v8086 = vpop.f32.mrf.mxu0
      %v8087 = vadd.f32 0.0, %v8086
      %v8088 = vpop.f32.mrf.mxu0
      %8089 = vdwg.mxu0
      %8090 = vmatpush.bf16.msra.mxu0 0
      %8091 = vmatpush.bf16.msra.mxu0 0
      %8092 = vmatpush.bf16.msra.mxu0 0
      %8093 = vmatpush.bf16.msra.mxu0 0
      %8094 = vmatpush.bf16.msra.mxu0 0
      %8095 = vmatpush.bf16.msra.mxu0 0
      %8096 = vmatpush.bf16.msra.mxu0 0
      %8097 = vmatpush.bf16.msra.mxu0 %v8010
      %8098 = vmatmul.bf16.gmra.mxu0 %v7989
      %v8099 = vpop.f32.mrf.mxu0
      %v8100 = vadd.f32 0.0, %v8099
      %v8101 = vpop.f32.mrf.mxu0
      %8102 = vdwg.mxu0
      %v8103 = vadd.f32 %v7942, %v8022
      %v8104 = vadd.f32 %v7943, %v8035
      %v8105 = vadd.f32 %v7944, %v8048
      %v8106 = vadd.f32 %v7945, %v8061
      %v8107 = vadd.f32 %v7946, %v8074
      %v8108 = vadd.f32 %v7947, %v8087
      %v8109 = vadd.f32 %v7948, %v8100
      %s8110 = scalar_lea.vmem %s5, 46
      %v8111 = vld [vmem:[%s8110] sm:$0x3]
      %8112 = vst [vmem:[#allocation1] ss:$4 sm:$0xff] %v4423
      %s8113 = scalar_lea.vmem [#allocation1], 32
      %8114 = vst [vmem:[%s8113] ss:$4 sm:$0xff] %v4424
      %v8115 = vld.sshfl [vmem:[#allocation1 + $0x8] sm:$0xff pattern:$0x73625140]
      %v8117 = vld.sshfl [vmem:[#allocation1 + $0x10] sm:$0xff pattern:$0x73625140]
      %v8119 = vld.sshfl [vmem:[#allocation1 + $0x18] sm:$0xff pattern:$0x73625140]
      %v8121 = vld.sshfl [vmem:[#allocation1 + $0x20] sm:$0xff pattern:$0x73625140]
      %v8123 = vld.sshfl [vmem:[#allocation1 + $0x28] sm:$0xff pattern:$0x73625140]
      %v8125 = vld.sshfl [vmem:[#allocation1 + $0x30] sm:$0xff pattern:$0x73625140]
      %v8127 = vld.sshfl [vmem:[#allocation1 + $0x38] sm:$0xff pattern:$0x73625140]
      %8129 = vrot.lane.b32.xlu0 %v8115, 27
      %v8130 = vpop.permute.xlu0 %8129
      %8131 = vrot.lane.b32.xlu0 %v8117, 27
      %v8132 = vpop.permute.xlu0 %8131
      %8133 = vrot.lane.b32.xlu0 %v8119, 27
      %v8134 = vpop.permute.xlu0 %8133
      %8135 = vrot.lane.b32.xlu0 %v8121, 27
      %v8136 = vpop.permute.xlu0 %8135
      %8137 = vrot.lane.b32.xlu0 %v8123, 27
      %v8138 = vpop.permute.xlu0 %8137
      %8139 = vrot.lane.b32.xlu0 %v8125, 27
      %v8140 = vpop.permute.xlu0 %8139
      %8141 = vrot.lane.b32.xlu0 %v8127, 27
      %v8142 = vpop.permute.xlu0 %8141
      %v8143 = vsel %vm1777, %v8130, %v8132
      %v8144 = vsel %vm1777, %v8132, %v8134
      %v8145 = vsel %vm1777, %v8134, %v8136
      %v8146 = vsel %vm1777, %v8136, %v8138
      %v8147 = vsel %vm1777, %v8138, %v8140
      %v8148 = vsel %vm1777, %v8140, %v8142
      %v8150 = vsel %vm4468, %v8111, 0
      %v8153 = vsel %vm4399, %v8143, 0
      %v8156 = vsel %vm4399, %v8144, 0
      %v8159 = vsel %vm4399, %v8145, 0
      %v8162 = vsel %vm4399, %v8146, 0
      %v8165 = vsel %vm4399, %v8147, 0
      %v8168 = vsel %vm4399, %v8148, 0
      %v8171 = vsel %vm4399, %v8142, 0
      %8173 = vmatpush.bf16.msra.mxu0 0
      %8174 = vmatpush.bf16.msra.mxu0 0
      %8175 = vmatpush.bf16.msra.mxu0 0
      %8176 = vmatpush.bf16.msra.mxu0 0
      %8177 = vmatpush.bf16.msra.mxu0 0
      %8178 = vmatpush.bf16.msra.mxu0 0
      %8179 = vmatpush.bf16.msra.mxu0 0
      %8180 = vmatpush.bf16.msra.mxu0 %v8153
      %8181 = vmatmul.bf16.gmra.mxu0 %v8150
      %v8182 = vpop.f32.mrf.mxu0
      %v8183 = vadd.f32 0.0, %v8182
      %v8184 = vpop.f32.mrf.mxu0
      %8185 = vdwg.mxu0
      %8186 = vmatpush.bf16.msra.mxu0 0
      %8187 = vmatpush.bf16.msra.mxu0 0
      %8188 = vmatpush.bf16.msra.mxu0 0
      %8189 = vmatpush.bf16.msra.mxu0 0
      %8190 = vmatpush.bf16.msra.mxu0 0
      %8191 = vmatpush.bf16.msra.mxu0 0
      %8192 = vmatpush.bf16.msra.mxu0 0
      %8193 = vmatpush.bf16.msra.mxu0 %v8156
      %8194 = vmatmul.bf16.gmra.mxu0 %v8150
      %v8195 = vpop.f32.mrf.mxu0
      %v8196 = vadd.f32 0.0, %v8195
      %v8197 = vpop.f32.mrf.mxu0
      %8198 = vdwg.mxu0
      %8199 = vmatpush.bf16.msra.mxu0 0
      %8200 = vmatpush.bf16.msra.mxu0 0
      %8201 = vmatpush.bf16.msra.mxu0 0
      %8202 = vmatpush.bf16.msra.mxu0 0
      %8203 = vmatpush.bf16.msra.mxu0 0
      %8204 = vmatpush.bf16.msra.mxu0 0
      %8205 = vmatpush.bf16.msra.mxu0 0
      %8206 = vmatpush.bf16.msra.mxu0 %v8159
      %8207 = vmatmul.bf16.gmra.mxu0 %v8150
      %v8208 = vpop.f32.mrf.mxu0
      %v8209 = vadd.f32 0.0, %v8208
      %v8210 = vpop.f32.mrf.mxu0
      %8211 = vdwg.mxu0
      %8212 = vmatpush.bf16.msra.mxu0 0
      %8213 = vmatpush.bf16.msra.mxu0 0
      %8214 = vmatpush.bf16.msra.mxu0 0
      %8215 = vmatpush.bf16.msra.mxu0 0
      %8216 = vmatpush.bf16.msra.mxu0 0
      %8217 = vmatpush.bf16.msra.mxu0 0
      %8218 = vmatpush.bf16.msra.mxu0 0
      %8219 = vmatpush.bf16.msra.mxu0 %v8162
      %8220 = vmatmul.bf16.gmra.mxu0 %v8150
      %v8221 = vpop.f32.mrf.mxu0
      %v8222 = vadd.f32 0.0, %v8221
      %v8223 = vpop.f32.mrf.mxu0
      %8224 = vdwg.mxu0
      %8225 = vmatpush.bf16.msra.mxu0 0
      %8226 = vmatpush.bf16.msra.mxu0 0
      %8227 = vmatpush.bf16.msra.mxu0 0
      %8228 = vmatpush.bf16.msra.mxu0 0
      %8229 = vmatpush.bf16.msra.mxu0 0
      %8230 = vmatpush.bf16.msra.mxu0 0
      %8231 = vmatpush.bf16.msra.mxu0 0
      %8232 = vmatpush.bf16.msra.mxu0 %v8165
      %8233 = vmatmul.bf16.gmra.mxu0 %v8150
      %v8234 = vpop.f32.mrf.mxu0
      %v8235 = vadd.f32 0.0, %v8234
      %v8236 = vpop.f32.mrf.mxu0
      %8237 = vdwg.mxu0
      %8238 = vmatpush.bf16.msra.mxu0 0
      %8239 = vmatpush.bf16.msra.mxu0 0
      %8240 = vmatpush.bf16.msra.mxu0 0
      %8241 = vmatpush.bf16.msra.mxu0 0
      %8242 = vmatpush.bf16.msra.mxu0 0
      %8243 = vmatpush.bf16.msra.mxu0 0
      %8244 = vmatpush.bf16.msra.mxu0 0
      %8245 = vmatpush.bf16.msra.mxu0 %v8168
      %8246 = vmatmul.bf16.gmra.mxu0 %v8150
      %v8247 = vpop.f32.mrf.mxu0
      %v8248 = vadd.f32 0.0, %v8247
      %v8249 = vpop.f32.mrf.mxu0
      %8250 = vdwg.mxu0
      %8251 = vmatpush.bf16.msra.mxu0 0
      %8252 = vmatpush.bf16.msra.mxu0 0
      %8253 = vmatpush.bf16.msra.mxu0 0
      %8254 = vmatpush.bf16.msra.mxu0 0
      %8255 = vmatpush.bf16.msra.mxu0 0
      %8256 = vmatpush.bf16.msra.mxu0 0
      %8257 = vmatpush.bf16.msra.mxu0 0
      %8258 = vmatpush.bf16.msra.mxu0 %v8171
      %8259 = vmatmul.bf16.gmra.mxu0 %v8150
      %v8260 = vpop.f32.mrf.mxu0
      %v8261 = vadd.f32 0.0, %v8260
      %v8262 = vpop.f32.mrf.mxu0
      %8263 = vdwg.mxu0
      %v8264 = vadd.f32 %v8103, %v8183
      %v8265 = vadd.f32 %v8104, %v8196
      %v8266 = vadd.f32 %v8105, %v8209
      %v8267 = vadd.f32 %v8106, %v8222
      %v8268 = vadd.f32 %v8107, %v8235
      %v8269 = vadd.f32 %v8108, %v8248
      %v8270 = vadd.f32 %v8109, %v8261
      %s8271 = scalar_lea.vmem %s5, 48
      %v8272 = vld [vmem:[%s8271] sm:$0x3]
      %8273 = vst [vmem:[#allocation1] ss:$4 sm:$0xff] %v4423
      %s8274 = scalar_lea.vmem [#allocation1], 32
      %8275 = vst [vmem:[%s8274] ss:$4 sm:$0xff] %v4424
      %v8276 = vld.sshfl [vmem:[#allocation1 + $0x8] sm:$0xff pattern:$0x73625140]
      %v8278 = vld.sshfl [vmem:[#allocation1 + $0x10] sm:$0xff pattern:$0x73625140]
      %v8280 = vld.sshfl [vmem:[#allocation1 + $0x18] sm:$0xff pattern:$0x73625140]
      %v8282 = vld.sshfl [vmem:[#allocation1 + $0x20] sm:$0xff pattern:$0x73625140]
      %v8284 = vld.sshfl [vmem:[#allocation1 + $0x28] sm:$0xff pattern:$0x73625140]
      %v8286 = vld.sshfl [vmem:[#allocation1 + $0x30] sm:$0xff pattern:$0x73625140]
      %v8288 = vld.sshfl [vmem:[#allocation1 + $0x38] sm:$0xff pattern:$0x73625140]
      %8290 = vrot.lane.b32.xlu0 %v8276, 19
      %v8291 = vpop.permute.xlu0 %8290
      %8292 = vrot.lane.b32.xlu0 %v8278, 19
      %v8293 = vpop.permute.xlu0 %8292
      %8294 = vrot.lane.b32.xlu0 %v8280, 19
      %v8295 = vpop.permute.xlu0 %8294
      %8296 = vrot.lane.b32.xlu0 %v8282, 19
      %v8297 = vpop.permute.xlu0 %8296
      %8298 = vrot.lane.b32.xlu0 %v8284, 19
      %v8299 = vpop.permute.xlu0 %8298
      %8300 = vrot.lane.b32.xlu0 %v8286, 19
      %v8301 = vpop.permute.xlu0 %8300
      %8302 = vrot.lane.b32.xlu0 %v8288, 19
      %v8303 = vpop.permute.xlu0 %8302
      %vm8304 = vcmask 154624
      %v8305 = vsel %vm8304, %v8291, %v8293
      %v8306 = vsel %vm8304, %v8293, %v8295
      %v8307 = vsel %vm8304, %v8295, %v8297
      %v8308 = vsel %vm8304, %v8297, %v8299
      %v8309 = vsel %vm8304, %v8299, %v8301
      %v8310 = vsel %vm8304, %v8301, %v8303
      %v8312 = vsel %vm4468, %v8272, 0
      %v8315 = vsel %vm4399, %v8305, 0
      %v8318 = vsel %vm4399, %v8306, 0
      %v8321 = vsel %vm4399, %v8307, 0
      %v8324 = vsel %vm4399, %v8308, 0
      %v8327 = vsel %vm4399, %v8309, 0
      %v8330 = vsel %vm4399, %v8310, 0
      %v8333 = vsel %vm4399, %v8303, 0
      %8335 = vmatpush.bf16.msra.mxu0 0
      %8336 = vmatpush.bf16.msra.mxu0 0
      %8337 = vmatpush.bf16.msra.mxu0 0
      %8338 = vmatpush.bf16.msra.mxu0 0
      %8339 = vmatpush.bf16.msra.mxu0 0
      %8340 = vmatpush.bf16.msra.mxu0 0
      %8341 = vmatpush.bf16.msra.mxu0 0
      %8342 = vmatpush.bf16.msra.mxu0 %v8315
      %8343 = vmatmul.bf16.gmra.mxu0 %v8312
      %v8344 = vpop.f32.mrf.mxu0
      %v8345 = vadd.f32 0.0, %v8344
      %v8346 = vpop.f32.mrf.mxu0
      %8347 = vdwg.mxu0
      %8348 = vmatpush.bf16.msra.mxu0 0
      %8349 = vmatpush.bf16.msra.mxu0 0
      %8350 = vmatpush.bf16.msra.mxu0 0
      %8351 = vmatpush.bf16.msra.mxu0 0
      %8352 = vmatpush.bf16.msra.mxu0 0
      %8353 = vmatpush.bf16.msra.mxu0 0
      %8354 = vmatpush.bf16.msra.mxu0 0
      %8355 = vmatpush.bf16.msra.mxu0 %v8318
      %8356 = vmatmul.bf16.gmra.mxu0 %v8312
      %v8357 = vpop.f32.mrf.mxu0
      %v8358 = vadd.f32 0.0, %v8357
      %v8359 = vpop.f32.mrf.mxu0
      %8360 = vdwg.mxu0
      %8361 = vmatpush.bf16.msra.mxu0 0
      %8362 = vmatpush.bf16.msra.mxu0 0
      %8363 = vmatpush.bf16.msra.mxu0 0
      %8364 = vmatpush.bf16.msra.mxu0 0
      %8365 = vmatpush.bf16.msra.mxu0 0
      %8366 = vmatpush.bf16.msra.mxu0 0
      %8367 = vmatpush.bf16.msra.mxu0 0
      %8368 = vmatpush.bf16.msra.mxu0 %v8321
      %8369 = vmatmul.bf16.gmra.mxu0 %v8312
      %v8370 = vpop.f32.mrf.mxu0
      %v8371 = vadd.f32 0.0, %v8370
      %v8372 = vpop.f32.mrf.mxu0
      %8373 = vdwg.mxu0
      %8374 = vmatpush.bf16.msra.mxu0 0
      %8375 = vmatpush.bf16.msra.mxu0 0
      %8376 = vmatpush.bf16.msra.mxu0 0
      %8377 = vmatpush.bf16.msra.mxu0 0
      %8378 = vmatpush.bf16.msra.mxu0 0
      %8379 = vmatpush.bf16.msra.mxu0 0
      %8380 = vmatpush.bf16.msra.mxu0 0
      %8381 = vmatpush.bf16.msra.mxu0 %v8324
      %8382 = vmatmul.bf16.gmra.mxu0 %v8312
      %v8383 = vpop.f32.mrf.mxu0
      %v8384 = vadd.f32 0.0, %v8383
      %v8385 = vpop.f32.mrf.mxu0
      %8386 = vdwg.mxu0
      %8387 = vmatpush.bf16.msra.mxu0 0
      %8388 = vmatpush.bf16.msra.mxu0 0
      %8389 = vmatpush.bf16.msra.mxu0 0
      %8390 = vmatpush.bf16.msra.mxu0 0
      %8391 = vmatpush.bf16.msra.mxu0 0
      %8392 = vmatpush.bf16.msra.mxu0 0
      %8393 = vmatpush.bf16.msra.mxu0 0
      %8394 = vmatpush.bf16.msra.mxu0 %v8327
      %8395 = vmatmul.bf16.gmra.mxu0 %v8312
      %v8396 = vpop.f32.mrf.mxu0
      %v8397 = vadd.f32 0.0, %v8396
      %v8398 = vpop.f32.mrf.mxu0
      %8399 = vdwg.mxu0
      %8400 = vmatpush.bf16.msra.mxu0 0
      %8401 = vmatpush.bf16.msra.mxu0 0
      %8402 = vmatpush.bf16.msra.mxu0 0
      %8403 = vmatpush.bf16.msra.mxu0 0
      %8404 = vmatpush.bf16.msra.mxu0 0
      %8405 = vmatpush.bf16.msra.mxu0 0
      %8406 = vmatpush.bf16.msra.mxu0 0
      %8407 = vmatpush.bf16.msra.mxu0 %v8330
      %8408 = vmatmul.bf16.gmra.mxu0 %v8312
      %v8409 = vpop.f32.mrf.mxu0
      %v8410 = vadd.f32 0.0, %v8409
      %v8411 = vpop.f32.mrf.mxu0
      %8412 = vdwg.mxu0
      %8413 = vmatpush.bf16.msra.mxu0 0
      %8414 = vmatpush.bf16.msra.mxu0 0
      %8415 = vmatpush.bf16.msra.mxu0 0
      %8416 = vmatpush.bf16.msra.mxu0 0
      %8417 = vmatpush.bf16.msra.mxu0 0
      %8418 = vmatpush.bf16.msra.mxu0 0
      %8419 = vmatpush.bf16.msra.mxu0 0
      %8420 = vmatpush.bf16.msra.mxu0 %v8333
      %8421 = vmatmul.bf16.gmra.mxu0 %v8312
      %v8422 = vpop.f32.mrf.mxu0
      %v8423 = vadd.f32 0.0, %v8422
      %v8424 = vpop.f32.mrf.mxu0
      %8425 = vdwg.mxu0
      %v8426 = vadd.f32 %v8264, %v8345
      %v8427 = vadd.f32 %v8265, %v8358
      %v8428 = vadd.f32 %v8266, %v8371
      %v8429 = vadd.f32 %v8267, %v8384
      %v8430 = vadd.f32 %v8268, %v8397
      %v8431 = vadd.f32 %v8269, %v8410
      %v8432 = vadd.f32 %v8270, %v8423
      %s8433 = scalar_lea.vmem %s5, 50
      %v8434 = vld [vmem:[%s8433] sm:$0x3]
      %8435 = vst [vmem:[#allocation1] ss:$4 sm:$0xff] %v4423
      %s8436 = scalar_lea.vmem [#allocation1], 32
      %8437 = vst [vmem:[%s8436] ss:$4 sm:$0xff] %v4424
      %v8438 = vld.sshfl [vmem:[#allocation1 + $0x8] sm:$0xff pattern:$0x73625140]
      %v8440 = vld.sshfl [vmem:[#allocation1 + $0x10] sm:$0xff pattern:$0x73625140]
      %v8442 = vld.sshfl [vmem:[#allocation1 + $0x18] sm:$0xff pattern:$0x73625140]
      %v8444 = vld.sshfl [vmem:[#allocation1 + $0x20] sm:$0xff pattern:$0x73625140]
      %v8446 = vld.sshfl [vmem:[#allocation1 + $0x28] sm:$0xff pattern:$0x73625140]
      %v8448 = vld.sshfl [vmem:[#allocation1 + $0x30] sm:$0xff pattern:$0x73625140]
      %v8450 = vld.sshfl [vmem:[#allocation1 + $0x38] sm:$0xff pattern:$0x73625140]
      %8452 = vrot.lane.b32.xlu0 %v8438, 18
      %v8453 = vpop.permute.xlu0 %8452
      %8454 = vrot.lane.b32.xlu0 %v8440, 18
      %v8455 = vpop.permute.xlu0 %8454
      %8456 = vrot.lane.b32.xlu0 %v8442, 18
      %v8457 = vpop.permute.xlu0 %8456
      %8458 = vrot.lane.b32.xlu0 %v8444, 18
      %v8459 = vpop.permute.xlu0 %8458
      %8460 = vrot.lane.b32.xlu0 %v8446, 18
      %v8461 = vpop.permute.xlu0 %8460
      %8462 = vrot.lane.b32.xlu0 %v8448, 18
      %v8463 = vpop.permute.xlu0 %8462
      %8464 = vrot.lane.b32.xlu0 %v8450, 18
      %v8465 = vpop.permute.xlu0 %8464
      %v8466 = vsel %vm2067, %v8453, %v8455
      %v8467 = vsel %vm2067, %v8455, %v8457
      %v8468 = vsel %vm2067, %v8457, %v8459
      %v8469 = vsel %vm2067, %v8459, %v8461
      %v8470 = vsel %vm2067, %v8461, %v8463
      %v8471 = vsel %vm2067, %v8463, %v8465
      %v8473 = vsel %vm4468, %v8434, 0
      %v8476 = vsel %vm4399, %v8466, 0
      %v8479 = vsel %vm4399, %v8467, 0
      %v8482 = vsel %vm4399, %v8468, 0
      %v8485 = vsel %vm4399, %v8469, 0
      %v8488 = vsel %vm4399, %v8470, 0
      %v8491 = vsel %vm4399, %v8471, 0
      %v8494 = vsel %vm4399, %v8465, 0
      %8496 = vmatpush.bf16.msra.mxu0 0
      %8497 = vmatpush.bf16.msra.mxu0 0
      %8498 = vmatpush.bf16.msra.mxu0 0
      %8499 = vmatpush.bf16.msra.mxu0 0
      %8500 = vmatpush.bf16.msra.mxu0 0
      %8501 = vmatpush.bf16.msra.mxu0 0
      %8502 = vmatpush.bf16.msra.mxu0 0
      %8503 = vmatpush.bf16.msra.mxu0 %v8476
      %8504 = vmatmul.bf16.gmra.mxu0 %v8473
      %v8505 = vpop.f32.mrf.mxu0
      %v8506 = vadd.f32 0.0, %v8505
      %v8507 = vpop.f32.mrf.mxu0
      %8508 = vdwg.mxu0
      %8509 = vmatpush.bf16.msra.mxu0 0
      %8510 = vmatpush.bf16.msra.mxu0 0
      %8511 = vmatpush.bf16.msra.mxu0 0
      %8512 = vmatpush.bf16.msra.mxu0 0
      %8513 = vmatpush.bf16.msra.mxu0 0
      %8514 = vmatpush.bf16.msra.mxu0 0
      %8515 = vmatpush.bf16.msra.mxu0 0
      %8516 = vmatpush.bf16.msra.mxu0 %v8479
      %8517 = vmatmul.bf16.gmra.mxu0 %v8473
      %v8518 = vpop.f32.mrf.mxu0
      %v8519 = vadd.f32 0.0, %v8518
      %v8520 = vpop.f32.mrf.mxu0
      %8521 = vdwg.mxu0
      %8522 = vmatpush.bf16.msra.mxu0 0
      %8523 = vmatpush.bf16.msra.mxu0 0
      %8524 = vmatpush.bf16.msra.mxu0 0
      %8525 = vmatpush.bf16.msra.mxu0 0
      %8526 = vmatpush.bf16.msra.mxu0 0
      %8527 = vmatpush.bf16.msra.mxu0 0
      %8528 = vmatpush.bf16.msra.mxu0 0
      %8529 = vmatpush.bf16.msra.mxu0 %v8482
      %8530 = vmatmul.bf16.gmra.mxu0 %v8473
      %v8531 = vpop.f32.mrf.mxu0
      %v8532 = vadd.f32 0.0, %v8531
      %v8533 = vpop.f32.mrf.mxu0
      %8534 = vdwg.mxu0
      %8535 = vmatpush.bf16.msra.mxu0 0
      %8536 = vmatpush.bf16.msra.mxu0 0
      %8537 = vmatpush.bf16.msra.mxu0 0
      %8538 = vmatpush.bf16.msra.mxu0 0
      %8539 = vmatpush.bf16.msra.mxu0 0
      %8540 = vmatpush.bf16.msra.mxu0 0
      %8541 = vmatpush.bf16.msra.mxu0 0
      %8542 = vmatpush.bf16.msra.mxu0 %v8485
      %8543 = vmatmul.bf16.gmra.mxu0 %v8473
      %v8544 = vpop.f32.mrf.mxu0
      %v8545 = vadd.f32 0.0, %v8544
      %v8546 = vpop.f32.mrf.mxu0
      %8547 = vdwg.mxu0
      %8548 = vmatpush.bf16.msra.mxu0 0
      %8549 = vmatpush.bf16.msra.mxu0 0
      %8550 = vmatpush.bf16.msra.mxu0 0
      %8551 = vmatpush.bf16.msra.mxu0 0
      %8552 = vmatpush.bf16.msra.mxu0 0
      %8553 = vmatpush.bf16.msra.mxu0 0
      %8554 = vmatpush.bf16.msra.mxu0 0
      %8555 = vmatpush.bf16.msra.mxu0 %v8488
      %8556 = vmatmul.bf16.gmra.mxu0 %v8473
      %v8557 = vpop.f32.mrf.mxu0
      %v8558 = vadd.f32 0.0, %v8557
      %v8559 = vpop.f32.mrf.mxu0
      %8560 = vdwg.mxu0
      %8561 = vmatpush.bf16.msra.mxu0 0
      %8562 = vmatpush.bf16.msra.mxu0 0
      %8563 = vmatpush.bf16.msra.mxu0 0
      %8564 = vmatpush.bf16.msra.mxu0 0
      %8565 = vmatpush.bf16.msra.mxu0 0
      %8566 = vmatpush.bf16.msra.mxu0 0
      %8567 = vmatpush.bf16.msra.mxu0 0
      %8568 = vmatpush.bf16.msra.mxu0 %v8491
      %8569 = vmatmul.bf16.gmra.mxu0 %v8473
      %v8570 = vpop.f32.mrf.mxu0
      %v8571 = vadd.f32 0.0, %v8570
      %v8572 = vpop.f32.mrf.mxu0
      %8573 = vdwg.mxu0
      %8574 = vmatpush.bf16.msra.mxu0 0
      %8575 = vmatpush.bf16.msra.mxu0 0
      %8576 = vmatpush.bf16.msra.mxu0 0
      %8577 = vmatpush.bf16.msra.mxu0 0
      %8578 = vmatpush.bf16.msra.mxu0 0
      %8579 = vmatpush.bf16.msra.mxu0 0
      %8580 = vmatpush.bf16.msra.mxu0 0
      %8581 = vmatpush.bf16.msra.mxu0 %v8494
      %8582 = vmatmul.bf16.gmra.mxu0 %v8473
      %v8583 = vpop.f32.mrf.mxu0
      %v8584 = vadd.f32 0.0, %v8583
      %v8585 = vpop.f32.mrf.mxu0
      %8586 = vdwg.mxu0
      %v8587 = vadd.f32 %v8426, %v8506
      %v8588 = vadd.f32 %v8427, %v8519
      %v8589 = vadd.f32 %v8428, %v8532
      %v8590 = vadd.f32 %v8429, %v8545
      %v8591 = vadd.f32 %v8430, %v8558
      %v8592 = vadd.f32 %v8431, %v8571
      %v8593 = vadd.f32 %v8432, %v8584
      %s8594 = scalar_lea.vmem %s5, 52
      %v8595 = vld [vmem:[%s8594] sm:$0x3]
      %8596 = vst [vmem:[#allocation1] ss:$4 sm:$0xff] %v4423
      %s8597 = scalar_lea.vmem [#allocation1], 32
      %8598 = vst [vmem:[%s8597] ss:$4 sm:$0xff] %v4424
      %v8599 = vld.sshfl [vmem:[#allocation1 + $0x8] sm:$0xff pattern:$0x73625140]
      %v8601 = vld.sshfl [vmem:[#allocation1 + $0x10] sm:$0xff pattern:$0x73625140]
      %v8603 = vld.sshfl [vmem:[#allocation1 + $0x18] sm:$0xff pattern:$0x73625140]
      %v8605 = vld.sshfl [vmem:[#allocation1 + $0x20] sm:$0xff pattern:$0x73625140]
      %v8607 = vld.sshfl [vmem:[#allocation1 + $0x28] sm:$0xff pattern:$0x73625140]
      %v8609 = vld.sshfl [vmem:[#allocation1 + $0x30] sm:$0xff pattern:$0x73625140]
      %v8611 = vld.sshfl [vmem:[#allocation1 + $0x38] sm:$0xff pattern:$0x73625140]
      %8613 = vrot.lane.b32.xlu0 %v8599, 17
      %v8614 = vpop.permute.xlu0 %8613
      %8615 = vrot.lane.b32.xlu0 %v8601, 17
      %v8616 = vpop.permute.xlu0 %8615
      %8617 = vrot.lane.b32.xlu0 %v8603, 17
      %v8618 = vpop.permute.xlu0 %8617
      %8619 = vrot.lane.b32.xlu0 %v8605, 17
      %v8620 = vpop.permute.xlu0 %8619
      %8621 = vrot.lane.b32.xlu0 %v8607, 17
      %v8622 = vpop.permute.xlu0 %8621
      %8623 = vrot.lane.b32.xlu0 %v8609, 17
      %v8624 = vpop.permute.xlu0 %8623
      %8625 = vrot.lane.b32.xlu0 %v8611, 17
      %v8626 = vpop.permute.xlu0 %8625
      %v8627 = vsel %vm2212, %v8614, %v8616
      %v8628 = vsel %vm2212, %v8616, %v8618
      %v8629 = vsel %vm2212, %v8618, %v8620
      %v8630 = vsel %vm2212, %v8620, %v8622
      %v8631 = vsel %vm2212, %v8622, %v8624
      %v8632 = vsel %vm2212, %v8624, %v8626
      %v8634 = vsel %vm4468, %v8595, 0
      %v8637 = vsel %vm4399, %v8627, 0
      %v8640 = vsel %vm4399, %v8628, 0
      %v8643 = vsel %vm4399, %v8629, 0
      %v8646 = vsel %vm4399, %v8630, 0
      %v8649 = vsel %vm4399, %v8631, 0
      %v8652 = vsel %vm4399, %v8632, 0
      %v8655 = vsel %vm4399, %v8626, 0
      %8657 = vmatpush.bf16.msra.mxu0 0
      %8658 = vmatpush.bf16.msra.mxu0 0
      %8659 = vmatpush.bf16.msra.mxu0 0
      %8660 = vmatpush.bf16.msra.mxu0 0
      %8661 = vmatpush.bf16.msra.mxu0 0
      %8662 = vmatpush.bf16.msra.mxu0 0
      %8663 = vmatpush.bf16.msra.mxu0 0
      %8664 = vmatpush.bf16.msra.mxu0 %v8637
      %8665 = vmatmul.bf16.gmra.mxu0 %v8634
      %v8666 = vpop.f32.mrf.mxu0
      %v8667 = vadd.f32 0.0, %v8666
      %v8668 = vpop.f32.mrf.mxu0
      %8669 = vdwg.mxu0
      %8670 = vmatpush.bf16.msra.mxu0 0
      %8671 = vmatpush.bf16.msra.mxu0 0
      %8672 = vmatpush.bf16.msra.mxu0 0
      %8673 = vmatpush.bf16.msra.mxu0 0
      %8674 = vmatpush.bf16.msra.mxu0 0
      %8675 = vmatpush.bf16.msra.mxu0 0
      %8676 = vmatpush.bf16.msra.mxu0 0
      %8677 = vmatpush.bf16.msra.mxu0 %v8640
      %8678 = vmatmul.bf16.gmra.mxu0 %v8634
      %v8679 = vpop.f32.mrf.mxu0
      %v8680 = vadd.f32 0.0, %v8679
      %v8681 = vpop.f32.mrf.mxu0
      %8682 = vdwg.mxu0
      %8683 = vmatpush.bf16.msra.mxu0 0
      %8684 = vmatpush.bf16.msra.mxu0 0
      %8685 = vmatpush.bf16.msra.mxu0 0
      %8686 = vmatpush.bf16.msra.mxu0 0
      %8687 = vmatpush.bf16.msra.mxu0 0
      %8688 = vmatpush.bf16.msra.mxu0 0
      %8689 = vmatpush.bf16.msra.mxu0 0
      %8690 = vmatpush.bf16.msra.mxu0 %v8643
      %8691 = vmatmul.bf16.gmra.mxu0 %v8634
      %v8692 = vpop.f32.mrf.mxu0
      %v8693 = vadd.f32 0.0, %v8692
      %v8694 = vpop.f32.mrf.mxu0
      %8695 = vdwg.mxu0
      %8696 = vmatpush.bf16.msra.mxu0 0
      %8697 = vmatpush.bf16.msra.mxu0 0
      %8698 = vmatpush.bf16.msra.mxu0 0
      %8699 = vmatpush.bf16.msra.mxu0 0
      %8700 = vmatpush.bf16.msra.mxu0 0
      %8701 = vmatpush.bf16.msra.mxu0 0
      %8702 = vmatpush.bf16.msra.mxu0 0
      %8703 = vmatpush.bf16.msra.mxu0 %v8646
      %8704 = vmatmul.bf16.gmra.mxu0 %v8634
      %v8705 = vpop.f32.mrf.mxu0
      %v8706 = vadd.f32 0.0, %v8705
      %v8707 = vpop.f32.mrf.mxu0
      %8708 = vdwg.mxu0
      %8709 = vmatpush.bf16.msra.mxu0 0
      %8710 = vmatpush.bf16.msra.mxu0 0
      %8711 = vmatpush.bf16.msra.mxu0 0
      %8712 = vmatpush.bf16.msra.mxu0 0
      %8713 = vmatpush.bf16.msra.mxu0 0
      %8714 = vmatpush.bf16.msra.mxu0 0
      %8715 = vmatpush.bf16.msra.mxu0 0
      %8716 = vmatpush.bf16.msra.mxu0 %v8649
      %8717 = vmatmul.bf16.gmra.mxu0 %v8634
      %v8718 = vpop.f32.mrf.mxu0
      %v8719 = vadd.f32 0.0, %v8718
      %v8720 = vpop.f32.mrf.mxu0
      %8721 = vdwg.mxu0
      %8722 = vmatpush.bf16.msra.mxu0 0
      %8723 = vmatpush.bf16.msra.mxu0 0
      %8724 = vmatpush.bf16.msra.mxu0 0
      %8725 = vmatpush.bf16.msra.mxu0 0
      %8726 = vmatpush.bf16.msra.mxu0 0
      %8727 = vmatpush.bf16.msra.mxu0 0
      %8728 = vmatpush.bf16.msra.mxu0 0
      %8729 = vmatpush.bf16.msra.mxu0 %v8652
      %8730 = vmatmul.bf16.gmra.mxu0 %v8634
      %v8731 = vpop.f32.mrf.mxu0
      %v8732 = vadd.f32 0.0, %v8731
      %v8733 = vpop.f32.mrf.mxu0
      %8734 = vdwg.mxu0
      %8735 = vmatpush.bf16.msra.mxu0 0
      %8736 = vmatpush.bf16.msra.mxu0 0
      %8737 = vmatpush.bf16.msra.mxu0 0
      %8738 = vmatpush.bf16.msra.mxu0 0
      %8739 = vmatpush.bf16.msra.mxu0 0
      %8740 = vmatpush.bf16.msra.mxu0 0
      %8741 = vmatpush.bf16.msra.mxu0 0
      %8742 = vmatpush.bf16.msra.mxu0 %v8655
      %8743 = vmatmul.bf16.gmra.mxu0 %v8634
      %v8744 = vpop.f32.mrf.mxu0
      %v8745 = vadd.f32 0.0, %v8744
      %v8746 = vpop.f32.mrf.mxu0
      %8747 = vdwg.mxu0
      %v8748 = vadd.f32 %v8587, %v8667
      %v8749 = vadd.f32 %v8588, %v8680
      %v8750 = vadd.f32 %v8589, %v8693
      %v8751 = vadd.f32 %v8590, %v8706
      %v8752 = vadd.f32 %v8591, %v8719
      %v8753 = vadd.f32 %v8592, %v8732
      %v8754 = vadd.f32 %v8593, %v8745
      %v8755 = vmul.f32 %v8748, %v4239
      %v8756 = vmul.f32 %v8749, %v4240
      %v8757 = vmul.f32 %v8750, %v4241
      %v8758 = vmul.f32 %v8751, %v4242
      %v8759 = vmul.f32 %v8752, %v4243
      %v8760 = vmul.f32 %v8753, %v4244
      %v8761 = vmul.f32 %v8754, %v4245
      %v8762 = vsel %vm4260, %v8755, 0.0
      %v8763 = vsel %vm4260, %v8756, 0.0
      %v8764 = vadd.f32 %v8762, %v8763
      %v8765 = vsel %vm4260, %v8757, 0.0
      %v8766 = vadd.f32 %v8764, %v8765
      %v8767 = vsel %vm4260, %v8758, 0.0
      %v8768 = vadd.f32 %v8766, %v8767
      %v8769 = vsel %vm4260, %v8759, 0.0
      %v8770 = vadd.f32 %v8768, %v8769
      %v8771 = vsel %vm4260, %v8760, 0.0
      %v8772 = vadd.f32 %v8770, %v8771
      %v8773 = vsel %vm4272, %v8761, 0.0
      %v8774 = vadd.f32 %v8772, %v8773
      %8775 = vadd.xlane.f32.xlu0 %v8774
      %v8776 = vpop.xlane.xlu0 %8775
      %v8777 = vmul.f32 %v8776, 0.001953125
      %v8778 = vmul.f32 %v8755, %v8748
      %v8779 = vmul.f32 %v8756, %v8749
      %v8780 = vmul.f32 %v8757, %v8750
      %v8781 = vmul.f32 %v8758, %v8751
      %v8782 = vmul.f32 %v8759, %v8752
      %v8783 = vmul.f32 %v8760, %v8753
      %v8784 = vmul.f32 %v8761, %v8754
      %v8785 = vsel %vm4260, %v8778, 0.0
      %v8786 = vsel %vm4260, %v8779, 0.0
      %v8787 = vadd.f32 %v8785, %v8786
      %v8788 = vsel %vm4260, %v8780, 0.0
      %v8789 = vadd.f32 %v8787, %v8788
      %v8790 = vsel %vm4260, %v8781, 0.0
      %v8791 = vadd.f32 %v8789, %v8790
      %v8792 = vsel %vm4260, %v8782, 0.0
      %v8793 = vadd.f32 %v8791, %v8792
      %v8794 = vsel %vm4260, %v8783, 0.0
      %v8795 = vadd.f32 %v8793, %v8794
      %v8796 = vsel %vm4272, %v8784, 0.0
      %v8797 = vadd.f32 %v8795, %v8796
      %8798 = vadd.xlane.f32.xlu0 %v8797
      %v8799 = vpop.xlane.xlu0 %8798
      %v8800 = vmul.f32 %v8799, 0.001953125
      %v8801 = vmul.f32 %v8777, %v8777
      %v8802 = vsub.f32 %v8800, %v8801
      %v8803 = vmax.f32 %v8802, 0.0
      %v8804 = vsub.f32 %v8748, %v8777
      %v8805 = vsub.f32 %v8749, %v8777
      %v8806 = vsub.f32 %v8750, %v8777
      %v8807 = vsub.f32 %v8751, %v8777
      %v8808 = vsub.f32 %v8752, %v8777
      %v8809 = vsub.f32 %v8753, %v8777
      %v8810 = vsub.f32 %v8754, %v8777
      %v8811 = vadd.f32 %v8803, 1e-05
      %v8812 = vrsqrt.pop %v8811
      %v8813 = vmul.f32 %v8812, %v8811
      %v8814 = vmul.f32 %v8813, %v8812
      %v8815 = vmul.f32 0.5, %v8814
      %v8816 = vsub.f32 1.5, %v8815
      %v8817 = vmul.f32 %v8812, %v8816
      %vm8818 = vweird.f32 %v8811
      %vm8819 = vweird.f32 %v8812
      %vm8820 = vmor %vm8818, %vm8819
      %v8821 = vsel %vm8820, %v8812, %v8817
      %v8822 = vmul.f32 %v8804, %v8821
      %v8823 = vmul.f32 %v8805, %v8821
      %v8824 = vmul.f32 %v8806, %v8821
      %v8825 = vmul.f32 %v8807, %v8821
      %v8826 = vmul.f32 %v8808, %v8821
      %v8827 = vmul.f32 %v8809, %v8821
      %v8828 = vmul.f32 %v8810, %v8821
      %v8829 = vld [vmem:[%s6] sm:$0xf]
      %8831 = vset.pattern.permute.xlu0 0
      %8832 = vperm.xlu0 %8831, %v8829
      %v8833 = vpop.permute.xlu0 %8832
      %v8835 = vmul.f32 %v8822, %v8833
      %v8836 = vmul.f32 %v8823, %v8833
      %v8837 = vmul.f32 %v8824, %v8833
      %v8838 = vmul.f32 %v8825, %v8833
      %v8839 = vmul.f32 %v8826, %v8833
      %v8840 = vmul.f32 %v8827, %v8833
      %v8841 = vmul.f32 %v8828, %v8833
      %v8842 = vld [vmem:[%s7] sm:$0xf]
      %8844 = vset.pattern.permute.xlu0 0
      %8845 = vperm.xlu0 %8844, %v8842
      %v8846 = vpop.permute.xlu0 %8845
      %v8848 = vadd.f32 %v8835, %v8846
      %v8849 = vadd.f32 %v8836, %v8846
      %v8850 = vadd.f32 %v8837, %v8846
      %v8851 = vadd.f32 %v8838, %v8846
      %v8852 = vadd.f32 %v8839, %v8846
      %v8853 = vadd.f32 %v8840, %v8846
      %v8854 = vadd.f32 %v8841, %v8846
      %vm8855 = vcmp.ge.f32.partialorder %v8848, 0.0
      %vm8856 = vcmp.ge.f32.partialorder %v8849, 0.0
      %vm8857 = vcmp.ge.f32.partialorder %v8850, 0.0
      %vm8858 = vcmp.ge.f32.partialorder %v8851, 0.0
      %vm8859 = vcmp.ge.f32.partialorder %v8852, 0.0
      %vm8860 = vcmp.ge.f32.partialorder %v8853, 0.0
      %vm8861 = vcmp.ge.f32.partialorder %v8854, 0.0
      %v8862 = vmul.f32 %v8848, 0.01
      %v8863 = vmul.f32 %v8849, 0.01
      %v8864 = vmul.f32 %v8850, 0.01
      %v8865 = vmul.f32 %v8851, 0.01
      %v8866 = vmul.f32 %v8852, 0.01
      %v8867 = vmul.f32 %v8853, 0.01
      %v8868 = vmul.f32 %v8854, 0.01
      %v8869 = vsel %vm8855, %v8848, %v8862
      %v8870 = vsel %vm8856, %v8849, %v8863
      %v8871 = vsel %vm8857, %v8850, %v8864
      %v8872 = vsel %vm8858, %v8851, %v8865
      %v8873 = vsel %vm8859, %v8852, %v8866
      %v8874 = vsel %vm8860, %v8853, %v8867
      %v8875 = vsel %vm8861, %v8854, %v8868
      %v8882 = vrot.slane %v8870, 4
      %v8883 = vrot.slane %v8872, 4
      %v8884 = vrot.slane %v8874, 4
      %v8885 = vsel %vm4260, %v8869, %v8882
      %v8886 = vsel %vm4260, %v8871, %v8883
      %v8887 = vsel %vm4260, %v8873, %v8884
      %8891 = vst [vmem:[%s305] sm:$0xff] %v8885
      %8892 = vst [vmem:[%s305 + $0x8] sm:$0xff] %v8886
      %8893 = vst [vmem:[%s305 + $0x10] sm:$0xff] %v8887
      %8894 = vst.msk [vmem:[%s305 + $0x18] sm:$0xf] %vm4272, %v8875
      %p8895 = scmp.lt.s32.totalorder %s19, 1
      %s8896 = scalar_select %p8895, %s19, 1
      %s8897 = smul.addr %s8896, 7
      %s8898 = smul.addr %s8897, 4
      %s8899 = scalar_lea.vmem %s8, %s8898
      // Predicated region
      $region53: #{upp_forward.3} parent=51 // pred_check
        %p8900 = pneg %p210
      $region54: #{upp_forward.3} parent=51 // pred_check_branch
        %8902 = sbr.rel (%p8900) target = $region56
      $region55: #{upp_forward.3} parent=51 // pred_region
        _
      $region56: #{upp_forward.3} parent=51 // pred_fallthru
        _
    $region52: #{upp_forward.3} parent=5 // pred_fallthru
      _
    %p8903 = scmp.le.s32.totalorder 2, %s14
    // Predicated region
    $region57: #{upp_forward.3} parent=5 // pred_check
      %p8904 = pneg %p8903
    $region58: #{upp_forward.3} parent=5 // pred_check_branch
      %8906 = sbr.rel (%p8904) target = $region60
    $region59: #{upp_forward.3} parent=5 // pred_region
      %s8907 = ssub.s32 %s14, 2
      // Predicated region
      $region61: #{upp_forward.3} parent=59 // pred_check
        %p8908 = pneg %p216
      $region62: #{upp_forward.3} parent=59 // pred_check_branch
        %8910 = sbr.rel (%p8908) target = $region64
      $region63: #{upp_forward.3} parent=59 // pred_region
        %p8911 = scmp.lt.s32.totalorder %s20, 1
        %s8912 = scalar_select %p8911, %s20, 1
        %s8913 = smul.addr %s8912, 7
        %s8914 = smul.addr %s8913, 4
        %s8915 = scalar_lea.vmem %s8, %s8914
      $region64: #{upp_forward.3} parent=59 // pred_fallthru
        _
    $region60: #{upp_forward.3} parent=5 // pred_fallthru
      _
  $region6: #{upp_forward.3} parent=0 // loop_footer
    %s18 = sadd.s32 1, %s14
  $region7: #{upp_forward.3} parent=0 // loop_footer_branch
    %13 = sbr.rel target = $region3
  $region8: #{upp_forward.3} parent=0 // loop_exit
    _

</llo_original>
